<compile_context>
chip_gen: v5e
topology: v5e:2x2
jax: 0.10.0
libtpu: 0.0.40
codegen_flags: <defaults>
</compile_context>

<pallas_src>
import jax
import jax.numpy as jnp
from jax import lax
from jax.experimental import pallas as pl
from jax.experimental.pallas import tpu as pltpu


def _vmem_limit():
    # generation-aware scoped-VMEM cap: ~3/4 of physical with headroom
    # (v7x 64 MiB -> 48 MiB ; v5e/v6e 128 MiB -> 96 MiB); safe fallback 48 MiB.
    try:
        cap = int(pltpu.get_tpu_info().vmem_capacity_bytes)
    except Exception:
        cap = 64 * 1024 * 1024
    return max(32 * 1024 * 1024, min((cap * 3) // 4, 96 * 1024 * 1024))


_VMEM_LIMIT = _vmem_limit()


# ---------------------------------------------------------------------------
# Pallas kernels
# ---------------------------------------------------------------------------
def _conv1_pool_relu_kernel(slab_ref, w_ref, b_ref, o_ref):
    """conv1 (as matmul on im2col rows) + 2x2 maxpool + bias + ReLU.

    slab: (4, bm, 300) bf16 -- per pool-window corner, 12 conv patches (one
          image-row of pooled pixels) concatenated per row.
    w: (300, 120) bf16 block-diagonal (12 copies of the 25x10 conv1 weight),
    b: (1, 120) f32, o: (bm, 120) bf16 (lane-dense).
    relu(maxpool(conv(x)+b)) == relu(max_corner(P_c @ W) + b)  (bias is
    corner-invariant).
    """
    w = w_ref[...]
    s = jnp.maximum(
        jnp.maximum(jnp.dot(slab_ref[0], w, preferred_element_type=jnp.float32),
                    jnp.dot(slab_ref[1], w, preferred_element_type=jnp.float32)),
        jnp.maximum(jnp.dot(slab_ref[2], w, preferred_element_type=jnp.float32),
                    jnp.dot(slab_ref[3], w, preferred_element_type=jnp.float32)))
    o_ref[...] = jnp.maximum(s + b_ref[...], 0.0).astype(o_ref.dtype)


def _conv2_fc_head_kernel(slab_ref, w2_ref, b2_ref, wf1_ref, bf1_ref,
                          wf2_ref, bf2_ref, o_ref):
    """conv2 + maxpool + ReLU + fc1 + ReLU + fc2 + log_softmax, fully fused.

    slab: (4, bi, 4000) bf16 -- per corner, the 16 pooled-pixel patches of one
          image concatenated per row.
    w2:   (4000, 320) bf16 block-diagonal (16 copies of 250x20 conv2 weight),
          so the conv2+pool+ReLU result is directly the flattened (bi, 320)
          activation in (h, w, c) order -- no in-kernel reshape needed.
    """
    w2 = w2_ref[...]
    s = jnp.maximum(
        jnp.maximum(jnp.dot(slab_ref[0], w2, preferred_element_type=jnp.float32),
                    jnp.dot(slab_ref[1], w2, preferred_element_type=jnp.float32)),
        jnp.maximum(jnp.dot(slab_ref[2], w2, preferred_element_type=jnp.float32),
                    jnp.dot(slab_ref[3], w2, preferred_element_type=jnp.float32)))
    flat = jnp.maximum(s + b2_ref[...], 0.0)                         # (bi, 320) f32
    h = jnp.dot(flat.astype(jnp.bfloat16), wf1_ref[...],
                preferred_element_type=jnp.float32) + bf1_ref[...]
    h = jnp.maximum(h, 0.0)                                          # (bi, 50)
    logits = jnp.dot(h.astype(jnp.bfloat16), wf2_ref[...],
                     preferred_element_type=jnp.float32) + bf2_ref[...]
    m = jnp.max(logits, axis=-1, keepdims=True)
    z = logits - m
    o_ref[...] = z - jnp.log(jnp.sum(jnp.exp(z), axis=-1, keepdims=True))


# ---------------------------------------------------------------------------
# Pallas wrappers: row/image-tiled grid ("parallel" -> megacore on v7x)
# ---------------------------------------------------------------------------
def _pick_block(total, want):
    if total <= want:
        return total                       # single full block at small batch
    return max((want // 16) * 16, 16)      # 16-aligned (bf16 sublane tiling)


def conv1_stage(slab, w, b, *, block_rows=2048):
    _, m, k = slab.shape
    c = w.shape[1]
    bm = _pick_block(m, block_rows)
    return pl.pallas_call(
        _conv1_pool_relu_kernel,
        out_shape=jax.ShapeDtypeStruct((m, c), jnp.bfloat16),
        grid=(pl.cdiv(m, bm),),
        in_specs=[pl.BlockSpec((4, bm, k), lambda i: (0, i, 0)),
                  pl.BlockSpec(w.shape, lambda i: (0, 0)),
                  pl.BlockSpec(b.shape, lambda i: (0, 0))],
        out_specs=pl.BlockSpec((bm, c), lambda i: (i, 0)),
        compiler_params=pltpu.CompilerParams(
            dimension_semantics=("parallel",),
            vmem_limit_bytes=_VMEM_LIMIT),
    )(slab, w, b)


def conv2_fc_stage(slab, w2, b2, wf1, bf1, wf2, bf2, *, block_images=256):
    _, n, k = slab.shape
    bi = _pick_block(n, block_images)
    full = lambda a: pl.BlockSpec(a.shape, lambda i: (0, 0))
    return pl.pallas_call(
        _conv2_fc_head_kernel,
        out_shape=jax.ShapeDtypeStruct((n, 10), jnp.float32),
        grid=(pl.cdiv(n, bi),),
        in_specs=[pl.BlockSpec((4, bi, k), lambda i: (0, i, 0)),
                  full(w2), full(b2), full(wf1), full(bf1), full(wf2), full(bf2)],
        out_specs=pl.BlockSpec((bi, 10), lambda i: (i, 0)),
        compiler_params=pltpu.CompilerParams(
            dimension_semantics=("parallel",),
            vmem_limit_bytes=_VMEM_LIMIT),
    )(slab, w2, b2, wf1, bf1, wf2, bf2)


# ---------------------------------------------------------------------------
# im2col via pure strided slicing (data movement only, no XLA convs)
# ---------------------------------------------------------------------------
def _conv1_slab(xh):
    """xh: (N, 28, 28, 1) bf16 -> (4, N*12, 300) bf16.
    Row = (image, pooled-row y); features = (x, ky, kx) for the 12 pooled
    pixels of that row, one slab per 2x2 pool corner."""
    n = xh.shape[0]
    corners = []
    for dy in (0, 1):
        for dx in (0, 1):
            feats = []
            for ky in range(5):
                for kx in range(5):
                    feats.append(xh[:, dy + ky: dy + ky + 24: 2,
                                    dx + kx: dx + kx + 24: 2, 0])   # (N,12,12)
            p = jnp.stack(feats, axis=-1)                           # (N,12,12,25)
            corners.append(p.reshape(n * 12, 12 * 25))
    return jnp.stack(corners, axis=0)                               # (4, N*12, 300)


def _conv2_slab(h1):
    """h1: (N, 12, 12, 10) bf16 -> (4, N, 4000) bf16.
    Row = image; features = (py, px, ky, kx, c) i.e. the 16 pooled-pixel
    patches concatenated, one slab per 2x2 pool corner."""
    n = h1.shape[0]
    corners = []
    for dy in (0, 1):
        for dx in (0, 1):
            feats = []
            for ky in range(5):
                for kx in range(5):
                    feats.append(h1[:, dy + ky: dy + ky + 8: 2,
                                    dx + kx: dx + kx + 8: 2, :])    # (N,4,4,10)
            p = jnp.stack(feats, axis=-2)                           # (N,4,4,25,10)
            corners.append(p.reshape(n, 4 * 4 * 25 * 10))
    return jnp.stack(corners, axis=0)                               # (4, N, 4000)


# ---------------------------------------------------------------------------
# Forward pass (mirrors torch Net.forward, eval mode)
# ---------------------------------------------------------------------------
def net_forward(x, p):
    n = x.shape[0]
    xh = jnp.transpose(x, (0, 2, 3, 1)).astype(jnp.bfloat16)        # (N,28,28,1)

    # conv1 + maxpool(2) + ReLU (fused); lane-dense (N*12, 120) bf16 output
    h1 = conv1_stage(_conv1_slab(xh), p['w1big'], p['b1big'])
    h1 = h1.reshape(n, 12, 12, 10)                                  # free view

    # conv2 + Dropout2d(identity) + maxpool(2) + ReLU + fc1 + ReLU
    # + dropout(identity) + fc2 + log_softmax, all in one fused kernel
    return conv2_fc_stage(_conv2_slab(h1), p['w2big'], p['b2big'],
                          p['wf1'], p['bf1'], p['wf2'], p['bf2'])


# ---------------------------------------------------------------------------
# Params: PyTorch-like init, then a one-time repack into kernel-friendly slabs
# ---------------------------------------------------------------------------
def init_params(key):
    keys = jax.random.split(key, 8)

    def u(k, shape, fan_in):
        bound = 1.0 / float(fan_in) ** 0.5
        return jax.random.uniform(k, shape, jnp.float32, -bound, bound)

    return (u(keys[0], (10, 1, 5, 5), 25), u(keys[1], (10,), 25),
            u(keys[2], (20, 10, 5, 5), 250), u(keys[3], (20,), 250),
            u(keys[4], (50, 320), 320), u(keys[5], (50,), 320),
            u(keys[6], (10, 50), 50), u(keys[7], (10,), 50))


def prepare_params(params):
    (W1, b1, W2, b2, Wfc1, bfc1, Wfc2, bfc2) = params
    bf16, f32 = jnp.bfloat16, jnp.float32
    # conv weights in (ky, kx, c_in) feature order (matches slice-based im2col)
    w1_mat = jnp.transpose(W1, (2, 3, 1, 0)).reshape(25, 10)
    w2_mat = jnp.transpose(W2, (2, 3, 1, 0)).reshape(250, 20)
    # block-diagonal expansion: 12 pixels / image-row for conv1, 16 pixels
    # (the whole 4x4 pooled map) for conv2 -> lane-dense outputs, fc fusion
    w1big = jnp.kron(jnp.eye(12, dtype=f32), w1_mat).astype(bf16)    # (300, 120)
    w2big = jnp.kron(jnp.eye(16, dtype=f32), w2_mat).astype(bf16)    # (4000, 320)
    b1big = jnp.tile(b1.reshape(1, 10), (1, 12)).astype(f32)         # (1, 120)
    b2big = jnp.tile(b2.reshape(1, 20), (1, 16)).astype(f32)         # (1, 320)
    # fold the channel-major .view(-1, 320) permutation into the fc1 weight
    wf1 = jnp.transpose(Wfc1.reshape(50, 20, 4, 4), (2, 3, 1, 0)).reshape(320, 50)
    return {
        'w1big': w1big, 'b1big': b1big,
        'w2big': w2big, 'b2big': b2big,
        'wf1': wf1.astype(bf16), 'bf1': bfc1.reshape(1, 50).astype(f32),
        'wf2': Wfc2.T.astype(bf16), 'bf2': bfc2.reshape(1, 10).astype(f32),
    }


# ---------------------------------------------------------------------------
# Pure-JAX f32 reference (for a numeric sanity check only)
# ---------------------------------------------------------------------------
def _reference_forward(x, raw):
    W1, b1, W2, b2, Wfc1, bfc1, Wfc2, bfc2 = raw

    def conv(a, w):
        return lax.conv_general_dilated(a, w, (1, 1), 'VALID',
                                        dimension_numbers=('NCHW', 'OIHW', 'NCHW'),
                                        precision=lax.Precision.HIGHEST)

    def pool(a):
        return lax.reduce_window(a, -jnp.inf, lax.max, (1, 1, 2, 2),
                                 (1, 1, 2, 2), 'VALID')

    y = jax.nn.relu(pool(conv(x, W1) + b1.reshape(1, -1, 1, 1)))
    y = jax.nn.relu(pool(conv(y, W2) + b2.reshape(1, -1, 1, 1)))
    y = y.reshape(y.shape[0], -1)
    y = jax.nn.relu(y @ Wfc1.T + bfc1)
    y = y @ Wfc2.T + bfc2
    return jax.nn.log_softmax(y, axis=1)


if __name__ == "__main__":
    k_params, k_x = jax.random.split(jax.random.PRNGKey(0))
    raw = init_params(k_params)
    params = prepare_params(raw)
    # MNIST-style input: the .view(-1, 320) in forward implies 1x28x28 inputs.
    x = jax.random.normal(k_x, (2, 1, 28, 28), jnp.float32)

    fwd = jax.jit(net_forward)
    out = jax.block_until_ready(fwd(x, params))

    assert out.shape == (2, 10)
    # log_softmax rows should sum (in prob space) to 1
    assert bool(jnp.all(jnp.abs(jnp.sum(jnp.exp(out), axis=1) - 1.0) < 1e-3))
    # loose-tolerance check vs f32 reference (kernels use bf16 MXU operands)
    ref = _reference_forward(x, raw)
    assert float(jnp.max(jnp.abs(out - ref))) < 0.2
    # TODO(synk): Dropout2d / F.dropout implemented as identity (eval mode only).
    print("KERNEL_OK")
</pallas_src>

<mosaic_0001>
module attributes {stable_mosaic.version = 11 : i64} {
  func.func @_conv1_pool_relu_kernel(%arg0: i32, %arg1: memref<4x24x300xbf16, #tpu.memory_space<vmem>>, %arg2: memref<300x120xbf16, #tpu.memory_space<vmem>>, %arg3: memref<1x120xf32, #tpu.memory_space<vmem>>, %arg4: memref<24x120xbf16, #tpu.memory_space<vmem>>) attributes {dimension_semantics = [#tpu.dimension_semantics<parallel>], iteration_bounds = array<i64: 1>, scalar_prefetch = 0 : i64, scratch_operands = 0 : i64, tpu.core_type = #tpu.core_type<tc>, window_params = [{transform_indices = @transform_0, window_bounds = array<i64: 4, 24, 300>}, {pipeline_mode = #tpu.pipeline_mode<synchronous>, transform_indices = @transform_1, window_bounds = array<i64: 300, 120>}, {pipeline_mode = #tpu.pipeline_mode<synchronous>, transform_indices = @transform_2, window_bounds = array<i64: 1, 120>}, {transform_indices = @transform_3, window_bounds = array<i64: 24, 120>}]} {
    %c0 = arith.constant 0 : index
    %c0_0 = arith.constant 0 : index
    %0 = vector.load %arg2[%c0, %c0_0] : memref<300x120xbf16, #tpu.memory_space<vmem>>, vector<300x120xbf16>
    %c0_1 = arith.constant 0 : index
    %c0_2 = arith.constant 0 : index
    %c0_3 = arith.constant 0 : index
    %1 = vector.load %arg1[%c0_1, %c0_2, %c0_3] : memref<4x24x300xbf16, #tpu.memory_space<vmem>>, vector<1x24x300xbf16>
    %2 = vector.shape_cast %1 : vector<1x24x300xbf16> to vector<24x300xbf16>
    %cst = arith.constant dense<0.000000e+00> : vector<24x120xf32>
    %3 = tpu.matmul %2, %0, %cst {dimension_numbers = #tpu.dot_dimension_numbers<[1], [0], [0], [1], [0, 0, 1, 1], [], []>} : vector<24x300xbf16>, vector<300x120xbf16>, vector<24x120xf32> -> vector<24x120xf32>
    %c1 = arith.constant 1 : index
    %c0_4 = arith.constant 0 : index
    %c0_5 = arith.constant 0 : index
    %4 = vector.load %arg1[%c1, %c0_4, %c0_5] : memref<4x24x300xbf16, #tpu.memory_space<vmem>>, vector<1x24x300xbf16>
    %5 = vector.shape_cast %4 : vector<1x24x300xbf16> to vector<24x300xbf16>
    %cst_6 = arith.constant dense<0.000000e+00> : vector<24x120xf32>
    %6 = tpu.matmul %5, %0, %cst_6 {dimension_numbers = #tpu.dot_dimension_numbers<[1], [0], [0], [1], [0, 0, 1, 1], [], []>} : vector<24x300xbf16>, vector<300x120xbf16>, vector<24x120xf32> -> vector<24x120xf32>
    %7 = arith.maximumf %3, %6 : vector<24x120xf32>
    %c2 = arith.constant 2 : index
    %c0_7 = arith.constant 0 : index
    %c0_8 = arith.constant 0 : index
    %8 = vector.load %arg1[%c2, %c0_7, %c0_8] : memref<4x24x300xbf16, #tpu.memory_space<vmem>>, vector<1x24x300xbf16>
    %9 = vector.shape_cast %8 : vector<1x24x300xbf16> to vector<24x300xbf16>
    %cst_9 = arith.constant dense<0.000000e+00> : vector<24x120xf32>
    %10 = tpu.matmul %9, %0, %cst_9 {dimension_numbers = #tpu.dot_dimension_numbers<[1], [0], [0], [1], [0, 0, 1, 1], [], []>} : vector<24x300xbf16>, vector<300x120xbf16>, vector<24x120xf32> -> vector<24x120xf32>
    %c3 = arith.constant 3 : index
    %c0_10 = arith.constant 0 : index
    %c0_11 = arith.constant 0 : index
    %11 = vector.load %arg1[%c3, %c0_10, %c0_11] : memref<4x24x300xbf16, #tpu.memory_space<vmem>>, vector<1x24x300xbf16>
    %12 = vector.shape_cast %11 : vector<1x24x300xbf16> to vector<24x300xbf16>
    %cst_12 = arith.constant dense<0.000000e+00> : vector<24x120xf32>
    %13 = tpu.matmul %12, %0, %cst_12 {dimension_numbers = #tpu.dot_dimension_numbers<[1], [0], [0], [1], [0, 0, 1, 1], [], []>} : vector<24x300xbf16>, vector<300x120xbf16>, vector<24x120xf32> -> vector<24x120xf32>
    %14 = arith.maximumf %10, %13 : vector<24x120xf32>
    %15 = arith.maximumf %7, %14 : vector<24x120xf32>
    %c0_13 = arith.constant 0 : index
    %c0_14 = arith.constant 0 : index
    %16 = vector.load %arg3[%c0_13, %c0_14] : memref<1x120xf32, #tpu.memory_space<vmem>>, vector<1x120xf32>
    %17 = vector.broadcast %16 : vector<1x120xf32> to vector<24x120xf32>
    %18 = arith.addf %15, %17 : vector<24x120xf32>
    %cst_15 = arith.constant 0.000000e+00 : f32
    %19 = vector.broadcast %cst_15 : f32 to vector<24x120xf32>
    %20 = arith.maximumf %18, %19 : vector<24x120xf32>
    %21 = arith.truncf %20 : vector<24x120xf32> to vector<24x120xbf16>
    %c0_16 = arith.constant 0 : index
    %c0_17 = arith.constant 0 : index
    %22 = vector.load %arg4[%c0_16, %c0_17] : memref<24x120xbf16, #tpu.memory_space<vmem>>, vector<24x120xbf16>
    tpu.vector_store %arg4[%c0_16, %c0_17], %21 {strides = array<i32>} : memref<24x120xbf16, #tpu.memory_space<vmem>>, vector<24x120xbf16>,
    return
  }
  func.func @transform_0(%arg0: i32) -> (i32, i32, i32) {
    %c0_i32 = arith.constant 0 : i32
    %c0_i32_0 = arith.constant 0 : i32
    %c0_i32_1 = arith.constant 0 : i32
    return %c0_i32, %arg0, %c0_i32_0 : i32, i32, i32
  }
  func.func @transform_1(%arg0: i32) -> (i32, i32) {
    %c0_i32 = arith.constant 0 : i32
    %c0_i32_0 = arith.constant 0 : i32
    %c0_i32_1 = arith.constant 0 : i32
    return %c0_i32, %c0_i32_0 : i32, i32
  }
  func.func @transform_2(%arg0: i32) -> (i32, i32) {
    %c0_i32 = arith.constant 0 : i32
    %c0_i32_0 = arith.constant 0 : i32
    %c0_i32_1 = arith.constant 0 : i32
    return %c0_i32, %c0_i32_0 : i32, i32
  }
  func.func @transform_3(%arg0: i32) -> (i32, i32) {
    %c0_i32 = arith.constant 0 : i32
    %c0_i32_0 = arith.constant 0 : i32
    return %arg0, %c0_i32 : i32, i32
  }
}

module attributes {stable_mosaic.version = 11 : i64} {
  func.func @_conv2_fc_head_kernel(%arg0: i32, %arg1: memref<4x2x4000xbf16, #tpu.memory_space<vmem>>, %arg2: memref<4000x320xbf16, #tpu.memory_space<vmem>>, %arg3: memref<1x320xf32, #tpu.memory_space<vmem>>, %arg4: memref<320x50xbf16, #tpu.memory_space<vmem>>, %arg5: memref<1x50xf32, #tpu.memory_space<vmem>>, %arg6: memref<50x10xbf16, #tpu.memory_space<vmem>>, %arg7: memref<1x10xf32, #tpu.memory_space<vmem>>, %arg8: memref<2x10xf32, #tpu.memory_space<vmem>>) attributes {dimension_semantics = [#tpu.dimension_semantics<parallel>], iteration_bounds = array<i64: 1>, scalar_prefetch = 0 : i64, scratch_operands = 0 : i64, tpu.core_type = #tpu.core_type<tc>, window_params = [{transform_indices = @transform_0, window_bounds = array<i64: 4, 2, 4000>}, {pipeline_mode = #tpu.pipeline_mode<synchronous>, transform_indices = @transform_1, window_bounds = array<i64: 4000, 320>}, {pipeline_mode = #tpu.pipeline_mode<synchronous>, transform_indices = @transform_2, window_bounds = array<i64: 1, 320>}, {pipeline_mode = #tpu.pipeline_mode<synchronous>, transform_indices = @transform_3, window_bounds = array<i64: 320, 50>}, {pipeline_mode = #tpu.pipeline_mode<synchronous>, transform_indices = @transform_4, window_bounds = array<i64: 1, 50>}, {pipeline_mode = #tpu.pipeline_mode<synchronous>, transform_indices = @transform_5, window_bounds = array<i64: 50, 10>}, {pipeline_mode = #tpu.pipeline_mode<synchronous>, transform_indices = @transform_6, window_bounds = array<i64: 1, 10>}, {transform_indices = @transform_7, window_bounds = array<i64: 2, 10>}]} {
    %c0 = arith.constant 0 : index
    %c0_0 = arith.constant 0 : index
    %0 = vector.load %arg2[%c0, %c0_0] : memref<4000x320xbf16, #tpu.memory_space<vmem>>, vector<4000x320xbf16>
    %c0_1 = arith.constant 0 : index
    %c0_2 = arith.constant 0 : index
    %c0_3 = arith.constant 0 : index
    %1 = vector.load %arg1[%c0_1, %c0_2, %c0_3] : memref<4x2x4000xbf16, #tpu.memory_space<vmem>>, vector<1x2x4000xbf16>
    %2 = vector.shape_cast %1 : vector<1x2x4000xbf16> to vector<2x4000xbf16>
    %cst = arith.constant dense<0.000000e+00> : vector<2x320xf32>
    %3 = tpu.matmul %2, %0, %cst {dimension_numbers = #tpu.dot_dimension_numbers<[1], [0], [0], [1], [0, 0, 1, 1], [], []>} : vector<2x4000xbf16>, vector<4000x320xbf16>, vector<2x320xf32> -> vector<2x320xf32>
    %c1 = arith.constant 1 : index
    %c0_4 = arith.constant 0 : index
    %c0_5 = arith.constant 0 : index
    %4 = vector.load %arg1[%c1, %c0_4, %c0_5] : memref<4x2x4000xbf16, #tpu.memory_space<vmem>>, vector<1x2x4000xbf16>
    %5 = vector.shape_cast %4 : vector<1x2x4000xbf16> to vector<2x4000xbf16>
    %cst_6 = arith.constant dense<0.000000e+00> : vector<2x320xf32>
    %6 = tpu.matmul %5, %0, %cst_6 {dimension_numbers = #tpu.dot_dimension_numbers<[1], [0], [0], [1], [0, 0, 1, 1], [], []>} : vector<2x4000xbf16>, vector<4000x320xbf16>, vector<2x320xf32> -> vector<2x320xf32>
    %7 = arith.maximumf %3, %6 : vector<2x320xf32>
    %c2 = arith.constant 2 : index
    %c0_7 = arith.constant 0 : index
    %c0_8 = arith.constant 0 : index
    %8 = vector.load %arg1[%c2, %c0_7, %c0_8] : memref<4x2x4000xbf16, #tpu.memory_space<vmem>>, vector<1x2x4000xbf16>
    %9 = vector.shape_cast %8 : vector<1x2x4000xbf16> to vector<2x4000xbf16>
    %cst_9 = arith.constant dense<0.000000e+00> : vector<2x320xf32>
    %10 = tpu.matmul %9, %0, %cst_9 {dimension_numbers = #tpu.dot_dimension_numbers<[1], [0], [0], [1], [0, 0, 1, 1], [], []>} : vector<2x4000xbf16>, vector<4000x320xbf16>, vector<2x320xf32> -> vector<2x320xf32>
    %c3 = arith.constant 3 : index
    %c0_10 = arith.constant 0 : index
    %c0_11 = arith.constant 0 : index
    %11 = vector.load %arg1[%c3, %c0_10, %c0_11] : memref<4x2x4000xbf16, #tpu.memory_space<vmem>>, vector<1x2x4000xbf16>
    %12 = vector.shape_cast %11 : vector<1x2x4000xbf16> to vector<2x4000xbf16>
    %cst_12 = arith.constant dense<0.000000e+00> : vector<2x320xf32>
    %13 = tpu.matmul %12, %0, %cst_12 {dimension_numbers = #tpu.dot_dimension_numbers<[1], [0], [0], [1], [0, 0, 1, 1], [], []>} : vector<2x4000xbf16>, vector<4000x320xbf16>, vector<2x320xf32> -> vector<2x320xf32>
    %14 = arith.maximumf %10, %13 : vector<2x320xf32>
    %15 = arith.maximumf %7, %14 : vector<2x320xf32>
    %c0_13 = arith.constant 0 : index
    %c0_14 = arith.constant 0 : index
    %16 = vector.load %arg3[%c0_13, %c0_14] : memref<1x320xf32, #tpu.memory_space<vmem>>, vector<1x320xf32>
    %17 = vector.broadcast %16 : vector<1x320xf32> to vector<2x320xf32>
    %18 = arith.addf %15, %17 : vector<2x320xf32>
    %cst_15 = arith.constant 0.000000e+00 : f32
    %19 = vector.broadcast %cst_15 : f32 to vector<2x320xf32>
    %20 = arith.maximumf %18, %19 : vector<2x320xf32>
    %21 = arith.truncf %20 : vector<2x320xf32> to vector<2x320xbf16>
    %c0_16 = arith.constant 0 : index
    %c0_17 = arith.constant 0 : index
    %22 = vector.load %arg4[%c0_16, %c0_17] : memref<320x50xbf16, #tpu.memory_space<vmem>>, vector<320x50xbf16>
    %cst_18 = arith.constant dense<0.000000e+00> : vector<2x50xf32>
    %23 = tpu.matmul %21, %22, %cst_18 {dimension_numbers = #tpu.dot_dimension_numbers<[1], [0], [0], [1], [0, 0, 1, 1], [], []>} : vector<2x320xbf16>, vector<320x50xbf16>, vector<2x50xf32> -> vector<2x50xf32>
    %c0_19 = arith.constant 0 : index
    %c0_20 = arith.constant 0 : index
    %24 = vector.load %arg5[%c0_19, %c0_20] : memref<1x50xf32, #tpu.memory_space<vmem>>, vector<1x50xf32>
    %25 = vector.broadcast %24 : vector<1x50xf32> to vector<2x50xf32>
    %26 = arith.addf %23, %25 : vector<2x50xf32>
    %cst_21 = arith.constant 0.000000e+00 : f32
    %27 = vector.broadcast %cst_21 : f32 to vector<2x50xf32>
    %28 = arith.maximumf %26, %27 : vector<2x50xf32>
    %29 = arith.truncf %28 : vector<2x50xf32> to vector<2x50xbf16>
    %c0_22 = arith.constant 0 : index
    %c0_23 = arith.constant 0 : index
    %30 = vector.load %arg6[%c0_22, %c0_23] : memref<50x10xbf16, #tpu.memory_space<vmem>>, vector<50x10xbf16>
    %cst_24 = arith.constant dense<0.000000e+00> : vector<2x10xf32>
    %31 = tpu.matmul %29, %30, %cst_24 {dimension_numbers = #tpu.dot_dimension_numbers<[1], [0], [0], [1], [0, 0, 1, 1], [], []>} : vector<2x50xbf16>, vector<50x10xbf16>, vector<2x10xf32> -> vector<2x10xf32>
    %c0_25 = arith.constant 0 : index
    %c0_26 = arith.constant 0 : index
    %32 = vector.load %arg7[%c0_25, %c0_26] : memref<1x10xf32, #tpu.memory_space<vmem>>, vector<1x10xf32>
    %33 = vector.broadcast %32 : vector<1x10xf32> to vector<2x10xf32>
    %34 = arith.addf %31, %33 : vector<2x10xf32>
    %cst_27 = arith.constant dense<0xFF800000> : vector<2xf32>
    %35 = vector.multi_reduction <maximumf>, %34, %cst_27 [1] : vector<2x10xf32> to vector<2xf32>
    %36 = vector.shape_cast %35 : vector<2xf32> to vector<2x1xf32>
    %37 = vector.broadcast %36 : vector<2x1xf32> to vector<2x10xf32>
    %38 = arith.subf %34, %37 : vector<2x10xf32>
    %39 = math.exp %38 : vector<2x10xf32>
    %cst_28 = arith.constant dense<0.000000e+00> : vector<2xf32>
    %40 = vector.multi_reduction <add>, %39, %cst_28 [1] : vector<2x10xf32> to vector<2xf32>
    %41 = vector.shape_cast %40 : vector<2xf32> to vector<2x1xf32>
    %42 = math.log %41 : vector<2x1xf32>
    %43 = vector.broadcast %42 : vector<2x1xf32> to vector<2x10xf32>
    %44 = arith.subf %38, %43 : vector<2x10xf32>
    %c0_29 = arith.constant 0 : index
    %c0_30 = arith.constant 0 : index
    %45 = vector.load %arg8[%c0_29, %c0_30] : memref<2x10xf32, #tpu.memory_space<vmem>>, vector<2x10xf32>
    tpu.vector_store %arg8[%c0_29, %c0_30], %44 {strides = array<i32>} : memref<2x10xf32, #tpu.memory_space<vmem>>, vector<2x10xf32>,
    return
  }
  func.func @transform_0(%arg0: i32) -> (i32, i32, i32) {
    %c0_i32 = arith.constant 0 : i32
    %c0_i32_0 = arith.constant 0 : i32
    %c0_i32_1 = arith.constant 0 : i32
    return %c0_i32, %arg0, %c0_i32_0 : i32, i32, i32
  }
  func.func @transform_1(%arg0: i32) -> (i32, i32) {
    %c0_i32 = arith.constant 0 : i32
    %c0_i32_0 = arith.constant 0 : i32
    %c0_i32_1 = arith.constant 0 : i32
    return %c0_i32, %c0_i32_0 : i32, i32
  }
  func.func @transform_2(%arg0: i32) -> (i32, i32) {
    %c0_i32 = arith.constant 0 : i32
    %c0_i32_0 = arith.constant 0 : i32
    %c0_i32_1 = arith.constant 0 : i32
    return %c0_i32, %c0_i32_0 : i32, i32
  }
  func.func @transform_3(%arg0: i32) -> (i32, i32) {
    %c0_i32 = arith.constant 0 : i32
    %c0_i32_0 = arith.constant 0 : i32
    %c0_i32_1 = arith.constant 0 : i32
    return %c0_i32, %c0_i32_0 : i32, i32
  }
  func.func @transform_4(%arg0: i32) -> (i32, i32) {
    %c0_i32 = arith.constant 0 : i32
    %c0_i32_0 = arith.constant 0 : i32
    %c0_i32_1 = arith.constant 0 : i32
    return %c0_i32, %c0_i32_0 : i32, i32
  }
  func.func @transform_5(%arg0: i32) -> (i32, i32) {
    %c0_i32 = arith.constant 0 : i32
    %c0_i32_0 = arith.constant 0 : i32
    %c0_i32_1 = arith.constant 0 : i32
    return %c0_i32, %c0_i32_0 : i32, i32
  }
  func.func @transform_6(%arg0: i32) -> (i32, i32) {
    %c0_i32 = arith.constant 0 : i32
    %c0_i32_0 = arith.constant 0 : i32
    %c0_i32_1 = arith.constant 0 : i32
    return %c0_i32, %c0_i32_0 : i32, i32
  }
  func.func @transform_7(%arg0: i32) -> (i32, i32) {
    %c0_i32 = arith.constant 0 : i32
    %c0_i32_0 = arith.constant 0 : i32
    return %arg0, %c0_i32 : i32, i32
  }
}

</mosaic_0001>

<llo_original>
// kernel: net_forward.2
$region0: #{net_forward.2}
  #allocation0 [shape = 'u32[]', space=smem, size = 0x4, offset = 0x4, fixed_abs, tag = 'smem constant byte address 0x4 - core index']
  #allocation1 [shape = 'u32[72,128]{1,0:T(1,128)}', space=vmem, size = 0x9000, scoped, tag = 'internal scratch']
  %s0 = inlined_call_operand.vmem [shape: bf16[4,24,300], index: 0, kind: input, shape index: {}]
  %s1 = inlined_call_operand.hbm [shape: bf16[300,120], index: 1, kind: input, shape index: {}]
  %s2 = inlined_call_operand.hbm [shape: f32[1,120], index: 2, kind: input, shape index: {}]
  %s3 = inlined_call_operand.vmem [shape: bf16[24,120], index: 3, kind: output, shape index: {}]
  %s4 = sld [smem:[#allocation0]]
  $region30: #{net_forward.2} parent=0
    _
  %s6 = ssub.s32 1, %s4
  %s7 = scalar_select 0, %s6, %s4
  $region1: #{net_forward.2} parent=0
    #allocation2 [shape = 'u8[77824]{0}', space=vmem, size = 0x13000, scoped, tag = 'input window, operand 1, single buffered']
    #allocation3 [shape = 's32[1]{0}', space=sflag, size = 0x4, scoped, tag = 'scoped memory for net_forward.2']
    #allocation4 [shape = 'u8[512]{0}', space=vmem, size = 0x400, scoped, tag = 'input window, operand 2, single buffered']
    #allocation5 [shape = 's32[1]{0}', space=sflag, size = 0x4, scoped, tag = 'scoped memory for net_forward.2']
    %8 = vsyncpa [#allocation3], 0
    %9 = vsyncpa [#allocation5], 0
    // Predicated region
    $region2: #{net_forward.2} parent=1 // pred_check
      _
    $region3: #{net_forward.2} parent=1 // pred_check_branch
      %11 = sbr.rel (0) target = $region5
    $region4: #{net_forward.2} parent=1 // pred_region
      _
    $region5: #{net_forward.2} parent=1 // pred_fallthru
      _
    // Predicated region
    $region6: #{net_forward.2} parent=1 // pred_check
      _
    $region7: #{net_forward.2} parent=1 // pred_check_branch
      %13 = sbr.rel (0) target = $region9
    $region8: #{net_forward.2} parent=1 // pred_region
      %15 = vsyncadd [#allocation3], 0
      %s16 = sshll.u32 %s1, 4
      %s17 = int_to_ptr.hbm [resolvable:$true] %s16
      %s18 = sshll.u32 [#allocation2], 4
      %s19 = int_to_ptr.vmem [resolvable:$true] %s18
      %24 = dma.hbm_to_vmem [thread:$0]  %s17, 2432, %s19, [#allocation3], 64, 64, 4
    $region9: #{net_forward.2} parent=1 // pred_fallthru
      _
    // Predicated region
    $region10: #{net_forward.2} parent=1 // pred_check
      _
    $region11: #{net_forward.2} parent=1 // pred_check_branch
      %26 = sbr.rel (0) target = $region13
    $region12: #{net_forward.2} parent=1 // pred_region
      %28 = vsyncadd [#allocation5], 0
      %s30 = sshll.u32 %s2, 4
      %s31 = int_to_ptr.hbm [resolvable:$true] %s30
      %s32 = sshll.u32 [#allocation4], 4
      %s33 = int_to_ptr.vmem [resolvable:$true] %s32
      %35 = dma.hbm_to_vmem [thread:$0]  %s31, 16, %s33, [#allocation5]
    $region13: #{net_forward.2} parent=1 // pred_fallthru
      _
    // Predicated region
    $region14: #{net_forward.2} parent=1 // pred_check
      _
    $region15: #{net_forward.2} parent=1 // pred_check_branch
      %37 = sbr.rel (0) target = $region17
    $region16: #{net_forward.2} parent=1 // pred_region
      %39 = dma.done [#allocation3], 2432
    $region17: #{net_forward.2} parent=1 // pred_fallthru
      _
    // Predicated region
    $region18: #{net_forward.2} parent=1 // pred_check
      _
    $region19: #{net_forward.2} parent=1 // pred_check_branch
      %41 = sbr.rel (0) target = $region21
    $region20: #{net_forward.2} parent=1 // pred_region
      %43 = dma.done [#allocation5], 16
    $region21: #{net_forward.2} parent=1 // pred_fallthru
      _
    %v45 = vld [vmem:[#allocation2] sm:$0xf]
    %v46 = vld [vmem:[#allocation2 + $0x4] sm:$0xf]
    %v47 = vld [vmem:[#allocation2 + $0x8] sm:$0xf]
    %v48 = vld [vmem:[#allocation2 + $0xc] sm:$0xf]
    %v49 = vld [vmem:[#allocation2 + $0x10] sm:$0xf]
    %v50 = vld [vmem:[#allocation2 + $0x14] sm:$0xf]
    %v51 = vld [vmem:[#allocation2 + $0x18] sm:$0xf]
    %v52 = vld [vmem:[#allocation2 + $0x1c] sm:$0xf]
    %v53 = vld [vmem:[#allocation2 + $0x20] sm:$0xf]
    %v54 = vld [vmem:[#allocation2 + $0x24] sm:$0xf]
    %v55 = vld [vmem:[#allocation2 + $0x28] sm:$0xf]
    %v56 = vld [vmem:[#allocation2 + $0x2c] sm:$0xf]
    %v57 = vld [vmem:[#allocation2 + $0x30] sm:$0xf]
    %v58 = vld [vmem:[#allocation2 + $0x34] sm:$0xf]
    %v59 = vld [vmem:[#allocation2 + $0x38] sm:$0xf]
    %v60 = vld [vmem:[#allocation2 + $0x3c] sm:$0xf]
    %v61 = vld [vmem:[#allocation2 + $0x40] sm:$0xf]
    %v62 = vld [vmem:[#allocation2 + $0x44] sm:$0xf]
    %v63 = vld [vmem:[#allocation2 + $0x48] sm:$0xf]
    %v64 = vld [vmem:[#allocation2 + $0x4c] sm:$0xf]
    %v65 = vld [vmem:[#allocation2 + $0x50] sm:$0xf]
    %v66 = vld [vmem:[#allocation2 + $0x54] sm:$0xf]
    %v67 = vld [vmem:[#allocation2 + $0x58] sm:$0xf]
    %v68 = vld [vmem:[#allocation2 + $0x5c] sm:$0xf]
    %v69 = vld [vmem:[#allocation2 + $0x60] sm:$0xf]
    %v70 = vld [vmem:[#allocation2 + $0x64] sm:$0xf]
    %v71 = vld [vmem:[#allocation2 + $0x68] sm:$0xf]
    %v72 = vld [vmem:[#allocation2 + $0x6c] sm:$0xf]
    %v73 = vld [vmem:[#allocation2 + $0x70] sm:$0xf]
    %v74 = vld [vmem:[#allocation2 + $0x74] sm:$0xf]
    %v75 = vld [vmem:[#allocation2 + $0x78] sm:$0xf]
    %v76 = vld [vmem:[#allocation2 + $0x7c] sm:$0xf]
    %v77 = vld [vmem:[#allocation2 + $0x80] sm:$0xf]
    %v78 = vld [vmem:[#allocation2 + $0x84] sm:$0xf]
    %v79 = vld [vmem:[#allocation2 + $0x88] sm:$0xf]
    %v80 = vld [vmem:[#allocation2 + $0x8c] sm:$0xf]
    %v81 = vld [vmem:[#allocation2 + $0x90] sm:$0xf]
    %v82 = vld [vmem:[#allocation2 + $0x94] sm:$0x3]
    %v83 = vld [vmem:[%s0] sm:$0xff]
    %v84 = vld [vmem:[%s0 + $0x8] sm:$0xf]
    %v85 = vld [vmem:[%s0 + $0xc] sm:$0xff]
    %v86 = vld [vmem:[%s0 + $0x14] sm:$0xf]
    %v87 = vld [vmem:[%s0 + $0x18] sm:$0xff]
    %v88 = vld [vmem:[%s0 + $0x20] sm:$0xf]
    %v95 = vunpack.c.l.b16 %v83
    %v96 = vunpack.c.h.b16 %v83
    %v97 = vunpack.c.l.b16 %v84
    %v98 = vunpack.c.l.b16 %v85
    %v99 = vunpack.c.h.b16 %v85
    %v100 = vunpack.c.l.b16 %v86
    %v101 = vunpack.c.l.b16 %v87
    %v102 = vunpack.c.h.b16 %v87
    %v103 = vunpack.c.l.b16 %v88
    %v104 = vpack.c.b16 %v98, %v95
    %v105 = vpack.c.b16 %v99, %v96
    %v106 = vpack.c.b16 %v100, %v97
    %v107 = vpack.c.b16 %v101, %v101
    %v108 = vpack.c.b16 %v102, %v102
    %v109 = vpack.c.b16 %v103, %v103
    %v152 = vunpack.c.l.b16 %v45
    %v153 = vunpack.c.l.b16 %v46
    %v154 = vunpack.c.l.b16 %v47
    %v155 = vunpack.c.l.b16 %v48
    %v156 = vunpack.c.l.b16 %v49
    %v157 = vunpack.c.l.b16 %v50
    %v158 = vunpack.c.l.b16 %v51
    %v159 = vunpack.c.l.b16 %v52
    %v160 = vunpack.c.l.b16 %v53
    %v161 = vunpack.c.l.b16 %v54
    %v162 = vunpack.c.l.b16 %v55
    %v163 = vunpack.c.l.b16 %v56
    %v164 = vunpack.c.l.b16 %v57
    %v165 = vunpack.c.l.b16 %v58
    %v166 = vunpack.c.l.b16 %v59
    %v167 = vunpack.c.l.b16 %v60
    %v168 = vunpack.c.l.b16 %v61
    %v169 = vunpack.c.l.b16 %v62
    %v170 = vunpack.c.l.b16 %v63
    %v171 = vunpack.c.l.b16 %v64
    %v172 = vunpack.c.l.b16 %v65
    %v173 = vunpack.c.l.b16 %v66
    %v174 = vunpack.c.l.b16 %v67
    %v175 = vunpack.c.l.b16 %v68
    %v176 = vunpack.c.l.b16 %v69
    %v177 = vunpack.c.l.b16 %v70
    %v178 = vunpack.c.l.b16 %v71
    %v179 = vunpack.c.l.b16 %v72
    %v180 = vunpack.c.l.b16 %v73
    %v181 = vunpack.c.l.b16 %v74
    %v182 = vunpack.c.l.b16 %v75
    %v183 = vunpack.c.l.b16 %v76
    %v184 = vunpack.c.l.b16 %v77
    %v185 = vunpack.c.l.b16 %v78
    %v186 = vunpack.c.l.b16 %v79
    %v187 = vunpack.c.l.b16 %v80
    %v188 = vunpack.c.l.b16 %v81
    %v189 = vunpack.c.l.b16 %v82
    %v190 = vpack.c.b16 %v153, %v152
    %v191 = vpack.c.b16 %v155, %v154
    %v192 = vpack.c.b16 %v157, %v156
    %v193 = vpack.c.b16 %v159, %v158
    %v194 = vpack.c.b16 %v161, %v160
    %v195 = vpack.c.b16 %v163, %v162
    %v196 = vpack.c.b16 %v165, %v164
    %v197 = vpack.c.b16 %v167, %v166
    %v198 = vpack.c.b16 %v169, %v168
    %v199 = vpack.c.b16 %v171, %v170
    %v200 = vpack.c.b16 %v173, %v172
    %v201 = vpack.c.b16 %v175, %v174
    %v202 = vpack.c.b16 %v177, %v176
    %v203 = vpack.c.b16 %v179, %v178
    %v204 = vpack.c.b16 %v181, %v180
    %v205 = vpack.c.b16 %v183, %v182
    %v206 = vpack.c.b16 %v185, %v184
    %v207 = vpack.c.b16 %v187, %v186
    %v208 = vpack.c.b16 %v189, %v188
    %vm227 = vcmask 359424
    %v229 = vsel %vm227, %v106, 0
    %v232 = vsel %vm227, %v109, 0
    %vm234 = vcmask 1045504
    %v236 = vsel %vm234, %v208, 0
    %238 = vmatpush.bf16.msra.mxu0 %v197
    %239 = vmatpush.bf16.msra.mxu0 %v196
    %240 = vmatpush.bf16.msra.mxu0 %v195
    %241 = vmatpush.bf16.msra.mxu0 %v194
    %242 = vmatpush.bf16.msra.mxu0 %v193
    %243 = vmatpush.bf16.msra.mxu0 %v192
    %244 = vmatpush.bf16.msra.mxu0 %v191
    %245 = vmatpush.bf16.msra.mxu0 %v190
    %246 = vmatmul.bf16.gmra.mxu0 %v104
    %v247 = vpop.f32.mrf.mxu0
    %v248 = vadd.f32 0.0, %v247
    %v249 = vpop.f32.mrf.mxu0
    %v250 = vadd.f32 0.0, %v249
    %251 = vmatmul.bf16.gmra.mxu0 %v107
    %v252 = vpop.f32.mrf.mxu0
    %v253 = vadd.f32 0.0, %v252
    %v254 = vpop.f32.mrf.mxu0
    %255 = vdwg.mxu0
    %256 = vmatpush.bf16.msra.mxu0 %v205
    %257 = vmatpush.bf16.msra.mxu0 %v204
    %258 = vmatpush.bf16.msra.mxu0 %v203
    %259 = vmatpush.bf16.msra.mxu0 %v202
    %260 = vmatpush.bf16.msra.mxu0 %v201
    %261 = vmatpush.bf16.msra.mxu0 %v200
    %262 = vmatpush.bf16.msra.mxu0 %v199
    %263 = vmatpush.bf16.msra.mxu0 %v198
    %264 = vmatmul.bf16.gmra.mxu0 %v105
    %v265 = vpop.f32.mrf.mxu0
    %v266 = vadd.f32 %v248, %v265
    %v267 = vpop.f32.mrf.mxu0
    %v268 = vadd.f32 %v250, %v267
    %269 = vmatmul.bf16.gmra.mxu0 %v108
    %v270 = vpop.f32.mrf.mxu0
    %v271 = vadd.f32 %v253, %v270
    %v272 = vpop.f32.mrf.mxu0
    %273 = vdwg.mxu0
    %274 = vmatpush.bf16.msra.mxu0 0
    %275 = vmatpush.bf16.msra.mxu0 0
    %276 = vmatpush.bf16.msra.mxu0 0
    %277 = vmatpush.bf16.msra.mxu0 0
    %278 = vmatpush.bf16.msra.mxu0 0
    %279 = vmatpush.bf16.msra.mxu0 %v236
    %280 = vmatpush.bf16.msra.mxu0 %v207
    %281 = vmatpush.bf16.msra.mxu0 %v206
    %282 = vmatmul.bf16.gmra.mxu0 %v229
    %v283 = vpop.f32.mrf.mxu0
    %v284 = vadd.f32 %v266, %v283
    %v285 = vpop.f32.mrf.mxu0
    %v286 = vadd.f32 %v268, %v285
    %287 = vmatmul.bf16.gmra.mxu0 %v232
    %v288 = vpop.f32.mrf.mxu0
    %v289 = vadd.f32 %v271, %v288
    %v290 = vpop.f32.mrf.mxu0
    %291 = vdwg.mxu0
    %s292 = scalar_lea.vmem %s0, 36
    %v293 = vld [vmem:[%s292] sm:$0xff]
    %v294 = vld [vmem:[%s292 + $0x8] sm:$0xf]
    %v295 = vld [vmem:[%s292 + $0xc] sm:$0xff]
    %v296 = vld [vmem:[%s292 + $0x14] sm:$0xf]
    %v297 = vld [vmem:[%s292 + $0x18] sm:$0xff]
    %v298 = vld [vmem:[%s292 + $0x20] sm:$0xf]
    %v305 = vunpack.c.l.b16 %v293
    %v306 = vunpack.c.h.b16 %v293
    %v307 = vunpack.c.l.b16 %v294
    %v308 = vunpack.c.l.b16 %v295
    %v309 = vunpack.c.h.b16 %v295
    %v310 = vunpack.c.l.b16 %v296
    %v311 = vunpack.c.l.b16 %v297
    %v312 = vunpack.c.h.b16 %v297
    %v313 = vunpack.c.l.b16 %v298
    %v314 = vpack.c.b16 %v308, %v305
    %v315 = vpack.c.b16 %v309, %v306
    %v316 = vpack.c.b16 %v310, %v307
    %v317 = vpack.c.b16 %v311, %v311
    %v318 = vpack.c.b16 %v312, %v312
    %v319 = vpack.c.b16 %v313, %v313
    %v325 = vsel %vm227, %v316, 0
    %v328 = vsel %vm227, %v319, 0
    %330 = vmatpush.bf16.msra.mxu0 %v197
    %331 = vmatpush.bf16.msra.mxu0 %v196
    %332 = vmatpush.bf16.msra.mxu0 %v195
    %333 = vmatpush.bf16.msra.mxu0 %v194
    %334 = vmatpush.bf16.msra.mxu0 %v193
    %335 = vmatpush.bf16.msra.mxu0 %v192
    %336 = vmatpush.bf16.msra.mxu0 %v191
    %337 = vmatpush.bf16.msra.mxu0 %v190
    %338 = vmatmul.bf16.gmra.mxu0 %v314
    %v339 = vpop.f32.mrf.mxu0
    %v340 = vadd.f32 0.0, %v339
    %v341 = vpop.f32.mrf.mxu0
    %v342 = vadd.f32 0.0, %v341
    %343 = vmatmul.bf16.gmra.mxu0 %v317
    %v344 = vpop.f32.mrf.mxu0
    %v345 = vadd.f32 0.0, %v344
    %v346 = vpop.f32.mrf.mxu0
    %347 = vdwg.mxu0
    %348 = vmatpush.bf16.msra.mxu0 %v205
    %349 = vmatpush.bf16.msra.mxu0 %v204
    %350 = vmatpush.bf16.msra.mxu0 %v203
    %351 = vmatpush.bf16.msra.mxu0 %v202
    %352 = vmatpush.bf16.msra.mxu0 %v201
    %353 = vmatpush.bf16.msra.mxu0 %v200
    %354 = vmatpush.bf16.msra.mxu0 %v199
    %355 = vmatpush.bf16.msra.mxu0 %v198
    %356 = vmatmul.bf16.gmra.mxu0 %v315
    %v357 = vpop.f32.mrf.mxu0
    %v358 = vadd.f32 %v340, %v357
    %v359 = vpop.f32.mrf.mxu0
    %v360 = vadd.f32 %v342, %v359
    %361 = vmatmul.bf16.gmra.mxu0 %v318
    %v362 = vpop.f32.mrf.mxu0
    %v363 = vadd.f32 %v345, %v362
    %v364 = vpop.f32.mrf.mxu0
    %365 = vdwg.mxu0
    %366 = vmatpush.bf16.msra.mxu0 0
    %367 = vmatpush.bf16.msra.mxu0 0
    %368 = vmatpush.bf16.msra.mxu0 0
    %369 = vmatpush.bf16.msra.mxu0 0
    %370 = vmatpush.bf16.msra.mxu0 0
    %371 = vmatpush.bf16.msra.mxu0 %v236
    %372 = vmatpush.bf16.msra.mxu0 %v207
    %373 = vmatpush.bf16.msra.mxu0 %v206
    %374 = vmatmul.bf16.gmra.mxu0 %v325
    %v375 = vpop.f32.mrf.mxu0
    %v376 = vadd.f32 %v358, %v375
    %v377 = vpop.f32.mrf.mxu0
    %v378 = vadd.f32 %v360, %v377
    %379 = vmatmul.bf16.gmra.mxu0 %v328
    %v380 = vpop.f32.mrf.mxu0
    %v381 = vadd.f32 %v363, %v380
    %v382 = vpop.f32.mrf.mxu0
    %383 = vdwg.mxu0
    %v384 = vmax.f32 %v284, %v376
    %v385 = vmax.f32 %v286, %v378
    %v386 = vmax.f32 %v289, %v381
    %s387 = scalar_lea.vmem %s0, 72
    %v388 = vld [vmem:[%s387] sm:$0xff]
    %v389 = vld [vmem:[%s387 + $0x8] sm:$0xf]
    %v390 = vld [vmem:[%s387 + $0xc] sm:$0xff]
    %v391 = vld [vmem:[%s387 + $0x14] sm:$0xf]
    %v392 = vld [vmem:[%s387 + $0x18] sm:$0xff]
    %v393 = vld [vmem:[%s387 + $0x20] sm:$0xf]
    %v400 = vunpack.c.l.b16 %v388
    %v401 = vunpack.c.h.b16 %v388
    %v402 = vunpack.c.l.b16 %v389
    %v403 = vunpack.c.l.b16 %v390
    %v404 = vunpack.c.h.b16 %v390
    %v405 = vunpack.c.l.b16 %v391
    %v406 = vunpack.c.l.b16 %v392
    %v407 = vunpack.c.h.b16 %v392
    %v408 = vunpack.c.l.b16 %v393
    %v409 = vpack.c.b16 %v403, %v400
    %v410 = vpack.c.b16 %v404, %v401
    %v411 = vpack.c.b16 %v405, %v402
    %v412 = vpack.c.b16 %v406, %v406
    %v413 = vpack.c.b16 %v407, %v407
    %v414 = vpack.c.b16 %v408, %v408
    %v420 = vsel %vm227, %v411, 0
    %v423 = vsel %vm227, %v414, 0
    %425 = vmatpush.bf16.msra.mxu0 %v197
    %426 = vmatpush.bf16.msra.mxu0 %v196
    %427 = vmatpush.bf16.msra.mxu0 %v195
    %428 = vmatpush.bf16.msra.mxu0 %v194
    %429 = vmatpush.bf16.msra.mxu0 %v193
    %430 = vmatpush.bf16.msra.mxu0 %v192
    %431 = vmatpush.bf16.msra.mxu0 %v191
    %432 = vmatpush.bf16.msra.mxu0 %v190
    %433 = vmatmul.bf16.gmra.mxu0 %v409
    %v434 = vpop.f32.mrf.mxu0
    %v435 = vadd.f32 0.0, %v434
    %v436 = vpop.f32.mrf.mxu0
    %v437 = vadd.f32 0.0, %v436
    %438 = vmatmul.bf16.gmra.mxu0 %v412
    %v439 = vpop.f32.mrf.mxu0
    %v440 = vadd.f32 0.0, %v439
    %v441 = vpop.f32.mrf.mxu0
    %442 = vdwg.mxu0
    %443 = vmatpush.bf16.msra.mxu0 %v205
    %444 = vmatpush.bf16.msra.mxu0 %v204
    %445 = vmatpush.bf16.msra.mxu0 %v203
    %446 = vmatpush.bf16.msra.mxu0 %v202
    %447 = vmatpush.bf16.msra.mxu0 %v201
    %448 = vmatpush.bf16.msra.mxu0 %v200
    %449 = vmatpush.bf16.msra.mxu0 %v199
    %450 = vmatpush.bf16.msra.mxu0 %v198
    %451 = vmatmul.bf16.gmra.mxu0 %v410
    %v452 = vpop.f32.mrf.mxu0
    %v453 = vadd.f32 %v435, %v452
    %v454 = vpop.f32.mrf.mxu0
    %v455 = vadd.f32 %v437, %v454
    %456 = vmatmul.bf16.gmra.mxu0 %v413
    %v457 = vpop.f32.mrf.mxu0
    %v458 = vadd.f32 %v440, %v457
    %v459 = vpop.f32.mrf.mxu0
    %460 = vdwg.mxu0
    %461 = vmatpush.bf16.msra.mxu0 0
    %462 = vmatpush.bf16.msra.mxu0 0
    %463 = vmatpush.bf16.msra.mxu0 0
    %464 = vmatpush.bf16.msra.mxu0 0
    %465 = vmatpush.bf16.msra.mxu0 0
    %466 = vmatpush.bf16.msra.mxu0 %v236
    %467 = vmatpush.bf16.msra.mxu0 %v207
    %468 = vmatpush.bf16.msra.mxu0 %v206
    %469 = vmatmul.bf16.gmra.mxu0 %v420
    %v470 = vpop.f32.mrf.mxu0
    %v471 = vadd.f32 %v453, %v470
    %v472 = vpop.f32.mrf.mxu0
    %v473 = vadd.f32 %v455, %v472
    %474 = vmatmul.bf16.gmra.mxu0 %v423
    %v475 = vpop.f32.mrf.mxu0
    %v476 = vadd.f32 %v458, %v475
    %v477 = vpop.f32.mrf.mxu0
    %478 = vdwg.mxu0
    %s479 = scalar_lea.vmem %s0, 108
    %v480 = vld [vmem:[%s479] sm:$0xff]
    %v481 = vld [vmem:[%s479 + $0x8] sm:$0xf]
    %v482 = vld [vmem:[%s479 + $0xc] sm:$0xff]
    %v483 = vld [vmem:[%s479 + $0x14] sm:$0xf]
    %v484 = vld [vmem:[%s479 + $0x18] sm:$0xff]
    %v485 = vld [vmem:[%s479 + $0x20] sm:$0xf]
    %v492 = vunpack.c.l.b16 %v480
    %v493 = vunpack.c.h.b16 %v480
    %v494 = vunpack.c.l.b16 %v481
    %v495 = vunpack.c.l.b16 %v482
    %v496 = vunpack.c.h.b16 %v482
    %v497 = vunpack.c.l.b16 %v483
    %v498 = vunpack.c.l.b16 %v484
    %v499 = vunpack.c.h.b16 %v484
    %v500 = vunpack.c.l.b16 %v485
    %v501 = vpack.c.b16 %v495, %v492
    %v502 = vpack.c.b16 %v496, %v493
    %v503 = vpack.c.b16 %v497, %v494
    %v504 = vpack.c.b16 %v498, %v498
    %v505 = vpack.c.b16 %v499, %v499
    %v506 = vpack.c.b16 %v500, %v500
    %v512 = vsel %vm227, %v503, 0
    %v515 = vsel %vm227, %v506, 0
    %517 = vmatpush.bf16.msra.mxu0 %v197
    %518 = vmatpush.bf16.msra.mxu0 %v196
    %519 = vmatpush.bf16.msra.mxu0 %v195
    %520 = vmatpush.bf16.msra.mxu0 %v194
    %521 = vmatpush.bf16.msra.mxu0 %v193
    %522 = vmatpush.bf16.msra.mxu0 %v192
    %523 = vmatpush.bf16.msra.mxu0 %v191
    %524 = vmatpush.bf16.msra.mxu0 %v190
    %525 = vmatmul.bf16.gmra.mxu0 %v501
    %v526 = vpop.f32.mrf.mxu0
    %v527 = vadd.f32 0.0, %v526
    %v528 = vpop.f32.mrf.mxu0
    %v529 = vadd.f32 0.0, %v528
    %530 = vmatmul.bf16.gmra.mxu0 %v504
    %v531 = vpop.f32.mrf.mxu0
    %v532 = vadd.f32 0.0, %v531
    %v533 = vpop.f32.mrf.mxu0
    %534 = vdwg.mxu0
    %535 = vmatpush.bf16.msra.mxu0 %v205
    %536 = vmatpush.bf16.msra.mxu0 %v204
    %537 = vmatpush.bf16.msra.mxu0 %v203
    %538 = vmatpush.bf16.msra.mxu0 %v202
    %539 = vmatpush.bf16.msra.mxu0 %v201
    %540 = vmatpush.bf16.msra.mxu0 %v200
    %541 = vmatpush.bf16.msra.mxu0 %v199
    %542 = vmatpush.bf16.msra.mxu0 %v198
    %543 = vmatmul.bf16.gmra.mxu0 %v502
    %v544 = vpop.f32.mrf.mxu0
    %v545 = vadd.f32 %v527, %v544
    %v546 = vpop.f32.mrf.mxu0
    %v547 = vadd.f32 %v529, %v546
    %548 = vmatmul.bf16.gmra.mxu0 %v505
    %v549 = vpop.f32.mrf.mxu0
    %v550 = vadd.f32 %v532, %v549
    %v551 = vpop.f32.mrf.mxu0
    %552 = vdwg.mxu0
    %553 = vmatpush.bf16.msra.mxu0 0
    %554 = vmatpush.bf16.msra.mxu0 0
    %555 = vmatpush.bf16.msra.mxu0 0
    %556 = vmatpush.bf16.msra.mxu0 0
    %557 = vmatpush.bf16.msra.mxu0 0
    %558 = vmatpush.bf16.msra.mxu0 %v236
    %559 = vmatpush.bf16.msra.mxu0 %v207
    %560 = vmatpush.bf16.msra.mxu0 %v206
    %561 = vmatmul.bf16.gmra.mxu0 %v512
    %v562 = vpop.f32.mrf.mxu0
    %v563 = vadd.f32 %v545, %v562
    %v564 = vpop.f32.mrf.mxu0
    %v565 = vadd.f32 %v547, %v564
    %566 = vmatmul.bf16.gmra.mxu0 %v515
    %v567 = vpop.f32.mrf.mxu0
    %v568 = vadd.f32 %v550, %v567
    %v569 = vpop.f32.mrf.mxu0
    %570 = vdwg.mxu0
    %v571 = vmax.f32 %v471, %v563
    %v572 = vmax.f32 %v473, %v565
    %v573 = vmax.f32 %v476, %v568
    %v574 = vmax.f32 %v384, %v571
    %v575 = vmax.f32 %v385, %v572
    %v576 = vmax.f32 %v386, %v573
    %v577 = vld [vmem:[#allocation4] sm:$0x1]
    %v579 = vperm.slane %v577, 0
    %v581 = vadd.f32 %v574, %v579
    %v582 = vadd.f32 %v575, %v579
    %v583 = vadd.f32 %v576, %v579
    %v584 = vmax.f32 %v581, 0.0
    %v585 = vmax.f32 %v582, 0.0
    %v586 = vmax.f32 %v583, 0.0
    %v587 = vpack.c.bf16 %v584, %v584
    %v588 = vpack.c.bf16 %v585, %v585
    %v589 = vpack.c.bf16 %v586, %v586
    %vm590 = vcmask 977920
    %591 = vst.msk [vmem:[%s3] sm:$0xf] %vm590, %v587
    %592 = vst.msk [vmem:[%s3 + $0x4] sm:$0xf] %vm590, %v588
    %593 = vst.msk [vmem:[%s3 + $0x8] sm:$0xf] %vm590, %v589
    // Predicated region
    $region22: #{net_forward.2} parent=1 // pred_check
      _
    $region23: #{net_forward.2} parent=1 // pred_check_branch
      %595 = sbr.rel (0) target = $region25
    $region24: #{net_forward.2} parent=1 // pred_region
      _
    $region25: #{net_forward.2} parent=1 // pred_fallthru
      _
    // Predicated region
    $region26: #{net_forward.2} parent=1 // pred_check
      _
    $region27: #{net_forward.2} parent=1 // pred_check_branch
      %597 = sbr.rel (0) target = $region29
    $region28: #{net_forward.2} parent=1 // pred_region
      _
    $region29: #{net_forward.2} parent=1 // pred_fallthru
      _
    %598 = vsyncpa [#allocation3], 1
    %599 = vsyncpa [#allocation5], 1

// kernel: net_forward.3
$region0: #{net_forward.3}
  #allocation0 [shape = 'u32[]', space=smem, size = 0x4, offset = 0x4, fixed_abs, tag = 'smem constant byte address 0x4 - core index']
  #allocation1 [shape = 'u32[72,128]{1,0:T(1,128)}', space=vmem, size = 0x9000, scoped, tag = 'internal scratch']
  %s0 = inlined_call_operand.vmem [shape: bf16[4,2,4000], index: 0, kind: input, shape index: {}]
  %s1 = inlined_call_operand.vmem [shape: bf16[4000,320], index: 1, kind: input, shape index: {}]
  %s2 = inlined_call_operand.vmem [shape: f32[1,320], index: 2, kind: input, shape index: {}]
  %s3 = inlined_call_operand.vmem [shape: bf16[320,50], index: 3, kind: input, shape index: {}]
  %s4 = inlined_call_operand.vmem [shape: f32[1,50], index: 4, kind: input, shape index: {}]
  %s5 = inlined_call_operand.vmem [shape: bf16[50,10], index: 5, kind: input, shape index: {}]
  %s6 = inlined_call_operand.vmem [shape: f32[1,10], index: 6, kind: input, shape index: {}]
  %s7 = inlined_call_operand.hbm [shape: f32[2,10], index: 7, kind: output, shape index: {}]
  %s8 = sld [smem:[#allocation0]]
  $region38: #{net_forward.3} parent=0
    _
  %s10 = ssub.s32 1, %s8
  %s11 = scalar_select 0, %s10, %s8
  $region1: #{net_forward.3} parent=0
    #allocation2 [shape = 'u8[1024]{0}', space=vmem, size = 0x400, scoped, tag = 'output window, operand 0, single buffered']
    #allocation3 [shape = 's32[1]{0}', space=sflag, size = 0x4, scoped, tag = 'scoped memory for net_forward.3']
    %12 = vsyncpa [#allocation3], 0
    // Predicated region
    $region2: #{net_forward.3} parent=1 // pred_check
      _
    $region3: #{net_forward.3} parent=1 // pred_check_branch
      %14 = sbr.rel (0) target = $region5
    $region4: #{net_forward.3} parent=1 // pred_region
      _
    $region5: #{net_forward.3} parent=1 // pred_fallthru
      _
    // Predicated region
    $region6: #{net_forward.3} parent=1 // pred_check
      _
    $region7: #{net_forward.3} parent=1 // pred_check_branch
      %16 = sbr.rel (0) target = $region9
    $region8: #{net_forward.3} parent=1 // pred_region
      _
    $region9: #{net_forward.3} parent=1 // pred_fallthru
      _
    // Predicated region
    $region10: #{net_forward.3} parent=1 // pred_check
      _
    $region11: #{net_forward.3} parent=1 // pred_check_branch
      %18 = sbr.rel (0) target = $region13
    $region12: #{net_forward.3} parent=1 // pred_region
      _
    $region13: #{net_forward.3} parent=1 // pred_fallthru
      _
    // Predicated region
    $region14: #{net_forward.3} parent=1 // pred_check
      _
    $region15: #{net_forward.3} parent=1 // pred_check_branch
      %20 = sbr.rel (0) target = $region17
    $region16: #{net_forward.3} parent=1 // pred_region
      _
    $region17: #{net_forward.3} parent=1 // pred_fallthru
      _
    // Predicated region
    $region18: #{net_forward.3} parent=1 // pred_check
      _
    $region19: #{net_forward.3} parent=1 // pred_check_branch
      %22 = sbr.rel (0) target = $region21
    $region20: #{net_forward.3} parent=1 // pred_region
      _
    $region21: #{net_forward.3} parent=1 // pred_fallthru
      _
    // Predicated region
    $region22: #{net_forward.3} parent=1 // pred_check
      _
    $region23: #{net_forward.3} parent=1 // pred_check_branch
      %24 = sbr.rel (0) target = $region25
    $region24: #{net_forward.3} parent=1 // pred_region
      _
    $region25: #{net_forward.3} parent=1 // pred_fallthru
      _
    // Predicated region
    $region26: #{net_forward.3} parent=1 // pred_check
      _
    $region27: #{net_forward.3} parent=1 // pred_check_branch
      %26 = sbr.rel (0) target = $region29
    $region28: #{net_forward.3} parent=1 // pred_region
      _
    $region29: #{net_forward.3} parent=1 // pred_fallthru
      _
    %v28 = vld [vmem:[%s1] sm:$0xff]
    %v29 = vld [vmem:[%s1 + $0x8] sm:$0xf]
    %v30 = vld [vmem:[%s1 + $0xc] sm:$0xff]
    %v31 = vld [vmem:[%s1 + $0x14] sm:$0xf]
    %v32 = vld [vmem:[%s1 + $0x18] sm:$0xff]
    %v33 = vld [vmem:[%s1 + $0x20] sm:$0xf]
    %v34 = vld [vmem:[%s1 + $0x24] sm:$0xff]
    %v35 = vld [vmem:[%s1 + $0x2c] sm:$0xf]
    %v36 = vld [vmem:[%s1 + $0x30] sm:$0xff]
    %v37 = vld [vmem:[%s1 + $0x38] sm:$0xf]
    %v38 = vld [vmem:[%s1 + $0x3c] sm:$0xff]
    %v39 = vld [vmem:[%s1 + $0x44] sm:$0xf]
    %v40 = vld [vmem:[%s1 + $0x48] sm:$0xff]
    %v41 = vld [vmem:[%s1 + $0x50] sm:$0xf]
    %v42 = vld [vmem:[%s1 + $0x54] sm:$0xff]
    %v43 = vld [vmem:[%s1 + $0x5c] sm:$0xf]
    %v44 = vld [vmem:[%s1 + $0x60] sm:$0xff]
    %v45 = vld [vmem:[%s1 + $0x68] sm:$0xf]
    %v46 = vld [vmem:[%s1 + $0x6c] sm:$0xff]
    %v47 = vld [vmem:[%s1 + $0x74] sm:$0xf]
    %v48 = vld [vmem:[%s1 + $0x78] sm:$0xff]
    %v49 = vld [vmem:[%s1 + $0x80] sm:$0xf]
    %v50 = vld [vmem:[%s1 + $0x84] sm:$0xff]
    %v51 = vld [vmem:[%s1 + $0x8c] sm:$0xf]
    %v52 = vld [vmem:[%s1 + $0x90] sm:$0xff]
    %v53 = vld [vmem:[%s1 + $0x98] sm:$0xf]
    %v54 = vld [vmem:[%s1 + $0x9c] sm:$0xff]
    %v55 = vld [vmem:[%s1 + $0xa4] sm:$0xf]
    %v56 = vld [vmem:[%s1 + $0xa8] sm:$0xff]
    %v57 = vld [vmem:[%s1 + $0xb0] sm:$0xf]
    %v58 = vld [vmem:[%s1 + $0xb4] sm:$0xff]
    %v59 = vld [vmem:[%s1 + $0xbc] sm:$0xf]
    %v60 = vld [vmem:[%s1 + $0xc0] sm:$0xff]
    %v61 = vld [vmem:[%s1 + $0xc8] sm:$0xf]
    %v62 = vld [vmem:[%s1 + $0xcc] sm:$0xff]
    %v63 = vld [vmem:[%s1 + $0xd4] sm:$0xf]
    %v64 = vld [vmem:[%s1 + $0xd8] sm:$0xff]
    %v65 = vld [vmem:[%s1 + $0xe0] sm:$0xf]
    %v66 = vld [vmem:[%s1 + $0xe4] sm:$0xff]
    %v67 = vld [vmem:[%s1 + $0xec] sm:$0xf]
    %v68 = vld [vmem:[%s1 + $0xf0] sm:$0xff]
    %v69 = vld [vmem:[%s1 + $0xf8] sm:$0xf]
    %v70 = vld [vmem:[%s1 + $0xfc] sm:$0xff]
    %v71 = vld [vmem:[%s1 + $0x104] sm:$0xf]
    %v72 = vld [vmem:[%s1 + $0x108] sm:$0xff]
    %v73 = vld [vmem:[%s1 + $0x110] sm:$0xf]
    %v74 = vld [vmem:[%s1 + $0x114] sm:$0xff]
    %v75 = vld [vmem:[%s1 + $0x11c] sm:$0xf]
    %v76 = vld [vmem:[%s1 + $0x120] sm:$0xff]
    %v77 = vld [vmem:[%s1 + $0x128] sm:$0xf]
    %v78 = vld [vmem:[%s1 + $0x12c] sm:$0xff]
    %v79 = vld [vmem:[%s1 + $0x134] sm:$0xf]
    %v80 = vld [vmem:[%s1 + $0x138] sm:$0xff]
    %v81 = vld [vmem:[%s1 + $0x140] sm:$0xf]
    %v82 = vld [vmem:[%s1 + $0x144] sm:$0xff]
    %v83 = vld [vmem:[%s1 + $0x14c] sm:$0xf]
    %v84 = vld [vmem:[%s1 + $0x150] sm:$0xff]
    %v85 = vld [vmem:[%s1 + $0x158] sm:$0xf]
    %v86 = vld [vmem:[%s1 + $0x15c] sm:$0xff]
    %v87 = vld [vmem:[%s1 + $0x164] sm:$0xf]
    %v88 = vld [vmem:[%s1 + $0x168] sm:$0xff]
    %v89 = vld [vmem:[%s1 + $0x170] sm:$0xf]
    %v90 = vld [vmem:[%s1 + $0x174] sm:$0xff]
    %v91 = vld [vmem:[%s1 + $0x17c] sm:$0xf]
    %v92 = vld [vmem:[%s1 + $0x180] sm:$0xff]
    %v93 = vld [vmem:[%s1 + $0x188] sm:$0xf]
    %v94 = vld [vmem:[%s1 + $0x18c] sm:$0xff]
    %v95 = vld [vmem:[%s1 + $0x194] sm:$0xf]
    %v96 = vld [vmem:[%s1 + $0x198] sm:$0xff]
    %v97 = vld [vmem:[%s1 + $0x1a0] sm:$0xf]
    %v98 = vld [vmem:[%s1 + $0x1a4] sm:$0xff]
    %v99 = vld [vmem:[%s1 + $0x1ac] sm:$0xf]
    %v100 = vld [vmem:[%s1 + $0x1b0] sm:$0xff]
    %v101 = vld [vmem:[%s1 + $0x1b8] sm:$0xf]
    %v102 = vld [vmem:[%s1 + $0x1bc] sm:$0xff]
    %v103 = vld [vmem:[%s1 + $0x1c4] sm:$0xf]
    %v104 = vld [vmem:[%s1 + $0x1c8] sm:$0xff]
    %v105 = vld [vmem:[%s1 + $0x1d0] sm:$0xf]
    %v106 = vld [vmem:[%s1 + $0x1d4] sm:$0xff]
    %v107 = vld [vmem:[%s1 + $0x1dc] sm:$0xf]
    %v108 = vld [vmem:[%s1 + $0x1e0] sm:$0xff]
    %v109 = vld [vmem:[%s1 + $0x1e8] sm:$0xf]
    %v110 = vld [vmem:[%s1 + $0x1ec] sm:$0xff]
    %v111 = vld [vmem:[%s1 + $0x1f4] sm:$0xf]
    %v112 = vld [vmem:[%s1 + $0x1f8] sm:$0xff]
    %v113 = vld [vmem:[%s1 + $0x200] sm:$0xf]
    %v114 = vld [vmem:[%s1 + $0x204] sm:$0xff]
    %v115 = vld [vmem:[%s1 + $0x20c] sm:$0xf]
    %v116 = vld [vmem:[%s1 + $0x210] sm:$0xff]
    %v117 = vld [vmem:[%s1 + $0x218] sm:$0xf]
    %v118 = vld [vmem:[%s1 + $0x21c] sm:$0xff]
    %v119 = vld [vmem:[%s1 + $0x224] sm:$0xf]
    %v120 = vld [vmem:[%s1 + $0x228] sm:$0xff]
    %v121 = vld [vmem:[%s1 + $0x230] sm:$0xf]
    %v122 = vld [vmem:[%s1 + $0x234] sm:$0xff]
    %v123 = vld [vmem:[%s1 + $0x23c] sm:$0xf]
    %v124 = vld [vmem:[%s1 + $0x240] sm:$0xff]
    %v125 = vld [vmem:[%s1 + $0x248] sm:$0xf]
    %v126 = vld [vmem:[%s1 + $0x24c] sm:$0xff]
    %v127 = vld [vmem:[%s1 + $0x254] sm:$0xf]
    %v128 = vld [vmem:[%s1 + $0x258] sm:$0xff]
    %v129 = vld [vmem:[%s1 + $0x260] sm:$0xf]
    %v130 = vld [vmem:[%s1 + $0x264] sm:$0xff]
    %v131 = vld [vmem:[%s1 + $0x26c] sm:$0xf]
    %v132 = vld [vmem:[%s1 + $0x270] sm:$0xff]
    %v133 = vld [vmem:[%s1 + $0x278] sm:$0xf]
    %v134 = vld [vmem:[%s1 + $0x27c] sm:$0xff]
    %v135 = vld [vmem:[%s1 + $0x284] sm:$0xf]
    %v136 = vld [vmem:[%s1 + $0x288] sm:$0xff]
    %v137 = vld [vmem:[%s1 + $0x290] sm:$0xf]
    %v138 = vld [vmem:[%s1 + $0x294] sm:$0xff]
    %v139 = vld [vmem:[%s1 + $0x29c] sm:$0xf]
    %v140 = vld [vmem:[%s1 + $0x2a0] sm:$0xff]
    %v141 = vld [vmem:[%s1 + $0x2a8] sm:$0xf]
    %v142 = vld [vmem:[%s1 + $0x2ac] sm:$0xff]
    %v143 = vld [vmem:[%s1 + $0x2b4] sm:$0xf]
    %v144 = vld [vmem:[%s1 + $0x2b8] sm:$0xff]
    %v145 = vld [vmem:[%s1 + $0x2c0] sm:$0xf]
    %v146 = vld [vmem:[%s1 + $0x2c4] sm:$0xff]
    %v147 = vld [vmem:[%s1 + $0x2cc] sm:$0xf]
    %v148 = vld [vmem:[%s1 + $0x2d0] sm:$0xff]
    %v149 = vld [vmem:[%s1 + $0x2d8] sm:$0xf]
    %v150 = vld [vmem:[%s1 + $0x2dc] sm:$0xff]
    %v151 = vld [vmem:[%s1 + $0x2e4] sm:$0xf]
    %v152 = vld [vmem:[%s1 + $0x2e8] sm:$0xff]
    %v153 = vld [vmem:[%s1 + $0x2f0] sm:$0xf]
    %v154 = vld [vmem:[%s1 + $0x2f4] sm:$0xff]
    %v155 = vld [vmem:[%s1 + $0x2fc] sm:$0xf]
    %v156 = vld [vmem:[%s1 + $0x300] sm:$0xff]
    %v157 = vld [vmem:[%s1 + $0x308] sm:$0xf]
    %v158 = vld [vmem:[%s1 + $0x30c] sm:$0xff]
    %v159 = vld [vmem:[%s1 + $0x314] sm:$0xf]
    %v160 = vld [vmem:[%s1 + $0x318] sm:$0xff]
    %v161 = vld [vmem:[%s1 + $0x320] sm:$0xf]
    %v162 = vld [vmem:[%s1 + $0x324] sm:$0xff]
    %v163 = vld [vmem:[%s1 + $0x32c] sm:$0xf]
    %v164 = vld [vmem:[%s1 + $0x330] sm:$0xff]
    %v165 = vld [vmem:[%s1 + $0x338] sm:$0xf]
    %v166 = vld [vmem:[%s1 + $0x33c] sm:$0xff]
    %v167 = vld [vmem:[%s1 + $0x344] sm:$0xf]
    %v168 = vld [vmem:[%s1 + $0x348] sm:$0xff]
    %v169 = vld [vmem:[%s1 + $0x350] sm:$0xf]
    %v170 = vld [vmem:[%s1 + $0x354] sm:$0xff]
    %v171 = vld [vmem:[%s1 + $0x35c] sm:$0xf]
    %v172 = vld [vmem:[%s1 + $0x360] sm:$0xff]
    %v173 = vld [vmem:[%s1 + $0x368] sm:$0xf]
    %v174 = vld [vmem:[%s1 + $0x36c] sm:$0xff]
    %v175 = vld [vmem:[%s1 + $0x374] sm:$0xf]
    %v176 = vld [vmem:[%s1 + $0x378] sm:$0xff]
    %v177 = vld [vmem:[%s1 + $0x380] sm:$0xf]
    %v178 = vld [vmem:[%s1 + $0x384] sm:$0xff]
    %v179 = vld [vmem:[%s1 + $0x38c] sm:$0xf]
    %v180 = vld [vmem:[%s1 + $0x390] sm:$0xff]
    %v181 = vld [vmem:[%s1 + $0x398] sm:$0xf]
    %v182 = vld [vmem:[%s1 + $0x39c] sm:$0xff]
    %v183 = vld [vmem:[%s1 + $0x3a4] sm:$0xf]
    %v184 = vld [vmem:[%s1 + $0x3a8] sm:$0xff]
    %v185 = vld [vmem:[%s1 + $0x3b0] sm:$0xf]
    %v186 = vld [vmem:[%s1 + $0x3b4] sm:$0xff]
    %v187 = vld [vmem:[%s1 + $0x3bc] sm:$0xf]
    %v188 = vld [vmem:[%s1 + $0x3c0] sm:$0xff]
    %v189 = vld [vmem:[%s1 + $0x3c8] sm:$0xf]
    %v190 = vld [vmem:[%s1 + $0x3cc] sm:$0xff]
    %v191 = vld [vmem:[%s1 + $0x3d4] sm:$0xf]
    %v192 = vld [vmem:[%s1 + $0x3d8] sm:$0xff]
    %v193 = vld [vmem:[%s1 + $0x3e0] sm:$0xf]
    %v194 = vld [vmem:[%s1 + $0x3e4] sm:$0xff]
    %v195 = vld [vmem:[%s1 + $0x3ec] sm:$0xf]
    %v196 = vld [vmem:[%s1 + $0x3f0] sm:$0xff]
    %v197 = vld [vmem:[%s1 + $0x3f8] sm:$0xf]
    %v198 = vld [vmem:[%s1 + $0x3fc] sm:$0xff]
    %v199 = vld [vmem:[%s1 + $0x404] sm:$0xf]
    %v200 = vld [vmem:[%s1 + $0x408] sm:$0xff]
    %v201 = vld [vmem:[%s1 + $0x410] sm:$0xf]
    %v202 = vld [vmem:[%s1 + $0x414] sm:$0xff]
    %v203 = vld [vmem:[%s1 + $0x41c] sm:$0xf]
    %v204 = vld [vmem:[%s1 + $0x420] sm:$0xff]
    %v205 = vld [vmem:[%s1 + $0x428] sm:$0xf]
    %v206 = vld [vmem:[%s1 + $0x42c] sm:$0xff]
    %v207 = vld [vmem:[%s1 + $0x434] sm:$0xf]
    %v208 = vld [vmem:[%s1 + $0x438] sm:$0xff]
    %v209 = vld [vmem:[%s1 + $0x440] sm:$0xf]
    %v210 = vld [vmem:[%s1 + $0x444] sm:$0xff]
    %v211 = vld [vmem:[%s1 + $0x44c] sm:$0xf]
    %v212 = vld [vmem:[%s1 + $0x450] sm:$0xff]
    %v213 = vld [vmem:[%s1 + $0x458] sm:$0xf]
    %v214 = vld [vmem:[%s1 + $0x45c] sm:$0xff]
    %v215 = vld [vmem:[%s1 + $0x464] sm:$0xf]
    %v216 = vld [vmem:[%s1 + $0x468] sm:$0xff]
    %v217 = vld [vmem:[%s1 + $0x470] sm:$0xf]
    %v218 = vld [vmem:[%s1 + $0x474] sm:$0xff]
    %v219 = vld [vmem:[%s1 + $0x47c] sm:$0xf]
    %v220 = vld [vmem:[%s1 + $0x480] sm:$0xff]
    %v221 = vld [vmem:[%s1 + $0x488] sm:$0xf]
    %v222 = vld [vmem:[%s1 + $0x48c] sm:$0xff]
    %v223 = vld [vmem:[%s1 + $0x494] sm:$0xf]
    %v224 = vld [vmem:[%s1 + $0x498] sm:$0xff]
    %v225 = vld [vmem:[%s1 + $0x4a0] sm:$0xf]
    %v226 = vld [vmem:[%s1 + $0x4a4] sm:$0xff]
    %v227 = vld [vmem:[%s1 + $0x4ac] sm:$0xf]
    %v228 = vld [vmem:[%s1 + $0x4b0] sm:$0xff]
    %v229 = vld [vmem:[%s1 + $0x4b8] sm:$0xf]
    %v230 = vld [vmem:[%s1 + $0x4bc] sm:$0xff]
    %v231 = vld [vmem:[%s1 + $0x4c4] sm:$0xf]
    %v232 = vld [vmem:[%s1 + $0x4c8] sm:$0xff]
    %v233 = vld [vmem:[%s1 + $0x4d0] sm:$0xf]
    %v234 = vld [vmem:[%s1 + $0x4d4] sm:$0xff]
    %v235 = vld [vmem:[%s1 + $0x4dc] sm:$0xf]
    %v236 = vld [vmem:[%s1 + $0x4e0] sm:$0xff]
    %v237 = vld [vmem:[%s1 + $0x4e8] sm:$0xf]
    %v238 = vld [vmem:[%s1 + $0x4ec] sm:$0xff]
    %v239 = vld [vmem:[%s1 + $0x4f4] sm:$0xf]
    %v240 = vld [vmem:[%s1 + $0x4f8] sm:$0xff]
    %v241 = vld [vmem:[%s1 + $0x500] sm:$0xf]
    %v242 = vld [vmem:[%s1 + $0x504] sm:$0xff]
    %v243 = vld [vmem:[%s1 + $0x50c] sm:$0xf]
    %v244 = vld [vmem:[%s1 + $0x510] sm:$0xff]
    %v245 = vld [vmem:[%s1 + $0x518] sm:$0xf]
    %v246 = vld [vmem:[%s1 + $0x51c] sm:$0xff]
    %v247 = vld [vmem:[%s1 + $0x524] sm:$0xf]
    %v248 = vld [vmem:[%s1 + $0x528] sm:$0xff]
    %v249 = vld [vmem:[%s1 + $0x530] sm:$0xf]
    %v250 = vld [vmem:[%s1 + $0x534] sm:$0xff]
    %v251 = vld [vmem:[%s1 + $0x53c] sm:$0xf]
    %v252 = vld [vmem:[%s1 + $0x540] sm:$0xff]
    %v253 = vld [vmem:[%s1 + $0x548] sm:$0xf]
    %v254 = vld [vmem:[%s1 + $0x54c] sm:$0xff]
    %v255 = vld [vmem:[%s1 + $0x554] sm:$0xf]
    %v256 = vld [vmem:[%s1 + $0x558] sm:$0xff]
    %v257 = vld [vmem:[%s1 + $0x560] sm:$0xf]
    %v258 = vld [vmem:[%s1 + $0x564] sm:$0xff]
    %v259 = vld [vmem:[%s1 + $0x56c] sm:$0xf]
    %v260 = vld [vmem:[%s1 + $0x570] sm:$0xff]
    %v261 = vld [vmem:[%s1 + $0x578] sm:$0xf]
    %v262 = vld [vmem:[%s1 + $0x57c] sm:$0xff]
    %v263 = vld [vmem:[%s1 + $0x584] sm:$0xf]
    %v264 = vld [vmem:[%s1 + $0x588] sm:$0xff]
    %v265 = vld [vmem:[%s1 + $0x590] sm:$0xf]
    %v266 = vld [vmem:[%s1 + $0x594] sm:$0xff]
    %v267 = vld [vmem:[%s1 + $0x59c] sm:$0xf]
    %v268 = vld [vmem:[%s1 + $0x5a0] sm:$0xff]
    %v269 = vld [vmem:[%s1 + $0x5a8] sm:$0xf]
    %v270 = vld [vmem:[%s1 + $0x5ac] sm:$0xff]
    %v271 = vld [vmem:[%s1 + $0x5b4] sm:$0xf]
    %v272 = vld [vmem:[%s1 + $0x5b8] sm:$0xff]
    %v273 = vld [vmem:[%s1 + $0x5c0] sm:$0xf]
    %v274 = vld [vmem:[%s1 + $0x5c4] sm:$0xff]
    %v275 = vld [vmem:[%s1 + $0x5cc] sm:$0xf]
    %v276 = vld [vmem:[%s1 + $0x5d0] sm:$0xff]
    %v277 = vld [vmem:[%s1 + $0x5d8] sm:$0xf]
    %v278 = vld [vmem:[%s1 + $0x5dc] sm:$0xff]
    %v279 = vld [vmem:[%s1 + $0x5e4] sm:$0xf]
    %v280 = vld [vmem:[%s1 + $0x5e8] sm:$0xff]
    %v281 = vld [vmem:[%s1 + $0x5f0] sm:$0xf]
    %v282 = vld [vmem:[%s1 + $0x5f4] sm:$0xff]
    %v283 = vld [vmem:[%s1 + $0x5fc] sm:$0xf]
    %v284 = vld [vmem:[%s1 + $0x600] sm:$0xff]
    %v285 = vld [vmem:[%s1 + $0x608] sm:$0xf]
    %v286 = vld [vmem:[%s1 + $0x60c] sm:$0xff]
    %v287 = vld [vmem:[%s1 + $0x614] sm:$0xf]
    %v288 = vld [vmem:[%s1 + $0x618] sm:$0xff]
    %v289 = vld [vmem:[%s1 + $0x620] sm:$0xf]
    %v290 = vld [vmem:[%s1 + $0x624] sm:$0xff]
    %v291 = vld [vmem:[%s1 + $0x62c] sm:$0xf]
    %v292 = vld [vmem:[%s1 + $0x630] sm:$0xff]
    %v293 = vld [vmem:[%s1 + $0x638] sm:$0xf]
    %v294 = vld [vmem:[%s1 + $0x63c] sm:$0xff]
    %v295 = vld [vmem:[%s1 + $0x644] sm:$0xf]
    %v296 = vld [vmem:[%s1 + $0x648] sm:$0xff]
    %v297 = vld [vmem:[%s1 + $0x650] sm:$0xf]
    %v298 = vld [vmem:[%s1 + $0x654] sm:$0xff]
    %v299 = vld [vmem:[%s1 + $0x65c] sm:$0xf]
    %v300 = vld [vmem:[%s1 + $0x660] sm:$0xff]
    %v301 = vld [vmem:[%s1 + $0x668] sm:$0xf]
    %v302 = vld [vmem:[%s1 + $0x66c] sm:$0xff]
    %v303 = vld [vmem:[%s1 + $0x674] sm:$0xf]
    %v304 = vld [vmem:[%s1 + $0x678] sm:$0xff]
    %v305 = vld [vmem:[%s1 + $0x680] sm:$0xf]
    %v306 = vld [vmem:[%s1 + $0x684] sm:$0xff]
    %v307 = vld [vmem:[%s1 + $0x68c] sm:$0xf]
    %v308 = vld [vmem:[%s1 + $0x690] sm:$0xff]
    %v309 = vld [vmem:[%s1 + $0x698] sm:$0xf]
    %v310 = vld [vmem:[%s1 + $0x69c] sm:$0xff]
    %v311 = vld [vmem:[%s1 + $0x6a4] sm:$0xf]
    %v312 = vld [vmem:[%s1 + $0x6a8] sm:$0xff]
    %v313 = vld [vmem:[%s1 + $0x6b0] sm:$0xf]
    %v314 = vld [vmem:[%s1 + $0x6b4] sm:$0xff]
    %v315 = vld [vmem:[%s1 + $0x6bc] sm:$0xf]
    %v316 = vld [vmem:[%s1 + $0x6c0] sm:$0xff]
    %v317 = vld [vmem:[%s1 + $0x6c8] sm:$0xf]
    %v318 = vld [vmem:[%s1 + $0x6cc] sm:$0xff]
    %v319 = vld [vmem:[%s1 + $0x6d4] sm:$0xf]
    %v320 = vld [vmem:[%s1 + $0x6d8] sm:$0xff]
    %v321 = vld [vmem:[%s1 + $0x6e0] sm:$0xf]
    %v322 = vld [vmem:[%s1 + $0x6e4] sm:$0xff]
    %v323 = vld [vmem:[%s1 + $0x6ec] sm:$0xf]
    %v324 = vld [vmem:[%s1 + $0x6f0] sm:$0xff]
    %v325 = vld [vmem:[%s1 + $0x6f8] sm:$0xf]
    %v326 = vld [vmem:[%s1 + $0x6fc] sm:$0xff]
    %v327 = vld [vmem:[%s1 + $0x704] sm:$0xf]
    %v328 = vld [vmem:[%s1 + $0x708] sm:$0xff]
    %v329 = vld [vmem:[%s1 + $0x710] sm:$0xf]
    %v330 = vld [vmem:[%s1 + $0x714] sm:$0xff]
    %v331 = vld [vmem:[%s1 + $0x71c] sm:$0xf]
    %v332 = vld [vmem:[%s1 + $0x720] sm:$0xff]
    %v333 = vld [vmem:[%s1 + $0x728] sm:$0xf]
    %v334 = vld [vmem:[%s1 + $0x72c] sm:$0xff]
    %v335 = vld [vmem:[%s1 + $0x734] sm:$0xf]
    %v336 = vld [vmem:[%s1 + $0x738] sm:$0xff]
    %v337 = vld [vmem:[%s1 + $0x740] sm:$0xf]
    %v338 = vld [vmem:[%s1 + $0x744] sm:$0xff]
    %v339 = vld [vmem:[%s1 + $0x74c] sm:$0xf]
    %v340 = vld [vmem:[%s1 + $0x750] sm:$0xff]
    %v341 = vld [vmem:[%s1 + $0x758] sm:$0xf]
    %v342 = vld [vmem:[%s1 + $0x75c] sm:$0xff]
    %v343 = vld [vmem:[%s1 + $0x764] sm:$0xf]
    %v344 = vld [vmem:[%s1 + $0x768] sm:$0xff]
    %v345 = vld [vmem:[%s1 + $0x770] sm:$0xf]
    %v346 = vld [vmem:[%s1 + $0x774] sm:$0xff]
    %v347 = vld [vmem:[%s1 + $0x77c] sm:$0xf]
    %v348 = vld [vmem:[%s1 + $0x780] sm:$0xff]
    %v349 = vld [vmem:[%s1 + $0x788] sm:$0xf]
    %v350 = vld [vmem:[%s1 + $0x78c] sm:$0xff]
    %v351 = vld [vmem:[%s1 + $0x794] sm:$0xf]
    %v352 = vld [vmem:[%s1 + $0x798] sm:$0xff]
    %v353 = vld [vmem:[%s1 + $0x7a0] sm:$0xf]
    %v354 = vld [vmem:[%s1 + $0x7a4] sm:$0xff]
    %v355 = vld [vmem:[%s1 + $0x7ac] sm:$0xf]
    %v356 = vld [vmem:[%s1 + $0x7b0] sm:$0xff]
    %v357 = vld [vmem:[%s1 + $0x7b8] sm:$0xf]
    %v358 = vld [vmem:[%s1 + $0x7bc] sm:$0xff]
    %v359 = vld [vmem:[%s1 + $0x7c4] sm:$0xf]
    %v360 = vld [vmem:[%s1 + $0x7c8] sm:$0xff]
    %v361 = vld [vmem:[%s1 + $0x7d0] sm:$0xf]
    %v362 = vld [vmem:[%s1 + $0x7d4] sm:$0xff]
    %v363 = vld [vmem:[%s1 + $0x7dc] sm:$0xf]
    %v364 = vld [vmem:[%s1 + $0x7e0] sm:$0xff]
    %v365 = vld [vmem:[%s1 + $0x7e8] sm:$0xf]
    %v366 = vld [vmem:[%s1 + $0x7ec] sm:$0xff]
    %v367 = vld [vmem:[%s1 + $0x7f4] sm:$0xf]
    %v368 = vld [vmem:[%s1 + $0x7f8] sm:$0xff]
    %v369 = vld [vmem:[%s1 + $0x800] sm:$0xf]
    %v370 = vld [vmem:[%s1 + $0x804] sm:$0xff]
    %v371 = vld [vmem:[%s1 + $0x80c] sm:$0xf]
    %v372 = vld [vmem:[%s1 + $0x810] sm:$0xff]
    %v373 = vld [vmem:[%s1 + $0x818] sm:$0xf]
    %v374 = vld [vmem:[%s1 + $0x81c] sm:$0xff]
    %v375 = vld [vmem:[%s1 + $0x824] sm:$0xf]
    %v376 = vld [vmem:[%s1 + $0x828] sm:$0xff]
    %v377 = vld [vmem:[%s1 + $0x830] sm:$0xf]
    %v378 = vld [vmem:[%s1 + $0x834] sm:$0xff]
    %v379 = vld [vmem:[%s1 + $0x83c] sm:$0xf]
    %v380 = vld [vmem:[%s1 + $0x840] sm:$0xff]
    %v381 = vld [vmem:[%s1 + $0x848] sm:$0xf]
    %v382 = vld [vmem:[%s1 + $0x84c] sm:$0xff]
    %v383 = vld [vmem:[%s1 + $0x854] sm:$0xf]
    %v384 = vld [vmem:[%s1 + $0x858] sm:$0xff]
    %v385 = vld [vmem:[%s1 + $0x860] sm:$0xf]
    %v386 = vld [vmem:[%s1 + $0x864] sm:$0xff]
    %v387 = vld [vmem:[%s1 + $0x86c] sm:$0xf]
    %v388 = vld [vmem:[%s1 + $0x870] sm:$0xff]
    %v389 = vld [vmem:[%s1 + $0x878] sm:$0xf]
    %v390 = vld [vmem:[%s1 + $0x87c] sm:$0xff]
    %v391 = vld [vmem:[%s1 + $0x884] sm:$0xf]
    %v392 = vld [vmem:[%s1 + $0x888] sm:$0xff]
    %v393 = vld [vmem:[%s1 + $0x890] sm:$0xf]
    %v394 = vld [vmem:[%s1 + $0x894] sm:$0xff]
    %v395 = vld [vmem:[%s1 + $0x89c] sm:$0xf]
    %v396 = vld [vmem:[%s1 + $0x8a0] sm:$0xff]
    %v397 = vld [vmem:[%s1 + $0x8a8] sm:$0xf]
    %v398 = vld [vmem:[%s1 + $0x8ac] sm:$0xff]
    %v399 = vld [vmem:[%s1 + $0x8b4] sm:$0xf]
    %v400 = vld [vmem:[%s1 + $0x8b8] sm:$0xff]
    %v401 = vld [vmem:[%s1 + $0x8c0] sm:$0xf]
    %v402 = vld [vmem:[%s1 + $0x8c4] sm:$0xff]
    %v403 = vld [vmem:[%s1 + $0x8cc] sm:$0xf]
    %v404 = vld [vmem:[%s1 + $0x8d0] sm:$0xff]
    %v405 = vld [vmem:[%s1 + $0x8d8] sm:$0xf]
    %v406 = vld [vmem:[%s1 + $0x8dc] sm:$0xff]
    %v407 = vld [vmem:[%s1 + $0x8e4] sm:$0xf]
    %v408 = vld [vmem:[%s1 + $0x8e8] sm:$0xff]
    %v409 = vld [vmem:[%s1 + $0x8f0] sm:$0xf]
    %v410 = vld [vmem:[%s1 + $0x8f4] sm:$0xff]
    %v411 = vld [vmem:[%s1 + $0x8fc] sm:$0xf]
    %v412 = vld [vmem:[%s1 + $0x900] sm:$0xff]
    %v413 = vld [vmem:[%s1 + $0x908] sm:$0xf]
    %v414 = vld [vmem:[%s1 + $0x90c] sm:$0xff]
    %v415 = vld [vmem:[%s1 + $0x914] sm:$0xf]
    %v416 = vld [vmem:[%s1 + $0x918] sm:$0xff]
    %v417 = vld [vmem:[%s1 + $0x920] sm:$0xf]
    %v418 = vld [vmem:[%s1 + $0x924] sm:$0xff]
    %v419 = vld [vmem:[%s1 + $0x92c] sm:$0xf]
    %v420 = vld [vmem:[%s1 + $0x930] sm:$0xff]
    %v421 = vld [vmem:[%s1 + $0x938] sm:$0xf]
    %v422 = vld [vmem:[%s1 + $0x93c] sm:$0xff]
    %v423 = vld [vmem:[%s1 + $0x944] sm:$0xf]
    %v424 = vld [vmem:[%s1 + $0x948] sm:$0xff]
    %v425 = vld [vmem:[%s1 + $0x950] sm:$0xf]
    %v426 = vld [vmem:[%s1 + $0x954] sm:$0xff]
    %v427 = vld [vmem:[%s1 + $0x95c] sm:$0xf]
    %v428 = vld [vmem:[%s1 + $0x960] sm:$0xff]
    %v429 = vld [vmem:[%s1 + $0x968] sm:$0xf]
    %v430 = vld [vmem:[%s1 + $0x96c] sm:$0xff]
    %v431 = vld [vmem:[%s1 + $0x974] sm:$0xf]
    %v432 = vld [vmem:[%s1 + $0x978] sm:$0xff]
    %v433 = vld [vmem:[%s1 + $0x980] sm:$0xf]
    %v434 = vld [vmem:[%s1 + $0x984] sm:$0xff]
    %v435 = vld [vmem:[%s1 + $0x98c] sm:$0xf]
    %v436 = vld [vmem:[%s1 + $0x990] sm:$0xff]
    %v437 = vld [vmem:[%s1 + $0x998] sm:$0xf]
    %v438 = vld [vmem:[%s1 + $0x99c] sm:$0xff]
    %v439 = vld [vmem:[%s1 + $0x9a4] sm:$0xf]
    %v440 = vld [vmem:[%s1 + $0x9a8] sm:$0xff]
    %v441 = vld [vmem:[%s1 + $0x9b0] sm:$0xf]
    %v442 = vld [vmem:[%s1 + $0x9b4] sm:$0xff]
    %v443 = vld [vmem:[%s1 + $0x9bc] sm:$0xf]
    %v444 = vld [vmem:[%s1 + $0x9c0] sm:$0xff]
    %v445 = vld [vmem:[%s1 + $0x9c8] sm:$0xf]
    %v446 = vld [vmem:[%s1 + $0x9cc] sm:$0xff]
    %v447 = vld [vmem:[%s1 + $0x9d4] sm:$0xf]
    %v448 = vld [vmem:[%s1 + $0x9d8] sm:$0xff]
    %v449 = vld [vmem:[%s1 + $0x9e0] sm:$0xf]
    %v450 = vld [vmem:[%s1 + $0x9e4] sm:$0xff]
    %v451 = vld [vmem:[%s1 + $0x9ec] sm:$0xf]
    %v452 = vld [vmem:[%s1 + $0x9f0] sm:$0xff]
    %v453 = vld [vmem:[%s1 + $0x9f8] sm:$0xf]
    %v454 = vld [vmem:[%s1 + $0x9fc] sm:$0xff]
    %v455 = vld [vmem:[%s1 + $0xa04] sm:$0xf]
    %v456 = vld [vmem:[%s1 + $0xa08] sm:$0xff]
    %v457 = vld [vmem:[%s1 + $0xa10] sm:$0xf]
    %v458 = vld [vmem:[%s1 + $0xa14] sm:$0xff]
    %v459 = vld [vmem:[%s1 + $0xa1c] sm:$0xf]
    %v460 = vld [vmem:[%s1 + $0xa20] sm:$0xff]
    %v461 = vld [vmem:[%s1 + $0xa28] sm:$0xf]
    %v462 = vld [vmem:[%s1 + $0xa2c] sm:$0xff]
    %v463 = vld [vmem:[%s1 + $0xa34] sm:$0xf]
    %v464 = vld [vmem:[%s1 + $0xa38] sm:$0xff]
    %v465 = vld [vmem:[%s1 + $0xa40] sm:$0xf]
    %v466 = vld [vmem:[%s1 + $0xa44] sm:$0xff]
    %v467 = vld [vmem:[%s1 + $0xa4c] sm:$0xf]
    %v468 = vld [vmem:[%s1 + $0xa50] sm:$0xff]
    %v469 = vld [vmem:[%s1 + $0xa58] sm:$0xf]
    %v470 = vld [vmem:[%s1 + $0xa5c] sm:$0xff]
    %v471 = vld [vmem:[%s1 + $0xa64] sm:$0xf]
    %v472 = vld [vmem:[%s1 + $0xa68] sm:$0xff]
    %v473 = vld [vmem:[%s1 + $0xa70] sm:$0xf]
    %v474 = vld [vmem:[%s1 + $0xa74] sm:$0xff]
    %v475 = vld [vmem:[%s1 + $0xa7c] sm:$0xf]
    %v476 = vld [vmem:[%s1 + $0xa80] sm:$0xff]
    %v477 = vld [vmem:[%s1 + $0xa88] sm:$0xf]
    %v478 = vld [vmem:[%s1 + $0xa8c] sm:$0xff]
    %v479 = vld [vmem:[%s1 + $0xa94] sm:$0xf]
    %v480 = vld [vmem:[%s1 + $0xa98] sm:$0xff]
    %v481 = vld [vmem:[%s1 + $0xaa0] sm:$0xf]
    %v482 = vld [vmem:[%s1 + $0xaa4] sm:$0xff]
    %v483 = vld [vmem:[%s1 + $0xaac] sm:$0xf]
    %v484 = vld [vmem:[%s1 + $0xab0] sm:$0xff]
    %v485 = vld [vmem:[%s1 + $0xab8] sm:$0xf]
    %v486 = vld [vmem:[%s1 + $0xabc] sm:$0xff]
    %v487 = vld [vmem:[%s1 + $0xac4] sm:$0xf]
    %v488 = vld [vmem:[%s1 + $0xac8] sm:$0xff]
    %v489 = vld [vmem:[%s1 + $0xad0] sm:$0xf]
    %v490 = vld [vmem:[%s1 + $0xad4] sm:$0xff]
    %v491 = vld [vmem:[%s1 + $0xadc] sm:$0xf]
    %v492 = vld [vmem:[%s1 + $0xae0] sm:$0xff]
    %v493 = vld [vmem:[%s1 + $0xae8] sm:$0xf]
    %v494 = vld [vmem:[%s1 + $0xaec] sm:$0xff]
    %v495 = vld [vmem:[%s1 + $0xaf4] sm:$0xf]
    %v496 = vld [vmem:[%s1 + $0xaf8] sm:$0xff]
    %v497 = vld [vmem:[%s1 + $0xb00] sm:$0xf]
    %v498 = vld [vmem:[%s1 + $0xb04] sm:$0xff]
    %v499 = vld [vmem:[%s1 + $0xb0c] sm:$0xf]
    %v500 = vld [vmem:[%s1 + $0xb10] sm:$0xff]
    %v501 = vld [vmem:[%s1 + $0xb18] sm:$0xf]
    %v502 = vld [vmem:[%s1 + $0xb1c] sm:$0xff]
    %v503 = vld [vmem:[%s1 + $0xb24] sm:$0xf]
    %v504 = vld [vmem:[%s1 + $0xb28] sm:$0xff]
    %v505 = vld [vmem:[%s1 + $0xb30] sm:$0xf]
    %v506 = vld [vmem:[%s1 + $0xb34] sm:$0xff]
    %v507 = vld [vmem:[%s1 + $0xb3c] sm:$0xf]
    %v508 = vld [vmem:[%s1 + $0xb40] sm:$0xff]
    %v509 = vld [vmem:[%s1 + $0xb48] sm:$0xf]
    %v510 = vld [vmem:[%s1 + $0xb4c] sm:$0xff]
    %v511 = vld [vmem:[%s1 + $0xb54] sm:$0xf]
    %v512 = vld [vmem:[%s1 + $0xb58] sm:$0xff]
    %v513 = vld [vmem:[%s1 + $0xb60] sm:$0xf]
    %v514 = vld [vmem:[%s1 + $0xb64] sm:$0xff]
    %v515 = vld [vmem:[%s1 + $0xb6c] sm:$0xf]
    %v516 = vld [vmem:[%s1 + $0xb70] sm:$0xff]
    %v517 = vld [vmem:[%s1 + $0xb78] sm:$0xf]
    %v518 = vld [vmem:[%s1 + $0xb7c] sm:$0xff]
    %v519 = vld [vmem:[%s1 + $0xb84] sm:$0xf]
    %v520 = vld [vmem:[%s1 + $0xb88] sm:$0xff]
    %v521 = vld [vmem:[%s1 + $0xb90] sm:$0xf]
    %v522 = vld [vmem:[%s1 + $0xb94] sm:$0xff]
    %v523 = vld [vmem:[%s1 + $0xb9c] sm:$0xf]
    %v524 = vld [vmem:[%s1 + $0xba0] sm:$0xff]
    %v525 = vld [vmem:[%s1 + $0xba8] sm:$0xf]
    %v526 = vld [vmem:[%s1 + $0xbac] sm:$0xff]
    %v527 = vld [vmem:[%s1 + $0xbb4] sm:$0xf]
    %v528 = vld [vmem:[%s1 + $0xbb8] sm:$0xff]
    %v529 = vld [vmem:[%s1 + $0xbc0] sm:$0xf]
    %v530 = vld [vmem:[%s1 + $0xbc4] sm:$0xff]
    %v531 = vld [vmem:[%s1 + $0xbcc] sm:$0xf]
    %v532 = vld [vmem:[%s1 + $0xbd0] sm:$0xff]
    %v533 = vld [vmem:[%s1 + $0xbd8] sm:$0xf]
    %v534 = vld [vmem:[%s1 + $0xbdc] sm:$0xff]
    %v535 = vld [vmem:[%s1 + $0xbe4] sm:$0xf]
    %v536 = vld [vmem:[%s1 + $0xbe8] sm:$0xff]
    %v537 = vld [vmem:[%s1 + $0xbf0] sm:$0xf]
    %v538 = vld [vmem:[%s1 + $0xbf4] sm:$0xff]
    %v539 = vld [vmem:[%s1 + $0xbfc] sm:$0xf]
    %v540 = vld [vmem:[%s1 + $0xc00] sm:$0xff]
    %v541 = vld [vmem:[%s1 + $0xc08] sm:$0xf]
    %v542 = vld [vmem:[%s1 + $0xc0c] sm:$0xff]
    %v543 = vld [vmem:[%s1 + $0xc14] sm:$0xf]
    %v544 = vld [vmem:[%s1 + $0xc18] sm:$0xff]
    %v545 = vld [vmem:[%s1 + $0xc20] sm:$0xf]
    %v546 = vld [vmem:[%s1 + $0xc24] sm:$0xff]
    %v547 = vld [vmem:[%s1 + $0xc2c] sm:$0xf]
    %v548 = vld [vmem:[%s1 + $0xc30] sm:$0xff]
    %v549 = vld [vmem:[%s1 + $0xc38] sm:$0xf]
    %v550 = vld [vmem:[%s1 + $0xc3c] sm:$0xff]
    %v551 = vld [vmem:[%s1 + $0xc44] sm:$0xf]
    %v552 = vld [vmem:[%s1 + $0xc48] sm:$0xff]
    %v553 = vld [vmem:[%s1 + $0xc50] sm:$0xf]
    %v554 = vld [vmem:[%s1 + $0xc54] sm:$0xff]
    %v555 = vld [vmem:[%s1 + $0xc5c] sm:$0xf]
    %v556 = vld [vmem:[%s1 + $0xc60] sm:$0xff]
    %v557 = vld [vmem:[%s1 + $0xc68] sm:$0xf]
    %v558 = vld [vmem:[%s1 + $0xc6c] sm:$0xff]
    %v559 = vld [vmem:[%s1 + $0xc74] sm:$0xf]
    %v560 = vld [vmem:[%s1 + $0xc78] sm:$0xff]
    %v561 = vld [vmem:[%s1 + $0xc80] sm:$0xf]
    %v562 = vld [vmem:[%s1 + $0xc84] sm:$0xff]
    %v563 = vld [vmem:[%s1 + $0xc8c] sm:$0xf]
    %v564 = vld [vmem:[%s1 + $0xc90] sm:$0xff]
    %v565 = vld [vmem:[%s1 + $0xc98] sm:$0xf]
    %v566 = vld [vmem:[%s1 + $0xc9c] sm:$0xff]
    %v567 = vld [vmem:[%s1 + $0xca4] sm:$0xf]
    %v568 = vld [vmem:[%s1 + $0xca8] sm:$0xff]
    %v569 = vld [vmem:[%s1 + $0xcb0] sm:$0xf]
    %v570 = vld [vmem:[%s1 + $0xcb4] sm:$0xff]
    %v571 = vld [vmem:[%s1 + $0xcbc] sm:$0xf]
    %v572 = vld [vmem:[%s1 + $0xcc0] sm:$0xff]
    %v573 = vld [vmem:[%s1 + $0xcc8] sm:$0xf]
    %v574 = vld [vmem:[%s1 + $0xccc] sm:$0xff]
    %v575 = vld [vmem:[%s1 + $0xcd4] sm:$0xf]
    %v576 = vld [vmem:[%s1 + $0xcd8] sm:$0xff]
    %v577 = vld [vmem:[%s1 + $0xce0] sm:$0xf]
    %v578 = vld [vmem:[%s1 + $0xce4] sm:$0xff]
    %v579 = vld [vmem:[%s1 + $0xcec] sm:$0xf]
    %v580 = vld [vmem:[%s1 + $0xcf0] sm:$0xff]
    %v581 = vld [vmem:[%s1 + $0xcf8] sm:$0xf]
    %v582 = vld [vmem:[%s1 + $0xcfc] sm:$0xff]
    %v583 = vld [vmem:[%s1 + $0xd04] sm:$0xf]
    %v584 = vld [vmem:[%s1 + $0xd08] sm:$0xff]
    %v585 = vld [vmem:[%s1 + $0xd10] sm:$0xf]
    %v586 = vld [vmem:[%s1 + $0xd14] sm:$0xff]
    %v587 = vld [vmem:[%s1 + $0xd1c] sm:$0xf]
    %v588 = vld [vmem:[%s1 + $0xd20] sm:$0xff]
    %v589 = vld [vmem:[%s1 + $0xd28] sm:$0xf]
    %v590 = vld [vmem:[%s1 + $0xd2c] sm:$0xff]
    %v591 = vld [vmem:[%s1 + $0xd34] sm:$0xf]
    %v592 = vld [vmem:[%s1 + $0xd38] sm:$0xff]
    %v593 = vld [vmem:[%s1 + $0xd40] sm:$0xf]
    %v594 = vld [vmem:[%s1 + $0xd44] sm:$0xff]
    %v595 = vld [vmem:[%s1 + $0xd4c] sm:$0xf]
    %v596 = vld [vmem:[%s1 + $0xd50] sm:$0xff]
    %v597 = vld [vmem:[%s1 + $0xd58] sm:$0xf]
    %v598 = vld [vmem:[%s1 + $0xd5c] sm:$0xff]
    %v599 = vld [vmem:[%s1 + $0xd64] sm:$0xf]
    %v600 = vld [vmem:[%s1 + $0xd68] sm:$0xff]
    %v601 = vld [vmem:[%s1 + $0xd70] sm:$0xf]
    %v602 = vld [vmem:[%s1 + $0xd74] sm:$0xff]
    %v603 = vld [vmem:[%s1 + $0xd7c] sm:$0xf]
    %v604 = vld [vmem:[%s1 + $0xd80] sm:$0xff]
    %v605 = vld [vmem:[%s1 + $0xd88] sm:$0xf]
    %v606 = vld [vmem:[%s1 + $0xd8c] sm:$0xff]
    %v607 = vld [vmem:[%s1 + $0xd94] sm:$0xf]
    %v608 = vld [vmem:[%s1 + $0xd98] sm:$0xff]
    %v609 = vld [vmem:[%s1 + $0xda0] sm:$0xf]
    %v610 = vld [vmem:[%s1 + $0xda4] sm:$0xff]
    %v611 = vld [vmem:[%s1 + $0xdac] sm:$0xf]
    %v612 = vld [vmem:[%s1 + $0xdb0] sm:$0xff]
    %v613 = vld [vmem:[%s1 + $0xdb8] sm:$0xf]
    %v614 = vld [vmem:[%s1 + $0xdbc] sm:$0xff]
    %v615 = vld [vmem:[%s1 + $0xdc4] sm:$0xf]
    %v616 = vld [vmem:[%s1 + $0xdc8] sm:$0xff]
    %v617 = vld [vmem:[%s1 + $0xdd0] sm:$0xf]
    %v618 = vld [vmem:[%s1 + $0xdd4] sm:$0xff]
    %v619 = vld [vmem:[%s1 + $0xddc] sm:$0xf]
    %v620 = vld [vmem:[%s1 + $0xde0] sm:$0xff]
    %v621 = vld [vmem:[%s1 + $0xde8] sm:$0xf]
    %v622 = vld [vmem:[%s1 + $0xdec] sm:$0xff]
    %v623 = vld [vmem:[%s1 + $0xdf4] sm:$0xf]
    %v624 = vld [vmem:[%s1 + $0xdf8] sm:$0xff]
    %v625 = vld [vmem:[%s1 + $0xe00] sm:$0xf]
    %v626 = vld [vmem:[%s1 + $0xe04] sm:$0xff]
    %v627 = vld [vmem:[%s1 + $0xe0c] sm:$0xf]
    %v628 = vld [vmem:[%s1 + $0xe10] sm:$0xff]
    %v629 = vld [vmem:[%s1 + $0xe18] sm:$0xf]
    %v630 = vld [vmem:[%s1 + $0xe1c] sm:$0xff]
    %v631 = vld [vmem:[%s1 + $0xe24] sm:$0xf]
    %v632 = vld [vmem:[%s1 + $0xe28] sm:$0xff]
    %v633 = vld [vmem:[%s1 + $0xe30] sm:$0xf]
    %v634 = vld [vmem:[%s1 + $0xe34] sm:$0xff]
    %v635 = vld [vmem:[%s1 + $0xe3c] sm:$0xf]
    %v636 = vld [vmem:[%s1 + $0xe40] sm:$0xff]
    %v637 = vld [vmem:[%s1 + $0xe48] sm:$0xf]
    %v638 = vld [vmem:[%s1 + $0xe4c] sm:$0xff]
    %v639 = vld [vmem:[%s1 + $0xe54] sm:$0xf]
    %v640 = vld [vmem:[%s1 + $0xe58] sm:$0xff]
    %v641 = vld [vmem:[%s1 + $0xe60] sm:$0xf]
    %v642 = vld [vmem:[%s1 + $0xe64] sm:$0xff]
    %v643 = vld [vmem:[%s1 + $0xe6c] sm:$0xf]
    %v644 = vld [vmem:[%s1 + $0xe70] sm:$0xff]
    %v645 = vld [vmem:[%s1 + $0xe78] sm:$0xf]
    %v646 = vld [vmem:[%s1 + $0xe7c] sm:$0xff]
    %v647 = vld [vmem:[%s1 + $0xe84] sm:$0xf]
    %v648 = vld [vmem:[%s1 + $0xe88] sm:$0xff]
    %v649 = vld [vmem:[%s1 + $0xe90] sm:$0xf]
    %v650 = vld [vmem:[%s1 + $0xe94] sm:$0xff]
    %v651 = vld [vmem:[%s1 + $0xe9c] sm:$0xf]
    %v652 = vld [vmem:[%s1 + $0xea0] sm:$0xff]
    %v653 = vld [vmem:[%s1 + $0xea8] sm:$0xf]
    %v654 = vld [vmem:[%s1 + $0xeac] sm:$0xff]
    %v655 = vld [vmem:[%s1 + $0xeb4] sm:$0xf]
    %v656 = vld [vmem:[%s1 + $0xeb8] sm:$0xff]
    %v657 = vld [vmem:[%s1 + $0xec0] sm:$0xf]
    %v658 = vld [vmem:[%s1 + $0xec4] sm:$0xff]
    %v659 = vld [vmem:[%s1 + $0xecc] sm:$0xf]
    %v660 = vld [vmem:[%s1 + $0xed0] sm:$0xff]
    %v661 = vld [vmem:[%s1 + $0xed8] sm:$0xf]
    %v662 = vld [vmem:[%s1 + $0xedc] sm:$0xff]
    %v663 = vld [vmem:[%s1 + $0xee4] sm:$0xf]
    %v664 = vld [vmem:[%s1 + $0xee8] sm:$0xff]
    %v665 = vld [vmem:[%s1 + $0xef0] sm:$0xf]
    %v666 = vld [vmem:[%s1 + $0xef4] sm:$0xff]
    %v667 = vld [vmem:[%s1 + $0xefc] sm:$0xf]
    %v668 = vld [vmem:[%s1 + $0xf00] sm:$0xff]
    %v669 = vld [vmem:[%s1 + $0xf08] sm:$0xf]
    %v670 = vld [vmem:[%s1 + $0xf0c] sm:$0xff]
    %v671 = vld [vmem:[%s1 + $0xf14] sm:$0xf]
    %v672 = vld [vmem:[%s1 + $0xf18] sm:$0xff]
    %v673 = vld [vmem:[%s1 + $0xf20] sm:$0xf]
    %v674 = vld [vmem:[%s1 + $0xf24] sm:$0xff]
    %v675 = vld [vmem:[%s1 + $0xf2c] sm:$0xf]
    %v676 = vld [vmem:[%s1 + $0xf30] sm:$0xff]
    %v677 = vld [vmem:[%s1 + $0xf38] sm:$0xf]
    %v678 = vld [vmem:[%s1 + $0xf3c] sm:$0xff]
    %v679 = vld [vmem:[%s1 + $0xf44] sm:$0xf]
    %v680 = vld [vmem:[%s1 + $0xf48] sm:$0xff]
    %v681 = vld [vmem:[%s1 + $0xf50] sm:$0xf]
    %v682 = vld [vmem:[%s1 + $0xf54] sm:$0xff]
    %v683 = vld [vmem:[%s1 + $0xf5c] sm:$0xf]
    %v684 = vld [vmem:[%s1 + $0xf60] sm:$0xff]
    %v685 = vld [vmem:[%s1 + $0xf68] sm:$0xf]
    %v686 = vld [vmem:[%s1 + $0xf6c] sm:$0xff]
    %v687 = vld [vmem:[%s1 + $0xf74] sm:$0xf]
    %v688 = vld [vmem:[%s1 + $0xf78] sm:$0xff]
    %v689 = vld [vmem:[%s1 + $0xf80] sm:$0xf]
    %v690 = vld [vmem:[%s1 + $0xf84] sm:$0xff]
    %v691 = vld [vmem:[%s1 + $0xf8c] sm:$0xf]
    %v692 = vld [vmem:[%s1 + $0xf90] sm:$0xff]
    %v693 = vld [vmem:[%s1 + $0xf98] sm:$0xf]
    %v694 = vld [vmem:[%s1 + $0xf9c] sm:$0xff]
    %v695 = vld [vmem:[%s1 + $0xfa4] sm:$0xf]
    %v696 = vld [vmem:[%s1 + $0xfa8] sm:$0xff]
    %v697 = vld [vmem:[%s1 + $0xfb0] sm:$0xf]
    %v698 = vld [vmem:[%s1 + $0xfb4] sm:$0xff]
    %v699 = vld [vmem:[%s1 + $0xfbc] sm:$0xf]
    %v700 = vld [vmem:[%s1 + $0xfc0] sm:$0xff]
    %v701 = vld [vmem:[%s1 + $0xfc8] sm:$0xf]
    %v702 = vld [vmem:[%s1 + $0xfcc] sm:$0xff]
    %v703 = vld [vmem:[%s1 + $0xfd4] sm:$0xf]
    %v704 = vld [vmem:[%s1 + $0xfd8] sm:$0xff]
    %v705 = vld [vmem:[%s1 + $0xfe0] sm:$0xf]
    %v706 = vld [vmem:[%s1 + $0xfe4] sm:$0xff]
    %v707 = vld [vmem:[%s1 + $0xfec] sm:$0xf]
    %v708 = vld [vmem:[%s1 + $0xff0] sm:$0xff]
    %v709 = vld [vmem:[%s1 + $0xff8] sm:$0xf]
    %v710 = vld [vmem:[%s1 + $0xffc] sm:$0xff]
    %v711 = vld [vmem:[%s1 + $0x1004] sm:$0xf]
    %v712 = vld [vmem:[%s1 + $0x1008] sm:$0xff]
    %v713 = vld [vmem:[%s1 + $0x1010] sm:$0xf]
    %v714 = vld [vmem:[%s1 + $0x1014] sm:$0xff]
    %v715 = vld [vmem:[%s1 + $0x101c] sm:$0xf]
    %v716 = vld [vmem:[%s1 + $0x1020] sm:$0xff]
    %v717 = vld [vmem:[%s1 + $0x1028] sm:$0xf]
    %v718 = vld [vmem:[%s1 + $0x102c] sm:$0xff]
    %v719 = vld [vmem:[%s1 + $0x1034] sm:$0xf]
    %v720 = vld [vmem:[%s1 + $0x1038] sm:$0xff]
    %v721 = vld [vmem:[%s1 + $0x1040] sm:$0xf]
    %v722 = vld [vmem:[%s1 + $0x1044] sm:$0xff]
    %v723 = vld [vmem:[%s1 + $0x104c] sm:$0xf]
    %v724 = vld [vmem:[%s1 + $0x1050] sm:$0xff]
    %v725 = vld [vmem:[%s1 + $0x1058] sm:$0xf]
    %v726 = vld [vmem:[%s1 + $0x105c] sm:$0xff]
    %v727 = vld [vmem:[%s1 + $0x1064] sm:$0xf]
    %v728 = vld [vmem:[%s1 + $0x1068] sm:$0xff]
    %v729 = vld [vmem:[%s1 + $0x1070] sm:$0xf]
    %v730 = vld [vmem:[%s1 + $0x1074] sm:$0xff]
    %v731 = vld [vmem:[%s1 + $0x107c] sm:$0xf]
    %v732 = vld [vmem:[%s1 + $0x1080] sm:$0xff]
    %v733 = vld [vmem:[%s1 + $0x1088] sm:$0xf]
    %v734 = vld [vmem:[%s1 + $0x108c] sm:$0xff]
    %v735 = vld [vmem:[%s1 + $0x1094] sm:$0xf]
    %v736 = vld [vmem:[%s1 + $0x1098] sm:$0xff]
    %v737 = vld [vmem:[%s1 + $0x10a0] sm:$0xf]
    %v738 = vld [vmem:[%s1 + $0x10a4] sm:$0xff]
    %v739 = vld [vmem:[%s1 + $0x10ac] sm:$0xf]
    %v740 = vld [vmem:[%s1 + $0x10b0] sm:$0xff]
    %v741 = vld [vmem:[%s1 + $0x10b8] sm:$0xf]
    %v742 = vld [vmem:[%s1 + $0x10bc] sm:$0xff]
    %v743 = vld [vmem:[%s1 + $0x10c4] sm:$0xf]
    %v744 = vld [vmem:[%s1 + $0x10c8] sm:$0xff]
    %v745 = vld [vmem:[%s1 + $0x10d0] sm:$0xf]
    %v746 = vld [vmem:[%s1 + $0x10d4] sm:$0xff]
    %v747 = vld [vmem:[%s1 + $0x10dc] sm:$0xf]
    %v748 = vld [vmem:[%s1 + $0x10e0] sm:$0xff]
    %v749 = vld [vmem:[%s1 + $0x10e8] sm:$0xf]
    %v750 = vld [vmem:[%s1 + $0x10ec] sm:$0xff]
    %v751 = vld [vmem:[%s1 + $0x10f4] sm:$0xf]
    %v752 = vld [vmem:[%s1 + $0x10f8] sm:$0xff]
    %v753 = vld [vmem:[%s1 + $0x1100] sm:$0xf]
    %v754 = vld [vmem:[%s1 + $0x1104] sm:$0xff]
    %v755 = vld [vmem:[%s1 + $0x110c] sm:$0xf]
    %v756 = vld [vmem:[%s1 + $0x1110] sm:$0xff]
    %v757 = vld [vmem:[%s1 + $0x1118] sm:$0xf]
    %v758 = vld [vmem:[%s1 + $0x111c] sm:$0xff]
    %v759 = vld [vmem:[%s1 + $0x1124] sm:$0xf]
    %v760 = vld [vmem:[%s1 + $0x1128] sm:$0xff]
    %v761 = vld [vmem:[%s1 + $0x1130] sm:$0xf]
    %v762 = vld [vmem:[%s1 + $0x1134] sm:$0xff]
    %v763 = vld [vmem:[%s1 + $0x113c] sm:$0xf]
    %v764 = vld [vmem:[%s1 + $0x1140] sm:$0xff]
    %v765 = vld [vmem:[%s1 + $0x1148] sm:$0xf]
    %v766 = vld [vmem:[%s1 + $0x114c] sm:$0xff]
    %v767 = vld [vmem:[%s1 + $0x1154] sm:$0xf]
    %v768 = vld [vmem:[%s1 + $0x1158] sm:$0xff]
    %v769 = vld [vmem:[%s1 + $0x1160] sm:$0xf]
    %v770 = vld [vmem:[%s1 + $0x1164] sm:$0xff]
    %v771 = vld [vmem:[%s1 + $0x116c] sm:$0xf]
    %v772 = vld [vmem:[%s1 + $0x1170] sm:$0xff]
    %v773 = vld [vmem:[%s1 + $0x1178] sm:$0xf]
    %v774 = vld [vmem:[%s1 + $0x117c] sm:$0xff]
    %v775 = vld [vmem:[%s1 + $0x1184] sm:$0xf]
    %v776 = vld [vmem:[%s1 + $0x1188] sm:$0xff]
    %v777 = vld [vmem:[%s1 + $0x1190] sm:$0xf]
    %v778 = vld [vmem:[%s1 + $0x1194] sm:$0xff]
    %v779 = vld [vmem:[%s1 + $0x119c] sm:$0xf]
    %v780 = vld [vmem:[%s1 + $0x11a0] sm:$0xff]
    %v781 = vld [vmem:[%s1 + $0x11a8] sm:$0xf]
    %v782 = vld [vmem:[%s1 + $0x11ac] sm:$0xff]
    %v783 = vld [vmem:[%s1 + $0x11b4] sm:$0xf]
    %v784 = vld [vmem:[%s1 + $0x11b8] sm:$0xff]
    %v785 = vld [vmem:[%s1 + $0x11c0] sm:$0xf]
    %v786 = vld [vmem:[%s1 + $0x11c4] sm:$0xff]
    %v787 = vld [vmem:[%s1 + $0x11cc] sm:$0xf]
    %v788 = vld [vmem:[%s1 + $0x11d0] sm:$0xff]
    %v789 = vld [vmem:[%s1 + $0x11d8] sm:$0xf]
    %v790 = vld [vmem:[%s1 + $0x11dc] sm:$0xff]
    %v791 = vld [vmem:[%s1 + $0x11e4] sm:$0xf]
    %v792 = vld [vmem:[%s1 + $0x11e8] sm:$0xff]
    %v793 = vld [vmem:[%s1 + $0x11f0] sm:$0xf]
    %v794 = vld [vmem:[%s1 + $0x11f4] sm:$0xff]
    %v795 = vld [vmem:[%s1 + $0x11fc] sm:$0xf]
    %v796 = vld [vmem:[%s1 + $0x1200] sm:$0xff]
    %v797 = vld [vmem:[%s1 + $0x1208] sm:$0xf]
    %v798 = vld [vmem:[%s1 + $0x120c] sm:$0xff]
    %v799 = vld [vmem:[%s1 + $0x1214] sm:$0xf]
    %v800 = vld [vmem:[%s1 + $0x1218] sm:$0xff]
    %v801 = vld [vmem:[%s1 + $0x1220] sm:$0xf]
    %v802 = vld [vmem:[%s1 + $0x1224] sm:$0xff]
    %v803 = vld [vmem:[%s1 + $0x122c] sm:$0xf]
    %v804 = vld [vmem:[%s1 + $0x1230] sm:$0xff]
    %v805 = vld [vmem:[%s1 + $0x1238] sm:$0xf]
    %v806 = vld [vmem:[%s1 + $0x123c] sm:$0xff]
    %v807 = vld [vmem:[%s1 + $0x1244] sm:$0xf]
    %v808 = vld [vmem:[%s1 + $0x1248] sm:$0xff]
    %v809 = vld [vmem:[%s1 + $0x1250] sm:$0xf]
    %v810 = vld [vmem:[%s1 + $0x1254] sm:$0xff]
    %v811 = vld [vmem:[%s1 + $0x125c] sm:$0xf]
    %v812 = vld [vmem:[%s1 + $0x1260] sm:$0xff]
    %v813 = vld [vmem:[%s1 + $0x1268] sm:$0xf]
    %v814 = vld [vmem:[%s1 + $0x126c] sm:$0xff]
    %v815 = vld [vmem:[%s1 + $0x1274] sm:$0xf]
    %v816 = vld [vmem:[%s1 + $0x1278] sm:$0xff]
    %v817 = vld [vmem:[%s1 + $0x1280] sm:$0xf]
    %v818 = vld [vmem:[%s1 + $0x1284] sm:$0xff]
    %v819 = vld [vmem:[%s1 + $0x128c] sm:$0xf]
    %v820 = vld [vmem:[%s1 + $0x1290] sm:$0xff]
    %v821 = vld [vmem:[%s1 + $0x1298] sm:$0xf]
    %v822 = vld [vmem:[%s1 + $0x129c] sm:$0xff]
    %v823 = vld [vmem:[%s1 + $0x12a4] sm:$0xf]
    %v824 = vld [vmem:[%s1 + $0x12a8] sm:$0xff]
    %v825 = vld [vmem:[%s1 + $0x12b0] sm:$0xf]
    %v826 = vld [vmem:[%s1 + $0x12b4] sm:$0xff]
    %v827 = vld [vmem:[%s1 + $0x12bc] sm:$0xf]
    %v828 = vld [vmem:[%s1 + $0x12c0] sm:$0xff]
    %v829 = vld [vmem:[%s1 + $0x12c8] sm:$0xf]
    %v830 = vld [vmem:[%s1 + $0x12cc] sm:$0xff]
    %v831 = vld [vmem:[%s1 + $0x12d4] sm:$0xf]
    %v832 = vld [vmem:[%s1 + $0x12d8] sm:$0xff]
    %v833 = vld [vmem:[%s1 + $0x12e0] sm:$0xf]
    %v834 = vld [vmem:[%s1 + $0x12e4] sm:$0xff]
    %v835 = vld [vmem:[%s1 + $0x12ec] sm:$0xf]
    %v836 = vld [vmem:[%s1 + $0x12f0] sm:$0xff]
    %v837 = vld [vmem:[%s1 + $0x12f8] sm:$0xf]
    %v838 = vld [vmem:[%s1 + $0x12fc] sm:$0xff]
    %v839 = vld [vmem:[%s1 + $0x1304] sm:$0xf]
    %v840 = vld [vmem:[%s1 + $0x1308] sm:$0xff]
    %v841 = vld [vmem:[%s1 + $0x1310] sm:$0xf]
    %v842 = vld [vmem:[%s1 + $0x1314] sm:$0xff]
    %v843 = vld [vmem:[%s1 + $0x131c] sm:$0xf]
    %v844 = vld [vmem:[%s1 + $0x1320] sm:$0xff]
    %v845 = vld [vmem:[%s1 + $0x1328] sm:$0xf]
    %v846 = vld [vmem:[%s1 + $0x132c] sm:$0xff]
    %v847 = vld [vmem:[%s1 + $0x1334] sm:$0xf]
    %v848 = vld [vmem:[%s1 + $0x1338] sm:$0xff]
    %v849 = vld [vmem:[%s1 + $0x1340] sm:$0xf]
    %v850 = vld [vmem:[%s1 + $0x1344] sm:$0xff]
    %v851 = vld [vmem:[%s1 + $0x134c] sm:$0xf]
    %v852 = vld [vmem:[%s1 + $0x1350] sm:$0xff]
    %v853 = vld [vmem:[%s1 + $0x1358] sm:$0xf]
    %v854 = vld [vmem:[%s1 + $0x135c] sm:$0xff]
    %v855 = vld [vmem:[%s1 + $0x1364] sm:$0xf]
    %v856 = vld [vmem:[%s1 + $0x1368] sm:$0xff]
    %v857 = vld [vmem:[%s1 + $0x1370] sm:$0xf]
    %v858 = vld [vmem:[%s1 + $0x1374] sm:$0xff]
    %v859 = vld [vmem:[%s1 + $0x137c] sm:$0xf]
    %v860 = vld [vmem:[%s1 + $0x1380] sm:$0xff]
    %v861 = vld [vmem:[%s1 + $0x1388] sm:$0xf]
    %v862 = vld [vmem:[%s1 + $0x138c] sm:$0xff]
    %v863 = vld [vmem:[%s1 + $0x1394] sm:$0xf]
    %v864 = vld [vmem:[%s1 + $0x1398] sm:$0xff]
    %v865 = vld [vmem:[%s1 + $0x13a0] sm:$0xf]
    %v866 = vld [vmem:[%s1 + $0x13a4] sm:$0xff]
    %v867 = vld [vmem:[%s1 + $0x13ac] sm:$0xf]
    %v868 = vld [vmem:[%s1 + $0x13b0] sm:$0xff]
    %v869 = vld [vmem:[%s1 + $0x13b8] sm:$0xf]
    %v870 = vld [vmem:[%s1 + $0x13bc] sm:$0xff]
    %v871 = vld [vmem:[%s1 + $0x13c4] sm:$0xf]
    %v872 = vld [vmem:[%s1 + $0x13c8] sm:$0xff]
    %v873 = vld [vmem:[%s1 + $0x13d0] sm:$0xf]
    %v874 = vld [vmem:[%s1 + $0x13d4] sm:$0xff]
    %v875 = vld [vmem:[%s1 + $0x13dc] sm:$0xf]
    %v876 = vld [vmem:[%s1 + $0x13e0] sm:$0xff]
    %v877 = vld [vmem:[%s1 + $0x13e8] sm:$0xf]
    %v878 = vld [vmem:[%s1 + $0x13ec] sm:$0xff]
    %v879 = vld [vmem:[%s1 + $0x13f4] sm:$0xf]
    %v880 = vld [vmem:[%s1 + $0x13f8] sm:$0xff]
    %v881 = vld [vmem:[%s1 + $0x1400] sm:$0xf]
    %v882 = vld [vmem:[%s1 + $0x1404] sm:$0xff]
    %v883 = vld [vmem:[%s1 + $0x140c] sm:$0xf]
    %v884 = vld [vmem:[%s1 + $0x1410] sm:$0xff]
    %v885 = vld [vmem:[%s1 + $0x1418] sm:$0xf]
    %v886 = vld [vmem:[%s1 + $0x141c] sm:$0xff]
    %v887 = vld [vmem:[%s1 + $0x1424] sm:$0xf]
    %v888 = vld [vmem:[%s1 + $0x1428] sm:$0xff]
    %v889 = vld [vmem:[%s1 + $0x1430] sm:$0xf]
    %v890 = vld [vmem:[%s1 + $0x1434] sm:$0xff]
    %v891 = vld [vmem:[%s1 + $0x143c] sm:$0xf]
    %v892 = vld [vmem:[%s1 + $0x1440] sm:$0xff]
    %v893 = vld [vmem:[%s1 + $0x1448] sm:$0xf]
    %v894 = vld [vmem:[%s1 + $0x144c] sm:$0xff]
    %v895 = vld [vmem:[%s1 + $0x1454] sm:$0xf]
    %v896 = vld [vmem:[%s1 + $0x1458] sm:$0xff]
    %v897 = vld [vmem:[%s1 + $0x1460] sm:$0xf]
    %v898 = vld [vmem:[%s1 + $0x1464] sm:$0xff]
    %v899 = vld [vmem:[%s1 + $0x146c] sm:$0xf]
    %v900 = vld [vmem:[%s1 + $0x1470] sm:$0xff]
    %v901 = vld [vmem:[%s1 + $0x1478] sm:$0xf]
    %v902 = vld [vmem:[%s1 + $0x147c] sm:$0xff]
    %v903 = vld [vmem:[%s1 + $0x1484] sm:$0xf]
    %v904 = vld [vmem:[%s1 + $0x1488] sm:$0xff]
    %v905 = vld [vmem:[%s1 + $0x1490] sm:$0xf]
    %v906 = vld [vmem:[%s1 + $0x1494] sm:$0xff]
    %v907 = vld [vmem:[%s1 + $0x149c] sm:$0xf]
    %v908 = vld [vmem:[%s1 + $0x14a0] sm:$0xff]
    %v909 = vld [vmem:[%s1 + $0x14a8] sm:$0xf]
    %v910 = vld [vmem:[%s1 + $0x14ac] sm:$0xff]
    %v911 = vld [vmem:[%s1 + $0x14b4] sm:$0xf]
    %v912 = vld [vmem:[%s1 + $0x14b8] sm:$0xff]
    %v913 = vld [vmem:[%s1 + $0x14c0] sm:$0xf]
    %v914 = vld [vmem:[%s1 + $0x14c4] sm:$0xff]
    %v915 = vld [vmem:[%s1 + $0x14cc] sm:$0xf]
    %v916 = vld [vmem:[%s1 + $0x14d0] sm:$0xff]
    %v917 = vld [vmem:[%s1 + $0x14d8] sm:$0xf]
    %v918 = vld [vmem:[%s1 + $0x14dc] sm:$0xff]
    %v919 = vld [vmem:[%s1 + $0x14e4] sm:$0xf]
    %v920 = vld [vmem:[%s1 + $0x14e8] sm:$0xff]
    %v921 = vld [vmem:[%s1 + $0x14f0] sm:$0xf]
    %v922 = vld [vmem:[%s1 + $0x14f4] sm:$0xff]
    %v923 = vld [vmem:[%s1 + $0x14fc] sm:$0xf]
    %v924 = vld [vmem:[%s1 + $0x1500] sm:$0xff]
    %v925 = vld [vmem:[%s1 + $0x1508] sm:$0xf]
    %v926 = vld [vmem:[%s1 + $0x150c] sm:$0xff]
    %v927 = vld [vmem:[%s1 + $0x1514] sm:$0xf]
    %v928 = vld [vmem:[%s1 + $0x1518] sm:$0xff]
    %v929 = vld [vmem:[%s1 + $0x1520] sm:$0xf]
    %v930 = vld [vmem:[%s1 + $0x1524] sm:$0xff]
    %v931 = vld [vmem:[%s1 + $0x152c] sm:$0xf]
    %v932 = vld [vmem:[%s1 + $0x1530] sm:$0xff]
    %v933 = vld [vmem:[%s1 + $0x1538] sm:$0xf]
    %v934 = vld [vmem:[%s1 + $0x153c] sm:$0xff]
    %v935 = vld [vmem:[%s1 + $0x1544] sm:$0xf]
    %v936 = vld [vmem:[%s1 + $0x1548] sm:$0xff]
    %v937 = vld [vmem:[%s1 + $0x1550] sm:$0xf]
    %v938 = vld [vmem:[%s1 + $0x1554] sm:$0xff]
    %v939 = vld [vmem:[%s1 + $0x155c] sm:$0xf]
    %v940 = vld [vmem:[%s1 + $0x1560] sm:$0xff]
    %v941 = vld [vmem:[%s1 + $0x1568] sm:$0xf]
    %v942 = vld [vmem:[%s1 + $0x156c] sm:$0xff]
    %v943 = vld [vmem:[%s1 + $0x1574] sm:$0xf]
    %v944 = vld [vmem:[%s1 + $0x1578] sm:$0xff]
    %v945 = vld [vmem:[%s1 + $0x1580] sm:$0xf]
    %v946 = vld [vmem:[%s1 + $0x1584] sm:$0xff]
    %v947 = vld [vmem:[%s1 + $0x158c] sm:$0xf]
    %v948 = vld [vmem:[%s1 + $0x1590] sm:$0xff]
    %v949 = vld [vmem:[%s1 + $0x1598] sm:$0xf]
    %v950 = vld [vmem:[%s1 + $0x159c] sm:$0xff]
    %v951 = vld [vmem:[%s1 + $0x15a4] sm:$0xf]
    %v952 = vld [vmem:[%s1 + $0x15a8] sm:$0xff]
    %v953 = vld [vmem:[%s1 + $0x15b0] sm:$0xf]
    %v954 = vld [vmem:[%s1 + $0x15b4] sm:$0xff]
    %v955 = vld [vmem:[%s1 + $0x15bc] sm:$0xf]
    %v956 = vld [vmem:[%s1 + $0x15c0] sm:$0xff]
    %v957 = vld [vmem:[%s1 + $0x15c8] sm:$0xf]
    %v958 = vld [vmem:[%s1 + $0x15cc] sm:$0xff]
    %v959 = vld [vmem:[%s1 + $0x15d4] sm:$0xf]
    %v960 = vld [vmem:[%s1 + $0x15d8] sm:$0xff]
    %v961 = vld [vmem:[%s1 + $0x15e0] sm:$0xf]
    %v962 = vld [vmem:[%s1 + $0x15e4] sm:$0xff]
    %v963 = vld [vmem:[%s1 + $0x15ec] sm:$0xf]
    %v964 = vld [vmem:[%s1 + $0x15f0] sm:$0xff]
    %v965 = vld [vmem:[%s1 + $0x15f8] sm:$0xf]
    %v966 = vld [vmem:[%s1 + $0x15fc] sm:$0xff]
    %v967 = vld [vmem:[%s1 + $0x1604] sm:$0xf]
    %v968 = vld [vmem:[%s1 + $0x1608] sm:$0xff]
    %v969 = vld [vmem:[%s1 + $0x1610] sm:$0xf]
    %v970 = vld [vmem:[%s1 + $0x1614] sm:$0xff]
    %v971 = vld [vmem:[%s1 + $0x161c] sm:$0xf]
    %v972 = vld [vmem:[%s1 + $0x1620] sm:$0xff]
    %v973 = vld [vmem:[%s1 + $0x1628] sm:$0xf]
    %v974 = vld [vmem:[%s1 + $0x162c] sm:$0xff]
    %v975 = vld [vmem:[%s1 + $0x1634] sm:$0xf]
    %v976 = vld [vmem:[%s1 + $0x1638] sm:$0xff]
    %v977 = vld [vmem:[%s1 + $0x1640] sm:$0xf]
    %v978 = vld [vmem:[%s1 + $0x1644] sm:$0xff]
    %v979 = vld [vmem:[%s1 + $0x164c] sm:$0xf]
    %v980 = vld [vmem:[%s1 + $0x1650] sm:$0xff]
    %v981 = vld [vmem:[%s1 + $0x1658] sm:$0xf]
    %v982 = vld [vmem:[%s1 + $0x165c] sm:$0xff]
    %v983 = vld [vmem:[%s1 + $0x1664] sm:$0xf]
    %v984 = vld [vmem:[%s1 + $0x1668] sm:$0xff]
    %v985 = vld [vmem:[%s1 + $0x1670] sm:$0xf]
    %v986 = vld [vmem:[%s1 + $0x1674] sm:$0xff]
    %v987 = vld [vmem:[%s1 + $0x167c] sm:$0xf]
    %v988 = vld [vmem:[%s1 + $0x1680] sm:$0xff]
    %v989 = vld [vmem:[%s1 + $0x1688] sm:$0xf]
    %v990 = vld [vmem:[%s1 + $0x168c] sm:$0xff]
    %v991 = vld [vmem:[%s1 + $0x1694] sm:$0xf]
    %v992 = vld [vmem:[%s1 + $0x1698] sm:$0xff]
    %v993 = vld [vmem:[%s1 + $0x16a0] sm:$0xf]
    %v994 = vld [vmem:[%s1 + $0x16a4] sm:$0xff]
    %v995 = vld [vmem:[%s1 + $0x16ac] sm:$0xf]
    %v996 = vld [vmem:[%s1 + $0x16b0] sm:$0xff]
    %v997 = vld [vmem:[%s1 + $0x16b8] sm:$0xf]
    %v998 = vld [vmem:[%s1 + $0x16bc] sm:$0xff]
    %v999 = vld [vmem:[%s1 + $0x16c4] sm:$0xf]
    %v1000 = vld [vmem:[%s1 + $0x16c8] sm:$0xff]
    %v1001 = vld [vmem:[%s1 + $0x16d0] sm:$0xf]
    %v1002 = vld [vmem:[%s1 + $0x16d4] sm:$0xff]
    %v1003 = vld [vmem:[%s1 + $0x16dc] sm:$0xf]
    %v1004 = vld [vmem:[%s1 + $0x16e0] sm:$0xff]
    %v1005 = vld [vmem:[%s1 + $0x16e8] sm:$0xf]
    %v1006 = vld [vmem:[%s1 + $0x16ec] sm:$0xff]
    %v1007 = vld [vmem:[%s1 + $0x16f4] sm:$0xf]
    %v1008 = vld [vmem:[%s1 + $0x16f8] sm:$0xff]
    %v1009 = vld [vmem:[%s1 + $0x1700] sm:$0xf]
    %v1010 = vld [vmem:[%s1 + $0x1704] sm:$0xff]
    %v1011 = vld [vmem:[%s1 + $0x170c] sm:$0xf]
    %v1012 = vld [vmem:[%s1 + $0x1710] sm:$0xff]
    %v1013 = vld [vmem:[%s1 + $0x1718] sm:$0xf]
    %v1014 = vld [vmem:[%s1 + $0x171c] sm:$0xff]
    %v1015 = vld [vmem:[%s1 + $0x1724] sm:$0xf]
    %v1016 = vld [vmem:[%s1 + $0x1728] sm:$0xff]
    %v1017 = vld [vmem:[%s1 + $0x1730] sm:$0xf]
    %v1018 = vld [vmem:[%s1 + $0x1734] sm:$0xff]
    %v1019 = vld [vmem:[%s1 + $0x173c] sm:$0xf]
    %v1020 = vld [vmem:[%s1 + $0x1740] sm:$0xff]
    %v1021 = vld [vmem:[%s1 + $0x1748] sm:$0xf]
    %v1022 = vld [vmem:[%s1 + $0x174c] sm:$0xff]
    %v1023 = vld [vmem:[%s1 + $0x1754] sm:$0xf]
    %v1024 = vld [vmem:[%s1 + $0x1758] sm:$0xff]
    %v1025 = vld [vmem:[%s1 + $0x1760] sm:$0xf]
    %v1026 = vld [vmem:[%s1 + $0x1764] sm:$0xff]
    %v1027 = vld [vmem:[%s1 + $0x176c] sm:$0xf]
    %v1028 = vld [vmem:[%s0] sm:$0xff]
    %v1029 = vld [vmem:[%s0 + $0x8] sm:$0xff]
    %v1030 = vld [vmem:[%s0 + $0x10] sm:$0xff]
    %v1031 = vld [vmem:[%s0 + $0x18] sm:$0xff]
    %1033 = vst [vmem:[#allocation1] ss:$9 sm:$0xff] %v1028
    %v1034 = vld [vmem:[#allocation1] sm:$0xff]
    %v1035 = vld [vmem:[#allocation1 + $0x9] sm:$0xff]
    %v1036 = vld [vmem:[#allocation1 + $0x12] sm:$0xff]
    %v1037 = vld [vmem:[#allocation1 + $0x1b] sm:$0xff]
    %v1038 = vld [vmem:[#allocation1 + $0x24] sm:$0xff]
    %v1039 = vld [vmem:[#allocation1 + $0x2d] sm:$0xff]
    %v1040 = vld [vmem:[#allocation1 + $0x36] sm:$0xff]
    %v1041 = vld [vmem:[#allocation1 + $0x3f] sm:$0xff]
    %1043 = vst [vmem:[#allocation1] ss:$9 sm:$0xff] %v1029
    %v1044 = vld [vmem:[#allocation1] sm:$0xff]
    %v1045 = vld [vmem:[#allocation1 + $0x9] sm:$0xff]
    %v1046 = vld [vmem:[#allocation1 + $0x12] sm:$0xff]
    %v1047 = vld [vmem:[#allocation1 + $0x1b] sm:$0xff]
    %v1048 = vld [vmem:[#allocation1 + $0x24] sm:$0xff]
    %v1049 = vld [vmem:[#allocation1 + $0x2d] sm:$0xff]
    %v1050 = vld [vmem:[#allocation1 + $0x36] sm:$0xff]
    %v1051 = vld [vmem:[#allocation1 + $0x3f] sm:$0xff]
    %1053 = vst [vmem:[#allocation1] ss:$9 sm:$0xff] %v1030
    %v1054 = vld [vmem:[#allocation1] sm:$0xff]
    %v1055 = vld [vmem:[#allocation1 + $0x9] sm:$0xff]
    %v1056 = vld [vmem:[#allocation1 + $0x12] sm:$0xff]
    %v1057 = vld [vmem:[#allocation1 + $0x1b] sm:$0xff]
    %v1058 = vld [vmem:[#allocation1 + $0x24] sm:$0xff]
    %v1059 = vld [vmem:[#allocation1 + $0x2d] sm:$0xff]
    %v1060 = vld [vmem:[#allocation1 + $0x36] sm:$0xff]
    %v1061 = vld [vmem:[#allocation1 + $0x3f] sm:$0xff]
    %1063 = vst [vmem:[#allocation1] ss:$9 sm:$0xff] %v1031
    %v1064 = vld [vmem:[#allocation1] sm:$0xff]
    %v1065 = vld [vmem:[#allocation1 + $0x9] sm:$0xff]
    %v1066 = vld [vmem:[#allocation1 + $0x12] sm:$0xff]
    %v1067 = vld [vmem:[#allocation1 + $0x1b] sm:$0xff]
    %v1068 = vld [vmem:[#allocation1 + $0x24] sm:$0xff]
    %v1069 = vld [vmem:[#allocation1 + $0x2d] sm:$0xff]
    %v1070 = vld [vmem:[#allocation1 + $0x36] sm:$0xff]
    %v1071 = vld [vmem:[#allocation1 + $0x3f] sm:$0xff]
    %v2103 = vunpack.c.l.b16 %v28
    %v2104 = vunpack.c.h.b16 %v28
    %v2105 = vunpack.c.l.b16 %v29
    %v2106 = vunpack.c.l.b16 %v30
    %v2107 = vunpack.c.h.b16 %v30
    %v2108 = vunpack.c.l.b16 %v31
    %v2109 = vunpack.c.l.b16 %v32
    %v2110 = vunpack.c.h.b16 %v32
    %v2111 = vunpack.c.l.b16 %v33
    %v2112 = vunpack.c.l.b16 %v34
    %v2113 = vunpack.c.h.b16 %v34
    %v2114 = vunpack.c.l.b16 %v35
    %v2115 = vunpack.c.l.b16 %v36
    %v2116 = vunpack.c.h.b16 %v36
    %v2117 = vunpack.c.l.b16 %v37
    %v2118 = vunpack.c.l.b16 %v38
    %v2119 = vunpack.c.h.b16 %v38
    %v2120 = vunpack.c.l.b16 %v39
    %v2121 = vunpack.c.l.b16 %v40
    %v2122 = vunpack.c.h.b16 %v40
    %v2123 = vunpack.c.l.b16 %v41
    %v2124 = vunpack.c.l.b16 %v42
    %v2125 = vunpack.c.h.b16 %v42
    %v2126 = vunpack.c.l.b16 %v43
    %v2127 = vunpack.c.l.b16 %v44
    %v2128 = vunpack.c.h.b16 %v44
    %v2129 = vunpack.c.l.b16 %v45
    %v2130 = vunpack.c.l.b16 %v46
    %v2131 = vunpack.c.h.b16 %v46
    %v2132 = vunpack.c.l.b16 %v47
    %v2133 = vunpack.c.l.b16 %v48
    %v2134 = vunpack.c.h.b16 %v48
    %v2135 = vunpack.c.l.b16 %v49
    %v2136 = vunpack.c.l.b16 %v50
    %v2137 = vunpack.c.h.b16 %v50
    %v2138 = vunpack.c.l.b16 %v51
    %v2139 = vunpack.c.l.b16 %v52
    %v2140 = vunpack.c.h.b16 %v52
    %v2141 = vunpack.c.l.b16 %v53
    %v2142 = vunpack.c.l.b16 %v54
    %v2143 = vunpack.c.h.b16 %v54
    %v2144 = vunpack.c.l.b16 %v55
    %v2145 = vunpack.c.l.b16 %v56
    %v2146 = vunpack.c.h.b16 %v56
    %v2147 = vunpack.c.l.b16 %v57
    %v2148 = vunpack.c.l.b16 %v58
    %v2149 = vunpack.c.h.b16 %v58
    %v2150 = vunpack.c.l.b16 %v59
    %v2151 = vunpack.c.l.b16 %v60
    %v2152 = vunpack.c.h.b16 %v60
    %v2153 = vunpack.c.l.b16 %v61
    %v2154 = vunpack.c.l.b16 %v62
    %v2155 = vunpack.c.h.b16 %v62
    %v2156 = vunpack.c.l.b16 %v63
    %v2157 = vunpack.c.l.b16 %v64
    %v2158 = vunpack.c.h.b16 %v64
    %v2159 = vunpack.c.l.b16 %v65
    %v2160 = vunpack.c.l.b16 %v66
    %v2161 = vunpack.c.h.b16 %v66
    %v2162 = vunpack.c.l.b16 %v67
    %v2163 = vunpack.c.l.b16 %v68
    %v2164 = vunpack.c.h.b16 %v68
    %v2165 = vunpack.c.l.b16 %v69
    %v2166 = vunpack.c.l.b16 %v70
    %v2167 = vunpack.c.h.b16 %v70
    %v2168 = vunpack.c.l.b16 %v71
    %v2169 = vunpack.c.l.b16 %v72
    %v2170 = vunpack.c.h.b16 %v72
    %v2171 = vunpack.c.l.b16 %v73
    %v2172 = vunpack.c.l.b16 %v74
    %v2173 = vunpack.c.h.b16 %v74
    %v2174 = vunpack.c.l.b16 %v75
    %v2175 = vunpack.c.l.b16 %v76
    %v2176 = vunpack.c.h.b16 %v76
    %v2177 = vunpack.c.l.b16 %v77
    %v2178 = vunpack.c.l.b16 %v78
    %v2179 = vunpack.c.h.b16 %v78
    %v2180 = vunpack.c.l.b16 %v79
    %v2181 = vunpack.c.l.b16 %v80
    %v2182 = vunpack.c.h.b16 %v80
    %v2183 = vunpack.c.l.b16 %v81
    %v2184 = vunpack.c.l.b16 %v82
    %v2185 = vunpack.c.h.b16 %v82
    %v2186 = vunpack.c.l.b16 %v83
    %v2187 = vunpack.c.l.b16 %v84
    %v2188 = vunpack.c.h.b16 %v84
    %v2189 = vunpack.c.l.b16 %v85
    %v2190 = vunpack.c.l.b16 %v86
    %v2191 = vunpack.c.h.b16 %v86
    %v2192 = vunpack.c.l.b16 %v87
    %v2193 = vunpack.c.l.b16 %v88
    %v2194 = vunpack.c.h.b16 %v88
    %v2195 = vunpack.c.l.b16 %v89
    %v2196 = vunpack.c.l.b16 %v90
    %v2197 = vunpack.c.h.b16 %v90
    %v2198 = vunpack.c.l.b16 %v91
    %v2199 = vunpack.c.l.b16 %v92
    %v2200 = vunpack.c.h.b16 %v92
    %v2201 = vunpack.c.l.b16 %v93
    %v2202 = vunpack.c.l.b16 %v94
    %v2203 = vunpack.c.h.b16 %v94
    %v2204 = vunpack.c.l.b16 %v95
    %v2205 = vunpack.c.l.b16 %v96
    %v2206 = vunpack.c.h.b16 %v96
    %v2207 = vunpack.c.l.b16 %v97
    %v2208 = vunpack.c.l.b16 %v98
    %v2209 = vunpack.c.h.b16 %v98
    %v2210 = vunpack.c.l.b16 %v99
    %v2211 = vunpack.c.l.b16 %v100
    %v2212 = vunpack.c.h.b16 %v100
    %v2213 = vunpack.c.l.b16 %v101
    %v2214 = vunpack.c.l.b16 %v102
    %v2215 = vunpack.c.h.b16 %v102
    %v2216 = vunpack.c.l.b16 %v103
    %v2217 = vunpack.c.l.b16 %v104
    %v2218 = vunpack.c.h.b16 %v104
    %v2219 = vunpack.c.l.b16 %v105
    %v2220 = vunpack.c.l.b16 %v106
    %v2221 = vunpack.c.h.b16 %v106
    %v2222 = vunpack.c.l.b16 %v107
    %v2223 = vunpack.c.l.b16 %v108
    %v2224 = vunpack.c.h.b16 %v108
    %v2225 = vunpack.c.l.b16 %v109
    %v2226 = vunpack.c.l.b16 %v110
    %v2227 = vunpack.c.h.b16 %v110
    %v2228 = vunpack.c.l.b16 %v111
    %v2229 = vunpack.c.l.b16 %v112
    %v2230 = vunpack.c.h.b16 %v112
    %v2231 = vunpack.c.l.b16 %v113
    %v2232 = vunpack.c.l.b16 %v114
    %v2233 = vunpack.c.h.b16 %v114
    %v2234 = vunpack.c.l.b16 %v115
    %v2235 = vunpack.c.l.b16 %v116
    %v2236 = vunpack.c.h.b16 %v116
    %v2237 = vunpack.c.l.b16 %v117
    %v2238 = vunpack.c.l.b16 %v118
    %v2239 = vunpack.c.h.b16 %v118
    %v2240 = vunpack.c.l.b16 %v119
    %v2241 = vunpack.c.l.b16 %v120
    %v2242 = vunpack.c.h.b16 %v120
    %v2243 = vunpack.c.l.b16 %v121
    %v2244 = vunpack.c.l.b16 %v122
    %v2245 = vunpack.c.h.b16 %v122
    %v2246 = vunpack.c.l.b16 %v123
    %v2247 = vunpack.c.l.b16 %v124
    %v2248 = vunpack.c.h.b16 %v124
    %v2249 = vunpack.c.l.b16 %v125
    %v2250 = vunpack.c.l.b16 %v126
    %v2251 = vunpack.c.h.b16 %v126
    %v2252 = vunpack.c.l.b16 %v127
    %v2253 = vunpack.c.l.b16 %v128
    %v2254 = vunpack.c.h.b16 %v128
    %v2255 = vunpack.c.l.b16 %v129
    %v2256 = vunpack.c.l.b16 %v130
    %v2257 = vunpack.c.h.b16 %v130
    %v2258 = vunpack.c.l.b16 %v131
    %v2259 = vunpack.c.l.b16 %v132
    %v2260 = vunpack.c.h.b16 %v132
    %v2261 = vunpack.c.l.b16 %v133
    %v2262 = vunpack.c.l.b16 %v134
    %v2263 = vunpack.c.h.b16 %v134
    %v2264 = vunpack.c.l.b16 %v135
    %v2265 = vunpack.c.l.b16 %v136
    %v2266 = vunpack.c.h.b16 %v136
    %v2267 = vunpack.c.l.b16 %v137
    %v2268 = vunpack.c.l.b16 %v138
    %v2269 = vunpack.c.h.b16 %v138
    %v2270 = vunpack.c.l.b16 %v139
    %v2271 = vunpack.c.l.b16 %v140
    %v2272 = vunpack.c.h.b16 %v140
    %v2273 = vunpack.c.l.b16 %v141
    %v2274 = vunpack.c.l.b16 %v142
    %v2275 = vunpack.c.h.b16 %v142
    %v2276 = vunpack.c.l.b16 %v143
    %v2277 = vunpack.c.l.b16 %v144
    %v2278 = vunpack.c.h.b16 %v144
    %v2279 = vunpack.c.l.b16 %v145
    %v2280 = vunpack.c.l.b16 %v146
    %v2281 = vunpack.c.h.b16 %v146
    %v2282 = vunpack.c.l.b16 %v147
    %v2283 = vunpack.c.l.b16 %v148
    %v2284 = vunpack.c.h.b16 %v148
    %v2285 = vunpack.c.l.b16 %v149
    %v2286 = vunpack.c.l.b16 %v150
    %v2287 = vunpack.c.h.b16 %v150
    %v2288 = vunpack.c.l.b16 %v151
    %v2289 = vunpack.c.l.b16 %v152
    %v2290 = vunpack.c.h.b16 %v152
    %v2291 = vunpack.c.l.b16 %v153
    %v2292 = vunpack.c.l.b16 %v154
    %v2293 = vunpack.c.h.b16 %v154
    %v2294 = vunpack.c.l.b16 %v155
    %v2295 = vunpack.c.l.b16 %v156
    %v2296 = vunpack.c.h.b16 %v156
    %v2297 = vunpack.c.l.b16 %v157
    %v2298 = vunpack.c.l.b16 %v158
    %v2299 = vunpack.c.h.b16 %v158
    %v2300 = vunpack.c.l.b16 %v159
    %v2301 = vunpack.c.l.b16 %v160
    %v2302 = vunpack.c.h.b16 %v160
    %v2303 = vunpack.c.l.b16 %v161
    %v2304 = vunpack.c.l.b16 %v162
    %v2305 = vunpack.c.h.b16 %v162
    %v2306 = vunpack.c.l.b16 %v163
    %v2307 = vunpack.c.l.b16 %v164
    %v2308 = vunpack.c.h.b16 %v164
    %v2309 = vunpack.c.l.b16 %v165
    %v2310 = vunpack.c.l.b16 %v166
    %v2311 = vunpack.c.h.b16 %v166
    %v2312 = vunpack.c.l.b16 %v167
    %v2313 = vunpack.c.l.b16 %v168
    %v2314 = vunpack.c.h.b16 %v168
    %v2315 = vunpack.c.l.b16 %v169
    %v2316 = vunpack.c.l.b16 %v170
    %v2317 = vunpack.c.h.b16 %v170
    %v2318 = vunpack.c.l.b16 %v171
    %v2319 = vunpack.c.l.b16 %v172
    %v2320 = vunpack.c.h.b16 %v172
    %v2321 = vunpack.c.l.b16 %v173
    %v2322 = vunpack.c.l.b16 %v174
    %v2323 = vunpack.c.h.b16 %v174
    %v2324 = vunpack.c.l.b16 %v175
    %v2325 = vunpack.c.l.b16 %v176
    %v2326 = vunpack.c.h.b16 %v176
    %v2327 = vunpack.c.l.b16 %v177
    %v2328 = vunpack.c.l.b16 %v178
    %v2329 = vunpack.c.h.b16 %v178
    %v2330 = vunpack.c.l.b16 %v179
    %v2331 = vunpack.c.l.b16 %v180
    %v2332 = vunpack.c.h.b16 %v180
    %v2333 = vunpack.c.l.b16 %v181
    %v2334 = vunpack.c.l.b16 %v182
    %v2335 = vunpack.c.h.b16 %v182
    %v2336 = vunpack.c.l.b16 %v183
    %v2337 = vunpack.c.l.b16 %v184
    %v2338 = vunpack.c.h.b16 %v184
    %v2339 = vunpack.c.l.b16 %v185
    %v2340 = vunpack.c.l.b16 %v186
    %v2341 = vunpack.c.h.b16 %v186
    %v2342 = vunpack.c.l.b16 %v187
    %v2343 = vunpack.c.l.b16 %v188
    %v2344 = vunpack.c.h.b16 %v188
    %v2345 = vunpack.c.l.b16 %v189
    %v2346 = vunpack.c.l.b16 %v190
    %v2347 = vunpack.c.h.b16 %v190
    %v2348 = vunpack.c.l.b16 %v191
    %v2349 = vunpack.c.l.b16 %v192
    %v2350 = vunpack.c.h.b16 %v192
    %v2351 = vunpack.c.l.b16 %v193
    %v2352 = vunpack.c.l.b16 %v194
    %v2353 = vunpack.c.h.b16 %v194
    %v2354 = vunpack.c.l.b16 %v195
    %v2355 = vunpack.c.l.b16 %v196
    %v2356 = vunpack.c.h.b16 %v196
    %v2357 = vunpack.c.l.b16 %v197
    %v2358 = vunpack.c.l.b16 %v198
    %v2359 = vunpack.c.h.b16 %v198
    %v2360 = vunpack.c.l.b16 %v199
    %v2361 = vunpack.c.l.b16 %v200
    %v2362 = vunpack.c.h.b16 %v200
    %v2363 = vunpack.c.l.b16 %v201
    %v2364 = vunpack.c.l.b16 %v202
    %v2365 = vunpack.c.h.b16 %v202
    %v2366 = vunpack.c.l.b16 %v203
    %v2367 = vunpack.c.l.b16 %v204
    %v2368 = vunpack.c.h.b16 %v204
    %v2369 = vunpack.c.l.b16 %v205
    %v2370 = vunpack.c.l.b16 %v206
    %v2371 = vunpack.c.h.b16 %v206
    %v2372 = vunpack.c.l.b16 %v207
    %v2373 = vunpack.c.l.b16 %v208
    %v2374 = vunpack.c.h.b16 %v208
    %v2375 = vunpack.c.l.b16 %v209
    %v2376 = vunpack.c.l.b16 %v210
    %v2377 = vunpack.c.h.b16 %v210
    %v2378 = vunpack.c.l.b16 %v211
    %v2379 = vunpack.c.l.b16 %v212
    %v2380 = vunpack.c.h.b16 %v212
    %v2381 = vunpack.c.l.b16 %v213
    %v2382 = vunpack.c.l.b16 %v214
    %v2383 = vunpack.c.h.b16 %v214
    %v2384 = vunpack.c.l.b16 %v215
    %v2385 = vunpack.c.l.b16 %v216
    %v2386 = vunpack.c.h.b16 %v216
    %v2387 = vunpack.c.l.b16 %v217
    %v2388 = vunpack.c.l.b16 %v218
    %v2389 = vunpack.c.h.b16 %v218
    %v2390 = vunpack.c.l.b16 %v219
    %v2391 = vunpack.c.l.b16 %v220
    %v2392 = vunpack.c.h.b16 %v220
    %v2393 = vunpack.c.l.b16 %v221
    %v2394 = vunpack.c.l.b16 %v222
    %v2395 = vunpack.c.h.b16 %v222
    %v2396 = vunpack.c.l.b16 %v223
    %v2397 = vunpack.c.l.b16 %v224
    %v2398 = vunpack.c.h.b16 %v224
    %v2399 = vunpack.c.l.b16 %v225
    %v2400 = vunpack.c.l.b16 %v226
    %v2401 = vunpack.c.h.b16 %v226
    %v2402 = vunpack.c.l.b16 %v227
    %v2403 = vunpack.c.l.b16 %v228
    %v2404 = vunpack.c.h.b16 %v228
    %v2405 = vunpack.c.l.b16 %v229
    %v2406 = vunpack.c.l.b16 %v230
    %v2407 = vunpack.c.h.b16 %v230
    %v2408 = vunpack.c.l.b16 %v231
    %v2409 = vunpack.c.l.b16 %v232
    %v2410 = vunpack.c.h.b16 %v232
    %v2411 = vunpack.c.l.b16 %v233
    %v2412 = vunpack.c.l.b16 %v234
    %v2413 = vunpack.c.h.b16 %v234
    %v2414 = vunpack.c.l.b16 %v235
    %v2415 = vunpack.c.l.b16 %v236
    %v2416 = vunpack.c.h.b16 %v236
    %v2417 = vunpack.c.l.b16 %v237
    %v2418 = vunpack.c.l.b16 %v238
    %v2419 = vunpack.c.h.b16 %v238
    %v2420 = vunpack.c.l.b16 %v239
    %v2421 = vunpack.c.l.b16 %v240
    %v2422 = vunpack.c.h.b16 %v240
    %v2423 = vunpack.c.l.b16 %v241
    %v2424 = vunpack.c.l.b16 %v242
    %v2425 = vunpack.c.h.b16 %v242
    %v2426 = vunpack.c.l.b16 %v243
    %v2427 = vunpack.c.l.b16 %v244
    %v2428 = vunpack.c.h.b16 %v244
    %v2429 = vunpack.c.l.b16 %v245
    %v2430 = vunpack.c.l.b16 %v246
    %v2431 = vunpack.c.h.b16 %v246
    %v2432 = vunpack.c.l.b16 %v247
    %v2433 = vunpack.c.l.b16 %v248
    %v2434 = vunpack.c.h.b16 %v248
    %v2435 = vunpack.c.l.b16 %v249
    %v2436 = vunpack.c.l.b16 %v250
    %v2437 = vunpack.c.h.b16 %v250
    %v2438 = vunpack.c.l.b16 %v251
    %v2439 = vunpack.c.l.b16 %v252
    %v2440 = vunpack.c.h.b16 %v252
    %v2441 = vunpack.c.l.b16 %v253
    %v2442 = vunpack.c.l.b16 %v254
    %v2443 = vunpack.c.h.b16 %v254
    %v2444 = vunpack.c.l.b16 %v255
    %v2445 = vunpack.c.l.b16 %v256
    %v2446 = vunpack.c.h.b16 %v256
    %v2447 = vunpack.c.l.b16 %v257
    %v2448 = vunpack.c.l.b16 %v258
    %v2449 = vunpack.c.h.b16 %v258
    %v2450 = vunpack.c.l.b16 %v259
    %v2451 = vunpack.c.l.b16 %v260
    %v2452 = vunpack.c.h.b16 %v260
    %v2453 = vunpack.c.l.b16 %v261
    %v2454 = vunpack.c.l.b16 %v262
    %v2455 = vunpack.c.h.b16 %v262
    %v2456 = vunpack.c.l.b16 %v263
    %v2457 = vunpack.c.l.b16 %v264
    %v2458 = vunpack.c.h.b16 %v264
    %v2459 = vunpack.c.l.b16 %v265
    %v2460 = vunpack.c.l.b16 %v266
    %v2461 = vunpack.c.h.b16 %v266
    %v2462 = vunpack.c.l.b16 %v267
    %v2463 = vunpack.c.l.b16 %v268
    %v2464 = vunpack.c.h.b16 %v268
    %v2465 = vunpack.c.l.b16 %v269
    %v2466 = vunpack.c.l.b16 %v270
    %v2467 = vunpack.c.h.b16 %v270
    %v2468 = vunpack.c.l.b16 %v271
    %v2469 = vunpack.c.l.b16 %v272
    %v2470 = vunpack.c.h.b16 %v272
    %v2471 = vunpack.c.l.b16 %v273
    %v2472 = vunpack.c.l.b16 %v274
    %v2473 = vunpack.c.h.b16 %v274
    %v2474 = vunpack.c.l.b16 %v275
    %v2475 = vunpack.c.l.b16 %v276
    %v2476 = vunpack.c.h.b16 %v276
    %v2477 = vunpack.c.l.b16 %v277
    %v2478 = vunpack.c.l.b16 %v278
    %v2479 = vunpack.c.h.b16 %v278
    %v2480 = vunpack.c.l.b16 %v279
    %v2481 = vunpack.c.l.b16 %v280
    %v2482 = vunpack.c.h.b16 %v280
    %v2483 = vunpack.c.l.b16 %v281
    %v2484 = vunpack.c.l.b16 %v282
    %v2485 = vunpack.c.h.b16 %v282
    %v2486 = vunpack.c.l.b16 %v283
    %v2487 = vunpack.c.l.b16 %v284
    %v2488 = vunpack.c.h.b16 %v284
    %v2489 = vunpack.c.l.b16 %v285
    %v2490 = vunpack.c.l.b16 %v286
    %v2491 = vunpack.c.h.b16 %v286
    %v2492 = vunpack.c.l.b16 %v287
    %v2493 = vunpack.c.l.b16 %v288
    %v2494 = vunpack.c.h.b16 %v288
    %v2495 = vunpack.c.l.b16 %v289
    %v2496 = vunpack.c.l.b16 %v290
    %v2497 = vunpack.c.h.b16 %v290
    %v2498 = vunpack.c.l.b16 %v291
    %v2499 = vunpack.c.l.b16 %v292
    %v2500 = vunpack.c.h.b16 %v292
    %v2501 = vunpack.c.l.b16 %v293
    %v2502 = vunpack.c.l.b16 %v294
    %v2503 = vunpack.c.h.b16 %v294
    %v2504 = vunpack.c.l.b16 %v295
    %v2505 = vunpack.c.l.b16 %v296
    %v2506 = vunpack.c.h.b16 %v296
    %v2507 = vunpack.c.l.b16 %v297
    %v2508 = vunpack.c.l.b16 %v298
    %v2509 = vunpack.c.h.b16 %v298
    %v2510 = vunpack.c.l.b16 %v299
    %v2511 = vunpack.c.l.b16 %v300
    %v2512 = vunpack.c.h.b16 %v300
    %v2513 = vunpack.c.l.b16 %v301
    %v2514 = vunpack.c.l.b16 %v302
    %v2515 = vunpack.c.h.b16 %v302
    %v2516 = vunpack.c.l.b16 %v303
    %v2517 = vunpack.c.l.b16 %v304
    %v2518 = vunpack.c.h.b16 %v304
    %v2519 = vunpack.c.l.b16 %v305
    %v2520 = vunpack.c.l.b16 %v306
    %v2521 = vunpack.c.h.b16 %v306
    %v2522 = vunpack.c.l.b16 %v307
    %v2523 = vunpack.c.l.b16 %v308
    %v2524 = vunpack.c.h.b16 %v308
    %v2525 = vunpack.c.l.b16 %v309
    %v2526 = vunpack.c.l.b16 %v310
    %v2527 = vunpack.c.h.b16 %v310
    %v2528 = vunpack.c.l.b16 %v311
    %v2529 = vunpack.c.l.b16 %v312
    %v2530 = vunpack.c.h.b16 %v312
    %v2531 = vunpack.c.l.b16 %v313
    %v2532 = vunpack.c.l.b16 %v314
    %v2533 = vunpack.c.h.b16 %v314
    %v2534 = vunpack.c.l.b16 %v315
    %v2535 = vunpack.c.l.b16 %v316
    %v2536 = vunpack.c.h.b16 %v316
    %v2537 = vunpack.c.l.b16 %v317
    %v2538 = vunpack.c.l.b16 %v318
    %v2539 = vunpack.c.h.b16 %v318
    %v2540 = vunpack.c.l.b16 %v319
    %v2541 = vunpack.c.l.b16 %v320
    %v2542 = vunpack.c.h.b16 %v320
    %v2543 = vunpack.c.l.b16 %v321
    %v2544 = vunpack.c.l.b16 %v322
    %v2545 = vunpack.c.h.b16 %v322
    %v2546 = vunpack.c.l.b16 %v323
    %v2547 = vunpack.c.l.b16 %v324
    %v2548 = vunpack.c.h.b16 %v324
    %v2549 = vunpack.c.l.b16 %v325
    %v2550 = vunpack.c.l.b16 %v326
    %v2551 = vunpack.c.h.b16 %v326
    %v2552 = vunpack.c.l.b16 %v327
    %v2553 = vunpack.c.l.b16 %v328
    %v2554 = vunpack.c.h.b16 %v328
    %v2555 = vunpack.c.l.b16 %v329
    %v2556 = vunpack.c.l.b16 %v330
    %v2557 = vunpack.c.h.b16 %v330
    %v2558 = vunpack.c.l.b16 %v331
    %v2559 = vunpack.c.l.b16 %v332
    %v2560 = vunpack.c.h.b16 %v332
    %v2561 = vunpack.c.l.b16 %v333
    %v2562 = vunpack.c.l.b16 %v334
    %v2563 = vunpack.c.h.b16 %v334
    %v2564 = vunpack.c.l.b16 %v335
    %v2565 = vunpack.c.l.b16 %v336
    %v2566 = vunpack.c.h.b16 %v336
    %v2567 = vunpack.c.l.b16 %v337
    %v2568 = vunpack.c.l.b16 %v338
    %v2569 = vunpack.c.h.b16 %v338
    %v2570 = vunpack.c.l.b16 %v339
    %v2571 = vunpack.c.l.b16 %v340
    %v2572 = vunpack.c.h.b16 %v340
    %v2573 = vunpack.c.l.b16 %v341
    %v2574 = vunpack.c.l.b16 %v342
    %v2575 = vunpack.c.h.b16 %v342
    %v2576 = vunpack.c.l.b16 %v343
    %v2577 = vunpack.c.l.b16 %v344
    %v2578 = vunpack.c.h.b16 %v344
    %v2579 = vunpack.c.l.b16 %v345
    %v2580 = vunpack.c.l.b16 %v346
    %v2581 = vunpack.c.h.b16 %v346
    %v2582 = vunpack.c.l.b16 %v347
    %v2583 = vunpack.c.l.b16 %v348
    %v2584 = vunpack.c.h.b16 %v348
    %v2585 = vunpack.c.l.b16 %v349
    %v2586 = vunpack.c.l.b16 %v350
    %v2587 = vunpack.c.h.b16 %v350
    %v2588 = vunpack.c.l.b16 %v351
    %v2589 = vunpack.c.l.b16 %v352
    %v2590 = vunpack.c.h.b16 %v352
    %v2591 = vunpack.c.l.b16 %v353
    %v2592 = vunpack.c.l.b16 %v354
    %v2593 = vunpack.c.h.b16 %v354
    %v2594 = vunpack.c.l.b16 %v355
    %v2595 = vunpack.c.l.b16 %v356
    %v2596 = vunpack.c.h.b16 %v356
    %v2597 = vunpack.c.l.b16 %v357
    %v2598 = vunpack.c.l.b16 %v358
    %v2599 = vunpack.c.h.b16 %v358
    %v2600 = vunpack.c.l.b16 %v359
    %v2601 = vunpack.c.l.b16 %v360
    %v2602 = vunpack.c.h.b16 %v360
    %v2603 = vunpack.c.l.b16 %v361
    %v2604 = vunpack.c.l.b16 %v362
    %v2605 = vunpack.c.h.b16 %v362
    %v2606 = vunpack.c.l.b16 %v363
    %v2607 = vunpack.c.l.b16 %v364
    %v2608 = vunpack.c.h.b16 %v364
    %v2609 = vunpack.c.l.b16 %v365
    %v2610 = vunpack.c.l.b16 %v366
    %v2611 = vunpack.c.h.b16 %v366
    %v2612 = vunpack.c.l.b16 %v367
    %v2613 = vunpack.c.l.b16 %v368
    %v2614 = vunpack.c.h.b16 %v368
    %v2615 = vunpack.c.l.b16 %v369
    %v2616 = vunpack.c.l.b16 %v370
    %v2617 = vunpack.c.h.b16 %v370
    %v2618 = vunpack.c.l.b16 %v371
    %v2619 = vunpack.c.l.b16 %v372
    %v2620 = vunpack.c.h.b16 %v372
    %v2621 = vunpack.c.l.b16 %v373
    %v2622 = vunpack.c.l.b16 %v374
    %v2623 = vunpack.c.h.b16 %v374
    %v2624 = vunpack.c.l.b16 %v375
    %v2625 = vunpack.c.l.b16 %v376
    %v2626 = vunpack.c.h.b16 %v376
    %v2627 = vunpack.c.l.b16 %v377
    %v2628 = vunpack.c.l.b16 %v378
    %v2629 = vunpack.c.h.b16 %v378
    %v2630 = vunpack.c.l.b16 %v379
    %v2631 = vunpack.c.l.b16 %v380
    %v2632 = vunpack.c.h.b16 %v380
    %v2633 = vunpack.c.l.b16 %v381
    %v2634 = vunpack.c.l.b16 %v382
    %v2635 = vunpack.c.h.b16 %v382
    %v2636 = vunpack.c.l.b16 %v383
    %v2637 = vunpack.c.l.b16 %v384
    %v2638 = vunpack.c.h.b16 %v384
    %v2639 = vunpack.c.l.b16 %v385
    %v2640 = vunpack.c.l.b16 %v386
    %v2641 = vunpack.c.h.b16 %v386
    %v2642 = vunpack.c.l.b16 %v387
    %v2643 = vunpack.c.l.b16 %v388
    %v2644 = vunpack.c.h.b16 %v388
    %v2645 = vunpack.c.l.b16 %v389
    %v2646 = vunpack.c.l.b16 %v390
    %v2647 = vunpack.c.h.b16 %v390
    %v2648 = vunpack.c.l.b16 %v391
    %v2649 = vunpack.c.l.b16 %v392
    %v2650 = vunpack.c.h.b16 %v392
    %v2651 = vunpack.c.l.b16 %v393
    %v2652 = vunpack.c.l.b16 %v394
    %v2653 = vunpack.c.h.b16 %v394
    %v2654 = vunpack.c.l.b16 %v395
    %v2655 = vunpack.c.l.b16 %v396
    %v2656 = vunpack.c.h.b16 %v396
    %v2657 = vunpack.c.l.b16 %v397
    %v2658 = vunpack.c.l.b16 %v398
    %v2659 = vunpack.c.h.b16 %v398
    %v2660 = vunpack.c.l.b16 %v399
    %v2661 = vunpack.c.l.b16 %v400
    %v2662 = vunpack.c.h.b16 %v400
    %v2663 = vunpack.c.l.b16 %v401
    %v2664 = vunpack.c.l.b16 %v402
    %v2665 = vunpack.c.h.b16 %v402
    %v2666 = vunpack.c.l.b16 %v403
    %v2667 = vunpack.c.l.b16 %v404
    %v2668 = vunpack.c.h.b16 %v404
    %v2669 = vunpack.c.l.b16 %v405
    %v2670 = vunpack.c.l.b16 %v406
    %v2671 = vunpack.c.h.b16 %v406
    %v2672 = vunpack.c.l.b16 %v407
    %v2673 = vunpack.c.l.b16 %v408
    %v2674 = vunpack.c.h.b16 %v408
    %v2675 = vunpack.c.l.b16 %v409
    %v2676 = vunpack.c.l.b16 %v410
    %v2677 = vunpack.c.h.b16 %v410
    %v2678 = vunpack.c.l.b16 %v411
    %v2679 = vunpack.c.l.b16 %v412
    %v2680 = vunpack.c.h.b16 %v412
    %v2681 = vunpack.c.l.b16 %v413
    %v2682 = vunpack.c.l.b16 %v414
    %v2683 = vunpack.c.h.b16 %v414
    %v2684 = vunpack.c.l.b16 %v415
    %v2685 = vunpack.c.l.b16 %v416
    %v2686 = vunpack.c.h.b16 %v416
    %v2687 = vunpack.c.l.b16 %v417
    %v2688 = vunpack.c.l.b16 %v418
    %v2689 = vunpack.c.h.b16 %v418
    %v2690 = vunpack.c.l.b16 %v419
    %v2691 = vunpack.c.l.b16 %v420
    %v2692 = vunpack.c.h.b16 %v420
    %v2693 = vunpack.c.l.b16 %v421
    %v2694 = vunpack.c.l.b16 %v422
    %v2695 = vunpack.c.h.b16 %v422
    %v2696 = vunpack.c.l.b16 %v423
    %v2697 = vunpack.c.l.b16 %v424
    %v2698 = vunpack.c.h.b16 %v424
    %v2699 = vunpack.c.l.b16 %v425
    %v2700 = vunpack.c.l.b16 %v426
    %v2701 = vunpack.c.h.b16 %v426
    %v2702 = vunpack.c.l.b16 %v427
    %v2703 = vunpack.c.l.b16 %v428
    %v2704 = vunpack.c.h.b16 %v428
    %v2705 = vunpack.c.l.b16 %v429
    %v2706 = vunpack.c.l.b16 %v430
    %v2707 = vunpack.c.h.b16 %v430
    %v2708 = vunpack.c.l.b16 %v431
    %v2709 = vunpack.c.l.b16 %v432
    %v2710 = vunpack.c.h.b16 %v432
    %v2711 = vunpack.c.l.b16 %v433
    %v2712 = vunpack.c.l.b16 %v434
    %v2713 = vunpack.c.h.b16 %v434
    %v2714 = vunpack.c.l.b16 %v435
    %v2715 = vunpack.c.l.b16 %v436
    %v2716 = vunpack.c.h.b16 %v436
    %v2717 = vunpack.c.l.b16 %v437
    %v2718 = vunpack.c.l.b16 %v438
    %v2719 = vunpack.c.h.b16 %v438
    %v2720 = vunpack.c.l.b16 %v439
    %v2721 = vunpack.c.l.b16 %v440
    %v2722 = vunpack.c.h.b16 %v440
    %v2723 = vunpack.c.l.b16 %v441
    %v2724 = vunpack.c.l.b16 %v442
    %v2725 = vunpack.c.h.b16 %v442
    %v2726 = vunpack.c.l.b16 %v443
    %v2727 = vunpack.c.l.b16 %v444
    %v2728 = vunpack.c.h.b16 %v444
    %v2729 = vunpack.c.l.b16 %v445
    %v2730 = vunpack.c.l.b16 %v446
    %v2731 = vunpack.c.h.b16 %v446
    %v2732 = vunpack.c.l.b16 %v447
    %v2733 = vunpack.c.l.b16 %v448
    %v2734 = vunpack.c.h.b16 %v448
    %v2735 = vunpack.c.l.b16 %v449
    %v2736 = vunpack.c.l.b16 %v450
    %v2737 = vunpack.c.h.b16 %v450
    %v2738 = vunpack.c.l.b16 %v451
    %v2739 = vunpack.c.l.b16 %v452
    %v2740 = vunpack.c.h.b16 %v452
    %v2741 = vunpack.c.l.b16 %v453
    %v2742 = vunpack.c.l.b16 %v454
    %v2743 = vunpack.c.h.b16 %v454
    %v2744 = vunpack.c.l.b16 %v455
    %v2745 = vunpack.c.l.b16 %v456
    %v2746 = vunpack.c.h.b16 %v456
    %v2747 = vunpack.c.l.b16 %v457
    %v2748 = vunpack.c.l.b16 %v458
    %v2749 = vunpack.c.h.b16 %v458
    %v2750 = vunpack.c.l.b16 %v459
    %v2751 = vunpack.c.l.b16 %v460
    %v2752 = vunpack.c.h.b16 %v460
    %v2753 = vunpack.c.l.b16 %v461
    %v2754 = vunpack.c.l.b16 %v462
    %v2755 = vunpack.c.h.b16 %v462
    %v2756 = vunpack.c.l.b16 %v463
    %v2757 = vunpack.c.l.b16 %v464
    %v2758 = vunpack.c.h.b16 %v464
    %v2759 = vunpack.c.l.b16 %v465
    %v2760 = vunpack.c.l.b16 %v466
    %v2761 = vunpack.c.h.b16 %v466
    %v2762 = vunpack.c.l.b16 %v467
    %v2763 = vunpack.c.l.b16 %v468
    %v2764 = vunpack.c.h.b16 %v468
    %v2765 = vunpack.c.l.b16 %v469
    %v2766 = vunpack.c.l.b16 %v470
    %v2767 = vunpack.c.h.b16 %v470
    %v2768 = vunpack.c.l.b16 %v471
    %v2769 = vunpack.c.l.b16 %v472
    %v2770 = vunpack.c.h.b16 %v472
    %v2771 = vunpack.c.l.b16 %v473
    %v2772 = vunpack.c.l.b16 %v474
    %v2773 = vunpack.c.h.b16 %v474
    %v2774 = vunpack.c.l.b16 %v475
    %v2775 = vunpack.c.l.b16 %v476
    %v2776 = vunpack.c.h.b16 %v476
    %v2777 = vunpack.c.l.b16 %v477
    %v2778 = vunpack.c.l.b16 %v478
    %v2779 = vunpack.c.h.b16 %v478
    %v2780 = vunpack.c.l.b16 %v479
    %v2781 = vunpack.c.l.b16 %v480
    %v2782 = vunpack.c.h.b16 %v480
    %v2783 = vunpack.c.l.b16 %v481
    %v2784 = vunpack.c.l.b16 %v482
    %v2785 = vunpack.c.h.b16 %v482
    %v2786 = vunpack.c.l.b16 %v483
    %v2787 = vunpack.c.l.b16 %v484
    %v2788 = vunpack.c.h.b16 %v484
    %v2789 = vunpack.c.l.b16 %v485
    %v2790 = vunpack.c.l.b16 %v486
    %v2791 = vunpack.c.h.b16 %v486
    %v2792 = vunpack.c.l.b16 %v487
    %v2793 = vunpack.c.l.b16 %v488
    %v2794 = vunpack.c.h.b16 %v488
    %v2795 = vunpack.c.l.b16 %v489
    %v2796 = vunpack.c.l.b16 %v490
    %v2797 = vunpack.c.h.b16 %v490
    %v2798 = vunpack.c.l.b16 %v491
    %v2799 = vunpack.c.l.b16 %v492
    %v2800 = vunpack.c.h.b16 %v492
    %v2801 = vunpack.c.l.b16 %v493
    %v2802 = vunpack.c.l.b16 %v494
    %v2803 = vunpack.c.h.b16 %v494
    %v2804 = vunpack.c.l.b16 %v495
    %v2805 = vunpack.c.l.b16 %v496
    %v2806 = vunpack.c.h.b16 %v496
    %v2807 = vunpack.c.l.b16 %v497
    %v2808 = vunpack.c.l.b16 %v498
    %v2809 = vunpack.c.h.b16 %v498
    %v2810 = vunpack.c.l.b16 %v499
    %v2811 = vunpack.c.l.b16 %v500
    %v2812 = vunpack.c.h.b16 %v500
    %v2813 = vunpack.c.l.b16 %v501
    %v2814 = vunpack.c.l.b16 %v502
    %v2815 = vunpack.c.h.b16 %v502
    %v2816 = vunpack.c.l.b16 %v503
    %v2817 = vunpack.c.l.b16 %v504
    %v2818 = vunpack.c.h.b16 %v504
    %v2819 = vunpack.c.l.b16 %v505
    %v2820 = vunpack.c.l.b16 %v506
    %v2821 = vunpack.c.h.b16 %v506
    %v2822 = vunpack.c.l.b16 %v507
    %v2823 = vunpack.c.l.b16 %v508
    %v2824 = vunpack.c.h.b16 %v508
    %v2825 = vunpack.c.l.b16 %v509
    %v2826 = vunpack.c.l.b16 %v510
    %v2827 = vunpack.c.h.b16 %v510
    %v2828 = vunpack.c.l.b16 %v511
    %v2829 = vunpack.c.l.b16 %v512
    %v2830 = vunpack.c.h.b16 %v512
    %v2831 = vunpack.c.l.b16 %v513
    %v2832 = vunpack.c.l.b16 %v514
    %v2833 = vunpack.c.h.b16 %v514
    %v2834 = vunpack.c.l.b16 %v515
    %v2835 = vunpack.c.l.b16 %v516
    %v2836 = vunpack.c.h.b16 %v516
    %v2837 = vunpack.c.l.b16 %v517
    %v2838 = vunpack.c.l.b16 %v518
    %v2839 = vunpack.c.h.b16 %v518
    %v2840 = vunpack.c.l.b16 %v519
    %v2841 = vunpack.c.l.b16 %v520
    %v2842 = vunpack.c.h.b16 %v520
    %v2843 = vunpack.c.l.b16 %v521
    %v2844 = vunpack.c.l.b16 %v522
    %v2845 = vunpack.c.h.b16 %v522
    %v2846 = vunpack.c.l.b16 %v523
    %v2847 = vunpack.c.l.b16 %v524
    %v2848 = vunpack.c.h.b16 %v524
    %v2849 = vunpack.c.l.b16 %v525
    %v2850 = vunpack.c.l.b16 %v526
    %v2851 = vunpack.c.h.b16 %v526
    %v2852 = vunpack.c.l.b16 %v527
    %v2853 = vunpack.c.l.b16 %v528
    %v2854 = vunpack.c.h.b16 %v528
    %v2855 = vunpack.c.l.b16 %v529
    %v2856 = vunpack.c.l.b16 %v530
    %v2857 = vunpack.c.h.b16 %v530
    %v2858 = vunpack.c.l.b16 %v531
    %v2859 = vunpack.c.l.b16 %v532
    %v2860 = vunpack.c.h.b16 %v532
    %v2861 = vunpack.c.l.b16 %v533
    %v2862 = vunpack.c.l.b16 %v534
    %v2863 = vunpack.c.h.b16 %v534
    %v2864 = vunpack.c.l.b16 %v535
    %v2865 = vunpack.c.l.b16 %v536
    %v2866 = vunpack.c.h.b16 %v536
    %v2867 = vunpack.c.l.b16 %v537
    %v2868 = vunpack.c.l.b16 %v538
    %v2869 = vunpack.c.h.b16 %v538
    %v2870 = vunpack.c.l.b16 %v539
    %v2871 = vunpack.c.l.b16 %v540
    %v2872 = vunpack.c.h.b16 %v540
    %v2873 = vunpack.c.l.b16 %v541
    %v2874 = vunpack.c.l.b16 %v542
    %v2875 = vunpack.c.h.b16 %v542
    %v2876 = vunpack.c.l.b16 %v543
    %v2877 = vunpack.c.l.b16 %v544
    %v2878 = vunpack.c.h.b16 %v544
    %v2879 = vunpack.c.l.b16 %v545
    %v2880 = vunpack.c.l.b16 %v546
    %v2881 = vunpack.c.h.b16 %v546
    %v2882 = vunpack.c.l.b16 %v547
    %v2883 = vunpack.c.l.b16 %v548
    %v2884 = vunpack.c.h.b16 %v548
    %v2885 = vunpack.c.l.b16 %v549
    %v2886 = vunpack.c.l.b16 %v550
    %v2887 = vunpack.c.h.b16 %v550
    %v2888 = vunpack.c.l.b16 %v551
    %v2889 = vunpack.c.l.b16 %v552
    %v2890 = vunpack.c.h.b16 %v552
    %v2891 = vunpack.c.l.b16 %v553
    %v2892 = vunpack.c.l.b16 %v554
    %v2893 = vunpack.c.h.b16 %v554
    %v2894 = vunpack.c.l.b16 %v555
    %v2895 = vunpack.c.l.b16 %v556
    %v2896 = vunpack.c.h.b16 %v556
    %v2897 = vunpack.c.l.b16 %v557
    %v2898 = vunpack.c.l.b16 %v558
    %v2899 = vunpack.c.h.b16 %v558
    %v2900 = vunpack.c.l.b16 %v559
    %v2901 = vunpack.c.l.b16 %v560
    %v2902 = vunpack.c.h.b16 %v560
    %v2903 = vunpack.c.l.b16 %v561
    %v2904 = vunpack.c.l.b16 %v562
    %v2905 = vunpack.c.h.b16 %v562
    %v2906 = vunpack.c.l.b16 %v563
    %v2907 = vunpack.c.l.b16 %v564
    %v2908 = vunpack.c.h.b16 %v564
    %v2909 = vunpack.c.l.b16 %v565
    %v2910 = vunpack.c.l.b16 %v566
    %v2911 = vunpack.c.h.b16 %v566
    %v2912 = vunpack.c.l.b16 %v567
    %v2913 = vunpack.c.l.b16 %v568
    %v2914 = vunpack.c.h.b16 %v568
    %v2915 = vunpack.c.l.b16 %v569
    %v2916 = vunpack.c.l.b16 %v570
    %v2917 = vunpack.c.h.b16 %v570
    %v2918 = vunpack.c.l.b16 %v571
    %v2919 = vunpack.c.l.b16 %v572
    %v2920 = vunpack.c.h.b16 %v572
    %v2921 = vunpack.c.l.b16 %v573
    %v2922 = vunpack.c.l.b16 %v574
    %v2923 = vunpack.c.h.b16 %v574
    %v2924 = vunpack.c.l.b16 %v575
    %v2925 = vunpack.c.l.b16 %v576
    %v2926 = vunpack.c.h.b16 %v576
    %v2927 = vunpack.c.l.b16 %v577
    %v2928 = vunpack.c.l.b16 %v578
    %v2929 = vunpack.c.h.b16 %v578
    %v2930 = vunpack.c.l.b16 %v579
    %v2931 = vunpack.c.l.b16 %v580
    %v2932 = vunpack.c.h.b16 %v580
    %v2933 = vunpack.c.l.b16 %v581
    %v2934 = vunpack.c.l.b16 %v582
    %v2935 = vunpack.c.h.b16 %v582
    %v2936 = vunpack.c.l.b16 %v583
    %v2937 = vunpack.c.l.b16 %v584
    %v2938 = vunpack.c.h.b16 %v584
    %v2939 = vunpack.c.l.b16 %v585
    %v2940 = vunpack.c.l.b16 %v586
    %v2941 = vunpack.c.h.b16 %v586
    %v2942 = vunpack.c.l.b16 %v587
    %v2943 = vunpack.c.l.b16 %v588
    %v2944 = vunpack.c.h.b16 %v588
    %v2945 = vunpack.c.l.b16 %v589
    %v2946 = vunpack.c.l.b16 %v590
    %v2947 = vunpack.c.h.b16 %v590
    %v2948 = vunpack.c.l.b16 %v591
    %v2949 = vunpack.c.l.b16 %v592
    %v2950 = vunpack.c.h.b16 %v592
    %v2951 = vunpack.c.l.b16 %v593
    %v2952 = vunpack.c.l.b16 %v594
    %v2953 = vunpack.c.h.b16 %v594
    %v2954 = vunpack.c.l.b16 %v595
    %v2955 = vunpack.c.l.b16 %v596
    %v2956 = vunpack.c.h.b16 %v596
    %v2957 = vunpack.c.l.b16 %v597
    %v2958 = vunpack.c.l.b16 %v598
    %v2959 = vunpack.c.h.b16 %v598
    %v2960 = vunpack.c.l.b16 %v599
    %v2961 = vunpack.c.l.b16 %v600
    %v2962 = vunpack.c.h.b16 %v600
    %v2963 = vunpack.c.l.b16 %v601
    %v2964 = vunpack.c.l.b16 %v602
    %v2965 = vunpack.c.h.b16 %v602
    %v2966 = vunpack.c.l.b16 %v603
    %v2967 = vunpack.c.l.b16 %v604
    %v2968 = vunpack.c.h.b16 %v604
    %v2969 = vunpack.c.l.b16 %v605
    %v2970 = vunpack.c.l.b16 %v606
    %v2971 = vunpack.c.h.b16 %v606
    %v2972 = vunpack.c.l.b16 %v607
    %v2973 = vunpack.c.l.b16 %v608
    %v2974 = vunpack.c.h.b16 %v608
    %v2975 = vunpack.c.l.b16 %v609
    %v2976 = vunpack.c.l.b16 %v610
    %v2977 = vunpack.c.h.b16 %v610
    %v2978 = vunpack.c.l.b16 %v611
    %v2979 = vunpack.c.l.b16 %v612
    %v2980 = vunpack.c.h.b16 %v612
    %v2981 = vunpack.c.l.b16 %v613
    %v2982 = vunpack.c.l.b16 %v614
    %v2983 = vunpack.c.h.b16 %v614
    %v2984 = vunpack.c.l.b16 %v615
    %v2985 = vunpack.c.l.b16 %v616
    %v2986 = vunpack.c.h.b16 %v616
    %v2987 = vunpack.c.l.b16 %v617
    %v2988 = vunpack.c.l.b16 %v618
    %v2989 = vunpack.c.h.b16 %v618
    %v2990 = vunpack.c.l.b16 %v619
    %v2991 = vunpack.c.l.b16 %v620
    %v2992 = vunpack.c.h.b16 %v620
    %v2993 = vunpack.c.l.b16 %v621
    %v2994 = vunpack.c.l.b16 %v622
    %v2995 = vunpack.c.h.b16 %v622
    %v2996 = vunpack.c.l.b16 %v623
    %v2997 = vunpack.c.l.b16 %v624
    %v2998 = vunpack.c.h.b16 %v624
    %v2999 = vunpack.c.l.b16 %v625
    %v3000 = vunpack.c.l.b16 %v626
    %v3001 = vunpack.c.h.b16 %v626
    %v3002 = vunpack.c.l.b16 %v627
    %v3003 = vunpack.c.l.b16 %v628
    %v3004 = vunpack.c.h.b16 %v628
    %v3005 = vunpack.c.l.b16 %v629
    %v3006 = vunpack.c.l.b16 %v630
    %v3007 = vunpack.c.h.b16 %v630
    %v3008 = vunpack.c.l.b16 %v631
    %v3009 = vunpack.c.l.b16 %v632
    %v3010 = vunpack.c.h.b16 %v632
    %v3011 = vunpack.c.l.b16 %v633
    %v3012 = vunpack.c.l.b16 %v634
    %v3013 = vunpack.c.h.b16 %v634
    %v3014 = vunpack.c.l.b16 %v635
    %v3015 = vunpack.c.l.b16 %v636
    %v3016 = vunpack.c.h.b16 %v636
    %v3017 = vunpack.c.l.b16 %v637
    %v3018 = vunpack.c.l.b16 %v638
    %v3019 = vunpack.c.h.b16 %v638
    %v3020 = vunpack.c.l.b16 %v639
    %v3021 = vunpack.c.l.b16 %v640
    %v3022 = vunpack.c.h.b16 %v640
    %v3023 = vunpack.c.l.b16 %v641
    %v3024 = vunpack.c.l.b16 %v642
    %v3025 = vunpack.c.h.b16 %v642
    %v3026 = vunpack.c.l.b16 %v643
    %v3027 = vunpack.c.l.b16 %v644
    %v3028 = vunpack.c.h.b16 %v644
    %v3029 = vunpack.c.l.b16 %v645
    %v3030 = vunpack.c.l.b16 %v646
    %v3031 = vunpack.c.h.b16 %v646
    %v3032 = vunpack.c.l.b16 %v647
    %v3033 = vunpack.c.l.b16 %v648
    %v3034 = vunpack.c.h.b16 %v648
    %v3035 = vunpack.c.l.b16 %v649
    %v3036 = vunpack.c.l.b16 %v650
    %v3037 = vunpack.c.h.b16 %v650
    %v3038 = vunpack.c.l.b16 %v651
    %v3039 = vunpack.c.l.b16 %v652
    %v3040 = vunpack.c.h.b16 %v652
    %v3041 = vunpack.c.l.b16 %v653
    %v3042 = vunpack.c.l.b16 %v654
    %v3043 = vunpack.c.h.b16 %v654
    %v3044 = vunpack.c.l.b16 %v655
    %v3045 = vunpack.c.l.b16 %v656
    %v3046 = vunpack.c.h.b16 %v656
    %v3047 = vunpack.c.l.b16 %v657
    %v3048 = vunpack.c.l.b16 %v658
    %v3049 = vunpack.c.h.b16 %v658
    %v3050 = vunpack.c.l.b16 %v659
    %v3051 = vunpack.c.l.b16 %v660
    %v3052 = vunpack.c.h.b16 %v660
    %v3053 = vunpack.c.l.b16 %v661
    %v3054 = vunpack.c.l.b16 %v662
    %v3055 = vunpack.c.h.b16 %v662
    %v3056 = vunpack.c.l.b16 %v663
    %v3057 = vunpack.c.l.b16 %v664
    %v3058 = vunpack.c.h.b16 %v664
    %v3059 = vunpack.c.l.b16 %v665
    %v3060 = vunpack.c.l.b16 %v666
    %v3061 = vunpack.c.h.b16 %v666
    %v3062 = vunpack.c.l.b16 %v667
    %v3063 = vunpack.c.l.b16 %v668
    %v3064 = vunpack.c.h.b16 %v668
    %v3065 = vunpack.c.l.b16 %v669
    %v3066 = vunpack.c.l.b16 %v670
    %v3067 = vunpack.c.h.b16 %v670
    %v3068 = vunpack.c.l.b16 %v671
    %v3069 = vunpack.c.l.b16 %v672
    %v3070 = vunpack.c.h.b16 %v672
    %v3071 = vunpack.c.l.b16 %v673
    %v3072 = vunpack.c.l.b16 %v674
    %v3073 = vunpack.c.h.b16 %v674
    %v3074 = vunpack.c.l.b16 %v675
    %v3075 = vunpack.c.l.b16 %v676
    %v3076 = vunpack.c.h.b16 %v676
    %v3077 = vunpack.c.l.b16 %v677
    %v3078 = vunpack.c.l.b16 %v678
    %v3079 = vunpack.c.h.b16 %v678
    %v3080 = vunpack.c.l.b16 %v679
    %v3081 = vunpack.c.l.b16 %v680
    %v3082 = vunpack.c.h.b16 %v680
    %v3083 = vunpack.c.l.b16 %v681
    %v3084 = vunpack.c.l.b16 %v682
    %v3085 = vunpack.c.h.b16 %v682
    %v3086 = vunpack.c.l.b16 %v683
    %v3087 = vunpack.c.l.b16 %v684
    %v3088 = vunpack.c.h.b16 %v684
    %v3089 = vunpack.c.l.b16 %v685
    %v3090 = vunpack.c.l.b16 %v686
    %v3091 = vunpack.c.h.b16 %v686
    %v3092 = vunpack.c.l.b16 %v687
    %v3093 = vunpack.c.l.b16 %v688
    %v3094 = vunpack.c.h.b16 %v688
    %v3095 = vunpack.c.l.b16 %v689
    %v3096 = vunpack.c.l.b16 %v690
    %v3097 = vunpack.c.h.b16 %v690
    %v3098 = vunpack.c.l.b16 %v691
    %v3099 = vunpack.c.l.b16 %v692
    %v3100 = vunpack.c.h.b16 %v692
    %v3101 = vunpack.c.l.b16 %v693
    %v3102 = vunpack.c.l.b16 %v694
    %v3103 = vunpack.c.h.b16 %v694
    %v3104 = vunpack.c.l.b16 %v695
    %v3105 = vunpack.c.l.b16 %v696
    %v3106 = vunpack.c.h.b16 %v696
    %v3107 = vunpack.c.l.b16 %v697
    %v3108 = vunpack.c.l.b16 %v698
    %v3109 = vunpack.c.h.b16 %v698
    %v3110 = vunpack.c.l.b16 %v699
    %v3111 = vunpack.c.l.b16 %v700
    %v3112 = vunpack.c.h.b16 %v700
    %v3113 = vunpack.c.l.b16 %v701
    %v3114 = vunpack.c.l.b16 %v702
    %v3115 = vunpack.c.h.b16 %v702
    %v3116 = vunpack.c.l.b16 %v703
    %v3117 = vunpack.c.l.b16 %v704
    %v3118 = vunpack.c.h.b16 %v704
    %v3119 = vunpack.c.l.b16 %v705
    %v3120 = vunpack.c.l.b16 %v706
    %v3121 = vunpack.c.h.b16 %v706
    %v3122 = vunpack.c.l.b16 %v707
    %v3123 = vunpack.c.l.b16 %v708
    %v3124 = vunpack.c.h.b16 %v708
    %v3125 = vunpack.c.l.b16 %v709
    %v3126 = vunpack.c.l.b16 %v710
    %v3127 = vunpack.c.h.b16 %v710
    %v3128 = vunpack.c.l.b16 %v711
    %v3129 = vunpack.c.l.b16 %v712
    %v3130 = vunpack.c.h.b16 %v712
    %v3131 = vunpack.c.l.b16 %v713
    %v3132 = vunpack.c.l.b16 %v714
    %v3133 = vunpack.c.h.b16 %v714
    %v3134 = vunpack.c.l.b16 %v715
    %v3135 = vunpack.c.l.b16 %v716
    %v3136 = vunpack.c.h.b16 %v716
    %v3137 = vunpack.c.l.b16 %v717
    %v3138 = vunpack.c.l.b16 %v718
    %v3139 = vunpack.c.h.b16 %v718
    %v3140 = vunpack.c.l.b16 %v719
    %v3141 = vunpack.c.l.b16 %v720
    %v3142 = vunpack.c.h.b16 %v720
    %v3143 = vunpack.c.l.b16 %v721
    %v3144 = vunpack.c.l.b16 %v722
    %v3145 = vunpack.c.h.b16 %v722
    %v3146 = vunpack.c.l.b16 %v723
    %v3147 = vunpack.c.l.b16 %v724
    %v3148 = vunpack.c.h.b16 %v724
    %v3149 = vunpack.c.l.b16 %v725
    %v3150 = vunpack.c.l.b16 %v726
    %v3151 = vunpack.c.h.b16 %v726
    %v3152 = vunpack.c.l.b16 %v727
    %v3153 = vunpack.c.l.b16 %v728
    %v3154 = vunpack.c.h.b16 %v728
    %v3155 = vunpack.c.l.b16 %v729
    %v3156 = vunpack.c.l.b16 %v730
    %v3157 = vunpack.c.h.b16 %v730
    %v3158 = vunpack.c.l.b16 %v731
    %v3159 = vunpack.c.l.b16 %v732
    %v3160 = vunpack.c.h.b16 %v732
    %v3161 = vunpack.c.l.b16 %v733
    %v3162 = vunpack.c.l.b16 %v734
    %v3163 = vunpack.c.h.b16 %v734
    %v3164 = vunpack.c.l.b16 %v735
    %v3165 = vunpack.c.l.b16 %v736
    %v3166 = vunpack.c.h.b16 %v736
    %v3167 = vunpack.c.l.b16 %v737
    %v3168 = vunpack.c.l.b16 %v738
    %v3169 = vunpack.c.h.b16 %v738
    %v3170 = vunpack.c.l.b16 %v739
    %v3171 = vunpack.c.l.b16 %v740
    %v3172 = vunpack.c.h.b16 %v740
    %v3173 = vunpack.c.l.b16 %v741
    %v3174 = vunpack.c.l.b16 %v742
    %v3175 = vunpack.c.h.b16 %v742
    %v3176 = vunpack.c.l.b16 %v743
    %v3177 = vunpack.c.l.b16 %v744
    %v3178 = vunpack.c.h.b16 %v744
    %v3179 = vunpack.c.l.b16 %v745
    %v3180 = vunpack.c.l.b16 %v746
    %v3181 = vunpack.c.h.b16 %v746
    %v3182 = vunpack.c.l.b16 %v747
    %v3183 = vunpack.c.l.b16 %v748
    %v3184 = vunpack.c.h.b16 %v748
    %v3185 = vunpack.c.l.b16 %v749
    %v3186 = vunpack.c.l.b16 %v750
    %v3187 = vunpack.c.h.b16 %v750
    %v3188 = vunpack.c.l.b16 %v751
    %v3189 = vunpack.c.l.b16 %v752
    %v3190 = vunpack.c.h.b16 %v752
    %v3191 = vunpack.c.l.b16 %v753
    %v3192 = vunpack.c.l.b16 %v754
    %v3193 = vunpack.c.h.b16 %v754
    %v3194 = vunpack.c.l.b16 %v755
    %v3195 = vunpack.c.l.b16 %v756
    %v3196 = vunpack.c.h.b16 %v756
    %v3197 = vunpack.c.l.b16 %v757
    %v3198 = vunpack.c.l.b16 %v758
    %v3199 = vunpack.c.h.b16 %v758
    %v3200 = vunpack.c.l.b16 %v759
    %v3201 = vunpack.c.l.b16 %v760
    %v3202 = vunpack.c.h.b16 %v760
    %v3203 = vunpack.c.l.b16 %v761
    %v3204 = vunpack.c.l.b16 %v762
    %v3205 = vunpack.c.h.b16 %v762
    %v3206 = vunpack.c.l.b16 %v763
    %v3207 = vunpack.c.l.b16 %v764
    %v3208 = vunpack.c.h.b16 %v764
    %v3209 = vunpack.c.l.b16 %v765
    %v3210 = vunpack.c.l.b16 %v766
    %v3211 = vunpack.c.h.b16 %v766
    %v3212 = vunpack.c.l.b16 %v767
    %v3213 = vunpack.c.l.b16 %v768
    %v3214 = vunpack.c.h.b16 %v768
    %v3215 = vunpack.c.l.b16 %v769
    %v3216 = vunpack.c.l.b16 %v770
    %v3217 = vunpack.c.h.b16 %v770
    %v3218 = vunpack.c.l.b16 %v771
    %v3219 = vunpack.c.l.b16 %v772
    %v3220 = vunpack.c.h.b16 %v772
    %v3221 = vunpack.c.l.b16 %v773
    %v3222 = vunpack.c.l.b16 %v774
    %v3223 = vunpack.c.h.b16 %v774
    %v3224 = vunpack.c.l.b16 %v775
    %v3225 = vunpack.c.l.b16 %v776
    %v3226 = vunpack.c.h.b16 %v776
    %v3227 = vunpack.c.l.b16 %v777
    %v3228 = vunpack.c.l.b16 %v778
    %v3229 = vunpack.c.h.b16 %v778
    %v3230 = vunpack.c.l.b16 %v779
    %v3231 = vunpack.c.l.b16 %v780
    %v3232 = vunpack.c.h.b16 %v780
    %v3233 = vunpack.c.l.b16 %v781
    %v3234 = vunpack.c.l.b16 %v782
    %v3235 = vunpack.c.h.b16 %v782
    %v3236 = vunpack.c.l.b16 %v783
    %v3237 = vunpack.c.l.b16 %v784
    %v3238 = vunpack.c.h.b16 %v784
    %v3239 = vunpack.c.l.b16 %v785
    %v3240 = vunpack.c.l.b16 %v786
    %v3241 = vunpack.c.h.b16 %v786
    %v3242 = vunpack.c.l.b16 %v787
    %v3243 = vunpack.c.l.b16 %v788
    %v3244 = vunpack.c.h.b16 %v788
    %v3245 = vunpack.c.l.b16 %v789
    %v3246 = vunpack.c.l.b16 %v790
    %v3247 = vunpack.c.h.b16 %v790
    %v3248 = vunpack.c.l.b16 %v791
    %v3249 = vunpack.c.l.b16 %v792
    %v3250 = vunpack.c.h.b16 %v792
    %v3251 = vunpack.c.l.b16 %v793
    %v3252 = vunpack.c.l.b16 %v794
    %v3253 = vunpack.c.h.b16 %v794
    %v3254 = vunpack.c.l.b16 %v795
    %v3255 = vunpack.c.l.b16 %v796
    %v3256 = vunpack.c.h.b16 %v796
    %v3257 = vunpack.c.l.b16 %v797
    %v3258 = vunpack.c.l.b16 %v798
    %v3259 = vunpack.c.h.b16 %v798
    %v3260 = vunpack.c.l.b16 %v799
    %v3261 = vunpack.c.l.b16 %v800
    %v3262 = vunpack.c.h.b16 %v800
    %v3263 = vunpack.c.l.b16 %v801
    %v3264 = vunpack.c.l.b16 %v802
    %v3265 = vunpack.c.h.b16 %v802
    %v3266 = vunpack.c.l.b16 %v803
    %v3267 = vunpack.c.l.b16 %v804
    %v3268 = vunpack.c.h.b16 %v804
    %v3269 = vunpack.c.l.b16 %v805
    %v3270 = vunpack.c.l.b16 %v806
    %v3271 = vunpack.c.h.b16 %v806
    %v3272 = vunpack.c.l.b16 %v807
    %v3273 = vunpack.c.l.b16 %v808
    %v3274 = vunpack.c.h.b16 %v808
    %v3275 = vunpack.c.l.b16 %v809
    %v3276 = vunpack.c.l.b16 %v810
    %v3277 = vunpack.c.h.b16 %v810
    %v3278 = vunpack.c.l.b16 %v811
    %v3279 = vunpack.c.l.b16 %v812
    %v3280 = vunpack.c.h.b16 %v812
    %v3281 = vunpack.c.l.b16 %v813
    %v3282 = vunpack.c.l.b16 %v814
    %v3283 = vunpack.c.h.b16 %v814
    %v3284 = vunpack.c.l.b16 %v815
    %v3285 = vunpack.c.l.b16 %v816
    %v3286 = vunpack.c.h.b16 %v816
    %v3287 = vunpack.c.l.b16 %v817
    %v3288 = vunpack.c.l.b16 %v818
    %v3289 = vunpack.c.h.b16 %v818
    %v3290 = vunpack.c.l.b16 %v819
    %v3291 = vunpack.c.l.b16 %v820
    %v3292 = vunpack.c.h.b16 %v820
    %v3293 = vunpack.c.l.b16 %v821
    %v3294 = vunpack.c.l.b16 %v822
    %v3295 = vunpack.c.h.b16 %v822
    %v3296 = vunpack.c.l.b16 %v823
    %v3297 = vunpack.c.l.b16 %v824
    %v3298 = vunpack.c.h.b16 %v824
    %v3299 = vunpack.c.l.b16 %v825
    %v3300 = vunpack.c.l.b16 %v826
    %v3301 = vunpack.c.h.b16 %v826
    %v3302 = vunpack.c.l.b16 %v827
    %v3303 = vunpack.c.l.b16 %v828
    %v3304 = vunpack.c.h.b16 %v828
    %v3305 = vunpack.c.l.b16 %v829
    %v3306 = vunpack.c.l.b16 %v830
    %v3307 = vunpack.c.h.b16 %v830
    %v3308 = vunpack.c.l.b16 %v831
    %v3309 = vunpack.c.l.b16 %v832
    %v3310 = vunpack.c.h.b16 %v832
    %v3311 = vunpack.c.l.b16 %v833
    %v3312 = vunpack.c.l.b16 %v834
    %v3313 = vunpack.c.h.b16 %v834
    %v3314 = vunpack.c.l.b16 %v835
    %v3315 = vunpack.c.l.b16 %v836
    %v3316 = vunpack.c.h.b16 %v836
    %v3317 = vunpack.c.l.b16 %v837
    %v3318 = vunpack.c.l.b16 %v838
    %v3319 = vunpack.c.h.b16 %v838
    %v3320 = vunpack.c.l.b16 %v839
    %v3321 = vunpack.c.l.b16 %v840
    %v3322 = vunpack.c.h.b16 %v840
    %v3323 = vunpack.c.l.b16 %v841
    %v3324 = vunpack.c.l.b16 %v842
    %v3325 = vunpack.c.h.b16 %v842
    %v3326 = vunpack.c.l.b16 %v843
    %v3327 = vunpack.c.l.b16 %v844
    %v3328 = vunpack.c.h.b16 %v844
    %v3329 = vunpack.c.l.b16 %v845
    %v3330 = vunpack.c.l.b16 %v846
    %v3331 = vunpack.c.h.b16 %v846
    %v3332 = vunpack.c.l.b16 %v847
    %v3333 = vunpack.c.l.b16 %v848
    %v3334 = vunpack.c.h.b16 %v848
    %v3335 = vunpack.c.l.b16 %v849
    %v3336 = vunpack.c.l.b16 %v850
    %v3337 = vunpack.c.h.b16 %v850
    %v3338 = vunpack.c.l.b16 %v851
    %v3339 = vunpack.c.l.b16 %v852
    %v3340 = vunpack.c.h.b16 %v852
    %v3341 = vunpack.c.l.b16 %v853
    %v3342 = vunpack.c.l.b16 %v854
    %v3343 = vunpack.c.h.b16 %v854
    %v3344 = vunpack.c.l.b16 %v855
    %v3345 = vunpack.c.l.b16 %v856
    %v3346 = vunpack.c.h.b16 %v856
    %v3347 = vunpack.c.l.b16 %v857
    %v3348 = vunpack.c.l.b16 %v858
    %v3349 = vunpack.c.h.b16 %v858
    %v3350 = vunpack.c.l.b16 %v859
    %v3351 = vunpack.c.l.b16 %v860
    %v3352 = vunpack.c.h.b16 %v860
    %v3353 = vunpack.c.l.b16 %v861
    %v3354 = vunpack.c.l.b16 %v862
    %v3355 = vunpack.c.h.b16 %v862
    %v3356 = vunpack.c.l.b16 %v863
    %v3357 = vunpack.c.l.b16 %v864
    %v3358 = vunpack.c.h.b16 %v864
    %v3359 = vunpack.c.l.b16 %v865
    %v3360 = vunpack.c.l.b16 %v866
    %v3361 = vunpack.c.h.b16 %v866
    %v3362 = vunpack.c.l.b16 %v867
    %v3363 = vunpack.c.l.b16 %v868
    %v3364 = vunpack.c.h.b16 %v868
    %v3365 = vunpack.c.l.b16 %v869
    %v3366 = vunpack.c.l.b16 %v870
    %v3367 = vunpack.c.h.b16 %v870
    %v3368 = vunpack.c.l.b16 %v871
    %v3369 = vunpack.c.l.b16 %v872
    %v3370 = vunpack.c.h.b16 %v872
    %v3371 = vunpack.c.l.b16 %v873
    %v3372 = vunpack.c.l.b16 %v874
    %v3373 = vunpack.c.h.b16 %v874
    %v3374 = vunpack.c.l.b16 %v875
    %v3375 = vunpack.c.l.b16 %v876
    %v3376 = vunpack.c.h.b16 %v876
    %v3377 = vunpack.c.l.b16 %v877
    %v3378 = vunpack.c.l.b16 %v878
    %v3379 = vunpack.c.h.b16 %v878
    %v3380 = vunpack.c.l.b16 %v879
    %v3381 = vunpack.c.l.b16 %v880
    %v3382 = vunpack.c.h.b16 %v880
    %v3383 = vunpack.c.l.b16 %v881
    %v3384 = vunpack.c.l.b16 %v882
    %v3385 = vunpack.c.h.b16 %v882
    %v3386 = vunpack.c.l.b16 %v883
    %v3387 = vunpack.c.l.b16 %v884
    %v3388 = vunpack.c.h.b16 %v884
    %v3389 = vunpack.c.l.b16 %v885
    %v3390 = vunpack.c.l.b16 %v886
    %v3391 = vunpack.c.h.b16 %v886
    %v3392 = vunpack.c.l.b16 %v887
    %v3393 = vunpack.c.l.b16 %v888
    %v3394 = vunpack.c.h.b16 %v888
    %v3395 = vunpack.c.l.b16 %v889
    %v3396 = vunpack.c.l.b16 %v890
    %v3397 = vunpack.c.h.b16 %v890
    %v3398 = vunpack.c.l.b16 %v891
    %v3399 = vunpack.c.l.b16 %v892
    %v3400 = vunpack.c.h.b16 %v892
    %v3401 = vunpack.c.l.b16 %v893
    %v3402 = vunpack.c.l.b16 %v894
    %v3403 = vunpack.c.h.b16 %v894
    %v3404 = vunpack.c.l.b16 %v895
    %v3405 = vunpack.c.l.b16 %v896
    %v3406 = vunpack.c.h.b16 %v896
    %v3407 = vunpack.c.l.b16 %v897
    %v3408 = vunpack.c.l.b16 %v898
    %v3409 = vunpack.c.h.b16 %v898
    %v3410 = vunpack.c.l.b16 %v899
    %v3411 = vunpack.c.l.b16 %v900
    %v3412 = vunpack.c.h.b16 %v900
    %v3413 = vunpack.c.l.b16 %v901
    %v3414 = vunpack.c.l.b16 %v902
    %v3415 = vunpack.c.h.b16 %v902
    %v3416 = vunpack.c.l.b16 %v903
    %v3417 = vunpack.c.l.b16 %v904
    %v3418 = vunpack.c.h.b16 %v904
    %v3419 = vunpack.c.l.b16 %v905
    %v3420 = vunpack.c.l.b16 %v906
    %v3421 = vunpack.c.h.b16 %v906
    %v3422 = vunpack.c.l.b16 %v907
    %v3423 = vunpack.c.l.b16 %v908
    %v3424 = vunpack.c.h.b16 %v908
    %v3425 = vunpack.c.l.b16 %v909
    %v3426 = vunpack.c.l.b16 %v910
    %v3427 = vunpack.c.h.b16 %v910
    %v3428 = vunpack.c.l.b16 %v911
    %v3429 = vunpack.c.l.b16 %v912
    %v3430 = vunpack.c.h.b16 %v912
    %v3431 = vunpack.c.l.b16 %v913
    %v3432 = vunpack.c.l.b16 %v914
    %v3433 = vunpack.c.h.b16 %v914
    %v3434 = vunpack.c.l.b16 %v915
    %v3435 = vunpack.c.l.b16 %v916
    %v3436 = vunpack.c.h.b16 %v916
    %v3437 = vunpack.c.l.b16 %v917
    %v3438 = vunpack.c.l.b16 %v918
    %v3439 = vunpack.c.h.b16 %v918
    %v3440 = vunpack.c.l.b16 %v919
    %v3441 = vunpack.c.l.b16 %v920
    %v3442 = vunpack.c.h.b16 %v920
    %v3443 = vunpack.c.l.b16 %v921
    %v3444 = vunpack.c.l.b16 %v922
    %v3445 = vunpack.c.h.b16 %v922
    %v3446 = vunpack.c.l.b16 %v923
    %v3447 = vunpack.c.l.b16 %v924
    %v3448 = vunpack.c.h.b16 %v924
    %v3449 = vunpack.c.l.b16 %v925
    %v3450 = vunpack.c.l.b16 %v926
    %v3451 = vunpack.c.h.b16 %v926
    %v3452 = vunpack.c.l.b16 %v927
    %v3453 = vunpack.c.l.b16 %v928
    %v3454 = vunpack.c.h.b16 %v928
    %v3455 = vunpack.c.l.b16 %v929
    %v3456 = vunpack.c.l.b16 %v930
    %v3457 = vunpack.c.h.b16 %v930
    %v3458 = vunpack.c.l.b16 %v931
    %v3459 = vunpack.c.l.b16 %v932
    %v3460 = vunpack.c.h.b16 %v932
    %v3461 = vunpack.c.l.b16 %v933
    %v3462 = vunpack.c.l.b16 %v934
    %v3463 = vunpack.c.h.b16 %v934
    %v3464 = vunpack.c.l.b16 %v935
    %v3465 = vunpack.c.l.b16 %v936
    %v3466 = vunpack.c.h.b16 %v936
    %v3467 = vunpack.c.l.b16 %v937
    %v3468 = vunpack.c.l.b16 %v938
    %v3469 = vunpack.c.h.b16 %v938
    %v3470 = vunpack.c.l.b16 %v939
    %v3471 = vunpack.c.l.b16 %v940
    %v3472 = vunpack.c.h.b16 %v940
    %v3473 = vunpack.c.l.b16 %v941
    %v3474 = vunpack.c.l.b16 %v942
    %v3475 = vunpack.c.h.b16 %v942
    %v3476 = vunpack.c.l.b16 %v943
    %v3477 = vunpack.c.l.b16 %v944
    %v3478 = vunpack.c.h.b16 %v944
    %v3479 = vunpack.c.l.b16 %v945
    %v3480 = vunpack.c.l.b16 %v946
    %v3481 = vunpack.c.h.b16 %v946
    %v3482 = vunpack.c.l.b16 %v947
    %v3483 = vunpack.c.l.b16 %v948
    %v3484 = vunpack.c.h.b16 %v948
    %v3485 = vunpack.c.l.b16 %v949
    %v3486 = vunpack.c.l.b16 %v950
    %v3487 = vunpack.c.h.b16 %v950
    %v3488 = vunpack.c.l.b16 %v951
    %v3489 = vunpack.c.l.b16 %v952
    %v3490 = vunpack.c.h.b16 %v952
    %v3491 = vunpack.c.l.b16 %v953
    %v3492 = vunpack.c.l.b16 %v954
    %v3493 = vunpack.c.h.b16 %v954
    %v3494 = vunpack.c.l.b16 %v955
    %v3495 = vunpack.c.l.b16 %v956
    %v3496 = vunpack.c.h.b16 %v956
    %v3497 = vunpack.c.l.b16 %v957
    %v3498 = vunpack.c.l.b16 %v958
    %v3499 = vunpack.c.h.b16 %v958
    %v3500 = vunpack.c.l.b16 %v959
    %v3501 = vunpack.c.l.b16 %v960
    %v3502 = vunpack.c.h.b16 %v960
    %v3503 = vunpack.c.l.b16 %v961
    %v3504 = vunpack.c.l.b16 %v962
    %v3505 = vunpack.c.h.b16 %v962
    %v3506 = vunpack.c.l.b16 %v963
    %v3507 = vunpack.c.l.b16 %v964
    %v3508 = vunpack.c.h.b16 %v964
    %v3509 = vunpack.c.l.b16 %v965
    %v3510 = vunpack.c.l.b16 %v966
    %v3511 = vunpack.c.h.b16 %v966
    %v3512 = vunpack.c.l.b16 %v967
    %v3513 = vunpack.c.l.b16 %v968
    %v3514 = vunpack.c.h.b16 %v968
    %v3515 = vunpack.c.l.b16 %v969
    %v3516 = vunpack.c.l.b16 %v970
    %v3517 = vunpack.c.h.b16 %v970
    %v3518 = vunpack.c.l.b16 %v971
    %v3519 = vunpack.c.l.b16 %v972
    %v3520 = vunpack.c.h.b16 %v972
    %v3521 = vunpack.c.l.b16 %v973
    %v3522 = vunpack.c.l.b16 %v974
    %v3523 = vunpack.c.h.b16 %v974
    %v3524 = vunpack.c.l.b16 %v975
    %v3525 = vunpack.c.l.b16 %v976
    %v3526 = vunpack.c.h.b16 %v976
    %v3527 = vunpack.c.l.b16 %v977
    %v3528 = vunpack.c.l.b16 %v978
    %v3529 = vunpack.c.h.b16 %v978
    %v3530 = vunpack.c.l.b16 %v979
    %v3531 = vunpack.c.l.b16 %v980
    %v3532 = vunpack.c.h.b16 %v980
    %v3533 = vunpack.c.l.b16 %v981
    %v3534 = vunpack.c.l.b16 %v982
    %v3535 = vunpack.c.h.b16 %v982
    %v3536 = vunpack.c.l.b16 %v983
    %v3537 = vunpack.c.l.b16 %v984
    %v3538 = vunpack.c.h.b16 %v984
    %v3539 = vunpack.c.l.b16 %v985
    %v3540 = vunpack.c.l.b16 %v986
    %v3541 = vunpack.c.h.b16 %v986
    %v3542 = vunpack.c.l.b16 %v987
    %v3543 = vunpack.c.l.b16 %v988
    %v3544 = vunpack.c.h.b16 %v988
    %v3545 = vunpack.c.l.b16 %v989
    %v3546 = vunpack.c.l.b16 %v990
    %v3547 = vunpack.c.h.b16 %v990
    %v3548 = vunpack.c.l.b16 %v991
    %v3549 = vunpack.c.l.b16 %v992
    %v3550 = vunpack.c.h.b16 %v992
    %v3551 = vunpack.c.l.b16 %v993
    %v3552 = vunpack.c.l.b16 %v994
    %v3553 = vunpack.c.h.b16 %v994
    %v3554 = vunpack.c.l.b16 %v995
    %v3555 = vunpack.c.l.b16 %v996
    %v3556 = vunpack.c.h.b16 %v996
    %v3557 = vunpack.c.l.b16 %v997
    %v3558 = vunpack.c.l.b16 %v998
    %v3559 = vunpack.c.h.b16 %v998
    %v3560 = vunpack.c.l.b16 %v999
    %v3561 = vunpack.c.l.b16 %v1000
    %v3562 = vunpack.c.h.b16 %v1000
    %v3563 = vunpack.c.l.b16 %v1001
    %v3564 = vunpack.c.l.b16 %v1002
    %v3565 = vunpack.c.h.b16 %v1002
    %v3566 = vunpack.c.l.b16 %v1003
    %v3567 = vunpack.c.l.b16 %v1004
    %v3568 = vunpack.c.h.b16 %v1004
    %v3569 = vunpack.c.l.b16 %v1005
    %v3570 = vunpack.c.l.b16 %v1006
    %v3571 = vunpack.c.h.b16 %v1006
    %v3572 = vunpack.c.l.b16 %v1007
    %v3573 = vunpack.c.l.b16 %v1008
    %v3574 = vunpack.c.h.b16 %v1008
    %v3575 = vunpack.c.l.b16 %v1009
    %v3576 = vunpack.c.l.b16 %v1010
    %v3577 = vunpack.c.h.b16 %v1010
    %v3578 = vunpack.c.l.b16 %v1011
    %v3579 = vunpack.c.l.b16 %v1012
    %v3580 = vunpack.c.h.b16 %v1012
    %v3581 = vunpack.c.l.b16 %v1013
    %v3582 = vunpack.c.l.b16 %v1014
    %v3583 = vunpack.c.h.b16 %v1014
    %v3584 = vunpack.c.l.b16 %v1015
    %v3585 = vunpack.c.l.b16 %v1016
    %v3586 = vunpack.c.h.b16 %v1016
    %v3587 = vunpack.c.l.b16 %v1017
    %v3588 = vunpack.c.l.b16 %v1018
    %v3589 = vunpack.c.h.b16 %v1018
    %v3590 = vunpack.c.l.b16 %v1019
    %v3591 = vunpack.c.l.b16 %v1020
    %v3592 = vunpack.c.h.b16 %v1020
    %v3593 = vunpack.c.l.b16 %v1021
    %v3594 = vunpack.c.l.b16 %v1022
    %v3595 = vunpack.c.h.b16 %v1022
    %v3596 = vunpack.c.l.b16 %v1023
    %v3597 = vunpack.c.l.b16 %v1024
    %v3598 = vunpack.c.h.b16 %v1024
    %v3599 = vunpack.c.l.b16 %v1025
    %v3600 = vunpack.c.l.b16 %v1026
    %v3601 = vunpack.c.h.b16 %v1026
    %v3602 = vunpack.c.l.b16 %v1027
    %v3603 = vpack.c.b16 %v2106, %v2103
    %v3604 = vpack.c.b16 %v2107, %v2104
    %v3605 = vpack.c.b16 %v2108, %v2105
    %v3606 = vpack.c.b16 %v2112, %v2109
    %v3607 = vpack.c.b16 %v2113, %v2110
    %v3608 = vpack.c.b16 %v2114, %v2111
    %v3609 = vpack.c.b16 %v2118, %v2115
    %v3610 = vpack.c.b16 %v2119, %v2116
    %v3611 = vpack.c.b16 %v2120, %v2117
    %v3612 = vpack.c.b16 %v2124, %v2121
    %v3613 = vpack.c.b16 %v2125, %v2122
    %v3614 = vpack.c.b16 %v2126, %v2123
    %v3615 = vpack.c.b16 %v2130, %v2127
    %v3616 = vpack.c.b16 %v2131, %v2128
    %v3617 = vpack.c.b16 %v2132, %v2129
    %v3618 = vpack.c.b16 %v2136, %v2133
    %v3619 = vpack.c.b16 %v2137, %v2134
    %v3620 = vpack.c.b16 %v2138, %v2135
    %v3621 = vpack.c.b16 %v2142, %v2139
    %v3622 = vpack.c.b16 %v2143, %v2140
    %v3623 = vpack.c.b16 %v2144, %v2141
    %v3624 = vpack.c.b16 %v2148, %v2145
    %v3625 = vpack.c.b16 %v2149, %v2146
    %v3626 = vpack.c.b16 %v2150, %v2147
    %v3627 = vpack.c.b16 %v2154, %v2151
    %v3628 = vpack.c.b16 %v2155, %v2152
    %v3629 = vpack.c.b16 %v2156, %v2153
    %v3630 = vpack.c.b16 %v2160, %v2157
    %v3631 = vpack.c.b16 %v2161, %v2158
    %v3632 = vpack.c.b16 %v2162, %v2159
    %v3633 = vpack.c.b16 %v2166, %v2163
    %v3634 = vpack.c.b16 %v2167, %v2164
    %v3635 = vpack.c.b16 %v2168, %v2165
    %v3636 = vpack.c.b16 %v2172, %v2169
    %v3637 = vpack.c.b16 %v2173, %v2170
    %v3638 = vpack.c.b16 %v2174, %v2171
    %v3639 = vpack.c.b16 %v2178, %v2175
    %v3640 = vpack.c.b16 %v2179, %v2176
    %v3641 = vpack.c.b16 %v2180, %v2177
    %v3642 = vpack.c.b16 %v2184, %v2181
    %v3643 = vpack.c.b16 %v2185, %v2182
    %v3644 = vpack.c.b16 %v2186, %v2183
    %v3645 = vpack.c.b16 %v2190, %v2187
    %v3646 = vpack.c.b16 %v2191, %v2188
    %v3647 = vpack.c.b16 %v2192, %v2189
    %v3648 = vpack.c.b16 %v2196, %v2193
    %v3649 = vpack.c.b16 %v2197, %v2194
    %v3650 = vpack.c.b16 %v2198, %v2195
    %v3651 = vpack.c.b16 %v2202, %v2199
    %v3652 = vpack.c.b16 %v2203, %v2200
    %v3653 = vpack.c.b16 %v2204, %v2201
    %v3654 = vpack.c.b16 %v2208, %v2205
    %v3655 = vpack.c.b16 %v2209, %v2206
    %v3656 = vpack.c.b16 %v2210, %v2207
    %v3657 = vpack.c.b16 %v2214, %v2211
    %v3658 = vpack.c.b16 %v2215, %v2212
    %v3659 = vpack.c.b16 %v2216, %v2213
    %v3660 = vpack.c.b16 %v2220, %v2217
    %v3661 = vpack.c.b16 %v2221, %v2218
    %v3662 = vpack.c.b16 %v2222, %v2219
    %v3663 = vpack.c.b16 %v2226, %v2223
    %v3664 = vpack.c.b16 %v2227, %v2224
    %v3665 = vpack.c.b16 %v2228, %v2225
    %v3666 = vpack.c.b16 %v2232, %v2229
    %v3667 = vpack.c.b16 %v2233, %v2230
    %v3668 = vpack.c.b16 %v2234, %v2231
    %v3669 = vpack.c.b16 %v2238, %v2235
    %v3670 = vpack.c.b16 %v2239, %v2236
    %v3671 = vpack.c.b16 %v2240, %v2237
    %v3672 = vpack.c.b16 %v2244, %v2241
    %v3673 = vpack.c.b16 %v2245, %v2242
    %v3674 = vpack.c.b16 %v2246, %v2243
    %v3675 = vpack.c.b16 %v2250, %v2247
    %v3676 = vpack.c.b16 %v2251, %v2248
    %v3677 = vpack.c.b16 %v2252, %v2249
    %v3678 = vpack.c.b16 %v2256, %v2253
    %v3679 = vpack.c.b16 %v2257, %v2254
    %v3680 = vpack.c.b16 %v2258, %v2255
    %v3681 = vpack.c.b16 %v2262, %v2259
    %v3682 = vpack.c.b16 %v2263, %v2260
    %v3683 = vpack.c.b16 %v2264, %v2261
    %v3684 = vpack.c.b16 %v2268, %v2265
    %v3685 = vpack.c.b16 %v2269, %v2266
    %v3686 = vpack.c.b16 %v2270, %v2267
    %v3687 = vpack.c.b16 %v2274, %v2271
    %v3688 = vpack.c.b16 %v2275, %v2272
    %v3689 = vpack.c.b16 %v2276, %v2273
    %v3690 = vpack.c.b16 %v2280, %v2277
    %v3691 = vpack.c.b16 %v2281, %v2278
    %v3692 = vpack.c.b16 %v2282, %v2279
    %v3693 = vpack.c.b16 %v2286, %v2283
    %v3694 = vpack.c.b16 %v2287, %v2284
    %v3695 = vpack.c.b16 %v2288, %v2285
    %v3696 = vpack.c.b16 %v2292, %v2289
    %v3697 = vpack.c.b16 %v2293, %v2290
    %v3698 = vpack.c.b16 %v2294, %v2291
    %v3699 = vpack.c.b16 %v2298, %v2295
    %v3700 = vpack.c.b16 %v2299, %v2296
    %v3701 = vpack.c.b16 %v2300, %v2297
    %v3702 = vpack.c.b16 %v2304, %v2301
    %v3703 = vpack.c.b16 %v2305, %v2302
    %v3704 = vpack.c.b16 %v2306, %v2303
    %v3705 = vpack.c.b16 %v2310, %v2307
    %v3706 = vpack.c.b16 %v2311, %v2308
    %v3707 = vpack.c.b16 %v2312, %v2309
    %v3708 = vpack.c.b16 %v2316, %v2313
    %v3709 = vpack.c.b16 %v2317, %v2314
    %v3710 = vpack.c.b16 %v2318, %v2315
    %v3711 = vpack.c.b16 %v2322, %v2319
    %v3712 = vpack.c.b16 %v2323, %v2320
    %v3713 = vpack.c.b16 %v2324, %v2321
    %v3714 = vpack.c.b16 %v2328, %v2325
    %v3715 = vpack.c.b16 %v2329, %v2326
    %v3716 = vpack.c.b16 %v2330, %v2327
    %v3717 = vpack.c.b16 %v2334, %v2331
    %v3718 = vpack.c.b16 %v2335, %v2332
    %v3719 = vpack.c.b16 %v2336, %v2333
    %v3720 = vpack.c.b16 %v2340, %v2337
    %v3721 = vpack.c.b16 %v2341, %v2338
    %v3722 = vpack.c.b16 %v2342, %v2339
    %v3723 = vpack.c.b16 %v2346, %v2343
    %v3724 = vpack.c.b16 %v2347, %v2344
    %v3725 = vpack.c.b16 %v2348, %v2345
    %v3726 = vpack.c.b16 %v2352, %v2349
    %v3727 = vpack.c.b16 %v2353, %v2350
    %v3728 = vpack.c.b16 %v2354, %v2351
    %v3729 = vpack.c.b16 %v2358, %v2355
    %v3730 = vpack.c.b16 %v2359, %v2356
    %v3731 = vpack.c.b16 %v2360, %v2357
    %v3732 = vpack.c.b16 %v2364, %v2361
    %v3733 = vpack.c.b16 %v2365, %v2362
    %v3734 = vpack.c.b16 %v2366, %v2363
    %v3735 = vpack.c.b16 %v2370, %v2367
    %v3736 = vpack.c.b16 %v2371, %v2368
    %v3737 = vpack.c.b16 %v2372, %v2369
    %v3738 = vpack.c.b16 %v2376, %v2373
    %v3739 = vpack.c.b16 %v2377, %v2374
    %v3740 = vpack.c.b16 %v2378, %v2375
    %v3741 = vpack.c.b16 %v2382, %v2379
    %v3742 = vpack.c.b16 %v2383, %v2380
    %v3743 = vpack.c.b16 %v2384, %v2381
    %v3744 = vpack.c.b16 %v2388, %v2385
    %v3745 = vpack.c.b16 %v2389, %v2386
    %v3746 = vpack.c.b16 %v2390, %v2387
    %v3747 = vpack.c.b16 %v2394, %v2391
    %v3748 = vpack.c.b16 %v2395, %v2392
    %v3749 = vpack.c.b16 %v2396, %v2393
    %v3750 = vpack.c.b16 %v2400, %v2397
    %v3751 = vpack.c.b16 %v2401, %v2398
    %v3752 = vpack.c.b16 %v2402, %v2399
    %v3753 = vpack.c.b16 %v2406, %v2403
    %v3754 = vpack.c.b16 %v2407, %v2404
    %v3755 = vpack.c.b16 %v2408, %v2405
    %v3756 = vpack.c.b16 %v2412, %v2409
    %v3757 = vpack.c.b16 %v2413, %v2410
    %v3758 = vpack.c.b16 %v2414, %v2411
    %v3759 = vpack.c.b16 %v2418, %v2415
    %v3760 = vpack.c.b16 %v2419, %v2416
    %v3761 = vpack.c.b16 %v2420, %v2417
    %v3762 = vpack.c.b16 %v2424, %v2421
    %v3763 = vpack.c.b16 %v2425, %v2422
    %v3764 = vpack.c.b16 %v2426, %v2423
    %v3765 = vpack.c.b16 %v2430, %v2427
    %v3766 = vpack.c.b16 %v2431, %v2428
    %v3767 = vpack.c.b16 %v2432, %v2429
    %v3768 = vpack.c.b16 %v2436, %v2433
    %v3769 = vpack.c.b16 %v2437, %v2434
    %v3770 = vpack.c.b16 %v2438, %v2435
    %v3771 = vpack.c.b16 %v2442, %v2439
    %v3772 = vpack.c.b16 %v2443, %v2440
    %v3773 = vpack.c.b16 %v2444, %v2441
    %v3774 = vpack.c.b16 %v2448, %v2445
    %v3775 = vpack.c.b16 %v2449, %v2446
    %v3776 = vpack.c.b16 %v2450, %v2447
    %v3777 = vpack.c.b16 %v2454, %v2451
    %v3778 = vpack.c.b16 %v2455, %v2452
    %v3779 = vpack.c.b16 %v2456, %v2453
    %v3780 = vpack.c.b16 %v2460, %v2457
    %v3781 = vpack.c.b16 %v2461, %v2458
    %v3782 = vpack.c.b16 %v2462, %v2459
    %v3783 = vpack.c.b16 %v2466, %v2463
    %v3784 = vpack.c.b16 %v2467, %v2464
    %v3785 = vpack.c.b16 %v2468, %v2465
    %v3786 = vpack.c.b16 %v2472, %v2469
    %v3787 = vpack.c.b16 %v2473, %v2470
    %v3788 = vpack.c.b16 %v2474, %v2471
    %v3789 = vpack.c.b16 %v2478, %v2475
    %v3790 = vpack.c.b16 %v2479, %v2476
    %v3791 = vpack.c.b16 %v2480, %v2477
    %v3792 = vpack.c.b16 %v2484, %v2481
    %v3793 = vpack.c.b16 %v2485, %v2482
    %v3794 = vpack.c.b16 %v2486, %v2483
    %v3795 = vpack.c.b16 %v2490, %v2487
    %v3796 = vpack.c.b16 %v2491, %v2488
    %v3797 = vpack.c.b16 %v2492, %v2489
    %v3798 = vpack.c.b16 %v2496, %v2493
    %v3799 = vpack.c.b16 %v2497, %v2494
    %v3800 = vpack.c.b16 %v2498, %v2495
    %v3801 = vpack.c.b16 %v2502, %v2499
    %v3802 = vpack.c.b16 %v2503, %v2500
    %v3803 = vpack.c.b16 %v2504, %v2501
    %v3804 = vpack.c.b16 %v2508, %v2505
    %v3805 = vpack.c.b16 %v2509, %v2506
    %v3806 = vpack.c.b16 %v2510, %v2507
    %v3807 = vpack.c.b16 %v2514, %v2511
    %v3808 = vpack.c.b16 %v2515, %v2512
    %v3809 = vpack.c.b16 %v2516, %v2513
    %v3810 = vpack.c.b16 %v2520, %v2517
    %v3811 = vpack.c.b16 %v2521, %v2518
    %v3812 = vpack.c.b16 %v2522, %v2519
    %v3813 = vpack.c.b16 %v2526, %v2523
    %v3814 = vpack.c.b16 %v2527, %v2524
    %v3815 = vpack.c.b16 %v2528, %v2525
    %v3816 = vpack.c.b16 %v2532, %v2529
    %v3817 = vpack.c.b16 %v2533, %v2530
    %v3818 = vpack.c.b16 %v2534, %v2531
    %v3819 = vpack.c.b16 %v2538, %v2535
    %v3820 = vpack.c.b16 %v2539, %v2536
    %v3821 = vpack.c.b16 %v2540, %v2537
    %v3822 = vpack.c.b16 %v2544, %v2541
    %v3823 = vpack.c.b16 %v2545, %v2542
    %v3824 = vpack.c.b16 %v2546, %v2543
    %v3825 = vpack.c.b16 %v2550, %v2547
    %v3826 = vpack.c.b16 %v2551, %v2548
    %v3827 = vpack.c.b16 %v2552, %v2549
    %v3828 = vpack.c.b16 %v2556, %v2553
    %v3829 = vpack.c.b16 %v2557, %v2554
    %v3830 = vpack.c.b16 %v2558, %v2555
    %v3831 = vpack.c.b16 %v2562, %v2559
    %v3832 = vpack.c.b16 %v2563, %v2560
    %v3833 = vpack.c.b16 %v2564, %v2561
    %v3834 = vpack.c.b16 %v2568, %v2565
    %v3835 = vpack.c.b16 %v2569, %v2566
    %v3836 = vpack.c.b16 %v2570, %v2567
    %v3837 = vpack.c.b16 %v2574, %v2571
    %v3838 = vpack.c.b16 %v2575, %v2572
    %v3839 = vpack.c.b16 %v2576, %v2573
    %v3840 = vpack.c.b16 %v2580, %v2577
    %v3841 = vpack.c.b16 %v2581, %v2578
    %v3842 = vpack.c.b16 %v2582, %v2579
    %v3843 = vpack.c.b16 %v2586, %v2583
    %v3844 = vpack.c.b16 %v2587, %v2584
    %v3845 = vpack.c.b16 %v2588, %v2585
    %v3846 = vpack.c.b16 %v2592, %v2589
    %v3847 = vpack.c.b16 %v2593, %v2590
    %v3848 = vpack.c.b16 %v2594, %v2591
    %v3849 = vpack.c.b16 %v2598, %v2595
    %v3850 = vpack.c.b16 %v2599, %v2596
    %v3851 = vpack.c.b16 %v2600, %v2597
    %v3852 = vpack.c.b16 %v2604, %v2601
    %v3853 = vpack.c.b16 %v2605, %v2602
    %v3854 = vpack.c.b16 %v2606, %v2603
    %v3855 = vpack.c.b16 %v2610, %v2607
    %v3856 = vpack.c.b16 %v2611, %v2608
    %v3857 = vpack.c.b16 %v2612, %v2609
    %v3858 = vpack.c.b16 %v2616, %v2613
    %v3859 = vpack.c.b16 %v2617, %v2614
    %v3860 = vpack.c.b16 %v2618, %v2615
    %v3861 = vpack.c.b16 %v2622, %v2619
    %v3862 = vpack.c.b16 %v2623, %v2620
    %v3863 = vpack.c.b16 %v2624, %v2621
    %v3864 = vpack.c.b16 %v2628, %v2625
    %v3865 = vpack.c.b16 %v2629, %v2626
    %v3866 = vpack.c.b16 %v2630, %v2627
    %v3867 = vpack.c.b16 %v2634, %v2631
    %v3868 = vpack.c.b16 %v2635, %v2632
    %v3869 = vpack.c.b16 %v2636, %v2633
    %v3870 = vpack.c.b16 %v2640, %v2637
    %v3871 = vpack.c.b16 %v2641, %v2638
    %v3872 = vpack.c.b16 %v2642, %v2639
    %v3873 = vpack.c.b16 %v2646, %v2643
    %v3874 = vpack.c.b16 %v2647, %v2644
    %v3875 = vpack.c.b16 %v2648, %v2645
    %v3876 = vpack.c.b16 %v2652, %v2649
    %v3877 = vpack.c.b16 %v2653, %v2650
    %v3878 = vpack.c.b16 %v2654, %v2651
    %v3879 = vpack.c.b16 %v2658, %v2655
    %v3880 = vpack.c.b16 %v2659, %v2656
    %v3881 = vpack.c.b16 %v2660, %v2657
    %v3882 = vpack.c.b16 %v2664, %v2661
    %v3883 = vpack.c.b16 %v2665, %v2662
    %v3884 = vpack.c.b16 %v2666, %v2663
    %v3885 = vpack.c.b16 %v2670, %v2667
    %v3886 = vpack.c.b16 %v2671, %v2668
    %v3887 = vpack.c.b16 %v2672, %v2669
    %v3888 = vpack.c.b16 %v2676, %v2673
    %v3889 = vpack.c.b16 %v2677, %v2674
    %v3890 = vpack.c.b16 %v2678, %v2675
    %v3891 = vpack.c.b16 %v2682, %v2679
    %v3892 = vpack.c.b16 %v2683, %v2680
    %v3893 = vpack.c.b16 %v2684, %v2681
    %v3894 = vpack.c.b16 %v2688, %v2685
    %v3895 = vpack.c.b16 %v2689, %v2686
    %v3896 = vpack.c.b16 %v2690, %v2687
    %v3897 = vpack.c.b16 %v2694, %v2691
    %v3898 = vpack.c.b16 %v2695, %v2692
    %v3899 = vpack.c.b16 %v2696, %v2693
    %v3900 = vpack.c.b16 %v2700, %v2697
    %v3901 = vpack.c.b16 %v2701, %v2698
    %v3902 = vpack.c.b16 %v2702, %v2699
    %v3903 = vpack.c.b16 %v2706, %v2703
    %v3904 = vpack.c.b16 %v2707, %v2704
    %v3905 = vpack.c.b16 %v2708, %v2705
    %v3906 = vpack.c.b16 %v2712, %v2709
    %v3907 = vpack.c.b16 %v2713, %v2710
    %v3908 = vpack.c.b16 %v2714, %v2711
    %v3909 = vpack.c.b16 %v2718, %v2715
    %v3910 = vpack.c.b16 %v2719, %v2716
    %v3911 = vpack.c.b16 %v2720, %v2717
    %v3912 = vpack.c.b16 %v2724, %v2721
    %v3913 = vpack.c.b16 %v2725, %v2722
    %v3914 = vpack.c.b16 %v2726, %v2723
    %v3915 = vpack.c.b16 %v2730, %v2727
    %v3916 = vpack.c.b16 %v2731, %v2728
    %v3917 = vpack.c.b16 %v2732, %v2729
    %v3918 = vpack.c.b16 %v2736, %v2733
    %v3919 = vpack.c.b16 %v2737, %v2734
    %v3920 = vpack.c.b16 %v2738, %v2735
    %v3921 = vpack.c.b16 %v2742, %v2739
    %v3922 = vpack.c.b16 %v2743, %v2740
    %v3923 = vpack.c.b16 %v2744, %v2741
    %v3924 = vpack.c.b16 %v2748, %v2745
    %v3925 = vpack.c.b16 %v2749, %v2746
    %v3926 = vpack.c.b16 %v2750, %v2747
    %v3927 = vpack.c.b16 %v2754, %v2751
    %v3928 = vpack.c.b16 %v2755, %v2752
    %v3929 = vpack.c.b16 %v2756, %v2753
    %v3930 = vpack.c.b16 %v2760, %v2757
    %v3931 = vpack.c.b16 %v2761, %v2758
    %v3932 = vpack.c.b16 %v2762, %v2759
    %v3933 = vpack.c.b16 %v2766, %v2763
    %v3934 = vpack.c.b16 %v2767, %v2764
    %v3935 = vpack.c.b16 %v2768, %v2765
    %v3936 = vpack.c.b16 %v2772, %v2769
    %v3937 = vpack.c.b16 %v2773, %v2770
    %v3938 = vpack.c.b16 %v2774, %v2771
    %v3939 = vpack.c.b16 %v2778, %v2775
    %v3940 = vpack.c.b16 %v2779, %v2776
    %v3941 = vpack.c.b16 %v2780, %v2777
    %v3942 = vpack.c.b16 %v2784, %v2781
    %v3943 = vpack.c.b16 %v2785, %v2782
    %v3944 = vpack.c.b16 %v2786, %v2783
    %v3945 = vpack.c.b16 %v2790, %v2787
    %v3946 = vpack.c.b16 %v2791, %v2788
    %v3947 = vpack.c.b16 %v2792, %v2789
    %v3948 = vpack.c.b16 %v2796, %v2793
    %v3949 = vpack.c.b16 %v2797, %v2794
    %v3950 = vpack.c.b16 %v2798, %v2795
    %v3951 = vpack.c.b16 %v2802, %v2799
    %v3952 = vpack.c.b16 %v2803, %v2800
    %v3953 = vpack.c.b16 %v2804, %v2801
    %v3954 = vpack.c.b16 %v2808, %v2805
    %v3955 = vpack.c.b16 %v2809, %v2806
    %v3956 = vpack.c.b16 %v2810, %v2807
    %v3957 = vpack.c.b16 %v2814, %v2811
    %v3958 = vpack.c.b16 %v2815, %v2812
    %v3959 = vpack.c.b16 %v2816, %v2813
    %v3960 = vpack.c.b16 %v2820, %v2817
    %v3961 = vpack.c.b16 %v2821, %v2818
    %v3962 = vpack.c.b16 %v2822, %v2819
    %v3963 = vpack.c.b16 %v2826, %v2823
    %v3964 = vpack.c.b16 %v2827, %v2824
    %v3965 = vpack.c.b16 %v2828, %v2825
    %v3966 = vpack.c.b16 %v2832, %v2829
    %v3967 = vpack.c.b16 %v2833, %v2830
    %v3968 = vpack.c.b16 %v2834, %v2831
    %v3969 = vpack.c.b16 %v2838, %v2835
    %v3970 = vpack.c.b16 %v2839, %v2836
    %v3971 = vpack.c.b16 %v2840, %v2837
    %v3972 = vpack.c.b16 %v2844, %v2841
    %v3973 = vpack.c.b16 %v2845, %v2842
    %v3974 = vpack.c.b16 %v2846, %v2843
    %v3975 = vpack.c.b16 %v2850, %v2847
    %v3976 = vpack.c.b16 %v2851, %v2848
    %v3977 = vpack.c.b16 %v2852, %v2849
    %v3978 = vpack.c.b16 %v2856, %v2853
    %v3979 = vpack.c.b16 %v2857, %v2854
    %v3980 = vpack.c.b16 %v2858, %v2855
    %v3981 = vpack.c.b16 %v2862, %v2859
    %v3982 = vpack.c.b16 %v2863, %v2860
    %v3983 = vpack.c.b16 %v2864, %v2861
    %v3984 = vpack.c.b16 %v2868, %v2865
    %v3985 = vpack.c.b16 %v2869, %v2866
    %v3986 = vpack.c.b16 %v2870, %v2867
    %v3987 = vpack.c.b16 %v2874, %v2871
    %v3988 = vpack.c.b16 %v2875, %v2872
    %v3989 = vpack.c.b16 %v2876, %v2873
    %v3990 = vpack.c.b16 %v2880, %v2877
    %v3991 = vpack.c.b16 %v2881, %v2878
    %v3992 = vpack.c.b16 %v2882, %v2879
    %v3993 = vpack.c.b16 %v2886, %v2883
    %v3994 = vpack.c.b16 %v2887, %v2884
    %v3995 = vpack.c.b16 %v2888, %v2885
    %v3996 = vpack.c.b16 %v2892, %v2889
    %v3997 = vpack.c.b16 %v2893, %v2890
    %v3998 = vpack.c.b16 %v2894, %v2891
    %v3999 = vpack.c.b16 %v2898, %v2895
    %v4000 = vpack.c.b16 %v2899, %v2896
    %v4001 = vpack.c.b16 %v2900, %v2897
    %v4002 = vpack.c.b16 %v2904, %v2901
    %v4003 = vpack.c.b16 %v2905, %v2902
    %v4004 = vpack.c.b16 %v2906, %v2903
    %v4005 = vpack.c.b16 %v2910, %v2907
    %v4006 = vpack.c.b16 %v2911, %v2908
    %v4007 = vpack.c.b16 %v2912, %v2909
    %v4008 = vpack.c.b16 %v2916, %v2913
    %v4009 = vpack.c.b16 %v2917, %v2914
    %v4010 = vpack.c.b16 %v2918, %v2915
    %v4011 = vpack.c.b16 %v2922, %v2919
    %v4012 = vpack.c.b16 %v2923, %v2920
    %v4013 = vpack.c.b16 %v2924, %v2921
    %v4014 = vpack.c.b16 %v2928, %v2925
    %v4015 = vpack.c.b16 %v2929, %v2926
    %v4016 = vpack.c.b16 %v2930, %v2927
    %v4017 = vpack.c.b16 %v2934, %v2931
    %v4018 = vpack.c.b16 %v2935, %v2932
    %v4019 = vpack.c.b16 %v2936, %v2933
    %v4020 = vpack.c.b16 %v2940, %v2937
    %v4021 = vpack.c.b16 %v2941, %v2938
    %v4022 = vpack.c.b16 %v2942, %v2939
    %v4023 = vpack.c.b16 %v2946, %v2943
    %v4024 = vpack.c.b16 %v2947, %v2944
    %v4025 = vpack.c.b16 %v2948, %v2945
    %v4026 = vpack.c.b16 %v2952, %v2949
    %v4027 = vpack.c.b16 %v2953, %v2950
    %v4028 = vpack.c.b16 %v2954, %v2951
    %v4029 = vpack.c.b16 %v2958, %v2955
    %v4030 = vpack.c.b16 %v2959, %v2956
    %v4031 = vpack.c.b16 %v2960, %v2957
    %v4032 = vpack.c.b16 %v2964, %v2961
    %v4033 = vpack.c.b16 %v2965, %v2962
    %v4034 = vpack.c.b16 %v2966, %v2963
    %v4035 = vpack.c.b16 %v2970, %v2967
    %v4036 = vpack.c.b16 %v2971, %v2968
    %v4037 = vpack.c.b16 %v2972, %v2969
    %v4038 = vpack.c.b16 %v2976, %v2973
    %v4039 = vpack.c.b16 %v2977, %v2974
    %v4040 = vpack.c.b16 %v2978, %v2975
    %v4041 = vpack.c.b16 %v2982, %v2979
    %v4042 = vpack.c.b16 %v2983, %v2980
    %v4043 = vpack.c.b16 %v2984, %v2981
    %v4044 = vpack.c.b16 %v2988, %v2985
    %v4045 = vpack.c.b16 %v2989, %v2986
    %v4046 = vpack.c.b16 %v2990, %v2987
    %v4047 = vpack.c.b16 %v2994, %v2991
    %v4048 = vpack.c.b16 %v2995, %v2992
    %v4049 = vpack.c.b16 %v2996, %v2993
    %v4050 = vpack.c.b16 %v3000, %v2997
    %v4051 = vpack.c.b16 %v3001, %v2998
    %v4052 = vpack.c.b16 %v3002, %v2999
    %v4053 = vpack.c.b16 %v3006, %v3003
    %v4054 = vpack.c.b16 %v3007, %v3004
    %v4055 = vpack.c.b16 %v3008, %v3005
    %v4056 = vpack.c.b16 %v3012, %v3009
    %v4057 = vpack.c.b16 %v3013, %v3010
    %v4058 = vpack.c.b16 %v3014, %v3011
    %v4059 = vpack.c.b16 %v3018, %v3015
    %v4060 = vpack.c.b16 %v3019, %v3016
    %v4061 = vpack.c.b16 %v3020, %v3017
    %v4062 = vpack.c.b16 %v3024, %v3021
    %v4063 = vpack.c.b16 %v3025, %v3022
    %v4064 = vpack.c.b16 %v3026, %v3023
    %v4065 = vpack.c.b16 %v3030, %v3027
    %v4066 = vpack.c.b16 %v3031, %v3028
    %v4067 = vpack.c.b16 %v3032, %v3029
    %v4068 = vpack.c.b16 %v3036, %v3033
    %v4069 = vpack.c.b16 %v3037, %v3034
    %v4070 = vpack.c.b16 %v3038, %v3035
    %v4071 = vpack.c.b16 %v3042, %v3039
    %v4072 = vpack.c.b16 %v3043, %v3040
    %v4073 = vpack.c.b16 %v3044, %v3041
    %v4074 = vpack.c.b16 %v3048, %v3045
    %v4075 = vpack.c.b16 %v3049, %v3046
    %v4076 = vpack.c.b16 %v3050, %v3047
    %v4077 = vpack.c.b16 %v3054, %v3051
    %v4078 = vpack.c.b16 %v3055, %v3052
    %v4079 = vpack.c.b16 %v3056, %v3053
    %v4080 = vpack.c.b16 %v3060, %v3057
    %v4081 = vpack.c.b16 %v3061, %v3058
    %v4082 = vpack.c.b16 %v3062, %v3059
    %v4083 = vpack.c.b16 %v3066, %v3063
    %v4084 = vpack.c.b16 %v3067, %v3064
    %v4085 = vpack.c.b16 %v3068, %v3065
    %v4086 = vpack.c.b16 %v3072, %v3069
    %v4087 = vpack.c.b16 %v3073, %v3070
    %v4088 = vpack.c.b16 %v3074, %v3071
    %v4089 = vpack.c.b16 %v3078, %v3075
    %v4090 = vpack.c.b16 %v3079, %v3076
    %v4091 = vpack.c.b16 %v3080, %v3077
    %v4092 = vpack.c.b16 %v3084, %v3081
    %v4093 = vpack.c.b16 %v3085, %v3082
    %v4094 = vpack.c.b16 %v3086, %v3083
    %v4095 = vpack.c.b16 %v3090, %v3087
    %v4096 = vpack.c.b16 %v3091, %v3088
    %v4097 = vpack.c.b16 %v3092, %v3089
    %v4098 = vpack.c.b16 %v3096, %v3093
    %v4099 = vpack.c.b16 %v3097, %v3094
    %v4100 = vpack.c.b16 %v3098, %v3095
    %v4101 = vpack.c.b16 %v3102, %v3099
    %v4102 = vpack.c.b16 %v3103, %v3100
    %v4103 = vpack.c.b16 %v3104, %v3101
    %v4104 = vpack.c.b16 %v3108, %v3105
    %v4105 = vpack.c.b16 %v3109, %v3106
    %v4106 = vpack.c.b16 %v3110, %v3107
    %v4107 = vpack.c.b16 %v3114, %v3111
    %v4108 = vpack.c.b16 %v3115, %v3112
    %v4109 = vpack.c.b16 %v3116, %v3113
    %v4110 = vpack.c.b16 %v3120, %v3117
    %v4111 = vpack.c.b16 %v3121, %v3118
    %v4112 = vpack.c.b16 %v3122, %v3119
    %v4113 = vpack.c.b16 %v3126, %v3123
    %v4114 = vpack.c.b16 %v3127, %v3124
    %v4115 = vpack.c.b16 %v3128, %v3125
    %v4116 = vpack.c.b16 %v3132, %v3129
    %v4117 = vpack.c.b16 %v3133, %v3130
    %v4118 = vpack.c.b16 %v3134, %v3131
    %v4119 = vpack.c.b16 %v3138, %v3135
    %v4120 = vpack.c.b16 %v3139, %v3136
    %v4121 = vpack.c.b16 %v3140, %v3137
    %v4122 = vpack.c.b16 %v3144, %v3141
    %v4123 = vpack.c.b16 %v3145, %v3142
    %v4124 = vpack.c.b16 %v3146, %v3143
    %v4125 = vpack.c.b16 %v3150, %v3147
    %v4126 = vpack.c.b16 %v3151, %v3148
    %v4127 = vpack.c.b16 %v3152, %v3149
    %v4128 = vpack.c.b16 %v3156, %v3153
    %v4129 = vpack.c.b16 %v3157, %v3154
    %v4130 = vpack.c.b16 %v3158, %v3155
    %v4131 = vpack.c.b16 %v3162, %v3159
    %v4132 = vpack.c.b16 %v3163, %v3160
    %v4133 = vpack.c.b16 %v3164, %v3161
    %v4134 = vpack.c.b16 %v3168, %v3165
    %v4135 = vpack.c.b16 %v3169, %v3166
    %v4136 = vpack.c.b16 %v3170, %v3167
    %v4137 = vpack.c.b16 %v3174, %v3171
    %v4138 = vpack.c.b16 %v3175, %v3172
    %v4139 = vpack.c.b16 %v3176, %v3173
    %v4140 = vpack.c.b16 %v3180, %v3177
    %v4141 = vpack.c.b16 %v3181, %v3178
    %v4142 = vpack.c.b16 %v3182, %v3179
    %v4143 = vpack.c.b16 %v3186, %v3183
    %v4144 = vpack.c.b16 %v3187, %v3184
    %v4145 = vpack.c.b16 %v3188, %v3185
    %v4146 = vpack.c.b16 %v3192, %v3189
    %v4147 = vpack.c.b16 %v3193, %v3190
    %v4148 = vpack.c.b16 %v3194, %v3191
    %v4149 = vpack.c.b16 %v3198, %v3195
    %v4150 = vpack.c.b16 %v3199, %v3196
    %v4151 = vpack.c.b16 %v3200, %v3197
    %v4152 = vpack.c.b16 %v3204, %v3201
    %v4153 = vpack.c.b16 %v3205, %v3202
    %v4154 = vpack.c.b16 %v3206, %v3203
    %v4155 = vpack.c.b16 %v3210, %v3207
    %v4156 = vpack.c.b16 %v3211, %v3208
    %v4157 = vpack.c.b16 %v3212, %v3209
    %v4158 = vpack.c.b16 %v3216, %v3213
    %v4159 = vpack.c.b16 %v3217, %v3214
    %v4160 = vpack.c.b16 %v3218, %v3215
    %v4161 = vpack.c.b16 %v3222, %v3219
    %v4162 = vpack.c.b16 %v3223, %v3220
    %v4163 = vpack.c.b16 %v3224, %v3221
    %v4164 = vpack.c.b16 %v3228, %v3225
    %v4165 = vpack.c.b16 %v3229, %v3226
    %v4166 = vpack.c.b16 %v3230, %v3227
    %v4167 = vpack.c.b16 %v3234, %v3231
    %v4168 = vpack.c.b16 %v3235, %v3232
    %v4169 = vpack.c.b16 %v3236, %v3233
    %v4170 = vpack.c.b16 %v3240, %v3237
    %v4171 = vpack.c.b16 %v3241, %v3238
    %v4172 = vpack.c.b16 %v3242, %v3239
    %v4173 = vpack.c.b16 %v3246, %v3243
    %v4174 = vpack.c.b16 %v3247, %v3244
    %v4175 = vpack.c.b16 %v3248, %v3245
    %v4176 = vpack.c.b16 %v3252, %v3249
    %v4177 = vpack.c.b16 %v3253, %v3250
    %v4178 = vpack.c.b16 %v3254, %v3251
    %v4179 = vpack.c.b16 %v3258, %v3255
    %v4180 = vpack.c.b16 %v3259, %v3256
    %v4181 = vpack.c.b16 %v3260, %v3257
    %v4182 = vpack.c.b16 %v3264, %v3261
    %v4183 = vpack.c.b16 %v3265, %v3262
    %v4184 = vpack.c.b16 %v3266, %v3263
    %v4185 = vpack.c.b16 %v3270, %v3267
    %v4186 = vpack.c.b16 %v3271, %v3268
    %v4187 = vpack.c.b16 %v3272, %v3269
    %v4188 = vpack.c.b16 %v3276, %v3273
    %v4189 = vpack.c.b16 %v3277, %v3274
    %v4190 = vpack.c.b16 %v3278, %v3275
    %v4191 = vpack.c.b16 %v3282, %v3279
    %v4192 = vpack.c.b16 %v3283, %v3280
    %v4193 = vpack.c.b16 %v3284, %v3281
    %v4194 = vpack.c.b16 %v3288, %v3285
    %v4195 = vpack.c.b16 %v3289, %v3286
    %v4196 = vpack.c.b16 %v3290, %v3287
    %v4197 = vpack.c.b16 %v3294, %v3291
    %v4198 = vpack.c.b16 %v3295, %v3292
    %v4199 = vpack.c.b16 %v3296, %v3293
    %v4200 = vpack.c.b16 %v3300, %v3297
    %v4201 = vpack.c.b16 %v3301, %v3298
    %v4202 = vpack.c.b16 %v3302, %v3299
    %v4203 = vpack.c.b16 %v3306, %v3303
    %v4204 = vpack.c.b16 %v3307, %v3304
    %v4205 = vpack.c.b16 %v3308, %v3305
    %v4206 = vpack.c.b16 %v3312, %v3309
    %v4207 = vpack.c.b16 %v3313, %v3310
    %v4208 = vpack.c.b16 %v3314, %v3311
    %v4209 = vpack.c.b16 %v3318, %v3315
    %v4210 = vpack.c.b16 %v3319, %v3316
    %v4211 = vpack.c.b16 %v3320, %v3317
    %v4212 = vpack.c.b16 %v3324, %v3321
    %v4213 = vpack.c.b16 %v3325, %v3322
    %v4214 = vpack.c.b16 %v3326, %v3323
    %v4215 = vpack.c.b16 %v3330, %v3327
    %v4216 = vpack.c.b16 %v3331, %v3328
    %v4217 = vpack.c.b16 %v3332, %v3329
    %v4218 = vpack.c.b16 %v3336, %v3333
    %v4219 = vpack.c.b16 %v3337, %v3334
    %v4220 = vpack.c.b16 %v3338, %v3335
    %v4221 = vpack.c.b16 %v3342, %v3339
    %v4222 = vpack.c.b16 %v3343, %v3340
    %v4223 = vpack.c.b16 %v3344, %v3341
    %v4224 = vpack.c.b16 %v3348, %v3345
    %v4225 = vpack.c.b16 %v3349, %v3346
    %v4226 = vpack.c.b16 %v3350, %v3347
    %v4227 = vpack.c.b16 %v3354, %v3351
    %v4228 = vpack.c.b16 %v3355, %v3352
    %v4229 = vpack.c.b16 %v3356, %v3353
    %v4230 = vpack.c.b16 %v3360, %v3357
    %v4231 = vpack.c.b16 %v3361, %v3358
    %v4232 = vpack.c.b16 %v3362, %v3359
    %v4233 = vpack.c.b16 %v3366, %v3363
    %v4234 = vpack.c.b16 %v3367, %v3364
    %v4235 = vpack.c.b16 %v3368, %v3365
    %v4236 = vpack.c.b16 %v3372, %v3369
    %v4237 = vpack.c.b16 %v3373, %v3370
    %v4238 = vpack.c.b16 %v3374, %v3371
    %v4239 = vpack.c.b16 %v3378, %v3375
    %v4240 = vpack.c.b16 %v3379, %v3376
    %v4241 = vpack.c.b16 %v3380, %v3377
    %v4242 = vpack.c.b16 %v3384, %v3381
    %v4243 = vpack.c.b16 %v3385, %v3382
    %v4244 = vpack.c.b16 %v3386, %v3383
    %v4245 = vpack.c.b16 %v3390, %v3387
    %v4246 = vpack.c.b16 %v3391, %v3388
    %v4247 = vpack.c.b16 %v3392, %v3389
    %v4248 = vpack.c.b16 %v3396, %v3393
    %v4249 = vpack.c.b16 %v3397, %v3394
    %v4250 = vpack.c.b16 %v3398, %v3395
    %v4251 = vpack.c.b16 %v3402, %v3399
    %v4252 = vpack.c.b16 %v3403, %v3400
    %v4253 = vpack.c.b16 %v3404, %v3401
    %v4254 = vpack.c.b16 %v3408, %v3405
    %v4255 = vpack.c.b16 %v3409, %v3406
    %v4256 = vpack.c.b16 %v3410, %v3407
    %v4257 = vpack.c.b16 %v3414, %v3411
    %v4258 = vpack.c.b16 %v3415, %v3412
    %v4259 = vpack.c.b16 %v3416, %v3413
    %v4260 = vpack.c.b16 %v3420, %v3417
    %v4261 = vpack.c.b16 %v3421, %v3418
    %v4262 = vpack.c.b16 %v3422, %v3419
    %v4263 = vpack.c.b16 %v3426, %v3423
    %v4264 = vpack.c.b16 %v3427, %v3424
    %v4265 = vpack.c.b16 %v3428, %v3425
    %v4266 = vpack.c.b16 %v3432, %v3429
    %v4267 = vpack.c.b16 %v3433, %v3430
    %v4268 = vpack.c.b16 %v3434, %v3431
    %v4269 = vpack.c.b16 %v3438, %v3435
    %v4270 = vpack.c.b16 %v3439, %v3436
    %v4271 = vpack.c.b16 %v3440, %v3437
    %v4272 = vpack.c.b16 %v3444, %v3441
    %v4273 = vpack.c.b16 %v3445, %v3442
    %v4274 = vpack.c.b16 %v3446, %v3443
    %v4275 = vpack.c.b16 %v3450, %v3447
    %v4276 = vpack.c.b16 %v3451, %v3448
    %v4277 = vpack.c.b16 %v3452, %v3449
    %v4278 = vpack.c.b16 %v3456, %v3453
    %v4279 = vpack.c.b16 %v3457, %v3454
    %v4280 = vpack.c.b16 %v3458, %v3455
    %v4281 = vpack.c.b16 %v3462, %v3459
    %v4282 = vpack.c.b16 %v3463, %v3460
    %v4283 = vpack.c.b16 %v3464, %v3461
    %v4284 = vpack.c.b16 %v3468, %v3465
    %v4285 = vpack.c.b16 %v3469, %v3466
    %v4286 = vpack.c.b16 %v3470, %v3467
    %v4287 = vpack.c.b16 %v3474, %v3471
    %v4288 = vpack.c.b16 %v3475, %v3472
    %v4289 = vpack.c.b16 %v3476, %v3473
    %v4290 = vpack.c.b16 %v3480, %v3477
    %v4291 = vpack.c.b16 %v3481, %v3478
    %v4292 = vpack.c.b16 %v3482, %v3479
    %v4293 = vpack.c.b16 %v3486, %v3483
    %v4294 = vpack.c.b16 %v3487, %v3484
    %v4295 = vpack.c.b16 %v3488, %v3485
    %v4296 = vpack.c.b16 %v3492, %v3489
    %v4297 = vpack.c.b16 %v3493, %v3490
    %v4298 = vpack.c.b16 %v3494, %v3491
    %v4299 = vpack.c.b16 %v3498, %v3495
    %v4300 = vpack.c.b16 %v3499, %v3496
    %v4301 = vpack.c.b16 %v3500, %v3497
    %v4302 = vpack.c.b16 %v3504, %v3501
    %v4303 = vpack.c.b16 %v3505, %v3502
    %v4304 = vpack.c.b16 %v3506, %v3503
    %v4305 = vpack.c.b16 %v3510, %v3507
    %v4306 = vpack.c.b16 %v3511, %v3508
    %v4307 = vpack.c.b16 %v3512, %v3509
    %v4308 = vpack.c.b16 %v3516, %v3513
    %v4309 = vpack.c.b16 %v3517, %v3514
    %v4310 = vpack.c.b16 %v3518, %v3515
    %v4311 = vpack.c.b16 %v3522, %v3519
    %v4312 = vpack.c.b16 %v3523, %v3520
    %v4313 = vpack.c.b16 %v3524, %v3521
    %v4314 = vpack.c.b16 %v3528, %v3525
    %v4315 = vpack.c.b16 %v3529, %v3526
    %v4316 = vpack.c.b16 %v3530, %v3527
    %v4317 = vpack.c.b16 %v3534, %v3531
    %v4318 = vpack.c.b16 %v3535, %v3532
    %v4319 = vpack.c.b16 %v3536, %v3533
    %v4320 = vpack.c.b16 %v3540, %v3537
    %v4321 = vpack.c.b16 %v3541, %v3538
    %v4322 = vpack.c.b16 %v3542, %v3539
    %v4323 = vpack.c.b16 %v3546, %v3543
    %v4324 = vpack.c.b16 %v3547, %v3544
    %v4325 = vpack.c.b16 %v3548, %v3545
    %v4326 = vpack.c.b16 %v3552, %v3549
    %v4327 = vpack.c.b16 %v3553, %v3550
    %v4328 = vpack.c.b16 %v3554, %v3551
    %v4329 = vpack.c.b16 %v3558, %v3555
    %v4330 = vpack.c.b16 %v3559, %v3556
    %v4331 = vpack.c.b16 %v3560, %v3557
    %v4332 = vpack.c.b16 %v3564, %v3561
    %v4333 = vpack.c.b16 %v3565, %v3562
    %v4334 = vpack.c.b16 %v3566, %v3563
    %v4335 = vpack.c.b16 %v3570, %v3567
    %v4336 = vpack.c.b16 %v3571, %v3568
    %v4337 = vpack.c.b16 %v3572, %v3569
    %v4338 = vpack.c.b16 %v3576, %v3573
    %v4339 = vpack.c.b16 %v3577, %v3574
    %v4340 = vpack.c.b16 %v3578, %v3575
    %v4341 = vpack.c.b16 %v3582, %v3579
    %v4342 = vpack.c.b16 %v3583, %v3580
    %v4343 = vpack.c.b16 %v3584, %v3581
    %v4344 = vpack.c.b16 %v3588, %v3585
    %v4345 = vpack.c.b16 %v3589, %v3586
    %v4346 = vpack.c.b16 %v3590, %v3587
    %v4347 = vpack.c.b16 %v3594, %v3591
    %v4348 = vpack.c.b16 %v3595, %v3592
    %v4349 = vpack.c.b16 %v3596, %v3593
    %v4350 = vpack.c.b16 %v3600, %v3597
    %v4351 = vpack.c.b16 %v3601, %v3598
    %v4352 = vpack.c.b16 %v3602, %v3599
    %vm5103 = vcmask 261120
    %v5104 = vsel %vm5103, %v1071, 0
    %5106 = vmatpush.bf16.msra.mxu0 %v3624
    %5107 = vmatpush.bf16.msra.mxu0 %v3621
    %5108 = vmatpush.bf16.msra.mxu0 %v3618
    %5109 = vmatpush.bf16.msra.mxu0 %v3615
    %5110 = vmatpush.bf16.msra.mxu0 %v3612
    %5111 = vmatpush.bf16.msra.mxu0 %v3609
    %5112 = vmatpush.bf16.msra.mxu0 %v3606
    %5113 = vmatpush.bf16.msra.mxu0 %v3603
    %5114 = vmatmul.bf16.gmra.mxu0 %v1034
    %v5115 = vpop.f32.mrf.mxu0
    %v5116 = vadd.f32 0.0, %v5115
    %v5117 = vpop.f32.mrf.mxu0
    %5118 = vdwg.mxu0
    %5119 = vmatpush.bf16.msra.mxu0 %v3648
    %5120 = vmatpush.bf16.msra.mxu0 %v3645
    %5121 = vmatpush.bf16.msra.mxu0 %v3642
    %5122 = vmatpush.bf16.msra.mxu0 %v3639
    %5123 = vmatpush.bf16.msra.mxu0 %v3636
    %5124 = vmatpush.bf16.msra.mxu0 %v3633
    %5125 = vmatpush.bf16.msra.mxu0 %v3630
    %5126 = vmatpush.bf16.msra.mxu0 %v3627
    %5127 = vmatmul.bf16.gmra.mxu0 %v1035
    %v5128 = vpop.f32.mrf.mxu0
    %v5129 = vadd.f32 %v5116, %v5128
    %v5130 = vpop.f32.mrf.mxu0
    %5131 = vdwg.mxu0
    %5132 = vmatpush.bf16.msra.mxu0 %v3672
    %5133 = vmatpush.bf16.msra.mxu0 %v3669
    %5134 = vmatpush.bf16.msra.mxu0 %v3666
    %5135 = vmatpush.bf16.msra.mxu0 %v3663
    %5136 = vmatpush.bf16.msra.mxu0 %v3660
    %5137 = vmatpush.bf16.msra.mxu0 %v3657
    %5138 = vmatpush.bf16.msra.mxu0 %v3654
    %5139 = vmatpush.bf16.msra.mxu0 %v3651
    %5140 = vmatmul.bf16.gmra.mxu0 %v1036
    %v5141 = vpop.f32.mrf.mxu0
    %v5142 = vadd.f32 %v5129, %v5141
    %v5143 = vpop.f32.mrf.mxu0
    %5144 = vdwg.mxu0
    %5145 = vmatpush.bf16.msra.mxu0 %v3696
    %5146 = vmatpush.bf16.msra.mxu0 %v3693
    %5147 = vmatpush.bf16.msra.mxu0 %v3690
    %5148 = vmatpush.bf16.msra.mxu0 %v3687
    %5149 = vmatpush.bf16.msra.mxu0 %v3684
    %5150 = vmatpush.bf16.msra.mxu0 %v3681
    %5151 = vmatpush.bf16.msra.mxu0 %v3678
    %5152 = vmatpush.bf16.msra.mxu0 %v3675
    %5153 = vmatmul.bf16.gmra.mxu0 %v1037
    %v5154 = vpop.f32.mrf.mxu0
    %v5155 = vadd.f32 %v5142, %v5154
    %v5156 = vpop.f32.mrf.mxu0
    %5157 = vdwg.mxu0
    %5158 = vmatpush.bf16.msra.mxu0 %v3720
    %5159 = vmatpush.bf16.msra.mxu0 %v3717
    %5160 = vmatpush.bf16.msra.mxu0 %v3714
    %5161 = vmatpush.bf16.msra.mxu0 %v3711
    %5162 = vmatpush.bf16.msra.mxu0 %v3708
    %5163 = vmatpush.bf16.msra.mxu0 %v3705
    %5164 = vmatpush.bf16.msra.mxu0 %v3702
    %5165 = vmatpush.bf16.msra.mxu0 %v3699
    %5166 = vmatmul.bf16.gmra.mxu0 %v1038
    %v5167 = vpop.f32.mrf.mxu0
    %v5168 = vadd.f32 %v5155, %v5167
    %v5169 = vpop.f32.mrf.mxu0
    %5170 = vdwg.mxu0
    %5171 = vmatpush.bf16.msra.mxu0 %v3744
    %5172 = vmatpush.bf16.msra.mxu0 %v3741
    %5173 = vmatpush.bf16.msra.mxu0 %v3738
    %5174 = vmatpush.bf16.msra.mxu0 %v3735
    %5175 = vmatpush.bf16.msra.mxu0 %v3732
    %5176 = vmatpush.bf16.msra.mxu0 %v3729
    %5177 = vmatpush.bf16.msra.mxu0 %v3726
    %5178 = vmatpush.bf16.msra.mxu0 %v3723
    %5179 = vmatmul.bf16.gmra.mxu0 %v1039
    %v5180 = vpop.f32.mrf.mxu0
    %v5181 = vadd.f32 %v5168, %v5180
    %v5182 = vpop.f32.mrf.mxu0
    %5183 = vdwg.mxu0
    %5184 = vmatpush.bf16.msra.mxu0 %v3768
    %5185 = vmatpush.bf16.msra.mxu0 %v3765
    %5186 = vmatpush.bf16.msra.mxu0 %v3762
    %5187 = vmatpush.bf16.msra.mxu0 %v3759
    %5188 = vmatpush.bf16.msra.mxu0 %v3756
    %5189 = vmatpush.bf16.msra.mxu0 %v3753
    %5190 = vmatpush.bf16.msra.mxu0 %v3750
    %5191 = vmatpush.bf16.msra.mxu0 %v3747
    %5192 = vmatmul.bf16.gmra.mxu0 %v1040
    %v5193 = vpop.f32.mrf.mxu0
    %v5194 = vadd.f32 %v5181, %v5193
    %v5195 = vpop.f32.mrf.mxu0
    %5196 = vdwg.mxu0
    %5197 = vmatpush.bf16.msra.mxu0 %v3792
    %5198 = vmatpush.bf16.msra.mxu0 %v3789
    %5199 = vmatpush.bf16.msra.mxu0 %v3786
    %5200 = vmatpush.bf16.msra.mxu0 %v3783
    %5201 = vmatpush.bf16.msra.mxu0 %v3780
    %5202 = vmatpush.bf16.msra.mxu0 %v3777
    %5203 = vmatpush.bf16.msra.mxu0 %v3774
    %5204 = vmatpush.bf16.msra.mxu0 %v3771
    %5205 = vmatmul.bf16.gmra.mxu0 %v1041
    %v5206 = vpop.f32.mrf.mxu0
    %v5207 = vadd.f32 %v5194, %v5206
    %v5208 = vpop.f32.mrf.mxu0
    %5209 = vdwg.mxu0
    %5210 = vmatpush.bf16.msra.mxu0 %v3816
    %5211 = vmatpush.bf16.msra.mxu0 %v3813
    %5212 = vmatpush.bf16.msra.mxu0 %v3810
    %5213 = vmatpush.bf16.msra.mxu0 %v3807
    %5214 = vmatpush.bf16.msra.mxu0 %v3804
    %5215 = vmatpush.bf16.msra.mxu0 %v3801
    %5216 = vmatpush.bf16.msra.mxu0 %v3798
    %5217 = vmatpush.bf16.msra.mxu0 %v3795
    %5218 = vmatmul.bf16.gmra.mxu0 %v1044
    %v5219 = vpop.f32.mrf.mxu0
    %v5220 = vadd.f32 %v5207, %v5219
    %v5221 = vpop.f32.mrf.mxu0
    %5222 = vdwg.mxu0
    %5223 = vmatpush.bf16.msra.mxu0 %v3840
    %5224 = vmatpush.bf16.msra.mxu0 %v3837
    %5225 = vmatpush.bf16.msra.mxu0 %v3834
    %5226 = vmatpush.bf16.msra.mxu0 %v3831
    %5227 = vmatpush.bf16.msra.mxu0 %v3828
    %5228 = vmatpush.bf16.msra.mxu0 %v3825
    %5229 = vmatpush.bf16.msra.mxu0 %v3822
    %5230 = vmatpush.bf16.msra.mxu0 %v3819
    %5231 = vmatmul.bf16.gmra.mxu0 %v1045
    %v5232 = vpop.f32.mrf.mxu0
    %v5233 = vadd.f32 %v5220, %v5232
    %v5234 = vpop.f32.mrf.mxu0
    %5235 = vdwg.mxu0
    %5236 = vmatpush.bf16.msra.mxu0 %v3864
    %5237 = vmatpush.bf16.msra.mxu0 %v3861
    %5238 = vmatpush.bf16.msra.mxu0 %v3858
    %5239 = vmatpush.bf16.msra.mxu0 %v3855
    %5240 = vmatpush.bf16.msra.mxu0 %v3852
    %5241 = vmatpush.bf16.msra.mxu0 %v3849
    %5242 = vmatpush.bf16.msra.mxu0 %v3846
    %5243 = vmatpush.bf16.msra.mxu0 %v3843
    %5244 = vmatmul.bf16.gmra.mxu0 %v1046
    %v5245 = vpop.f32.mrf.mxu0
    %v5246 = vadd.f32 %v5233, %v5245
    %v5247 = vpop.f32.mrf.mxu0
    %5248 = vdwg.mxu0
    %5249 = vmatpush.bf16.msra.mxu0 %v3888
    %5250 = vmatpush.bf16.msra.mxu0 %v3885
    %5251 = vmatpush.bf16.msra.mxu0 %v3882
    %5252 = vmatpush.bf16.msra.mxu0 %v3879
    %5253 = vmatpush.bf16.msra.mxu0 %v3876
    %5254 = vmatpush.bf16.msra.mxu0 %v3873
    %5255 = vmatpush.bf16.msra.mxu0 %v3870
    %5256 = vmatpush.bf16.msra.mxu0 %v3867
    %5257 = vmatmul.bf16.gmra.mxu0 %v1047
    %v5258 = vpop.f32.mrf.mxu0
    %v5259 = vadd.f32 %v5246, %v5258
    %v5260 = vpop.f32.mrf.mxu0
    %5261 = vdwg.mxu0
    %5262 = vmatpush.bf16.msra.mxu0 %v3912
    %5263 = vmatpush.bf16.msra.mxu0 %v3909
    %5264 = vmatpush.bf16.msra.mxu0 %v3906
    %5265 = vmatpush.bf16.msra.mxu0 %v3903
    %5266 = vmatpush.bf16.msra.mxu0 %v3900
    %5267 = vmatpush.bf16.msra.mxu0 %v3897
    %5268 = vmatpush.bf16.msra.mxu0 %v3894
    %5269 = vmatpush.bf16.msra.mxu0 %v3891
    %5270 = vmatmul.bf16.gmra.mxu0 %v1048
    %v5271 = vpop.f32.mrf.mxu0
    %v5272 = vadd.f32 %v5259, %v5271
    %v5273 = vpop.f32.mrf.mxu0
    %5274 = vdwg.mxu0
    %5275 = vmatpush.bf16.msra.mxu0 %v3936
    %5276 = vmatpush.bf16.msra.mxu0 %v3933
    %5277 = vmatpush.bf16.msra.mxu0 %v3930
    %5278 = vmatpush.bf16.msra.mxu0 %v3927
    %5279 = vmatpush.bf16.msra.mxu0 %v3924
    %5280 = vmatpush.bf16.msra.mxu0 %v3921
    %5281 = vmatpush.bf16.msra.mxu0 %v3918
    %5282 = vmatpush.bf16.msra.mxu0 %v3915
    %5283 = vmatmul.bf16.gmra.mxu0 %v1049
    %v5284 = vpop.f32.mrf.mxu0
    %v5285 = vadd.f32 %v5272, %v5284
    %v5286 = vpop.f32.mrf.mxu0
    %5287 = vdwg.mxu0
    %5288 = vmatpush.bf16.msra.mxu0 %v3960
    %5289 = vmatpush.bf16.msra.mxu0 %v3957
    %5290 = vmatpush.bf16.msra.mxu0 %v3954
    %5291 = vmatpush.bf16.msra.mxu0 %v3951
    %5292 = vmatpush.bf16.msra.mxu0 %v3948
    %5293 = vmatpush.bf16.msra.mxu0 %v3945
    %5294 = vmatpush.bf16.msra.mxu0 %v3942
    %5295 = vmatpush.bf16.msra.mxu0 %v3939
    %5296 = vmatmul.bf16.gmra.mxu0 %v1050
    %v5297 = vpop.f32.mrf.mxu0
    %v5298 = vadd.f32 %v5285, %v5297
    %v5299 = vpop.f32.mrf.mxu0
    %5300 = vdwg.mxu0
    %5301 = vmatpush.bf16.msra.mxu0 %v3984
    %5302 = vmatpush.bf16.msra.mxu0 %v3981
    %5303 = vmatpush.bf16.msra.mxu0 %v3978
    %5304 = vmatpush.bf16.msra.mxu0 %v3975
    %5305 = vmatpush.bf16.msra.mxu0 %v3972
    %5306 = vmatpush.bf16.msra.mxu0 %v3969
    %5307 = vmatpush.bf16.msra.mxu0 %v3966
    %5308 = vmatpush.bf16.msra.mxu0 %v3963
    %5309 = vmatmul.bf16.gmra.mxu0 %v1051
    %v5310 = vpop.f32.mrf.mxu0
    %v5311 = vadd.f32 %v5298, %v5310
    %v5312 = vpop.f32.mrf.mxu0
    %5313 = vdwg.mxu0
    %5314 = vmatpush.bf16.msra.mxu0 %v4008
    %5315 = vmatpush.bf16.msra.mxu0 %v4005
    %5316 = vmatpush.bf16.msra.mxu0 %v4002
    %5317 = vmatpush.bf16.msra.mxu0 %v3999
    %5318 = vmatpush.bf16.msra.mxu0 %v3996
    %5319 = vmatpush.bf16.msra.mxu0 %v3993
    %5320 = vmatpush.bf16.msra.mxu0 %v3990
    %5321 = vmatpush.bf16.msra.mxu0 %v3987
    %5322 = vmatmul.bf16.gmra.mxu0 %v1054
    %v5323 = vpop.f32.mrf.mxu0
    %v5324 = vadd.f32 %v5311, %v5323
    %v5325 = vpop.f32.mrf.mxu0
    %5326 = vdwg.mxu0
    %5327 = vmatpush.bf16.msra.mxu0 %v4032
    %5328 = vmatpush.bf16.msra.mxu0 %v4029
    %5329 = vmatpush.bf16.msra.mxu0 %v4026
    %5330 = vmatpush.bf16.msra.mxu0 %v4023
    %5331 = vmatpush.bf16.msra.mxu0 %v4020
    %5332 = vmatpush.bf16.msra.mxu0 %v4017
    %5333 = vmatpush.bf16.msra.mxu0 %v4014
    %5334 = vmatpush.bf16.msra.mxu0 %v4011
    %5335 = vmatmul.bf16.gmra.mxu0 %v1055
    %v5336 = vpop.f32.mrf.mxu0
    %v5337 = vadd.f32 %v5324, %v5336
    %v5338 = vpop.f32.mrf.mxu0
    %5339 = vdwg.mxu0
    %5340 = vmatpush.bf16.msra.mxu0 %v4056
    %5341 = vmatpush.bf16.msra.mxu0 %v4053
    %5342 = vmatpush.bf16.msra.mxu0 %v4050
    %5343 = vmatpush.bf16.msra.mxu0 %v4047
    %5344 = vmatpush.bf16.msra.mxu0 %v4044
    %5345 = vmatpush.bf16.msra.mxu0 %v4041
    %5346 = vmatpush.bf16.msra.mxu0 %v4038
    %5347 = vmatpush.bf16.msra.mxu0 %v4035
    %5348 = vmatmul.bf16.gmra.mxu0 %v1056
    %v5349 = vpop.f32.mrf.mxu0
    %v5350 = vadd.f32 %v5337, %v5349
    %v5351 = vpop.f32.mrf.mxu0
    %5352 = vdwg.mxu0
    %5353 = vmatpush.bf16.msra.mxu0 %v4080
    %5354 = vmatpush.bf16.msra.mxu0 %v4077
    %5355 = vmatpush.bf16.msra.mxu0 %v4074
    %5356 = vmatpush.bf16.msra.mxu0 %v4071
    %5357 = vmatpush.bf16.msra.mxu0 %v4068
    %5358 = vmatpush.bf16.msra.mxu0 %v4065
    %5359 = vmatpush.bf16.msra.mxu0 %v4062
    %5360 = vmatpush.bf16.msra.mxu0 %v4059
    %5361 = vmatmul.bf16.gmra.mxu0 %v1057
    %v5362 = vpop.f32.mrf.mxu0
    %v5363 = vadd.f32 %v5350, %v5362
    %v5364 = vpop.f32.mrf.mxu0
    %5365 = vdwg.mxu0
    %5366 = vmatpush.bf16.msra.mxu0 %v4104
    %5367 = vmatpush.bf16.msra.mxu0 %v4101
    %5368 = vmatpush.bf16.msra.mxu0 %v4098
    %5369 = vmatpush.bf16.msra.mxu0 %v4095
    %5370 = vmatpush.bf16.msra.mxu0 %v4092
    %5371 = vmatpush.bf16.msra.mxu0 %v4089
    %5372 = vmatpush.bf16.msra.mxu0 %v4086
    %5373 = vmatpush.bf16.msra.mxu0 %v4083
    %5374 = vmatmul.bf16.gmra.mxu0 %v1058
    %v5375 = vpop.f32.mrf.mxu0
    %v5376 = vadd.f32 %v5363, %v5375
    %v5377 = vpop.f32.mrf.mxu0
    %5378 = vdwg.mxu0
    %5379 = vmatpush.bf16.msra.mxu0 %v4128
    %5380 = vmatpush.bf16.msra.mxu0 %v4125
    %5381 = vmatpush.bf16.msra.mxu0 %v4122
    %5382 = vmatpush.bf16.msra.mxu0 %v4119
    %5383 = vmatpush.bf16.msra.mxu0 %v4116
    %5384 = vmatpush.bf16.msra.mxu0 %v4113
    %5385 = vmatpush.bf16.msra.mxu0 %v4110
    %5386 = vmatpush.bf16.msra.mxu0 %v4107
    %5387 = vmatmul.bf16.gmra.mxu0 %v1059
    %v5388 = vpop.f32.mrf.mxu0
    %v5389 = vadd.f32 %v5376, %v5388
    %v5390 = vpop.f32.mrf.mxu0
    %5391 = vdwg.mxu0
    %5392 = vmatpush.bf16.msra.mxu0 %v4152
    %5393 = vmatpush.bf16.msra.mxu0 %v4149
    %5394 = vmatpush.bf16.msra.mxu0 %v4146
    %5395 = vmatpush.bf16.msra.mxu0 %v4143
    %5396 = vmatpush.bf16.msra.mxu0 %v4140
    %5397 = vmatpush.bf16.msra.mxu0 %v4137
    %5398 = vmatpush.bf16.msra.mxu0 %v4134
    %5399 = vmatpush.bf16.msra.mxu0 %v4131
    %5400 = vmatmul.bf16.gmra.mxu0 %v1060
    %v5401 = vpop.f32.mrf.mxu0
    %v5402 = vadd.f32 %v5389, %v5401
    %v5403 = vpop.f32.mrf.mxu0
    %5404 = vdwg.mxu0
    %5405 = vmatpush.bf16.msra.mxu0 %v4176
    %5406 = vmatpush.bf16.msra.mxu0 %v4173
    %5407 = vmatpush.bf16.msra.mxu0 %v4170
    %5408 = vmatpush.bf16.msra.mxu0 %v4167
    %5409 = vmatpush.bf16.msra.mxu0 %v4164
    %5410 = vmatpush.bf16.msra.mxu0 %v4161
    %5411 = vmatpush.bf16.msra.mxu0 %v4158
    %5412 = vmatpush.bf16.msra.mxu0 %v4155
    %5413 = vmatmul.bf16.gmra.mxu0 %v1061
    %v5414 = vpop.f32.mrf.mxu0
    %v5415 = vadd.f32 %v5402, %v5414
    %v5416 = vpop.f32.mrf.mxu0
    %5417 = vdwg.mxu0
    %5418 = vmatpush.bf16.msra.mxu0 %v4200
    %5419 = vmatpush.bf16.msra.mxu0 %v4197
    %5420 = vmatpush.bf16.msra.mxu0 %v4194
    %5421 = vmatpush.bf16.msra.mxu0 %v4191
    %5422 = vmatpush.bf16.msra.mxu0 %v4188
    %5423 = vmatpush.bf16.msra.mxu0 %v4185
    %5424 = vmatpush.bf16.msra.mxu0 %v4182
    %5425 = vmatpush.bf16.msra.mxu0 %v4179
    %5426 = vmatmul.bf16.gmra.mxu0 %v1064
    %v5427 = vpop.f32.mrf.mxu0
    %v5428 = vadd.f32 %v5415, %v5427
    %v5429 = vpop.f32.mrf.mxu0
    %5430 = vdwg.mxu0
    %5431 = vmatpush.bf16.msra.mxu0 %v4224
    %5432 = vmatpush.bf16.msra.mxu0 %v4221
    %5433 = vmatpush.bf16.msra.mxu0 %v4218
    %5434 = vmatpush.bf16.msra.mxu0 %v4215
    %5435 = vmatpush.bf16.msra.mxu0 %v4212
    %5436 = vmatpush.bf16.msra.mxu0 %v4209
    %5437 = vmatpush.bf16.msra.mxu0 %v4206
    %5438 = vmatpush.bf16.msra.mxu0 %v4203
    %5439 = vmatmul.bf16.gmra.mxu0 %v1065
    %v5440 = vpop.f32.mrf.mxu0
    %v5441 = vadd.f32 %v5428, %v5440
    %v5442 = vpop.f32.mrf.mxu0
    %5443 = vdwg.mxu0
    %5444 = vmatpush.bf16.msra.mxu0 %v4248
    %5445 = vmatpush.bf16.msra.mxu0 %v4245
    %5446 = vmatpush.bf16.msra.mxu0 %v4242
    %5447 = vmatpush.bf16.msra.mxu0 %v4239
    %5448 = vmatpush.bf16.msra.mxu0 %v4236
    %5449 = vmatpush.bf16.msra.mxu0 %v4233
    %5450 = vmatpush.bf16.msra.mxu0 %v4230
    %5451 = vmatpush.bf16.msra.mxu0 %v4227
    %5452 = vmatmul.bf16.gmra.mxu0 %v1066
    %v5453 = vpop.f32.mrf.mxu0
    %v5454 = vadd.f32 %v5441, %v5453
    %v5455 = vpop.f32.mrf.mxu0
    %5456 = vdwg.mxu0
    %5457 = vmatpush.bf16.msra.mxu0 %v4272
    %5458 = vmatpush.bf16.msra.mxu0 %v4269
    %5459 = vmatpush.bf16.msra.mxu0 %v4266
    %5460 = vmatpush.bf16.msra.mxu0 %v4263
    %5461 = vmatpush.bf16.msra.mxu0 %v4260
    %5462 = vmatpush.bf16.msra.mxu0 %v4257
    %5463 = vmatpush.bf16.msra.mxu0 %v4254
    %5464 = vmatpush.bf16.msra.mxu0 %v4251
    %5465 = vmatmul.bf16.gmra.mxu0 %v1067
    %v5466 = vpop.f32.mrf.mxu0
    %v5467 = vadd.f32 %v5454, %v5466
    %v5468 = vpop.f32.mrf.mxu0
    %5469 = vdwg.mxu0
    %5470 = vmatpush.bf16.msra.mxu0 %v4296
    %5471 = vmatpush.bf16.msra.mxu0 %v4293
    %5472 = vmatpush.bf16.msra.mxu0 %v4290
    %5473 = vmatpush.bf16.msra.mxu0 %v4287
    %5474 = vmatpush.bf16.msra.mxu0 %v4284
    %5475 = vmatpush.bf16.msra.mxu0 %v4281
    %5476 = vmatpush.bf16.msra.mxu0 %v4278
    %5477 = vmatpush.bf16.msra.mxu0 %v4275
    %5478 = vmatmul.bf16.gmra.mxu0 %v1068
    %v5479 = vpop.f32.mrf.mxu0
    %v5480 = vadd.f32 %v5467, %v5479
    %v5481 = vpop.f32.mrf.mxu0
    %5482 = vdwg.mxu0
    %5483 = vmatpush.bf16.msra.mxu0 %v4320
    %5484 = vmatpush.bf16.msra.mxu0 %v4317
    %5485 = vmatpush.bf16.msra.mxu0 %v4314
    %5486 = vmatpush.bf16.msra.mxu0 %v4311
    %5487 = vmatpush.bf16.msra.mxu0 %v4308
    %5488 = vmatpush.bf16.msra.mxu0 %v4305
    %5489 = vmatpush.bf16.msra.mxu0 %v4302
    %5490 = vmatpush.bf16.msra.mxu0 %v4299
    %5491 = vmatmul.bf16.gmra.mxu0 %v1069
    %v5492 = vpop.f32.mrf.mxu0
    %v5493 = vadd.f32 %v5480, %v5492
    %v5494 = vpop.f32.mrf.mxu0
    %5495 = vdwg.mxu0
    %5496 = vmatpush.bf16.msra.mxu0 %v4344
    %5497 = vmatpush.bf16.msra.mxu0 %v4341
    %5498 = vmatpush.bf16.msra.mxu0 %v4338
    %5499 = vmatpush.bf16.msra.mxu0 %v4335
    %5500 = vmatpush.bf16.msra.mxu0 %v4332
    %5501 = vmatpush.bf16.msra.mxu0 %v4329
    %5502 = vmatpush.bf16.msra.mxu0 %v4326
    %5503 = vmatpush.bf16.msra.mxu0 %v4323
    %5504 = vmatmul.bf16.gmra.mxu0 %v1070
    %v5505 = vpop.f32.mrf.mxu0
    %v5506 = vadd.f32 %v5493, %v5505
    %v5507 = vpop.f32.mrf.mxu0
    %5508 = vdwg.mxu0
    %5509 = vmatpush.bf16.msra.mxu0 0
    %5510 = vmatpush.bf16.msra.mxu0 0
    %5511 = vmatpush.bf16.msra.mxu0 0
    %5512 = vmatpush.bf16.msra.mxu0 0
    %5513 = vmatpush.bf16.msra.mxu0 0
    %5514 = vmatpush.bf16.msra.mxu0 0
    %5515 = vmatpush.bf16.msra.mxu0 %v4350
    %5516 = vmatpush.bf16.msra.mxu0 %v4347
    %5517 = vmatmul.bf16.gmra.mxu0 %v5104
    %v5518 = vpop.f32.mrf.mxu0
    %v5519 = vadd.f32 %v5506, %v5518
    %v5520 = vpop.f32.mrf.mxu0
    %5521 = vdwg.mxu0
    %5522 = vmatpush.bf16.msra.mxu0 %v3625
    %5523 = vmatpush.bf16.msra.mxu0 %v3622
    %5524 = vmatpush.bf16.msra.mxu0 %v3619
    %5525 = vmatpush.bf16.msra.mxu0 %v3616
    %5526 = vmatpush.bf16.msra.mxu0 %v3613
    %5527 = vmatpush.bf16.msra.mxu0 %v3610
    %5528 = vmatpush.bf16.msra.mxu0 %v3607
    %5529 = vmatpush.bf16.msra.mxu0 %v3604
    %5530 = vmatmul.bf16.gmra.mxu0 %v1034
    %v5531 = vpop.f32.mrf.mxu0
    %v5532 = vadd.f32 0.0, %v5531
    %v5533 = vpop.f32.mrf.mxu0
    %5534 = vdwg.mxu0
    %5535 = vmatpush.bf16.msra.mxu0 %v3649
    %5536 = vmatpush.bf16.msra.mxu0 %v3646
    %5537 = vmatpush.bf16.msra.mxu0 %v3643
    %5538 = vmatpush.bf16.msra.mxu0 %v3640
    %5539 = vmatpush.bf16.msra.mxu0 %v3637
    %5540 = vmatpush.bf16.msra.mxu0 %v3634
    %5541 = vmatpush.bf16.msra.mxu0 %v3631
    %5542 = vmatpush.bf16.msra.mxu0 %v3628
    %5543 = vmatmul.bf16.gmra.mxu0 %v1035
    %v5544 = vpop.f32.mrf.mxu0
    %v5545 = vadd.f32 %v5532, %v5544
    %v5546 = vpop.f32.mrf.mxu0
    %5547 = vdwg.mxu0
    %5548 = vmatpush.bf16.msra.mxu0 %v3673
    %5549 = vmatpush.bf16.msra.mxu0 %v3670
    %5550 = vmatpush.bf16.msra.mxu0 %v3667
    %5551 = vmatpush.bf16.msra.mxu0 %v3664
    %5552 = vmatpush.bf16.msra.mxu0 %v3661
    %5553 = vmatpush.bf16.msra.mxu0 %v3658
    %5554 = vmatpush.bf16.msra.mxu0 %v3655
    %5555 = vmatpush.bf16.msra.mxu0 %v3652
    %5556 = vmatmul.bf16.gmra.mxu0 %v1036
    %v5557 = vpop.f32.mrf.mxu0
    %v5558 = vadd.f32 %v5545, %v5557
    %v5559 = vpop.f32.mrf.mxu0
    %5560 = vdwg.mxu0
    %5561 = vmatpush.bf16.msra.mxu0 %v3697
    %5562 = vmatpush.bf16.msra.mxu0 %v3694
    %5563 = vmatpush.bf16.msra.mxu0 %v3691
    %5564 = vmatpush.bf16.msra.mxu0 %v3688
    %5565 = vmatpush.bf16.msra.mxu0 %v3685
    %5566 = vmatpush.bf16.msra.mxu0 %v3682
    %5567 = vmatpush.bf16.msra.mxu0 %v3679
    %5568 = vmatpush.bf16.msra.mxu0 %v3676
    %5569 = vmatmul.bf16.gmra.mxu0 %v1037
    %v5570 = vpop.f32.mrf.mxu0
    %v5571 = vadd.f32 %v5558, %v5570
    %v5572 = vpop.f32.mrf.mxu0
    %5573 = vdwg.mxu0
    %5574 = vmatpush.bf16.msra.mxu0 %v3721
    %5575 = vmatpush.bf16.msra.mxu0 %v3718
    %5576 = vmatpush.bf16.msra.mxu0 %v3715
    %5577 = vmatpush.bf16.msra.mxu0 %v3712
    %5578 = vmatpush.bf16.msra.mxu0 %v3709
    %5579 = vmatpush.bf16.msra.mxu0 %v3706
    %5580 = vmatpush.bf16.msra.mxu0 %v3703
    %5581 = vmatpush.bf16.msra.mxu0 %v3700
    %5582 = vmatmul.bf16.gmra.mxu0 %v1038
    %v5583 = vpop.f32.mrf.mxu0
    %v5584 = vadd.f32 %v5571, %v5583
    %v5585 = vpop.f32.mrf.mxu0
    %5586 = vdwg.mxu0
    %5587 = vmatpush.bf16.msra.mxu0 %v3745
    %5588 = vmatpush.bf16.msra.mxu0 %v3742
    %5589 = vmatpush.bf16.msra.mxu0 %v3739
    %5590 = vmatpush.bf16.msra.mxu0 %v3736
    %5591 = vmatpush.bf16.msra.mxu0 %v3733
    %5592 = vmatpush.bf16.msra.mxu0 %v3730
    %5593 = vmatpush.bf16.msra.mxu0 %v3727
    %5594 = vmatpush.bf16.msra.mxu0 %v3724
    %5595 = vmatmul.bf16.gmra.mxu0 %v1039
    %v5596 = vpop.f32.mrf.mxu0
    %v5597 = vadd.f32 %v5584, %v5596
    %v5598 = vpop.f32.mrf.mxu0
    %5599 = vdwg.mxu0
    %5600 = vmatpush.bf16.msra.mxu0 %v3769
    %5601 = vmatpush.bf16.msra.mxu0 %v3766
    %5602 = vmatpush.bf16.msra.mxu0 %v3763
    %5603 = vmatpush.bf16.msra.mxu0 %v3760
    %5604 = vmatpush.bf16.msra.mxu0 %v3757
    %5605 = vmatpush.bf16.msra.mxu0 %v3754
    %5606 = vmatpush.bf16.msra.mxu0 %v3751
    %5607 = vmatpush.bf16.msra.mxu0 %v3748
    %5608 = vmatmul.bf16.gmra.mxu0 %v1040
    %v5609 = vpop.f32.mrf.mxu0
    %v5610 = vadd.f32 %v5597, %v5609
    %v5611 = vpop.f32.mrf.mxu0
    %5612 = vdwg.mxu0
    %5613 = vmatpush.bf16.msra.mxu0 %v3793
    %5614 = vmatpush.bf16.msra.mxu0 %v3790
    %5615 = vmatpush.bf16.msra.mxu0 %v3787
    %5616 = vmatpush.bf16.msra.mxu0 %v3784
    %5617 = vmatpush.bf16.msra.mxu0 %v3781
    %5618 = vmatpush.bf16.msra.mxu0 %v3778
    %5619 = vmatpush.bf16.msra.mxu0 %v3775
    %5620 = vmatpush.bf16.msra.mxu0 %v3772
    %5621 = vmatmul.bf16.gmra.mxu0 %v1041
    %v5622 = vpop.f32.mrf.mxu0
    %v5623 = vadd.f32 %v5610, %v5622
    %v5624 = vpop.f32.mrf.mxu0
    %5625 = vdwg.mxu0
    %5626 = vmatpush.bf16.msra.mxu0 %v3817
    %5627 = vmatpush.bf16.msra.mxu0 %v3814
    %5628 = vmatpush.bf16.msra.mxu0 %v3811
    %5629 = vmatpush.bf16.msra.mxu0 %v3808
    %5630 = vmatpush.bf16.msra.mxu0 %v3805
    %5631 = vmatpush.bf16.msra.mxu0 %v3802
    %5632 = vmatpush.bf16.msra.mxu0 %v3799
    %5633 = vmatpush.bf16.msra.mxu0 %v3796
    %5634 = vmatmul.bf16.gmra.mxu0 %v1044
    %v5635 = vpop.f32.mrf.mxu0
    %v5636 = vadd.f32 %v5623, %v5635
    %v5637 = vpop.f32.mrf.mxu0
    %5638 = vdwg.mxu0
    %5639 = vmatpush.bf16.msra.mxu0 %v3841
    %5640 = vmatpush.bf16.msra.mxu0 %v3838
    %5641 = vmatpush.bf16.msra.mxu0 %v3835
    %5642 = vmatpush.bf16.msra.mxu0 %v3832
    %5643 = vmatpush.bf16.msra.mxu0 %v3829
    %5644 = vmatpush.bf16.msra.mxu0 %v3826
    %5645 = vmatpush.bf16.msra.mxu0 %v3823
    %5646 = vmatpush.bf16.msra.mxu0 %v3820
    %5647 = vmatmul.bf16.gmra.mxu0 %v1045
    %v5648 = vpop.f32.mrf.mxu0
    %v5649 = vadd.f32 %v5636, %v5648
    %v5650 = vpop.f32.mrf.mxu0
    %5651 = vdwg.mxu0
    %5652 = vmatpush.bf16.msra.mxu0 %v3865
    %5653 = vmatpush.bf16.msra.mxu0 %v3862
    %5654 = vmatpush.bf16.msra.mxu0 %v3859
    %5655 = vmatpush.bf16.msra.mxu0 %v3856
    %5656 = vmatpush.bf16.msra.mxu0 %v3853
    %5657 = vmatpush.bf16.msra.mxu0 %v3850
    %5658 = vmatpush.bf16.msra.mxu0 %v3847
    %5659 = vmatpush.bf16.msra.mxu0 %v3844
    %5660 = vmatmul.bf16.gmra.mxu0 %v1046
    %v5661 = vpop.f32.mrf.mxu0
    %v5662 = vadd.f32 %v5649, %v5661
    %v5663 = vpop.f32.mrf.mxu0
    %5664 = vdwg.mxu0
    %5665 = vmatpush.bf16.msra.mxu0 %v3889
    %5666 = vmatpush.bf16.msra.mxu0 %v3886
    %5667 = vmatpush.bf16.msra.mxu0 %v3883
    %5668 = vmatpush.bf16.msra.mxu0 %v3880
    %5669 = vmatpush.bf16.msra.mxu0 %v3877
    %5670 = vmatpush.bf16.msra.mxu0 %v3874
    %5671 = vmatpush.bf16.msra.mxu0 %v3871
    %5672 = vmatpush.bf16.msra.mxu0 %v3868
    %5673 = vmatmul.bf16.gmra.mxu0 %v1047
    %v5674 = vpop.f32.mrf.mxu0
    %v5675 = vadd.f32 %v5662, %v5674
    %v5676 = vpop.f32.mrf.mxu0
    %5677 = vdwg.mxu0
    %5678 = vmatpush.bf16.msra.mxu0 %v3913
    %5679 = vmatpush.bf16.msra.mxu0 %v3910
    %5680 = vmatpush.bf16.msra.mxu0 %v3907
    %5681 = vmatpush.bf16.msra.mxu0 %v3904
    %5682 = vmatpush.bf16.msra.mxu0 %v3901
    %5683 = vmatpush.bf16.msra.mxu0 %v3898
    %5684 = vmatpush.bf16.msra.mxu0 %v3895
    %5685 = vmatpush.bf16.msra.mxu0 %v3892
    %5686 = vmatmul.bf16.gmra.mxu0 %v1048
    %v5687 = vpop.f32.mrf.mxu0
    %v5688 = vadd.f32 %v5675, %v5687
    %v5689 = vpop.f32.mrf.mxu0
    %5690 = vdwg.mxu0
    %5691 = vmatpush.bf16.msra.mxu0 %v3937
    %5692 = vmatpush.bf16.msra.mxu0 %v3934
    %5693 = vmatpush.bf16.msra.mxu0 %v3931
    %5694 = vmatpush.bf16.msra.mxu0 %v3928
    %5695 = vmatpush.bf16.msra.mxu0 %v3925
    %5696 = vmatpush.bf16.msra.mxu0 %v3922
    %5697 = vmatpush.bf16.msra.mxu0 %v3919
    %5698 = vmatpush.bf16.msra.mxu0 %v3916
    %5699 = vmatmul.bf16.gmra.mxu0 %v1049
    %v5700 = vpop.f32.mrf.mxu0
    %v5701 = vadd.f32 %v5688, %v5700
    %v5702 = vpop.f32.mrf.mxu0
    %5703 = vdwg.mxu0
    %5704 = vmatpush.bf16.msra.mxu0 %v3961
    %5705 = vmatpush.bf16.msra.mxu0 %v3958
    %5706 = vmatpush.bf16.msra.mxu0 %v3955
    %5707 = vmatpush.bf16.msra.mxu0 %v3952
    %5708 = vmatpush.bf16.msra.mxu0 %v3949
    %5709 = vmatpush.bf16.msra.mxu0 %v3946
    %5710 = vmatpush.bf16.msra.mxu0 %v3943
    %5711 = vmatpush.bf16.msra.mxu0 %v3940
    %5712 = vmatmul.bf16.gmra.mxu0 %v1050
    %v5713 = vpop.f32.mrf.mxu0
    %v5714 = vadd.f32 %v5701, %v5713
    %v5715 = vpop.f32.mrf.mxu0
    %5716 = vdwg.mxu0
    %5717 = vmatpush.bf16.msra.mxu0 %v3985
    %5718 = vmatpush.bf16.msra.mxu0 %v3982
    %5719 = vmatpush.bf16.msra.mxu0 %v3979
    %5720 = vmatpush.bf16.msra.mxu0 %v3976
    %5721 = vmatpush.bf16.msra.mxu0 %v3973
    %5722 = vmatpush.bf16.msra.mxu0 %v3970
    %5723 = vmatpush.bf16.msra.mxu0 %v3967
    %5724 = vmatpush.bf16.msra.mxu0 %v3964
    %5725 = vmatmul.bf16.gmra.mxu0 %v1051
    %v5726 = vpop.f32.mrf.mxu0
    %v5727 = vadd.f32 %v5714, %v5726
    %v5728 = vpop.f32.mrf.mxu0
    %5729 = vdwg.mxu0
    %5730 = vmatpush.bf16.msra.mxu0 %v4009
    %5731 = vmatpush.bf16.msra.mxu0 %v4006
    %5732 = vmatpush.bf16.msra.mxu0 %v4003
    %5733 = vmatpush.bf16.msra.mxu0 %v4000
    %5734 = vmatpush.bf16.msra.mxu0 %v3997
    %5735 = vmatpush.bf16.msra.mxu0 %v3994
    %5736 = vmatpush.bf16.msra.mxu0 %v3991
    %5737 = vmatpush.bf16.msra.mxu0 %v3988
    %5738 = vmatmul.bf16.gmra.mxu0 %v1054
    %v5739 = vpop.f32.mrf.mxu0
    %v5740 = vadd.f32 %v5727, %v5739
    %v5741 = vpop.f32.mrf.mxu0
    %5742 = vdwg.mxu0
    %5743 = vmatpush.bf16.msra.mxu0 %v4033
    %5744 = vmatpush.bf16.msra.mxu0 %v4030
    %5745 = vmatpush.bf16.msra.mxu0 %v4027
    %5746 = vmatpush.bf16.msra.mxu0 %v4024
    %5747 = vmatpush.bf16.msra.mxu0 %v4021
    %5748 = vmatpush.bf16.msra.mxu0 %v4018
    %5749 = vmatpush.bf16.msra.mxu0 %v4015
    %5750 = vmatpush.bf16.msra.mxu0 %v4012
    %5751 = vmatmul.bf16.gmra.mxu0 %v1055
    %v5752 = vpop.f32.mrf.mxu0
    %v5753 = vadd.f32 %v5740, %v5752
    %v5754 = vpop.f32.mrf.mxu0
    %5755 = vdwg.mxu0
    %5756 = vmatpush.bf16.msra.mxu0 %v4057
    %5757 = vmatpush.bf16.msra.mxu0 %v4054
    %5758 = vmatpush.bf16.msra.mxu0 %v4051
    %5759 = vmatpush.bf16.msra.mxu0 %v4048
    %5760 = vmatpush.bf16.msra.mxu0 %v4045
    %5761 = vmatpush.bf16.msra.mxu0 %v4042
    %5762 = vmatpush.bf16.msra.mxu0 %v4039
    %5763 = vmatpush.bf16.msra.mxu0 %v4036
    %5764 = vmatmul.bf16.gmra.mxu0 %v1056
    %v5765 = vpop.f32.mrf.mxu0
    %v5766 = vadd.f32 %v5753, %v5765
    %v5767 = vpop.f32.mrf.mxu0
    %5768 = vdwg.mxu0
    %5769 = vmatpush.bf16.msra.mxu0 %v4081
    %5770 = vmatpush.bf16.msra.mxu0 %v4078
    %5771 = vmatpush.bf16.msra.mxu0 %v4075
    %5772 = vmatpush.bf16.msra.mxu0 %v4072
    %5773 = vmatpush.bf16.msra.mxu0 %v4069
    %5774 = vmatpush.bf16.msra.mxu0 %v4066
    %5775 = vmatpush.bf16.msra.mxu0 %v4063
    %5776 = vmatpush.bf16.msra.mxu0 %v4060
    %5777 = vmatmul.bf16.gmra.mxu0 %v1057
    %v5778 = vpop.f32.mrf.mxu0
    %v5779 = vadd.f32 %v5766, %v5778
    %v5780 = vpop.f32.mrf.mxu0
    %5781 = vdwg.mxu0
    %5782 = vmatpush.bf16.msra.mxu0 %v4105
    %5783 = vmatpush.bf16.msra.mxu0 %v4102
    %5784 = vmatpush.bf16.msra.mxu0 %v4099
    %5785 = vmatpush.bf16.msra.mxu0 %v4096
    %5786 = vmatpush.bf16.msra.mxu0 %v4093
    %5787 = vmatpush.bf16.msra.mxu0 %v4090
    %5788 = vmatpush.bf16.msra.mxu0 %v4087
    %5789 = vmatpush.bf16.msra.mxu0 %v4084
    %5790 = vmatmul.bf16.gmra.mxu0 %v1058
    %v5791 = vpop.f32.mrf.mxu0
    %v5792 = vadd.f32 %v5779, %v5791
    %v5793 = vpop.f32.mrf.mxu0
    %5794 = vdwg.mxu0
    %5795 = vmatpush.bf16.msra.mxu0 %v4129
    %5796 = vmatpush.bf16.msra.mxu0 %v4126
    %5797 = vmatpush.bf16.msra.mxu0 %v4123
    %5798 = vmatpush.bf16.msra.mxu0 %v4120
    %5799 = vmatpush.bf16.msra.mxu0 %v4117
    %5800 = vmatpush.bf16.msra.mxu0 %v4114
    %5801 = vmatpush.bf16.msra.mxu0 %v4111
    %5802 = vmatpush.bf16.msra.mxu0 %v4108
    %5803 = vmatmul.bf16.gmra.mxu0 %v1059
    %v5804 = vpop.f32.mrf.mxu0
    %v5805 = vadd.f32 %v5792, %v5804
    %v5806 = vpop.f32.mrf.mxu0
    %5807 = vdwg.mxu0
    %5808 = vmatpush.bf16.msra.mxu0 %v4153
    %5809 = vmatpush.bf16.msra.mxu0 %v4150
    %5810 = vmatpush.bf16.msra.mxu0 %v4147
    %5811 = vmatpush.bf16.msra.mxu0 %v4144
    %5812 = vmatpush.bf16.msra.mxu0 %v4141
    %5813 = vmatpush.bf16.msra.mxu0 %v4138
    %5814 = vmatpush.bf16.msra.mxu0 %v4135
    %5815 = vmatpush.bf16.msra.mxu0 %v4132
    %5816 = vmatmul.bf16.gmra.mxu0 %v1060
    %v5817 = vpop.f32.mrf.mxu0
    %v5818 = vadd.f32 %v5805, %v5817
    %v5819 = vpop.f32.mrf.mxu0
    %5820 = vdwg.mxu0
    %5821 = vmatpush.bf16.msra.mxu0 %v4177
    %5822 = vmatpush.bf16.msra.mxu0 %v4174
    %5823 = vmatpush.bf16.msra.mxu0 %v4171
    %5824 = vmatpush.bf16.msra.mxu0 %v4168
    %5825 = vmatpush.bf16.msra.mxu0 %v4165
    %5826 = vmatpush.bf16.msra.mxu0 %v4162
    %5827 = vmatpush.bf16.msra.mxu0 %v4159
    %5828 = vmatpush.bf16.msra.mxu0 %v4156
    %5829 = vmatmul.bf16.gmra.mxu0 %v1061
    %v5830 = vpop.f32.mrf.mxu0
    %v5831 = vadd.f32 %v5818, %v5830
    %v5832 = vpop.f32.mrf.mxu0
    %5833 = vdwg.mxu0
    %5834 = vmatpush.bf16.msra.mxu0 %v4201
    %5835 = vmatpush.bf16.msra.mxu0 %v4198
    %5836 = vmatpush.bf16.msra.mxu0 %v4195
    %5837 = vmatpush.bf16.msra.mxu0 %v4192
    %5838 = vmatpush.bf16.msra.mxu0 %v4189
    %5839 = vmatpush.bf16.msra.mxu0 %v4186
    %5840 = vmatpush.bf16.msra.mxu0 %v4183
    %5841 = vmatpush.bf16.msra.mxu0 %v4180
    %5842 = vmatmul.bf16.gmra.mxu0 %v1064
    %v5843 = vpop.f32.mrf.mxu0
    %v5844 = vadd.f32 %v5831, %v5843
    %v5845 = vpop.f32.mrf.mxu0
    %5846 = vdwg.mxu0
    %5847 = vmatpush.bf16.msra.mxu0 %v4225
    %5848 = vmatpush.bf16.msra.mxu0 %v4222
    %5849 = vmatpush.bf16.msra.mxu0 %v4219
    %5850 = vmatpush.bf16.msra.mxu0 %v4216
    %5851 = vmatpush.bf16.msra.mxu0 %v4213
    %5852 = vmatpush.bf16.msra.mxu0 %v4210
    %5853 = vmatpush.bf16.msra.mxu0 %v4207
    %5854 = vmatpush.bf16.msra.mxu0 %v4204
    %5855 = vmatmul.bf16.gmra.mxu0 %v1065
    %v5856 = vpop.f32.mrf.mxu0
    %v5857 = vadd.f32 %v5844, %v5856
    %v5858 = vpop.f32.mrf.mxu0
    %5859 = vdwg.mxu0
    %5860 = vmatpush.bf16.msra.mxu0 %v4249
    %5861 = vmatpush.bf16.msra.mxu0 %v4246
    %5862 = vmatpush.bf16.msra.mxu0 %v4243
    %5863 = vmatpush.bf16.msra.mxu0 %v4240
    %5864 = vmatpush.bf16.msra.mxu0 %v4237
    %5865 = vmatpush.bf16.msra.mxu0 %v4234
    %5866 = vmatpush.bf16.msra.mxu0 %v4231
    %5867 = vmatpush.bf16.msra.mxu0 %v4228
    %5868 = vmatmul.bf16.gmra.mxu0 %v1066
    %v5869 = vpop.f32.mrf.mxu0
    %v5870 = vadd.f32 %v5857, %v5869
    %v5871 = vpop.f32.mrf.mxu0
    %5872 = vdwg.mxu0
    %5873 = vmatpush.bf16.msra.mxu0 %v4273
    %5874 = vmatpush.bf16.msra.mxu0 %v4270
    %5875 = vmatpush.bf16.msra.mxu0 %v4267
    %5876 = vmatpush.bf16.msra.mxu0 %v4264
    %5877 = vmatpush.bf16.msra.mxu0 %v4261
    %5878 = vmatpush.bf16.msra.mxu0 %v4258
    %5879 = vmatpush.bf16.msra.mxu0 %v4255
    %5880 = vmatpush.bf16.msra.mxu0 %v4252
    %5881 = vmatmul.bf16.gmra.mxu0 %v1067
    %v5882 = vpop.f32.mrf.mxu0
    %v5883 = vadd.f32 %v5870, %v5882
    %v5884 = vpop.f32.mrf.mxu0
    %5885 = vdwg.mxu0
    %5886 = vmatpush.bf16.msra.mxu0 %v4297
    %5887 = vmatpush.bf16.msra.mxu0 %v4294
    %5888 = vmatpush.bf16.msra.mxu0 %v4291
    %5889 = vmatpush.bf16.msra.mxu0 %v4288
    %5890 = vmatpush.bf16.msra.mxu0 %v4285
    %5891 = vmatpush.bf16.msra.mxu0 %v4282
    %5892 = vmatpush.bf16.msra.mxu0 %v4279
    %5893 = vmatpush.bf16.msra.mxu0 %v4276
    %5894 = vmatmul.bf16.gmra.mxu0 %v1068
    %v5895 = vpop.f32.mrf.mxu0
    %v5896 = vadd.f32 %v5883, %v5895
    %v5897 = vpop.f32.mrf.mxu0
    %5898 = vdwg.mxu0
    %5899 = vmatpush.bf16.msra.mxu0 %v4321
    %5900 = vmatpush.bf16.msra.mxu0 %v4318
    %5901 = vmatpush.bf16.msra.mxu0 %v4315
    %5902 = vmatpush.bf16.msra.mxu0 %v4312
    %5903 = vmatpush.bf16.msra.mxu0 %v4309
    %5904 = vmatpush.bf16.msra.mxu0 %v4306
    %5905 = vmatpush.bf16.msra.mxu0 %v4303
    %5906 = vmatpush.bf16.msra.mxu0 %v4300
    %5907 = vmatmul.bf16.gmra.mxu0 %v1069
    %v5908 = vpop.f32.mrf.mxu0
    %v5909 = vadd.f32 %v5896, %v5908
    %v5910 = vpop.f32.mrf.mxu0
    %5911 = vdwg.mxu0
    %5912 = vmatpush.bf16.msra.mxu0 %v4345
    %5913 = vmatpush.bf16.msra.mxu0 %v4342
    %5914 = vmatpush.bf16.msra.mxu0 %v4339
    %5915 = vmatpush.bf16.msra.mxu0 %v4336
    %5916 = vmatpush.bf16.msra.mxu0 %v4333
    %5917 = vmatpush.bf16.msra.mxu0 %v4330
    %5918 = vmatpush.bf16.msra.mxu0 %v4327
    %5919 = vmatpush.bf16.msra.mxu0 %v4324
    %5920 = vmatmul.bf16.gmra.mxu0 %v1070
    %v5921 = vpop.f32.mrf.mxu0
    %v5922 = vadd.f32 %v5909, %v5921
    %v5923 = vpop.f32.mrf.mxu0
    %5924 = vdwg.mxu0
    %5925 = vmatpush.bf16.msra.mxu0 0
    %5926 = vmatpush.bf16.msra.mxu0 0
    %5927 = vmatpush.bf16.msra.mxu0 0
    %5928 = vmatpush.bf16.msra.mxu0 0
    %5929 = vmatpush.bf16.msra.mxu0 0
    %5930 = vmatpush.bf16.msra.mxu0 0
    %5931 = vmatpush.bf16.msra.mxu0 %v4351
    %5932 = vmatpush.bf16.msra.mxu0 %v4348
    %5933 = vmatmul.bf16.gmra.mxu0 %v5104
    %v5934 = vpop.f32.mrf.mxu0
    %v5935 = vadd.f32 %v5922, %v5934
    %v5936 = vpop.f32.mrf.mxu0
    %5937 = vdwg.mxu0
    %5938 = vmatpush.bf16.msra.mxu0 %v3626
    %5939 = vmatpush.bf16.msra.mxu0 %v3623
    %5940 = vmatpush.bf16.msra.mxu0 %v3620
    %5941 = vmatpush.bf16.msra.mxu0 %v3617
    %5942 = vmatpush.bf16.msra.mxu0 %v3614
    %5943 = vmatpush.bf16.msra.mxu0 %v3611
    %5944 = vmatpush.bf16.msra.mxu0 %v3608
    %5945 = vmatpush.bf16.msra.mxu0 %v3605
    %5946 = vmatmul.bf16.gmra.mxu0 %v1034
    %v5947 = vpop.f32.mrf.mxu0
    %v5948 = vadd.f32 0.0, %v5947
    %v5949 = vpop.f32.mrf.mxu0
    %5950 = vdwg.mxu0
    %5951 = vmatpush.bf16.msra.mxu0 %v3650
    %5952 = vmatpush.bf16.msra.mxu0 %v3647
    %5953 = vmatpush.bf16.msra.mxu0 %v3644
    %5954 = vmatpush.bf16.msra.mxu0 %v3641
    %5955 = vmatpush.bf16.msra.mxu0 %v3638
    %5956 = vmatpush.bf16.msra.mxu0 %v3635
    %5957 = vmatpush.bf16.msra.mxu0 %v3632
    %5958 = vmatpush.bf16.msra.mxu0 %v3629
    %5959 = vmatmul.bf16.gmra.mxu0 %v1035
    %v5960 = vpop.f32.mrf.mxu0
    %v5961 = vadd.f32 %v5948, %v5960
    %v5962 = vpop.f32.mrf.mxu0
    %5963 = vdwg.mxu0
    %5964 = vmatpush.bf16.msra.mxu0 %v3674
    %5965 = vmatpush.bf16.msra.mxu0 %v3671
    %5966 = vmatpush.bf16.msra.mxu0 %v3668
    %5967 = vmatpush.bf16.msra.mxu0 %v3665
    %5968 = vmatpush.bf16.msra.mxu0 %v3662
    %5969 = vmatpush.bf16.msra.mxu0 %v3659
    %5970 = vmatpush.bf16.msra.mxu0 %v3656
    %5971 = vmatpush.bf16.msra.mxu0 %v3653
    %5972 = vmatmul.bf16.gmra.mxu0 %v1036
    %v5973 = vpop.f32.mrf.mxu0
    %v5974 = vadd.f32 %v5961, %v5973
    %v5975 = vpop.f32.mrf.mxu0
    %5976 = vdwg.mxu0
    %5977 = vmatpush.bf16.msra.mxu0 %v3698
    %5978 = vmatpush.bf16.msra.mxu0 %v3695
    %5979 = vmatpush.bf16.msra.mxu0 %v3692
    %5980 = vmatpush.bf16.msra.mxu0 %v3689
    %5981 = vmatpush.bf16.msra.mxu0 %v3686
    %5982 = vmatpush.bf16.msra.mxu0 %v3683
    %5983 = vmatpush.bf16.msra.mxu0 %v3680
    %5984 = vmatpush.bf16.msra.mxu0 %v3677
    %5985 = vmatmul.bf16.gmra.mxu0 %v1037
    %v5986 = vpop.f32.mrf.mxu0
    %v5987 = vadd.f32 %v5974, %v5986
    %v5988 = vpop.f32.mrf.mxu0
    %5989 = vdwg.mxu0
    %5990 = vmatpush.bf16.msra.mxu0 %v3722
    %5991 = vmatpush.bf16.msra.mxu0 %v3719
    %5992 = vmatpush.bf16.msra.mxu0 %v3716
    %5993 = vmatpush.bf16.msra.mxu0 %v3713
    %5994 = vmatpush.bf16.msra.mxu0 %v3710
    %5995 = vmatpush.bf16.msra.mxu0 %v3707
    %5996 = vmatpush.bf16.msra.mxu0 %v3704
    %5997 = vmatpush.bf16.msra.mxu0 %v3701
    %5998 = vmatmul.bf16.gmra.mxu0 %v1038
    %v5999 = vpop.f32.mrf.mxu0
    %v6000 = vadd.f32 %v5987, %v5999
    %v6001 = vpop.f32.mrf.mxu0
    %6002 = vdwg.mxu0
    %6003 = vmatpush.bf16.msra.mxu0 %v3746
    %6004 = vmatpush.bf16.msra.mxu0 %v3743
    %6005 = vmatpush.bf16.msra.mxu0 %v3740
    %6006 = vmatpush.bf16.msra.mxu0 %v3737
    %6007 = vmatpush.bf16.msra.mxu0 %v3734
    %6008 = vmatpush.bf16.msra.mxu0 %v3731
    %6009 = vmatpush.bf16.msra.mxu0 %v3728
    %6010 = vmatpush.bf16.msra.mxu0 %v3725
    %6011 = vmatmul.bf16.gmra.mxu0 %v1039
    %v6012 = vpop.f32.mrf.mxu0
    %v6013 = vadd.f32 %v6000, %v6012
    %v6014 = vpop.f32.mrf.mxu0
    %6015 = vdwg.mxu0
    %6016 = vmatpush.bf16.msra.mxu0 %v3770
    %6017 = vmatpush.bf16.msra.mxu0 %v3767
    %6018 = vmatpush.bf16.msra.mxu0 %v3764
    %6019 = vmatpush.bf16.msra.mxu0 %v3761
    %6020 = vmatpush.bf16.msra.mxu0 %v3758
    %6021 = vmatpush.bf16.msra.mxu0 %v3755
    %6022 = vmatpush.bf16.msra.mxu0 %v3752
    %6023 = vmatpush.bf16.msra.mxu0 %v3749
    %6024 = vmatmul.bf16.gmra.mxu0 %v1040
    %v6025 = vpop.f32.mrf.mxu0
    %v6026 = vadd.f32 %v6013, %v6025
    %v6027 = vpop.f32.mrf.mxu0
    %6028 = vdwg.mxu0
    %6029 = vmatpush.bf16.msra.mxu0 %v3794
    %6030 = vmatpush.bf16.msra.mxu0 %v3791
    %6031 = vmatpush.bf16.msra.mxu0 %v3788
    %6032 = vmatpush.bf16.msra.mxu0 %v3785
    %6033 = vmatpush.bf16.msra.mxu0 %v3782
    %6034 = vmatpush.bf16.msra.mxu0 %v3779
    %6035 = vmatpush.bf16.msra.mxu0 %v3776
    %6036 = vmatpush.bf16.msra.mxu0 %v3773
    %6037 = vmatmul.bf16.gmra.mxu0 %v1041
    %v6038 = vpop.f32.mrf.mxu0
    %v6039 = vadd.f32 %v6026, %v6038
    %v6040 = vpop.f32.mrf.mxu0
    %6041 = vdwg.mxu0
    %6042 = vmatpush.bf16.msra.mxu0 %v3818
    %6043 = vmatpush.bf16.msra.mxu0 %v3815
    %6044 = vmatpush.bf16.msra.mxu0 %v3812
    %6045 = vmatpush.bf16.msra.mxu0 %v3809
    %6046 = vmatpush.bf16.msra.mxu0 %v3806
    %6047 = vmatpush.bf16.msra.mxu0 %v3803
    %6048 = vmatpush.bf16.msra.mxu0 %v3800
    %6049 = vmatpush.bf16.msra.mxu0 %v3797
    %6050 = vmatmul.bf16.gmra.mxu0 %v1044
    %v6051 = vpop.f32.mrf.mxu0
    %v6052 = vadd.f32 %v6039, %v6051
    %v6053 = vpop.f32.mrf.mxu0
    %6054 = vdwg.mxu0
    %6055 = vmatpush.bf16.msra.mxu0 %v3842
    %6056 = vmatpush.bf16.msra.mxu0 %v3839
    %6057 = vmatpush.bf16.msra.mxu0 %v3836
    %6058 = vmatpush.bf16.msra.mxu0 %v3833
    %6059 = vmatpush.bf16.msra.mxu0 %v3830
    %6060 = vmatpush.bf16.msra.mxu0 %v3827
    %6061 = vmatpush.bf16.msra.mxu0 %v3824
    %6062 = vmatpush.bf16.msra.mxu0 %v3821
    %6063 = vmatmul.bf16.gmra.mxu0 %v1045
    %v6064 = vpop.f32.mrf.mxu0
    %v6065 = vadd.f32 %v6052, %v6064
    %v6066 = vpop.f32.mrf.mxu0
    %6067 = vdwg.mxu0
    %6068 = vmatpush.bf16.msra.mxu0 %v3866
    %6069 = vmatpush.bf16.msra.mxu0 %v3863
    %6070 = vmatpush.bf16.msra.mxu0 %v3860
    %6071 = vmatpush.bf16.msra.mxu0 %v3857
    %6072 = vmatpush.bf16.msra.mxu0 %v3854
    %6073 = vmatpush.bf16.msra.mxu0 %v3851
    %6074 = vmatpush.bf16.msra.mxu0 %v3848
    %6075 = vmatpush.bf16.msra.mxu0 %v3845
    %6076 = vmatmul.bf16.gmra.mxu0 %v1046
    %v6077 = vpop.f32.mrf.mxu0
    %v6078 = vadd.f32 %v6065, %v6077
    %v6079 = vpop.f32.mrf.mxu0
    %6080 = vdwg.mxu0
    %6081 = vmatpush.bf16.msra.mxu0 %v3890
    %6082 = vmatpush.bf16.msra.mxu0 %v3887
    %6083 = vmatpush.bf16.msra.mxu0 %v3884
    %6084 = vmatpush.bf16.msra.mxu0 %v3881
    %6085 = vmatpush.bf16.msra.mxu0 %v3878
    %6086 = vmatpush.bf16.msra.mxu0 %v3875
    %6087 = vmatpush.bf16.msra.mxu0 %v3872
    %6088 = vmatpush.bf16.msra.mxu0 %v3869
    %6089 = vmatmul.bf16.gmra.mxu0 %v1047
    %v6090 = vpop.f32.mrf.mxu0
    %v6091 = vadd.f32 %v6078, %v6090
    %v6092 = vpop.f32.mrf.mxu0
    %6093 = vdwg.mxu0
    %6094 = vmatpush.bf16.msra.mxu0 %v3914
    %6095 = vmatpush.bf16.msra.mxu0 %v3911
    %6096 = vmatpush.bf16.msra.mxu0 %v3908
    %6097 = vmatpush.bf16.msra.mxu0 %v3905
    %6098 = vmatpush.bf16.msra.mxu0 %v3902
    %6099 = vmatpush.bf16.msra.mxu0 %v3899
    %6100 = vmatpush.bf16.msra.mxu0 %v3896
    %6101 = vmatpush.bf16.msra.mxu0 %v3893
    %6102 = vmatmul.bf16.gmra.mxu0 %v1048
    %v6103 = vpop.f32.mrf.mxu0
    %v6104 = vadd.f32 %v6091, %v6103
    %v6105 = vpop.f32.mrf.mxu0
    %6106 = vdwg.mxu0
    %6107 = vmatpush.bf16.msra.mxu0 %v3938
    %6108 = vmatpush.bf16.msra.mxu0 %v3935
    %6109 = vmatpush.bf16.msra.mxu0 %v3932
    %6110 = vmatpush.bf16.msra.mxu0 %v3929
    %6111 = vmatpush.bf16.msra.mxu0 %v3926
    %6112 = vmatpush.bf16.msra.mxu0 %v3923
    %6113 = vmatpush.bf16.msra.mxu0 %v3920
    %6114 = vmatpush.bf16.msra.mxu0 %v3917
    %6115 = vmatmul.bf16.gmra.mxu0 %v1049
    %v6116 = vpop.f32.mrf.mxu0
    %v6117 = vadd.f32 %v6104, %v6116
    %v6118 = vpop.f32.mrf.mxu0
    %6119 = vdwg.mxu0
    %6120 = vmatpush.bf16.msra.mxu0 %v3962
    %6121 = vmatpush.bf16.msra.mxu0 %v3959
    %6122 = vmatpush.bf16.msra.mxu0 %v3956
    %6123 = vmatpush.bf16.msra.mxu0 %v3953
    %6124 = vmatpush.bf16.msra.mxu0 %v3950
    %6125 = vmatpush.bf16.msra.mxu0 %v3947
    %6126 = vmatpush.bf16.msra.mxu0 %v3944
    %6127 = vmatpush.bf16.msra.mxu0 %v3941
    %6128 = vmatmul.bf16.gmra.mxu0 %v1050
    %v6129 = vpop.f32.mrf.mxu0
    %v6130 = vadd.f32 %v6117, %v6129
    %v6131 = vpop.f32.mrf.mxu0
    %6132 = vdwg.mxu0
    %6133 = vmatpush.bf16.msra.mxu0 %v3986
    %6134 = vmatpush.bf16.msra.mxu0 %v3983
    %6135 = vmatpush.bf16.msra.mxu0 %v3980
    %6136 = vmatpush.bf16.msra.mxu0 %v3977
    %6137 = vmatpush.bf16.msra.mxu0 %v3974
    %6138 = vmatpush.bf16.msra.mxu0 %v3971
    %6139 = vmatpush.bf16.msra.mxu0 %v3968
    %6140 = vmatpush.bf16.msra.mxu0 %v3965
    %6141 = vmatmul.bf16.gmra.mxu0 %v1051
    %v6142 = vpop.f32.mrf.mxu0
    %v6143 = vadd.f32 %v6130, %v6142
    %v6144 = vpop.f32.mrf.mxu0
    %6145 = vdwg.mxu0
    %6146 = vmatpush.bf16.msra.mxu0 %v4010
    %6147 = vmatpush.bf16.msra.mxu0 %v4007
    %6148 = vmatpush.bf16.msra.mxu0 %v4004
    %6149 = vmatpush.bf16.msra.mxu0 %v4001
    %6150 = vmatpush.bf16.msra.mxu0 %v3998
    %6151 = vmatpush.bf16.msra.mxu0 %v3995
    %6152 = vmatpush.bf16.msra.mxu0 %v3992
    %6153 = vmatpush.bf16.msra.mxu0 %v3989
    %6154 = vmatmul.bf16.gmra.mxu0 %v1054
    %v6155 = vpop.f32.mrf.mxu0
    %v6156 = vadd.f32 %v6143, %v6155
    %v6157 = vpop.f32.mrf.mxu0
    %6158 = vdwg.mxu0
    %6159 = vmatpush.bf16.msra.mxu0 %v4034
    %6160 = vmatpush.bf16.msra.mxu0 %v4031
    %6161 = vmatpush.bf16.msra.mxu0 %v4028
    %6162 = vmatpush.bf16.msra.mxu0 %v4025
    %6163 = vmatpush.bf16.msra.mxu0 %v4022
    %6164 = vmatpush.bf16.msra.mxu0 %v4019
    %6165 = vmatpush.bf16.msra.mxu0 %v4016
    %6166 = vmatpush.bf16.msra.mxu0 %v4013
    %6167 = vmatmul.bf16.gmra.mxu0 %v1055
    %v6168 = vpop.f32.mrf.mxu0
    %v6169 = vadd.f32 %v6156, %v6168
    %v6170 = vpop.f32.mrf.mxu0
    %6171 = vdwg.mxu0
    %6172 = vmatpush.bf16.msra.mxu0 %v4058
    %6173 = vmatpush.bf16.msra.mxu0 %v4055
    %6174 = vmatpush.bf16.msra.mxu0 %v4052
    %6175 = vmatpush.bf16.msra.mxu0 %v4049
    %6176 = vmatpush.bf16.msra.mxu0 %v4046
    %6177 = vmatpush.bf16.msra.mxu0 %v4043
    %6178 = vmatpush.bf16.msra.mxu0 %v4040
    %6179 = vmatpush.bf16.msra.mxu0 %v4037
    %6180 = vmatmul.bf16.gmra.mxu0 %v1056
    %v6181 = vpop.f32.mrf.mxu0
    %v6182 = vadd.f32 %v6169, %v6181
    %v6183 = vpop.f32.mrf.mxu0
    %6184 = vdwg.mxu0
    %6185 = vmatpush.bf16.msra.mxu0 %v4082
    %6186 = vmatpush.bf16.msra.mxu0 %v4079
    %6187 = vmatpush.bf16.msra.mxu0 %v4076
    %6188 = vmatpush.bf16.msra.mxu0 %v4073
    %6189 = vmatpush.bf16.msra.mxu0 %v4070
    %6190 = vmatpush.bf16.msra.mxu0 %v4067
    %6191 = vmatpush.bf16.msra.mxu0 %v4064
    %6192 = vmatpush.bf16.msra.mxu0 %v4061
    %6193 = vmatmul.bf16.gmra.mxu0 %v1057
    %v6194 = vpop.f32.mrf.mxu0
    %v6195 = vadd.f32 %v6182, %v6194
    %v6196 = vpop.f32.mrf.mxu0
    %6197 = vdwg.mxu0
    %6198 = vmatpush.bf16.msra.mxu0 %v4106
    %6199 = vmatpush.bf16.msra.mxu0 %v4103
    %6200 = vmatpush.bf16.msra.mxu0 %v4100
    %6201 = vmatpush.bf16.msra.mxu0 %v4097
    %6202 = vmatpush.bf16.msra.mxu0 %v4094
    %6203 = vmatpush.bf16.msra.mxu0 %v4091
    %6204 = vmatpush.bf16.msra.mxu0 %v4088
    %6205 = vmatpush.bf16.msra.mxu0 %v4085
    %6206 = vmatmul.bf16.gmra.mxu0 %v1058
    %v6207 = vpop.f32.mrf.mxu0
    %v6208 = vadd.f32 %v6195, %v6207
    %v6209 = vpop.f32.mrf.mxu0
    %6210 = vdwg.mxu0
    %6211 = vmatpush.bf16.msra.mxu0 %v4130
    %6212 = vmatpush.bf16.msra.mxu0 %v4127
    %6213 = vmatpush.bf16.msra.mxu0 %v4124
    %6214 = vmatpush.bf16.msra.mxu0 %v4121
    %6215 = vmatpush.bf16.msra.mxu0 %v4118
    %6216 = vmatpush.bf16.msra.mxu0 %v4115
    %6217 = vmatpush.bf16.msra.mxu0 %v4112
    %6218 = vmatpush.bf16.msra.mxu0 %v4109
    %6219 = vmatmul.bf16.gmra.mxu0 %v1059
    %v6220 = vpop.f32.mrf.mxu0
    %v6221 = vadd.f32 %v6208, %v6220
    %v6222 = vpop.f32.mrf.mxu0
    %6223 = vdwg.mxu0
    %6224 = vmatpush.bf16.msra.mxu0 %v4154
    %6225 = vmatpush.bf16.msra.mxu0 %v4151
    %6226 = vmatpush.bf16.msra.mxu0 %v4148
    %6227 = vmatpush.bf16.msra.mxu0 %v4145
    %6228 = vmatpush.bf16.msra.mxu0 %v4142
    %6229 = vmatpush.bf16.msra.mxu0 %v4139
    %6230 = vmatpush.bf16.msra.mxu0 %v4136
    %6231 = vmatpush.bf16.msra.mxu0 %v4133
    %6232 = vmatmul.bf16.gmra.mxu0 %v1060
    %v6233 = vpop.f32.mrf.mxu0
    %v6234 = vadd.f32 %v6221, %v6233
    %v6235 = vpop.f32.mrf.mxu0
    %6236 = vdwg.mxu0
    %6237 = vmatpush.bf16.msra.mxu0 %v4178
    %6238 = vmatpush.bf16.msra.mxu0 %v4175
    %6239 = vmatpush.bf16.msra.mxu0 %v4172
    %6240 = vmatpush.bf16.msra.mxu0 %v4169
    %6241 = vmatpush.bf16.msra.mxu0 %v4166
    %6242 = vmatpush.bf16.msra.mxu0 %v4163
    %6243 = vmatpush.bf16.msra.mxu0 %v4160
    %6244 = vmatpush.bf16.msra.mxu0 %v4157
    %6245 = vmatmul.bf16.gmra.mxu0 %v1061
    %v6246 = vpop.f32.mrf.mxu0
    %v6247 = vadd.f32 %v6234, %v6246
    %v6248 = vpop.f32.mrf.mxu0
    %6249 = vdwg.mxu0
    %6250 = vmatpush.bf16.msra.mxu0 %v4202
    %6251 = vmatpush.bf16.msra.mxu0 %v4199
    %6252 = vmatpush.bf16.msra.mxu0 %v4196
    %6253 = vmatpush.bf16.msra.mxu0 %v4193
    %6254 = vmatpush.bf16.msra.mxu0 %v4190
    %6255 = vmatpush.bf16.msra.mxu0 %v4187
    %6256 = vmatpush.bf16.msra.mxu0 %v4184
    %6257 = vmatpush.bf16.msra.mxu0 %v4181
    %6258 = vmatmul.bf16.gmra.mxu0 %v1064
    %v6259 = vpop.f32.mrf.mxu0
    %v6260 = vadd.f32 %v6247, %v6259
    %v6261 = vpop.f32.mrf.mxu0
    %6262 = vdwg.mxu0
    %6263 = vmatpush.bf16.msra.mxu0 %v4226
    %6264 = vmatpush.bf16.msra.mxu0 %v4223
    %6265 = vmatpush.bf16.msra.mxu0 %v4220
    %6266 = vmatpush.bf16.msra.mxu0 %v4217
    %6267 = vmatpush.bf16.msra.mxu0 %v4214
    %6268 = vmatpush.bf16.msra.mxu0 %v4211
    %6269 = vmatpush.bf16.msra.mxu0 %v4208
    %6270 = vmatpush.bf16.msra.mxu0 %v4205
    %6271 = vmatmul.bf16.gmra.mxu0 %v1065
    %v6272 = vpop.f32.mrf.mxu0
    %v6273 = vadd.f32 %v6260, %v6272
    %v6274 = vpop.f32.mrf.mxu0
    %6275 = vdwg.mxu0
    %6276 = vmatpush.bf16.msra.mxu0 %v4250
    %6277 = vmatpush.bf16.msra.mxu0 %v4247
    %6278 = vmatpush.bf16.msra.mxu0 %v4244
    %6279 = vmatpush.bf16.msra.mxu0 %v4241
    %6280 = vmatpush.bf16.msra.mxu0 %v4238
    %6281 = vmatpush.bf16.msra.mxu0 %v4235
    %6282 = vmatpush.bf16.msra.mxu0 %v4232
    %6283 = vmatpush.bf16.msra.mxu0 %v4229
    %6284 = vmatmul.bf16.gmra.mxu0 %v1066
    %v6285 = vpop.f32.mrf.mxu0
    %v6286 = vadd.f32 %v6273, %v6285
    %v6287 = vpop.f32.mrf.mxu0
    %6288 = vdwg.mxu0
    %6289 = vmatpush.bf16.msra.mxu0 %v4274
    %6290 = vmatpush.bf16.msra.mxu0 %v4271
    %6291 = vmatpush.bf16.msra.mxu0 %v4268
    %6292 = vmatpush.bf16.msra.mxu0 %v4265
    %6293 = vmatpush.bf16.msra.mxu0 %v4262
    %6294 = vmatpush.bf16.msra.mxu0 %v4259
    %6295 = vmatpush.bf16.msra.mxu0 %v4256
    %6296 = vmatpush.bf16.msra.mxu0 %v4253
    %6297 = vmatmul.bf16.gmra.mxu0 %v1067
    %v6298 = vpop.f32.mrf.mxu0
    %v6299 = vadd.f32 %v6286, %v6298
    %v6300 = vpop.f32.mrf.mxu0
    %6301 = vdwg.mxu0
    %6302 = vmatpush.bf16.msra.mxu0 %v4298
    %6303 = vmatpush.bf16.msra.mxu0 %v4295
    %6304 = vmatpush.bf16.msra.mxu0 %v4292
    %6305 = vmatpush.bf16.msra.mxu0 %v4289
    %6306 = vmatpush.bf16.msra.mxu0 %v4286
    %6307 = vmatpush.bf16.msra.mxu0 %v4283
    %6308 = vmatpush.bf16.msra.mxu0 %v4280
    %6309 = vmatpush.bf16.msra.mxu0 %v4277
    %6310 = vmatmul.bf16.gmra.mxu0 %v1068
    %v6311 = vpop.f32.mrf.mxu0
    %v6312 = vadd.f32 %v6299, %v6311
    %v6313 = vpop.f32.mrf.mxu0
    %6314 = vdwg.mxu0
    %6315 = vmatpush.bf16.msra.mxu0 %v4322
    %6316 = vmatpush.bf16.msra.mxu0 %v4319
    %6317 = vmatpush.bf16.msra.mxu0 %v4316
    %6318 = vmatpush.bf16.msra.mxu0 %v4313
    %6319 = vmatpush.bf16.msra.mxu0 %v4310
    %6320 = vmatpush.bf16.msra.mxu0 %v4307
    %6321 = vmatpush.bf16.msra.mxu0 %v4304
    %6322 = vmatpush.bf16.msra.mxu0 %v4301
    %6323 = vmatmul.bf16.gmra.mxu0 %v1069
    %v6324 = vpop.f32.mrf.mxu0
    %v6325 = vadd.f32 %v6312, %v6324
    %v6326 = vpop.f32.mrf.mxu0
    %6327 = vdwg.mxu0
    %6328 = vmatpush.bf16.msra.mxu0 %v4346
    %6329 = vmatpush.bf16.msra.mxu0 %v4343
    %6330 = vmatpush.bf16.msra.mxu0 %v4340
    %6331 = vmatpush.bf16.msra.mxu0 %v4337
    %6332 = vmatpush.bf16.msra.mxu0 %v4334
    %6333 = vmatpush.bf16.msra.mxu0 %v4331
    %6334 = vmatpush.bf16.msra.mxu0 %v4328
    %6335 = vmatpush.bf16.msra.mxu0 %v4325
    %6336 = vmatmul.bf16.gmra.mxu0 %v1070
    %v6337 = vpop.f32.mrf.mxu0
    %v6338 = vadd.f32 %v6325, %v6337
    %v6339 = vpop.f32.mrf.mxu0
    %6340 = vdwg.mxu0
    %6341 = vmatpush.bf16.msra.mxu0 0
    %6342 = vmatpush.bf16.msra.mxu0 0
    %6343 = vmatpush.bf16.msra.mxu0 0
    %6344 = vmatpush.bf16.msra.mxu0 0
    %6345 = vmatpush.bf16.msra.mxu0 0
    %6346 = vmatpush.bf16.msra.mxu0 0
    %6347 = vmatpush.bf16.msra.mxu0 %v4352
    %6348 = vmatpush.bf16.msra.mxu0 %v4349
    %6349 = vmatmul.bf16.gmra.mxu0 %v5104
    %v6350 = vpop.f32.mrf.mxu0
    %v6351 = vadd.f32 %v6338, %v6350
    %v6352 = vpop.f32.mrf.mxu0
    %6353 = vdwg.mxu0
    %s6354 = scalar_lea.vmem %s0, 32
    %v6355 = vld [vmem:[%s6354] sm:$0xff]
    %v6356 = vld [vmem:[%s6354 + $0x8] sm:$0xff]
    %v6357 = vld [vmem:[%s6354 + $0x10] sm:$0xff]
    %v6358 = vld [vmem:[%s6354 + $0x18] sm:$0xff]
    %6360 = vst [vmem:[#allocation1] ss:$9 sm:$0xff] %v6355
    %v6361 = vld [vmem:[#allocation1] sm:$0xff]
    %v6362 = vld [vmem:[#allocation1 + $0x9] sm:$0xff]
    %v6363 = vld [vmem:[#allocation1 + $0x12] sm:$0xff]
    %v6364 = vld [vmem:[#allocation1 + $0x1b] sm:$0xff]
    %v6365 = vld [vmem:[#allocation1 + $0x24] sm:$0xff]
    %v6366 = vld [vmem:[#allocation1 + $0x2d] sm:$0xff]
    %v6367 = vld [vmem:[#allocation1 + $0x36] sm:$0xff]
    %v6368 = vld [vmem:[#allocation1 + $0x3f] sm:$0xff]
    %6370 = vst [vmem:[#allocation1] ss:$9 sm:$0xff] %v6356
    %v6371 = vld [vmem:[#allocation1] sm:$0xff]
    %v6372 = vld [vmem:[#allocation1 + $0x9] sm:$0xff]
    %v6373 = vld [vmem:[#allocation1 + $0x12] sm:$0xff]
    %v6374 = vld [vmem:[#allocation1 + $0x1b] sm:$0xff]
    %v6375 = vld [vmem:[#allocation1 + $0x24] sm:$0xff]
    %v6376 = vld [vmem:[#allocation1 + $0x2d] sm:$0xff]
    %v6377 = vld [vmem:[#allocation1 + $0x36] sm:$0xff]
    %v6378 = vld [vmem:[#allocation1 + $0x3f] sm:$0xff]
    %6380 = vst [vmem:[#allocation1] ss:$9 sm:$0xff] %v6357
    %v6381 = vld [vmem:[#allocation1] sm:$0xff]
    %v6382 = vld [vmem:[#allocation1 + $0x9] sm:$0xff]
    %v6383 = vld [vmem:[#allocation1 + $0x12] sm:$0xff]
    %v6384 = vld [vmem:[#allocation1 + $0x1b] sm:$0xff]
    %v6385 = vld [vmem:[#allocation1 + $0x24] sm:$0xff]
    %v6386 = vld [vmem:[#allocation1 + $0x2d] sm:$0xff]
    %v6387 = vld [vmem:[#allocation1 + $0x36] sm:$0xff]
    %v6388 = vld [vmem:[#allocation1 + $0x3f] sm:$0xff]
    %6390 = vst [vmem:[#allocation1] ss:$9 sm:$0xff] %v6358
    %v6391 = vld [vmem:[#allocation1] sm:$0xff]
    %v6392 = vld [vmem:[#allocation1 + $0x9] sm:$0xff]
    %v6393 = vld [vmem:[#allocation1 + $0x12] sm:$0xff]
    %v6394 = vld [vmem:[#allocation1 + $0x1b] sm:$0xff]
    %v6395 = vld [vmem:[#allocation1 + $0x24] sm:$0xff]
    %v6396 = vld [vmem:[#allocation1 + $0x2d] sm:$0xff]
    %v6397 = vld [vmem:[#allocation1 + $0x36] sm:$0xff]
    %v6398 = vld [vmem:[#allocation1 + $0x3f] sm:$0xff]
    %v6430 = vsel %vm5103, %v6398, 0
    %6432 = vmatpush.bf16.msra.mxu0 %v3624
    %6433 = vmatpush.bf16.msra.mxu0 %v3621
    %6434 = vmatpush.bf16.msra.mxu0 %v3618
    %6435 = vmatpush.bf16.msra.mxu0 %v3615
    %6436 = vmatpush.bf16.msra.mxu0 %v3612
    %6437 = vmatpush.bf16.msra.mxu0 %v3609
    %6438 = vmatpush.bf16.msra.mxu0 %v3606
    %6439 = vmatpush.bf16.msra.mxu0 %v3603
    %6440 = vmatmul.bf16.gmra.mxu0 %v6361
    %v6441 = vpop.f32.mrf.mxu0
    %v6442 = vadd.f32 0.0, %v6441
    %v6443 = vpop.f32.mrf.mxu0
    %6444 = vdwg.mxu0
    %6445 = vmatpush.bf16.msra.mxu0 %v3648
    %6446 = vmatpush.bf16.msra.mxu0 %v3645
    %6447 = vmatpush.bf16.msra.mxu0 %v3642
    %6448 = vmatpush.bf16.msra.mxu0 %v3639
    %6449 = vmatpush.bf16.msra.mxu0 %v3636
    %6450 = vmatpush.bf16.msra.mxu0 %v3633
    %6451 = vmatpush.bf16.msra.mxu0 %v3630
    %6452 = vmatpush.bf16.msra.mxu0 %v3627
    %6453 = vmatmul.bf16.gmra.mxu0 %v6362
    %v6454 = vpop.f32.mrf.mxu0
    %v6455 = vadd.f32 %v6442, %v6454
    %v6456 = vpop.f32.mrf.mxu0
    %6457 = vdwg.mxu0
    %6458 = vmatpush.bf16.msra.mxu0 %v3672
    %6459 = vmatpush.bf16.msra.mxu0 %v3669
    %6460 = vmatpush.bf16.msra.mxu0 %v3666
    %6461 = vmatpush.bf16.msra.mxu0 %v3663
    %6462 = vmatpush.bf16.msra.mxu0 %v3660
    %6463 = vmatpush.bf16.msra.mxu0 %v3657
    %6464 = vmatpush.bf16.msra.mxu0 %v3654
    %6465 = vmatpush.bf16.msra.mxu0 %v3651
    %6466 = vmatmul.bf16.gmra.mxu0 %v6363
    %v6467 = vpop.f32.mrf.mxu0
    %v6468 = vadd.f32 %v6455, %v6467
    %v6469 = vpop.f32.mrf.mxu0
    %6470 = vdwg.mxu0
    %6471 = vmatpush.bf16.msra.mxu0 %v3696
    %6472 = vmatpush.bf16.msra.mxu0 %v3693
    %6473 = vmatpush.bf16.msra.mxu0 %v3690
    %6474 = vmatpush.bf16.msra.mxu0 %v3687
    %6475 = vmatpush.bf16.msra.mxu0 %v3684
    %6476 = vmatpush.bf16.msra.mxu0 %v3681
    %6477 = vmatpush.bf16.msra.mxu0 %v3678
    %6478 = vmatpush.bf16.msra.mxu0 %v3675
    %6479 = vmatmul.bf16.gmra.mxu0 %v6364
    %v6480 = vpop.f32.mrf.mxu0
    %v6481 = vadd.f32 %v6468, %v6480
    %v6482 = vpop.f32.mrf.mxu0
    %6483 = vdwg.mxu0
    %6484 = vmatpush.bf16.msra.mxu0 %v3720
    %6485 = vmatpush.bf16.msra.mxu0 %v3717
    %6486 = vmatpush.bf16.msra.mxu0 %v3714
    %6487 = vmatpush.bf16.msra.mxu0 %v3711
    %6488 = vmatpush.bf16.msra.mxu0 %v3708
    %6489 = vmatpush.bf16.msra.mxu0 %v3705
    %6490 = vmatpush.bf16.msra.mxu0 %v3702
    %6491 = vmatpush.bf16.msra.mxu0 %v3699
    %6492 = vmatmul.bf16.gmra.mxu0 %v6365
    %v6493 = vpop.f32.mrf.mxu0
    %v6494 = vadd.f32 %v6481, %v6493
    %v6495 = vpop.f32.mrf.mxu0
    %6496 = vdwg.mxu0
    %6497 = vmatpush.bf16.msra.mxu0 %v3744
    %6498 = vmatpush.bf16.msra.mxu0 %v3741
    %6499 = vmatpush.bf16.msra.mxu0 %v3738
    %6500 = vmatpush.bf16.msra.mxu0 %v3735
    %6501 = vmatpush.bf16.msra.mxu0 %v3732
    %6502 = vmatpush.bf16.msra.mxu0 %v3729
    %6503 = vmatpush.bf16.msra.mxu0 %v3726
    %6504 = vmatpush.bf16.msra.mxu0 %v3723
    %6505 = vmatmul.bf16.gmra.mxu0 %v6366
    %v6506 = vpop.f32.mrf.mxu0
    %v6507 = vadd.f32 %v6494, %v6506
    %v6508 = vpop.f32.mrf.mxu0
    %6509 = vdwg.mxu0
    %6510 = vmatpush.bf16.msra.mxu0 %v3768
    %6511 = vmatpush.bf16.msra.mxu0 %v3765
    %6512 = vmatpush.bf16.msra.mxu0 %v3762
    %6513 = vmatpush.bf16.msra.mxu0 %v3759
    %6514 = vmatpush.bf16.msra.mxu0 %v3756
    %6515 = vmatpush.bf16.msra.mxu0 %v3753
    %6516 = vmatpush.bf16.msra.mxu0 %v3750
    %6517 = vmatpush.bf16.msra.mxu0 %v3747
    %6518 = vmatmul.bf16.gmra.mxu0 %v6367
    %v6519 = vpop.f32.mrf.mxu0
    %v6520 = vadd.f32 %v6507, %v6519
    %v6521 = vpop.f32.mrf.mxu0
    %6522 = vdwg.mxu0
    %6523 = vmatpush.bf16.msra.mxu0 %v3792
    %6524 = vmatpush.bf16.msra.mxu0 %v3789
    %6525 = vmatpush.bf16.msra.mxu0 %v3786
    %6526 = vmatpush.bf16.msra.mxu0 %v3783
    %6527 = vmatpush.bf16.msra.mxu0 %v3780
    %6528 = vmatpush.bf16.msra.mxu0 %v3777
    %6529 = vmatpush.bf16.msra.mxu0 %v3774
    %6530 = vmatpush.bf16.msra.mxu0 %v3771
    %6531 = vmatmul.bf16.gmra.mxu0 %v6368
    %v6532 = vpop.f32.mrf.mxu0
    %v6533 = vadd.f32 %v6520, %v6532
    %v6534 = vpop.f32.mrf.mxu0
    %6535 = vdwg.mxu0
    %6536 = vmatpush.bf16.msra.mxu0 %v3816
    %6537 = vmatpush.bf16.msra.mxu0 %v3813
    %6538 = vmatpush.bf16.msra.mxu0 %v3810
    %6539 = vmatpush.bf16.msra.mxu0 %v3807
    %6540 = vmatpush.bf16.msra.mxu0 %v3804
    %6541 = vmatpush.bf16.msra.mxu0 %v3801
    %6542 = vmatpush.bf16.msra.mxu0 %v3798
    %6543 = vmatpush.bf16.msra.mxu0 %v3795
    %6544 = vmatmul.bf16.gmra.mxu0 %v6371
    %v6545 = vpop.f32.mrf.mxu0
    %v6546 = vadd.f32 %v6533, %v6545
    %v6547 = vpop.f32.mrf.mxu0
    %6548 = vdwg.mxu0
    %6549 = vmatpush.bf16.msra.mxu0 %v3840
    %6550 = vmatpush.bf16.msra.mxu0 %v3837
    %6551 = vmatpush.bf16.msra.mxu0 %v3834
    %6552 = vmatpush.bf16.msra.mxu0 %v3831
    %6553 = vmatpush.bf16.msra.mxu0 %v3828
    %6554 = vmatpush.bf16.msra.mxu0 %v3825
    %6555 = vmatpush.bf16.msra.mxu0 %v3822
    %6556 = vmatpush.bf16.msra.mxu0 %v3819
    %6557 = vmatmul.bf16.gmra.mxu0 %v6372
    %v6558 = vpop.f32.mrf.mxu0
    %v6559 = vadd.f32 %v6546, %v6558
    %v6560 = vpop.f32.mrf.mxu0
    %6561 = vdwg.mxu0
    %6562 = vmatpush.bf16.msra.mxu0 %v3864
    %6563 = vmatpush.bf16.msra.mxu0 %v3861
    %6564 = vmatpush.bf16.msra.mxu0 %v3858
    %6565 = vmatpush.bf16.msra.mxu0 %v3855
    %6566 = vmatpush.bf16.msra.mxu0 %v3852
    %6567 = vmatpush.bf16.msra.mxu0 %v3849
    %6568 = vmatpush.bf16.msra.mxu0 %v3846
    %6569 = vmatpush.bf16.msra.mxu0 %v3843
    %6570 = vmatmul.bf16.gmra.mxu0 %v6373
    %v6571 = vpop.f32.mrf.mxu0
    %v6572 = vadd.f32 %v6559, %v6571
    %v6573 = vpop.f32.mrf.mxu0
    %6574 = vdwg.mxu0
    %6575 = vmatpush.bf16.msra.mxu0 %v3888
    %6576 = vmatpush.bf16.msra.mxu0 %v3885
    %6577 = vmatpush.bf16.msra.mxu0 %v3882
    %6578 = vmatpush.bf16.msra.mxu0 %v3879
    %6579 = vmatpush.bf16.msra.mxu0 %v3876
    %6580 = vmatpush.bf16.msra.mxu0 %v3873
    %6581 = vmatpush.bf16.msra.mxu0 %v3870
    %6582 = vmatpush.bf16.msra.mxu0 %v3867
    %6583 = vmatmul.bf16.gmra.mxu0 %v6374
    %v6584 = vpop.f32.mrf.mxu0
    %v6585 = vadd.f32 %v6572, %v6584
    %v6586 = vpop.f32.mrf.mxu0
    %6587 = vdwg.mxu0
    %6588 = vmatpush.bf16.msra.mxu0 %v3912
    %6589 = vmatpush.bf16.msra.mxu0 %v3909
    %6590 = vmatpush.bf16.msra.mxu0 %v3906
    %6591 = vmatpush.bf16.msra.mxu0 %v3903
    %6592 = vmatpush.bf16.msra.mxu0 %v3900
    %6593 = vmatpush.bf16.msra.mxu0 %v3897
    %6594 = vmatpush.bf16.msra.mxu0 %v3894
    %6595 = vmatpush.bf16.msra.mxu0 %v3891
    %6596 = vmatmul.bf16.gmra.mxu0 %v6375
    %v6597 = vpop.f32.mrf.mxu0
    %v6598 = vadd.f32 %v6585, %v6597
    %v6599 = vpop.f32.mrf.mxu0
    %6600 = vdwg.mxu0
    %6601 = vmatpush.bf16.msra.mxu0 %v3936
    %6602 = vmatpush.bf16.msra.mxu0 %v3933
    %6603 = vmatpush.bf16.msra.mxu0 %v3930
    %6604 = vmatpush.bf16.msra.mxu0 %v3927
    %6605 = vmatpush.bf16.msra.mxu0 %v3924
    %6606 = vmatpush.bf16.msra.mxu0 %v3921
    %6607 = vmatpush.bf16.msra.mxu0 %v3918
    %6608 = vmatpush.bf16.msra.mxu0 %v3915
    %6609 = vmatmul.bf16.gmra.mxu0 %v6376
    %v6610 = vpop.f32.mrf.mxu0
    %v6611 = vadd.f32 %v6598, %v6610
    %v6612 = vpop.f32.mrf.mxu0
    %6613 = vdwg.mxu0
    %6614 = vmatpush.bf16.msra.mxu0 %v3960
    %6615 = vmatpush.bf16.msra.mxu0 %v3957
    %6616 = vmatpush.bf16.msra.mxu0 %v3954
    %6617 = vmatpush.bf16.msra.mxu0 %v3951
    %6618 = vmatpush.bf16.msra.mxu0 %v3948
    %6619 = vmatpush.bf16.msra.mxu0 %v3945
    %6620 = vmatpush.bf16.msra.mxu0 %v3942
    %6621 = vmatpush.bf16.msra.mxu0 %v3939
    %6622 = vmatmul.bf16.gmra.mxu0 %v6377
    %v6623 = vpop.f32.mrf.mxu0
    %v6624 = vadd.f32 %v6611, %v6623
    %v6625 = vpop.f32.mrf.mxu0
    %6626 = vdwg.mxu0
    %6627 = vmatpush.bf16.msra.mxu0 %v3984
    %6628 = vmatpush.bf16.msra.mxu0 %v3981
    %6629 = vmatpush.bf16.msra.mxu0 %v3978
    %6630 = vmatpush.bf16.msra.mxu0 %v3975
    %6631 = vmatpush.bf16.msra.mxu0 %v3972
    %6632 = vmatpush.bf16.msra.mxu0 %v3969
    %6633 = vmatpush.bf16.msra.mxu0 %v3966
    %6634 = vmatpush.bf16.msra.mxu0 %v3963
    %6635 = vmatmul.bf16.gmra.mxu0 %v6378
    %v6636 = vpop.f32.mrf.mxu0
    %v6637 = vadd.f32 %v6624, %v6636
    %v6638 = vpop.f32.mrf.mxu0
    %6639 = vdwg.mxu0
    %6640 = vmatpush.bf16.msra.mxu0 %v4008
    %6641 = vmatpush.bf16.msra.mxu0 %v4005
    %6642 = vmatpush.bf16.msra.mxu0 %v4002
    %6643 = vmatpush.bf16.msra.mxu0 %v3999
    %6644 = vmatpush.bf16.msra.mxu0 %v3996
    %6645 = vmatpush.bf16.msra.mxu0 %v3993
    %6646 = vmatpush.bf16.msra.mxu0 %v3990
    %6647 = vmatpush.bf16.msra.mxu0 %v3987
    %6648 = vmatmul.bf16.gmra.mxu0 %v6381
    %v6649 = vpop.f32.mrf.mxu0
    %v6650 = vadd.f32 %v6637, %v6649
    %v6651 = vpop.f32.mrf.mxu0
    %6652 = vdwg.mxu0
    %6653 = vmatpush.bf16.msra.mxu0 %v4032
    %6654 = vmatpush.bf16.msra.mxu0 %v4029
    %6655 = vmatpush.bf16.msra.mxu0 %v4026
    %6656 = vmatpush.bf16.msra.mxu0 %v4023
    %6657 = vmatpush.bf16.msra.mxu0 %v4020
    %6658 = vmatpush.bf16.msra.mxu0 %v4017
    %6659 = vmatpush.bf16.msra.mxu0 %v4014
    %6660 = vmatpush.bf16.msra.mxu0 %v4011
    %6661 = vmatmul.bf16.gmra.mxu0 %v6382
    %v6662 = vpop.f32.mrf.mxu0
    %v6663 = vadd.f32 %v6650, %v6662
    %v6664 = vpop.f32.mrf.mxu0
    %6665 = vdwg.mxu0
    %6666 = vmatpush.bf16.msra.mxu0 %v4056
    %6667 = vmatpush.bf16.msra.mxu0 %v4053
    %6668 = vmatpush.bf16.msra.mxu0 %v4050
    %6669 = vmatpush.bf16.msra.mxu0 %v4047
    %6670 = vmatpush.bf16.msra.mxu0 %v4044
    %6671 = vmatpush.bf16.msra.mxu0 %v4041
    %6672 = vmatpush.bf16.msra.mxu0 %v4038
    %6673 = vmatpush.bf16.msra.mxu0 %v4035
    %6674 = vmatmul.bf16.gmra.mxu0 %v6383
    %v6675 = vpop.f32.mrf.mxu0
    %v6676 = vadd.f32 %v6663, %v6675
    %v6677 = vpop.f32.mrf.mxu0
    %6678 = vdwg.mxu0
    %6679 = vmatpush.bf16.msra.mxu0 %v4080
    %6680 = vmatpush.bf16.msra.mxu0 %v4077
    %6681 = vmatpush.bf16.msra.mxu0 %v4074
    %6682 = vmatpush.bf16.msra.mxu0 %v4071
    %6683 = vmatpush.bf16.msra.mxu0 %v4068
    %6684 = vmatpush.bf16.msra.mxu0 %v4065
    %6685 = vmatpush.bf16.msra.mxu0 %v4062
    %6686 = vmatpush.bf16.msra.mxu0 %v4059
    %6687 = vmatmul.bf16.gmra.mxu0 %v6384
    %v6688 = vpop.f32.mrf.mxu0
    %v6689 = vadd.f32 %v6676, %v6688
    %v6690 = vpop.f32.mrf.mxu0
    %6691 = vdwg.mxu0
    %6692 = vmatpush.bf16.msra.mxu0 %v4104
    %6693 = vmatpush.bf16.msra.mxu0 %v4101
    %6694 = vmatpush.bf16.msra.mxu0 %v4098
    %6695 = vmatpush.bf16.msra.mxu0 %v4095
    %6696 = vmatpush.bf16.msra.mxu0 %v4092
    %6697 = vmatpush.bf16.msra.mxu0 %v4089
    %6698 = vmatpush.bf16.msra.mxu0 %v4086
    %6699 = vmatpush.bf16.msra.mxu0 %v4083
    %6700 = vmatmul.bf16.gmra.mxu0 %v6385
    %v6701 = vpop.f32.mrf.mxu0
    %v6702 = vadd.f32 %v6689, %v6701
    %v6703 = vpop.f32.mrf.mxu0
    %6704 = vdwg.mxu0
    %6705 = vmatpush.bf16.msra.mxu0 %v4128
    %6706 = vmatpush.bf16.msra.mxu0 %v4125
    %6707 = vmatpush.bf16.msra.mxu0 %v4122
    %6708 = vmatpush.bf16.msra.mxu0 %v4119
    %6709 = vmatpush.bf16.msra.mxu0 %v4116
    %6710 = vmatpush.bf16.msra.mxu0 %v4113
    %6711 = vmatpush.bf16.msra.mxu0 %v4110
    %6712 = vmatpush.bf16.msra.mxu0 %v4107
    %6713 = vmatmul.bf16.gmra.mxu0 %v6386
    %v6714 = vpop.f32.mrf.mxu0
    %v6715 = vadd.f32 %v6702, %v6714
    %v6716 = vpop.f32.mrf.mxu0
    %6717 = vdwg.mxu0
    %6718 = vmatpush.bf16.msra.mxu0 %v4152
    %6719 = vmatpush.bf16.msra.mxu0 %v4149
    %6720 = vmatpush.bf16.msra.mxu0 %v4146
    %6721 = vmatpush.bf16.msra.mxu0 %v4143
    %6722 = vmatpush.bf16.msra.mxu0 %v4140
    %6723 = vmatpush.bf16.msra.mxu0 %v4137
    %6724 = vmatpush.bf16.msra.mxu0 %v4134
    %6725 = vmatpush.bf16.msra.mxu0 %v4131
    %6726 = vmatmul.bf16.gmra.mxu0 %v6387
    %v6727 = vpop.f32.mrf.mxu0
    %v6728 = vadd.f32 %v6715, %v6727
    %v6729 = vpop.f32.mrf.mxu0
    %6730 = vdwg.mxu0
    %6731 = vmatpush.bf16.msra.mxu0 %v4176
    %6732 = vmatpush.bf16.msra.mxu0 %v4173
    %6733 = vmatpush.bf16.msra.mxu0 %v4170
    %6734 = vmatpush.bf16.msra.mxu0 %v4167
    %6735 = vmatpush.bf16.msra.mxu0 %v4164
    %6736 = vmatpush.bf16.msra.mxu0 %v4161
    %6737 = vmatpush.bf16.msra.mxu0 %v4158
    %6738 = vmatpush.bf16.msra.mxu0 %v4155
    %6739 = vmatmul.bf16.gmra.mxu0 %v6388
    %v6740 = vpop.f32.mrf.mxu0
    %v6741 = vadd.f32 %v6728, %v6740
    %v6742 = vpop.f32.mrf.mxu0
    %6743 = vdwg.mxu0
    %6744 = vmatpush.bf16.msra.mxu0 %v4200
    %6745 = vmatpush.bf16.msra.mxu0 %v4197
    %6746 = vmatpush.bf16.msra.mxu0 %v4194
    %6747 = vmatpush.bf16.msra.mxu0 %v4191
    %6748 = vmatpush.bf16.msra.mxu0 %v4188
    %6749 = vmatpush.bf16.msra.mxu0 %v4185
    %6750 = vmatpush.bf16.msra.mxu0 %v4182
    %6751 = vmatpush.bf16.msra.mxu0 %v4179
    %6752 = vmatmul.bf16.gmra.mxu0 %v6391
    %v6753 = vpop.f32.mrf.mxu0
    %v6754 = vadd.f32 %v6741, %v6753
    %v6755 = vpop.f32.mrf.mxu0
    %6756 = vdwg.mxu0
    %6757 = vmatpush.bf16.msra.mxu0 %v4224
    %6758 = vmatpush.bf16.msra.mxu0 %v4221
    %6759 = vmatpush.bf16.msra.mxu0 %v4218
    %6760 = vmatpush.bf16.msra.mxu0 %v4215
    %6761 = vmatpush.bf16.msra.mxu0 %v4212
    %6762 = vmatpush.bf16.msra.mxu0 %v4209
    %6763 = vmatpush.bf16.msra.mxu0 %v4206
    %6764 = vmatpush.bf16.msra.mxu0 %v4203
    %6765 = vmatmul.bf16.gmra.mxu0 %v6392
    %v6766 = vpop.f32.mrf.mxu0
    %v6767 = vadd.f32 %v6754, %v6766
    %v6768 = vpop.f32.mrf.mxu0
    %6769 = vdwg.mxu0
    %6770 = vmatpush.bf16.msra.mxu0 %v4248
    %6771 = vmatpush.bf16.msra.mxu0 %v4245
    %6772 = vmatpush.bf16.msra.mxu0 %v4242
    %6773 = vmatpush.bf16.msra.mxu0 %v4239
    %6774 = vmatpush.bf16.msra.mxu0 %v4236
    %6775 = vmatpush.bf16.msra.mxu0 %v4233
    %6776 = vmatpush.bf16.msra.mxu0 %v4230
    %6777 = vmatpush.bf16.msra.mxu0 %v4227
    %6778 = vmatmul.bf16.gmra.mxu0 %v6393
    %v6779 = vpop.f32.mrf.mxu0
    %v6780 = vadd.f32 %v6767, %v6779
    %v6781 = vpop.f32.mrf.mxu0
    %6782 = vdwg.mxu0
    %6783 = vmatpush.bf16.msra.mxu0 %v4272
    %6784 = vmatpush.bf16.msra.mxu0 %v4269
    %6785 = vmatpush.bf16.msra.mxu0 %v4266
    %6786 = vmatpush.bf16.msra.mxu0 %v4263
    %6787 = vmatpush.bf16.msra.mxu0 %v4260
    %6788 = vmatpush.bf16.msra.mxu0 %v4257
    %6789 = vmatpush.bf16.msra.mxu0 %v4254
    %6790 = vmatpush.bf16.msra.mxu0 %v4251
    %6791 = vmatmul.bf16.gmra.mxu0 %v6394
    %v6792 = vpop.f32.mrf.mxu0
    %v6793 = vadd.f32 %v6780, %v6792
    %v6794 = vpop.f32.mrf.mxu0
    %6795 = vdwg.mxu0
    %6796 = vmatpush.bf16.msra.mxu0 %v4296
    %6797 = vmatpush.bf16.msra.mxu0 %v4293
    %6798 = vmatpush.bf16.msra.mxu0 %v4290
    %6799 = vmatpush.bf16.msra.mxu0 %v4287
    %6800 = vmatpush.bf16.msra.mxu0 %v4284
    %6801 = vmatpush.bf16.msra.mxu0 %v4281
    %6802 = vmatpush.bf16.msra.mxu0 %v4278
    %6803 = vmatpush.bf16.msra.mxu0 %v4275
    %6804 = vmatmul.bf16.gmra.mxu0 %v6395
    %v6805 = vpop.f32.mrf.mxu0
    %v6806 = vadd.f32 %v6793, %v6805
    %v6807 = vpop.f32.mrf.mxu0
    %6808 = vdwg.mxu0
    %6809 = vmatpush.bf16.msra.mxu0 %v4320
    %6810 = vmatpush.bf16.msra.mxu0 %v4317
    %6811 = vmatpush.bf16.msra.mxu0 %v4314
    %6812 = vmatpush.bf16.msra.mxu0 %v4311
    %6813 = vmatpush.bf16.msra.mxu0 %v4308
    %6814 = vmatpush.bf16.msra.mxu0 %v4305
    %6815 = vmatpush.bf16.msra.mxu0 %v4302
    %6816 = vmatpush.bf16.msra.mxu0 %v4299
    %6817 = vmatmul.bf16.gmra.mxu0 %v6396
    %v6818 = vpop.f32.mrf.mxu0
    %v6819 = vadd.f32 %v6806, %v6818
    %v6820 = vpop.f32.mrf.mxu0
    %6821 = vdwg.mxu0
    %6822 = vmatpush.bf16.msra.mxu0 %v4344
    %6823 = vmatpush.bf16.msra.mxu0 %v4341
    %6824 = vmatpush.bf16.msra.mxu0 %v4338
    %6825 = vmatpush.bf16.msra.mxu0 %v4335
    %6826 = vmatpush.bf16.msra.mxu0 %v4332
    %6827 = vmatpush.bf16.msra.mxu0 %v4329
    %6828 = vmatpush.bf16.msra.mxu0 %v4326
    %6829 = vmatpush.bf16.msra.mxu0 %v4323
    %6830 = vmatmul.bf16.gmra.mxu0 %v6397
    %v6831 = vpop.f32.mrf.mxu0
    %v6832 = vadd.f32 %v6819, %v6831
    %v6833 = vpop.f32.mrf.mxu0
    %6834 = vdwg.mxu0
    %6835 = vmatpush.bf16.msra.mxu0 0
    %6836 = vmatpush.bf16.msra.mxu0 0
    %6837 = vmatpush.bf16.msra.mxu0 0
    %6838 = vmatpush.bf16.msra.mxu0 0
    %6839 = vmatpush.bf16.msra.mxu0 0
    %6840 = vmatpush.bf16.msra.mxu0 0
    %6841 = vmatpush.bf16.msra.mxu0 %v4350
    %6842 = vmatpush.bf16.msra.mxu0 %v4347
    %6843 = vmatmul.bf16.gmra.mxu0 %v6430
    %v6844 = vpop.f32.mrf.mxu0
    %v6845 = vadd.f32 %v6832, %v6844
    %v6846 = vpop.f32.mrf.mxu0
    %6847 = vdwg.mxu0
    %6848 = vmatpush.bf16.msra.mxu0 %v3625
    %6849 = vmatpush.bf16.msra.mxu0 %v3622
    %6850 = vmatpush.bf16.msra.mxu0 %v3619
    %6851 = vmatpush.bf16.msra.mxu0 %v3616
    %6852 = vmatpush.bf16.msra.mxu0 %v3613
    %6853 = vmatpush.bf16.msra.mxu0 %v3610
    %6854 = vmatpush.bf16.msra.mxu0 %v3607
    %6855 = vmatpush.bf16.msra.mxu0 %v3604
    %6856 = vmatmul.bf16.gmra.mxu0 %v6361
    %v6857 = vpop.f32.mrf.mxu0
    %v6858 = vadd.f32 0.0, %v6857
    %v6859 = vpop.f32.mrf.mxu0
    %6860 = vdwg.mxu0
    %6861 = vmatpush.bf16.msra.mxu0 %v3649
    %6862 = vmatpush.bf16.msra.mxu0 %v3646
    %6863 = vmatpush.bf16.msra.mxu0 %v3643
    %6864 = vmatpush.bf16.msra.mxu0 %v3640
    %6865 = vmatpush.bf16.msra.mxu0 %v3637
    %6866 = vmatpush.bf16.msra.mxu0 %v3634
    %6867 = vmatpush.bf16.msra.mxu0 %v3631
    %6868 = vmatpush.bf16.msra.mxu0 %v3628
    %6869 = vmatmul.bf16.gmra.mxu0 %v6362
    %v6870 = vpop.f32.mrf.mxu0
    %v6871 = vadd.f32 %v6858, %v6870
    %v6872 = vpop.f32.mrf.mxu0
    %6873 = vdwg.mxu0
    %6874 = vmatpush.bf16.msra.mxu0 %v3673
    %6875 = vmatpush.bf16.msra.mxu0 %v3670
    %6876 = vmatpush.bf16.msra.mxu0 %v3667
    %6877 = vmatpush.bf16.msra.mxu0 %v3664
    %6878 = vmatpush.bf16.msra.mxu0 %v3661
    %6879 = vmatpush.bf16.msra.mxu0 %v3658
    %6880 = vmatpush.bf16.msra.mxu0 %v3655
    %6881 = vmatpush.bf16.msra.mxu0 %v3652
    %6882 = vmatmul.bf16.gmra.mxu0 %v6363
    %v6883 = vpop.f32.mrf.mxu0
    %v6884 = vadd.f32 %v6871, %v6883
    %v6885 = vpop.f32.mrf.mxu0
    %6886 = vdwg.mxu0
    %6887 = vmatpush.bf16.msra.mxu0 %v3697
    %6888 = vmatpush.bf16.msra.mxu0 %v3694
    %6889 = vmatpush.bf16.msra.mxu0 %v3691
    %6890 = vmatpush.bf16.msra.mxu0 %v3688
    %6891 = vmatpush.bf16.msra.mxu0 %v3685
    %6892 = vmatpush.bf16.msra.mxu0 %v3682
    %6893 = vmatpush.bf16.msra.mxu0 %v3679
    %6894 = vmatpush.bf16.msra.mxu0 %v3676
    %6895 = vmatmul.bf16.gmra.mxu0 %v6364
    %v6896 = vpop.f32.mrf.mxu0
    %v6897 = vadd.f32 %v6884, %v6896
    %v6898 = vpop.f32.mrf.mxu0
    %6899 = vdwg.mxu0
    %6900 = vmatpush.bf16.msra.mxu0 %v3721
    %6901 = vmatpush.bf16.msra.mxu0 %v3718
    %6902 = vmatpush.bf16.msra.mxu0 %v3715
    %6903 = vmatpush.bf16.msra.mxu0 %v3712
    %6904 = vmatpush.bf16.msra.mxu0 %v3709
    %6905 = vmatpush.bf16.msra.mxu0 %v3706
    %6906 = vmatpush.bf16.msra.mxu0 %v3703
    %6907 = vmatpush.bf16.msra.mxu0 %v3700
    %6908 = vmatmul.bf16.gmra.mxu0 %v6365
    %v6909 = vpop.f32.mrf.mxu0
    %v6910 = vadd.f32 %v6897, %v6909
    %v6911 = vpop.f32.mrf.mxu0
    %6912 = vdwg.mxu0
    %6913 = vmatpush.bf16.msra.mxu0 %v3745
    %6914 = vmatpush.bf16.msra.mxu0 %v3742
    %6915 = vmatpush.bf16.msra.mxu0 %v3739
    %6916 = vmatpush.bf16.msra.mxu0 %v3736
    %6917 = vmatpush.bf16.msra.mxu0 %v3733
    %6918 = vmatpush.bf16.msra.mxu0 %v3730
    %6919 = vmatpush.bf16.msra.mxu0 %v3727
    %6920 = vmatpush.bf16.msra.mxu0 %v3724
    %6921 = vmatmul.bf16.gmra.mxu0 %v6366
    %v6922 = vpop.f32.mrf.mxu0
    %v6923 = vadd.f32 %v6910, %v6922
    %v6924 = vpop.f32.mrf.mxu0
    %6925 = vdwg.mxu0
    %6926 = vmatpush.bf16.msra.mxu0 %v3769
    %6927 = vmatpush.bf16.msra.mxu0 %v3766
    %6928 = vmatpush.bf16.msra.mxu0 %v3763
    %6929 = vmatpush.bf16.msra.mxu0 %v3760
    %6930 = vmatpush.bf16.msra.mxu0 %v3757
    %6931 = vmatpush.bf16.msra.mxu0 %v3754
    %6932 = vmatpush.bf16.msra.mxu0 %v3751
    %6933 = vmatpush.bf16.msra.mxu0 %v3748
    %6934 = vmatmul.bf16.gmra.mxu0 %v6367
    %v6935 = vpop.f32.mrf.mxu0
    %v6936 = vadd.f32 %v6923, %v6935
    %v6937 = vpop.f32.mrf.mxu0
    %6938 = vdwg.mxu0
    %6939 = vmatpush.bf16.msra.mxu0 %v3793
    %6940 = vmatpush.bf16.msra.mxu0 %v3790
    %6941 = vmatpush.bf16.msra.mxu0 %v3787
    %6942 = vmatpush.bf16.msra.mxu0 %v3784
    %6943 = vmatpush.bf16.msra.mxu0 %v3781
    %6944 = vmatpush.bf16.msra.mxu0 %v3778
    %6945 = vmatpush.bf16.msra.mxu0 %v3775
    %6946 = vmatpush.bf16.msra.mxu0 %v3772
    %6947 = vmatmul.bf16.gmra.mxu0 %v6368
    %v6948 = vpop.f32.mrf.mxu0
    %v6949 = vadd.f32 %v6936, %v6948
    %v6950 = vpop.f32.mrf.mxu0
    %6951 = vdwg.mxu0
    %6952 = vmatpush.bf16.msra.mxu0 %v3817
    %6953 = vmatpush.bf16.msra.mxu0 %v3814
    %6954 = vmatpush.bf16.msra.mxu0 %v3811
    %6955 = vmatpush.bf16.msra.mxu0 %v3808
    %6956 = vmatpush.bf16.msra.mxu0 %v3805
    %6957 = vmatpush.bf16.msra.mxu0 %v3802
    %6958 = vmatpush.bf16.msra.mxu0 %v3799
    %6959 = vmatpush.bf16.msra.mxu0 %v3796
    %6960 = vmatmul.bf16.gmra.mxu0 %v6371
    %v6961 = vpop.f32.mrf.mxu0
    %v6962 = vadd.f32 %v6949, %v6961
    %v6963 = vpop.f32.mrf.mxu0
    %6964 = vdwg.mxu0
    %6965 = vmatpush.bf16.msra.mxu0 %v3841
    %6966 = vmatpush.bf16.msra.mxu0 %v3838
    %6967 = vmatpush.bf16.msra.mxu0 %v3835
    %6968 = vmatpush.bf16.msra.mxu0 %v3832
    %6969 = vmatpush.bf16.msra.mxu0 %v3829
    %6970 = vmatpush.bf16.msra.mxu0 %v3826
    %6971 = vmatpush.bf16.msra.mxu0 %v3823
    %6972 = vmatpush.bf16.msra.mxu0 %v3820
    %6973 = vmatmul.bf16.gmra.mxu0 %v6372
    %v6974 = vpop.f32.mrf.mxu0
    %v6975 = vadd.f32 %v6962, %v6974
    %v6976 = vpop.f32.mrf.mxu0
    %6977 = vdwg.mxu0
    %6978 = vmatpush.bf16.msra.mxu0 %v3865
    %6979 = vmatpush.bf16.msra.mxu0 %v3862
    %6980 = vmatpush.bf16.msra.mxu0 %v3859
    %6981 = vmatpush.bf16.msra.mxu0 %v3856
    %6982 = vmatpush.bf16.msra.mxu0 %v3853
    %6983 = vmatpush.bf16.msra.mxu0 %v3850
    %6984 = vmatpush.bf16.msra.mxu0 %v3847
    %6985 = vmatpush.bf16.msra.mxu0 %v3844
    %6986 = vmatmul.bf16.gmra.mxu0 %v6373
    %v6987 = vpop.f32.mrf.mxu0
    %v6988 = vadd.f32 %v6975, %v6987
    %v6989 = vpop.f32.mrf.mxu0
    %6990 = vdwg.mxu0
    %6991 = vmatpush.bf16.msra.mxu0 %v3889
    %6992 = vmatpush.bf16.msra.mxu0 %v3886
    %6993 = vmatpush.bf16.msra.mxu0 %v3883
    %6994 = vmatpush.bf16.msra.mxu0 %v3880
    %6995 = vmatpush.bf16.msra.mxu0 %v3877
    %6996 = vmatpush.bf16.msra.mxu0 %v3874
    %6997 = vmatpush.bf16.msra.mxu0 %v3871
    %6998 = vmatpush.bf16.msra.mxu0 %v3868
    %6999 = vmatmul.bf16.gmra.mxu0 %v6374
    %v7000 = vpop.f32.mrf.mxu0
    %v7001 = vadd.f32 %v6988, %v7000
    %v7002 = vpop.f32.mrf.mxu0
    %7003 = vdwg.mxu0
    %7004 = vmatpush.bf16.msra.mxu0 %v3913
    %7005 = vmatpush.bf16.msra.mxu0 %v3910
    %7006 = vmatpush.bf16.msra.mxu0 %v3907
    %7007 = vmatpush.bf16.msra.mxu0 %v3904
    %7008 = vmatpush.bf16.msra.mxu0 %v3901
    %7009 = vmatpush.bf16.msra.mxu0 %v3898
    %7010 = vmatpush.bf16.msra.mxu0 %v3895
    %7011 = vmatpush.bf16.msra.mxu0 %v3892
    %7012 = vmatmul.bf16.gmra.mxu0 %v6375
    %v7013 = vpop.f32.mrf.mxu0
    %v7014 = vadd.f32 %v7001, %v7013
    %v7015 = vpop.f32.mrf.mxu0
    %7016 = vdwg.mxu0
    %7017 = vmatpush.bf16.msra.mxu0 %v3937
    %7018 = vmatpush.bf16.msra.mxu0 %v3934
    %7019 = vmatpush.bf16.msra.mxu0 %v3931
    %7020 = vmatpush.bf16.msra.mxu0 %v3928
    %7021 = vmatpush.bf16.msra.mxu0 %v3925
    %7022 = vmatpush.bf16.msra.mxu0 %v3922
    %7023 = vmatpush.bf16.msra.mxu0 %v3919
    %7024 = vmatpush.bf16.msra.mxu0 %v3916
    %7025 = vmatmul.bf16.gmra.mxu0 %v6376
    %v7026 = vpop.f32.mrf.mxu0
    %v7027 = vadd.f32 %v7014, %v7026
    %v7028 = vpop.f32.mrf.mxu0
    %7029 = vdwg.mxu0
    %7030 = vmatpush.bf16.msra.mxu0 %v3961
    %7031 = vmatpush.bf16.msra.mxu0 %v3958
    %7032 = vmatpush.bf16.msra.mxu0 %v3955
    %7033 = vmatpush.bf16.msra.mxu0 %v3952
    %7034 = vmatpush.bf16.msra.mxu0 %v3949
    %7035 = vmatpush.bf16.msra.mxu0 %v3946
    %7036 = vmatpush.bf16.msra.mxu0 %v3943
    %7037 = vmatpush.bf16.msra.mxu0 %v3940
    %7038 = vmatmul.bf16.gmra.mxu0 %v6377
    %v7039 = vpop.f32.mrf.mxu0
    %v7040 = vadd.f32 %v7027, %v7039
    %v7041 = vpop.f32.mrf.mxu0
    %7042 = vdwg.mxu0
    %7043 = vmatpush.bf16.msra.mxu0 %v3985
    %7044 = vmatpush.bf16.msra.mxu0 %v3982
    %7045 = vmatpush.bf16.msra.mxu0 %v3979
    %7046 = vmatpush.bf16.msra.mxu0 %v3976
    %7047 = vmatpush.bf16.msra.mxu0 %v3973
    %7048 = vmatpush.bf16.msra.mxu0 %v3970
    %7049 = vmatpush.bf16.msra.mxu0 %v3967
    %7050 = vmatpush.bf16.msra.mxu0 %v3964
    %7051 = vmatmul.bf16.gmra.mxu0 %v6378
    %v7052 = vpop.f32.mrf.mxu0
    %v7053 = vadd.f32 %v7040, %v7052
    %v7054 = vpop.f32.mrf.mxu0
    %7055 = vdwg.mxu0
    %7056 = vmatpush.bf16.msra.mxu0 %v4009
    %7057 = vmatpush.bf16.msra.mxu0 %v4006
    %7058 = vmatpush.bf16.msra.mxu0 %v4003
    %7059 = vmatpush.bf16.msra.mxu0 %v4000
    %7060 = vmatpush.bf16.msra.mxu0 %v3997
    %7061 = vmatpush.bf16.msra.mxu0 %v3994
    %7062 = vmatpush.bf16.msra.mxu0 %v3991
    %7063 = vmatpush.bf16.msra.mxu0 %v3988
    %7064 = vmatmul.bf16.gmra.mxu0 %v6381
    %v7065 = vpop.f32.mrf.mxu0
    %v7066 = vadd.f32 %v7053, %v7065
    %v7067 = vpop.f32.mrf.mxu0
    %7068 = vdwg.mxu0
    %7069 = vmatpush.bf16.msra.mxu0 %v4033
    %7070 = vmatpush.bf16.msra.mxu0 %v4030
    %7071 = vmatpush.bf16.msra.mxu0 %v4027
    %7072 = vmatpush.bf16.msra.mxu0 %v4024
    %7073 = vmatpush.bf16.msra.mxu0 %v4021
    %7074 = vmatpush.bf16.msra.mxu0 %v4018
    %7075 = vmatpush.bf16.msra.mxu0 %v4015
    %7076 = vmatpush.bf16.msra.mxu0 %v4012
    %7077 = vmatmul.bf16.gmra.mxu0 %v6382
    %v7078 = vpop.f32.mrf.mxu0
    %v7079 = vadd.f32 %v7066, %v7078
    %v7080 = vpop.f32.mrf.mxu0
    %7081 = vdwg.mxu0
    %7082 = vmatpush.bf16.msra.mxu0 %v4057
    %7083 = vmatpush.bf16.msra.mxu0 %v4054
    %7084 = vmatpush.bf16.msra.mxu0 %v4051
    %7085 = vmatpush.bf16.msra.mxu0 %v4048
    %7086 = vmatpush.bf16.msra.mxu0 %v4045
    %7087 = vmatpush.bf16.msra.mxu0 %v4042
    %7088 = vmatpush.bf16.msra.mxu0 %v4039
    %7089 = vmatpush.bf16.msra.mxu0 %v4036
    %7090 = vmatmul.bf16.gmra.mxu0 %v6383
    %v7091 = vpop.f32.mrf.mxu0
    %v7092 = vadd.f32 %v7079, %v7091
    %v7093 = vpop.f32.mrf.mxu0
    %7094 = vdwg.mxu0
    %7095 = vmatpush.bf16.msra.mxu0 %v4081
    %7096 = vmatpush.bf16.msra.mxu0 %v4078
    %7097 = vmatpush.bf16.msra.mxu0 %v4075
    %7098 = vmatpush.bf16.msra.mxu0 %v4072
    %7099 = vmatpush.bf16.msra.mxu0 %v4069
    %7100 = vmatpush.bf16.msra.mxu0 %v4066
    %7101 = vmatpush.bf16.msra.mxu0 %v4063
    %7102 = vmatpush.bf16.msra.mxu0 %v4060
    %7103 = vmatmul.bf16.gmra.mxu0 %v6384
    %v7104 = vpop.f32.mrf.mxu0
    %v7105 = vadd.f32 %v7092, %v7104
    %v7106 = vpop.f32.mrf.mxu0
    %7107 = vdwg.mxu0
    %7108 = vmatpush.bf16.msra.mxu0 %v4105
    %7109 = vmatpush.bf16.msra.mxu0 %v4102
    %7110 = vmatpush.bf16.msra.mxu0 %v4099
    %7111 = vmatpush.bf16.msra.mxu0 %v4096
    %7112 = vmatpush.bf16.msra.mxu0 %v4093
    %7113 = vmatpush.bf16.msra.mxu0 %v4090
    %7114 = vmatpush.bf16.msra.mxu0 %v4087
    %7115 = vmatpush.bf16.msra.mxu0 %v4084
    %7116 = vmatmul.bf16.gmra.mxu0 %v6385
    %v7117 = vpop.f32.mrf.mxu0
    %v7118 = vadd.f32 %v7105, %v7117
    %v7119 = vpop.f32.mrf.mxu0
    %7120 = vdwg.mxu0
    %7121 = vmatpush.bf16.msra.mxu0 %v4129
    %7122 = vmatpush.bf16.msra.mxu0 %v4126
    %7123 = vmatpush.bf16.msra.mxu0 %v4123
    %7124 = vmatpush.bf16.msra.mxu0 %v4120
    %7125 = vmatpush.bf16.msra.mxu0 %v4117
    %7126 = vmatpush.bf16.msra.mxu0 %v4114
    %7127 = vmatpush.bf16.msra.mxu0 %v4111
    %7128 = vmatpush.bf16.msra.mxu0 %v4108
    %7129 = vmatmul.bf16.gmra.mxu0 %v6386
    %v7130 = vpop.f32.mrf.mxu0
    %v7131 = vadd.f32 %v7118, %v7130
    %v7132 = vpop.f32.mrf.mxu0
    %7133 = vdwg.mxu0
    %7134 = vmatpush.bf16.msra.mxu0 %v4153
    %7135 = vmatpush.bf16.msra.mxu0 %v4150
    %7136 = vmatpush.bf16.msra.mxu0 %v4147
    %7137 = vmatpush.bf16.msra.mxu0 %v4144
    %7138 = vmatpush.bf16.msra.mxu0 %v4141
    %7139 = vmatpush.bf16.msra.mxu0 %v4138
    %7140 = vmatpush.bf16.msra.mxu0 %v4135
    %7141 = vmatpush.bf16.msra.mxu0 %v4132
    %7142 = vmatmul.bf16.gmra.mxu0 %v6387
    %v7143 = vpop.f32.mrf.mxu0
    %v7144 = vadd.f32 %v7131, %v7143
    %v7145 = vpop.f32.mrf.mxu0
    %7146 = vdwg.mxu0
    %7147 = vmatpush.bf16.msra.mxu0 %v4177
    %7148 = vmatpush.bf16.msra.mxu0 %v4174
    %7149 = vmatpush.bf16.msra.mxu0 %v4171
    %7150 = vmatpush.bf16.msra.mxu0 %v4168
    %7151 = vmatpush.bf16.msra.mxu0 %v4165
    %7152 = vmatpush.bf16.msra.mxu0 %v4162
    %7153 = vmatpush.bf16.msra.mxu0 %v4159
    %7154 = vmatpush.bf16.msra.mxu0 %v4156
    %7155 = vmatmul.bf16.gmra.mxu0 %v6388
    %v7156 = vpop.f32.mrf.mxu0
    %v7157 = vadd.f32 %v7144, %v7156
    %v7158 = vpop.f32.mrf.mxu0
    %7159 = vdwg.mxu0
    %7160 = vmatpush.bf16.msra.mxu0 %v4201
    %7161 = vmatpush.bf16.msra.mxu0 %v4198
    %7162 = vmatpush.bf16.msra.mxu0 %v4195
    %7163 = vmatpush.bf16.msra.mxu0 %v4192
    %7164 = vmatpush.bf16.msra.mxu0 %v4189
    %7165 = vmatpush.bf16.msra.mxu0 %v4186
    %7166 = vmatpush.bf16.msra.mxu0 %v4183
    %7167 = vmatpush.bf16.msra.mxu0 %v4180
    %7168 = vmatmul.bf16.gmra.mxu0 %v6391
    %v7169 = vpop.f32.mrf.mxu0
    %v7170 = vadd.f32 %v7157, %v7169
    %v7171 = vpop.f32.mrf.mxu0
    %7172 = vdwg.mxu0
    %7173 = vmatpush.bf16.msra.mxu0 %v4225
    %7174 = vmatpush.bf16.msra.mxu0 %v4222
    %7175 = vmatpush.bf16.msra.mxu0 %v4219
    %7176 = vmatpush.bf16.msra.mxu0 %v4216
    %7177 = vmatpush.bf16.msra.mxu0 %v4213
    %7178 = vmatpush.bf16.msra.mxu0 %v4210
    %7179 = vmatpush.bf16.msra.mxu0 %v4207
    %7180 = vmatpush.bf16.msra.mxu0 %v4204
    %7181 = vmatmul.bf16.gmra.mxu0 %v6392
    %v7182 = vpop.f32.mrf.mxu0
    %v7183 = vadd.f32 %v7170, %v7182
    %v7184 = vpop.f32.mrf.mxu0
    %7185 = vdwg.mxu0
    %7186 = vmatpush.bf16.msra.mxu0 %v4249
    %7187 = vmatpush.bf16.msra.mxu0 %v4246
    %7188 = vmatpush.bf16.msra.mxu0 %v4243
    %7189 = vmatpush.bf16.msra.mxu0 %v4240
    %7190 = vmatpush.bf16.msra.mxu0 %v4237
    %7191 = vmatpush.bf16.msra.mxu0 %v4234
    %7192 = vmatpush.bf16.msra.mxu0 %v4231
    %7193 = vmatpush.bf16.msra.mxu0 %v4228
    %7194 = vmatmul.bf16.gmra.mxu0 %v6393
    %v7195 = vpop.f32.mrf.mxu0
    %v7196 = vadd.f32 %v7183, %v7195
    %v7197 = vpop.f32.mrf.mxu0
    %7198 = vdwg.mxu0
    %7199 = vmatpush.bf16.msra.mxu0 %v4273
    %7200 = vmatpush.bf16.msra.mxu0 %v4270
    %7201 = vmatpush.bf16.msra.mxu0 %v4267
    %7202 = vmatpush.bf16.msra.mxu0 %v4264
    %7203 = vmatpush.bf16.msra.mxu0 %v4261
    %7204 = vmatpush.bf16.msra.mxu0 %v4258
    %7205 = vmatpush.bf16.msra.mxu0 %v4255
    %7206 = vmatpush.bf16.msra.mxu0 %v4252
    %7207 = vmatmul.bf16.gmra.mxu0 %v6394
    %v7208 = vpop.f32.mrf.mxu0
    %v7209 = vadd.f32 %v7196, %v7208
    %v7210 = vpop.f32.mrf.mxu0
    %7211 = vdwg.mxu0
    %7212 = vmatpush.bf16.msra.mxu0 %v4297
    %7213 = vmatpush.bf16.msra.mxu0 %v4294
    %7214 = vmatpush.bf16.msra.mxu0 %v4291
    %7215 = vmatpush.bf16.msra.mxu0 %v4288
    %7216 = vmatpush.bf16.msra.mxu0 %v4285
    %7217 = vmatpush.bf16.msra.mxu0 %v4282
    %7218 = vmatpush.bf16.msra.mxu0 %v4279
    %7219 = vmatpush.bf16.msra.mxu0 %v4276
    %7220 = vmatmul.bf16.gmra.mxu0 %v6395
    %v7221 = vpop.f32.mrf.mxu0
    %v7222 = vadd.f32 %v7209, %v7221
    %v7223 = vpop.f32.mrf.mxu0
    %7224 = vdwg.mxu0
    %7225 = vmatpush.bf16.msra.mxu0 %v4321
    %7226 = vmatpush.bf16.msra.mxu0 %v4318
    %7227 = vmatpush.bf16.msra.mxu0 %v4315
    %7228 = vmatpush.bf16.msra.mxu0 %v4312
    %7229 = vmatpush.bf16.msra.mxu0 %v4309
    %7230 = vmatpush.bf16.msra.mxu0 %v4306
    %7231 = vmatpush.bf16.msra.mxu0 %v4303
    %7232 = vmatpush.bf16.msra.mxu0 %v4300
    %7233 = vmatmul.bf16.gmra.mxu0 %v6396
    %v7234 = vpop.f32.mrf.mxu0
    %v7235 = vadd.f32 %v7222, %v7234
    %v7236 = vpop.f32.mrf.mxu0
    %7237 = vdwg.mxu0
    %7238 = vmatpush.bf16.msra.mxu0 %v4345
    %7239 = vmatpush.bf16.msra.mxu0 %v4342
    %7240 = vmatpush.bf16.msra.mxu0 %v4339
    %7241 = vmatpush.bf16.msra.mxu0 %v4336
    %7242 = vmatpush.bf16.msra.mxu0 %v4333
    %7243 = vmatpush.bf16.msra.mxu0 %v4330
    %7244 = vmatpush.bf16.msra.mxu0 %v4327
    %7245 = vmatpush.bf16.msra.mxu0 %v4324
    %7246 = vmatmul.bf16.gmra.mxu0 %v6397
    %v7247 = vpop.f32.mrf.mxu0
    %v7248 = vadd.f32 %v7235, %v7247
    %v7249 = vpop.f32.mrf.mxu0
    %7250 = vdwg.mxu0
    %7251 = vmatpush.bf16.msra.mxu0 0
    %7252 = vmatpush.bf16.msra.mxu0 0
    %7253 = vmatpush.bf16.msra.mxu0 0
    %7254 = vmatpush.bf16.msra.mxu0 0
    %7255 = vmatpush.bf16.msra.mxu0 0
    %7256 = vmatpush.bf16.msra.mxu0 0
    %7257 = vmatpush.bf16.msra.mxu0 %v4351
    %7258 = vmatpush.bf16.msra.mxu0 %v4348
    %7259 = vmatmul.bf16.gmra.mxu0 %v6430
    %v7260 = vpop.f32.mrf.mxu0
    %v7261 = vadd.f32 %v7248, %v7260
    %v7262 = vpop.f32.mrf.mxu0
    %7263 = vdwg.mxu0
    %7264 = vmatpush.bf16.msra.mxu0 %v3626
    %7265 = vmatpush.bf16.msra.mxu0 %v3623
    %7266 = vmatpush.bf16.msra.mxu0 %v3620
    %7267 = vmatpush.bf16.msra.mxu0 %v3617
    %7268 = vmatpush.bf16.msra.mxu0 %v3614
    %7269 = vmatpush.bf16.msra.mxu0 %v3611
    %7270 = vmatpush.bf16.msra.mxu0 %v3608
    %7271 = vmatpush.bf16.msra.mxu0 %v3605
    %7272 = vmatmul.bf16.gmra.mxu0 %v6361
    %v7273 = vpop.f32.mrf.mxu0
    %v7274 = vadd.f32 0.0, %v7273
    %v7275 = vpop.f32.mrf.mxu0
    %7276 = vdwg.mxu0
    %7277 = vmatpush.bf16.msra.mxu0 %v3650
    %7278 = vmatpush.bf16.msra.mxu0 %v3647
    %7279 = vmatpush.bf16.msra.mxu0 %v3644
    %7280 = vmatpush.bf16.msra.mxu0 %v3641
    %7281 = vmatpush.bf16.msra.mxu0 %v3638
    %7282 = vmatpush.bf16.msra.mxu0 %v3635
    %7283 = vmatpush.bf16.msra.mxu0 %v3632
    %7284 = vmatpush.bf16.msra.mxu0 %v3629
    %7285 = vmatmul.bf16.gmra.mxu0 %v6362
    %v7286 = vpop.f32.mrf.mxu0
    %v7287 = vadd.f32 %v7274, %v7286
    %v7288 = vpop.f32.mrf.mxu0
    %7289 = vdwg.mxu0
    %7290 = vmatpush.bf16.msra.mxu0 %v3674
    %7291 = vmatpush.bf16.msra.mxu0 %v3671
    %7292 = vmatpush.bf16.msra.mxu0 %v3668
    %7293 = vmatpush.bf16.msra.mxu0 %v3665
    %7294 = vmatpush.bf16.msra.mxu0 %v3662
    %7295 = vmatpush.bf16.msra.mxu0 %v3659
    %7296 = vmatpush.bf16.msra.mxu0 %v3656
    %7297 = vmatpush.bf16.msra.mxu0 %v3653
    %7298 = vmatmul.bf16.gmra.mxu0 %v6363
    %v7299 = vpop.f32.mrf.mxu0
    %v7300 = vadd.f32 %v7287, %v7299
    %v7301 = vpop.f32.mrf.mxu0
    %7302 = vdwg.mxu0
    %7303 = vmatpush.bf16.msra.mxu0 %v3698
    %7304 = vmatpush.bf16.msra.mxu0 %v3695
    %7305 = vmatpush.bf16.msra.mxu0 %v3692
    %7306 = vmatpush.bf16.msra.mxu0 %v3689
    %7307 = vmatpush.bf16.msra.mxu0 %v3686
    %7308 = vmatpush.bf16.msra.mxu0 %v3683
    %7309 = vmatpush.bf16.msra.mxu0 %v3680
    %7310 = vmatpush.bf16.msra.mxu0 %v3677
    %7311 = vmatmul.bf16.gmra.mxu0 %v6364
    %v7312 = vpop.f32.mrf.mxu0
    %v7313 = vadd.f32 %v7300, %v7312
    %v7314 = vpop.f32.mrf.mxu0
    %7315 = vdwg.mxu0
    %7316 = vmatpush.bf16.msra.mxu0 %v3722
    %7317 = vmatpush.bf16.msra.mxu0 %v3719
    %7318 = vmatpush.bf16.msra.mxu0 %v3716
    %7319 = vmatpush.bf16.msra.mxu0 %v3713
    %7320 = vmatpush.bf16.msra.mxu0 %v3710
    %7321 = vmatpush.bf16.msra.mxu0 %v3707
    %7322 = vmatpush.bf16.msra.mxu0 %v3704
    %7323 = vmatpush.bf16.msra.mxu0 %v3701
    %7324 = vmatmul.bf16.gmra.mxu0 %v6365
    %v7325 = vpop.f32.mrf.mxu0
    %v7326 = vadd.f32 %v7313, %v7325
    %v7327 = vpop.f32.mrf.mxu0
    %7328 = vdwg.mxu0
    %7329 = vmatpush.bf16.msra.mxu0 %v3746
    %7330 = vmatpush.bf16.msra.mxu0 %v3743
    %7331 = vmatpush.bf16.msra.mxu0 %v3740
    %7332 = vmatpush.bf16.msra.mxu0 %v3737
    %7333 = vmatpush.bf16.msra.mxu0 %v3734
    %7334 = vmatpush.bf16.msra.mxu0 %v3731
    %7335 = vmatpush.bf16.msra.mxu0 %v3728
    %7336 = vmatpush.bf16.msra.mxu0 %v3725
    %7337 = vmatmul.bf16.gmra.mxu0 %v6366
    %v7338 = vpop.f32.mrf.mxu0
    %v7339 = vadd.f32 %v7326, %v7338
    %v7340 = vpop.f32.mrf.mxu0
    %7341 = vdwg.mxu0
    %7342 = vmatpush.bf16.msra.mxu0 %v3770
    %7343 = vmatpush.bf16.msra.mxu0 %v3767
    %7344 = vmatpush.bf16.msra.mxu0 %v3764
    %7345 = vmatpush.bf16.msra.mxu0 %v3761
    %7346 = vmatpush.bf16.msra.mxu0 %v3758
    %7347 = vmatpush.bf16.msra.mxu0 %v3755
    %7348 = vmatpush.bf16.msra.mxu0 %v3752
    %7349 = vmatpush.bf16.msra.mxu0 %v3749
    %7350 = vmatmul.bf16.gmra.mxu0 %v6367
    %v7351 = vpop.f32.mrf.mxu0
    %v7352 = vadd.f32 %v7339, %v7351
    %v7353 = vpop.f32.mrf.mxu0
    %7354 = vdwg.mxu0
    %7355 = vmatpush.bf16.msra.mxu0 %v3794
    %7356 = vmatpush.bf16.msra.mxu0 %v3791
    %7357 = vmatpush.bf16.msra.mxu0 %v3788
    %7358 = vmatpush.bf16.msra.mxu0 %v3785
    %7359 = vmatpush.bf16.msra.mxu0 %v3782
    %7360 = vmatpush.bf16.msra.mxu0 %v3779
    %7361 = vmatpush.bf16.msra.mxu0 %v3776
    %7362 = vmatpush.bf16.msra.mxu0 %v3773
    %7363 = vmatmul.bf16.gmra.mxu0 %v6368
    %v7364 = vpop.f32.mrf.mxu0
    %v7365 = vadd.f32 %v7352, %v7364
    %v7366 = vpop.f32.mrf.mxu0
    %7367 = vdwg.mxu0
    %7368 = vmatpush.bf16.msra.mxu0 %v3818
    %7369 = vmatpush.bf16.msra.mxu0 %v3815
    %7370 = vmatpush.bf16.msra.mxu0 %v3812
    %7371 = vmatpush.bf16.msra.mxu0 %v3809
    %7372 = vmatpush.bf16.msra.mxu0 %v3806
    %7373 = vmatpush.bf16.msra.mxu0 %v3803
    %7374 = vmatpush.bf16.msra.mxu0 %v3800
    %7375 = vmatpush.bf16.msra.mxu0 %v3797
    %7376 = vmatmul.bf16.gmra.mxu0 %v6371
    %v7377 = vpop.f32.mrf.mxu0
    %v7378 = vadd.f32 %v7365, %v7377
    %v7379 = vpop.f32.mrf.mxu0
    %7380 = vdwg.mxu0
    %7381 = vmatpush.bf16.msra.mxu0 %v3842
    %7382 = vmatpush.bf16.msra.mxu0 %v3839
    %7383 = vmatpush.bf16.msra.mxu0 %v3836
    %7384 = vmatpush.bf16.msra.mxu0 %v3833
    %7385 = vmatpush.bf16.msra.mxu0 %v3830
    %7386 = vmatpush.bf16.msra.mxu0 %v3827
    %7387 = vmatpush.bf16.msra.mxu0 %v3824
    %7388 = vmatpush.bf16.msra.mxu0 %v3821
    %7389 = vmatmul.bf16.gmra.mxu0 %v6372
    %v7390 = vpop.f32.mrf.mxu0
    %v7391 = vadd.f32 %v7378, %v7390
    %v7392 = vpop.f32.mrf.mxu0
    %7393 = vdwg.mxu0
    %7394 = vmatpush.bf16.msra.mxu0 %v3866
    %7395 = vmatpush.bf16.msra.mxu0 %v3863
    %7396 = vmatpush.bf16.msra.mxu0 %v3860
    %7397 = vmatpush.bf16.msra.mxu0 %v3857
    %7398 = vmatpush.bf16.msra.mxu0 %v3854
    %7399 = vmatpush.bf16.msra.mxu0 %v3851
    %7400 = vmatpush.bf16.msra.mxu0 %v3848
    %7401 = vmatpush.bf16.msra.mxu0 %v3845
    %7402 = vmatmul.bf16.gmra.mxu0 %v6373
    %v7403 = vpop.f32.mrf.mxu0
    %v7404 = vadd.f32 %v7391, %v7403
    %v7405 = vpop.f32.mrf.mxu0
    %7406 = vdwg.mxu0
    %7407 = vmatpush.bf16.msra.mxu0 %v3890
    %7408 = vmatpush.bf16.msra.mxu0 %v3887
    %7409 = vmatpush.bf16.msra.mxu0 %v3884
    %7410 = vmatpush.bf16.msra.mxu0 %v3881
    %7411 = vmatpush.bf16.msra.mxu0 %v3878
    %7412 = vmatpush.bf16.msra.mxu0 %v3875
    %7413 = vmatpush.bf16.msra.mxu0 %v3872
    %7414 = vmatpush.bf16.msra.mxu0 %v3869
    %7415 = vmatmul.bf16.gmra.mxu0 %v6374
    %v7416 = vpop.f32.mrf.mxu0
    %v7417 = vadd.f32 %v7404, %v7416
    %v7418 = vpop.f32.mrf.mxu0
    %7419 = vdwg.mxu0
    %7420 = vmatpush.bf16.msra.mxu0 %v3914
    %7421 = vmatpush.bf16.msra.mxu0 %v3911
    %7422 = vmatpush.bf16.msra.mxu0 %v3908
    %7423 = vmatpush.bf16.msra.mxu0 %v3905
    %7424 = vmatpush.bf16.msra.mxu0 %v3902
    %7425 = vmatpush.bf16.msra.mxu0 %v3899
    %7426 = vmatpush.bf16.msra.mxu0 %v3896
    %7427 = vmatpush.bf16.msra.mxu0 %v3893
    %7428 = vmatmul.bf16.gmra.mxu0 %v6375
    %v7429 = vpop.f32.mrf.mxu0
    %v7430 = vadd.f32 %v7417, %v7429
    %v7431 = vpop.f32.mrf.mxu0
    %7432 = vdwg.mxu0
    %7433 = vmatpush.bf16.msra.mxu0 %v3938
    %7434 = vmatpush.bf16.msra.mxu0 %v3935
    %7435 = vmatpush.bf16.msra.mxu0 %v3932
    %7436 = vmatpush.bf16.msra.mxu0 %v3929
    %7437 = vmatpush.bf16.msra.mxu0 %v3926
    %7438 = vmatpush.bf16.msra.mxu0 %v3923
    %7439 = vmatpush.bf16.msra.mxu0 %v3920
    %7440 = vmatpush.bf16.msra.mxu0 %v3917
    %7441 = vmatmul.bf16.gmra.mxu0 %v6376
    %v7442 = vpop.f32.mrf.mxu0
    %v7443 = vadd.f32 %v7430, %v7442
    %v7444 = vpop.f32.mrf.mxu0
    %7445 = vdwg.mxu0
    %7446 = vmatpush.bf16.msra.mxu0 %v3962
    %7447 = vmatpush.bf16.msra.mxu0 %v3959
    %7448 = vmatpush.bf16.msra.mxu0 %v3956
    %7449 = vmatpush.bf16.msra.mxu0 %v3953
    %7450 = vmatpush.bf16.msra.mxu0 %v3950
    %7451 = vmatpush.bf16.msra.mxu0 %v3947
    %7452 = vmatpush.bf16.msra.mxu0 %v3944
    %7453 = vmatpush.bf16.msra.mxu0 %v3941
    %7454 = vmatmul.bf16.gmra.mxu0 %v6377
    %v7455 = vpop.f32.mrf.mxu0
    %v7456 = vadd.f32 %v7443, %v7455
    %v7457 = vpop.f32.mrf.mxu0
    %7458 = vdwg.mxu0
    %7459 = vmatpush.bf16.msra.mxu0 %v3986
    %7460 = vmatpush.bf16.msra.mxu0 %v3983
    %7461 = vmatpush.bf16.msra.mxu0 %v3980
    %7462 = vmatpush.bf16.msra.mxu0 %v3977
    %7463 = vmatpush.bf16.msra.mxu0 %v3974
    %7464 = vmatpush.bf16.msra.mxu0 %v3971
    %7465 = vmatpush.bf16.msra.mxu0 %v3968
    %7466 = vmatpush.bf16.msra.mxu0 %v3965
    %7467 = vmatmul.bf16.gmra.mxu0 %v6378
    %v7468 = vpop.f32.mrf.mxu0
    %v7469 = vadd.f32 %v7456, %v7468
    %v7470 = vpop.f32.mrf.mxu0
    %7471 = vdwg.mxu0
    %7472 = vmatpush.bf16.msra.mxu0 %v4010
    %7473 = vmatpush.bf16.msra.mxu0 %v4007
    %7474 = vmatpush.bf16.msra.mxu0 %v4004
    %7475 = vmatpush.bf16.msra.mxu0 %v4001
    %7476 = vmatpush.bf16.msra.mxu0 %v3998
    %7477 = vmatpush.bf16.msra.mxu0 %v3995
    %7478 = vmatpush.bf16.msra.mxu0 %v3992
    %7479 = vmatpush.bf16.msra.mxu0 %v3989
    %7480 = vmatmul.bf16.gmra.mxu0 %v6381
    %v7481 = vpop.f32.mrf.mxu0
    %v7482 = vadd.f32 %v7469, %v7481
    %v7483 = vpop.f32.mrf.mxu0
    %7484 = vdwg.mxu0
    %7485 = vmatpush.bf16.msra.mxu0 %v4034
    %7486 = vmatpush.bf16.msra.mxu0 %v4031
    %7487 = vmatpush.bf16.msra.mxu0 %v4028
    %7488 = vmatpush.bf16.msra.mxu0 %v4025
    %7489 = vmatpush.bf16.msra.mxu0 %v4022
    %7490 = vmatpush.bf16.msra.mxu0 %v4019
    %7491 = vmatpush.bf16.msra.mxu0 %v4016
    %7492 = vmatpush.bf16.msra.mxu0 %v4013
    %7493 = vmatmul.bf16.gmra.mxu0 %v6382
    %v7494 = vpop.f32.mrf.mxu0
    %v7495 = vadd.f32 %v7482, %v7494
    %v7496 = vpop.f32.mrf.mxu0
    %7497 = vdwg.mxu0
    %7498 = vmatpush.bf16.msra.mxu0 %v4058
    %7499 = vmatpush.bf16.msra.mxu0 %v4055
    %7500 = vmatpush.bf16.msra.mxu0 %v4052
    %7501 = vmatpush.bf16.msra.mxu0 %v4049
    %7502 = vmatpush.bf16.msra.mxu0 %v4046
    %7503 = vmatpush.bf16.msra.mxu0 %v4043
    %7504 = vmatpush.bf16.msra.mxu0 %v4040
    %7505 = vmatpush.bf16.msra.mxu0 %v4037
    %7506 = vmatmul.bf16.gmra.mxu0 %v6383
    %v7507 = vpop.f32.mrf.mxu0
    %v7508 = vadd.f32 %v7495, %v7507
    %v7509 = vpop.f32.mrf.mxu0
    %7510 = vdwg.mxu0
    %7511 = vmatpush.bf16.msra.mxu0 %v4082
    %7512 = vmatpush.bf16.msra.mxu0 %v4079
    %7513 = vmatpush.bf16.msra.mxu0 %v4076
    %7514 = vmatpush.bf16.msra.mxu0 %v4073
    %7515 = vmatpush.bf16.msra.mxu0 %v4070
    %7516 = vmatpush.bf16.msra.mxu0 %v4067
    %7517 = vmatpush.bf16.msra.mxu0 %v4064
    %7518 = vmatpush.bf16.msra.mxu0 %v4061
    %7519 = vmatmul.bf16.gmra.mxu0 %v6384
    %v7520 = vpop.f32.mrf.mxu0
    %v7521 = vadd.f32 %v7508, %v7520
    %v7522 = vpop.f32.mrf.mxu0
    %7523 = vdwg.mxu0
    %7524 = vmatpush.bf16.msra.mxu0 %v4106
    %7525 = vmatpush.bf16.msra.mxu0 %v4103
    %7526 = vmatpush.bf16.msra.mxu0 %v4100
    %7527 = vmatpush.bf16.msra.mxu0 %v4097
    %7528 = vmatpush.bf16.msra.mxu0 %v4094
    %7529 = vmatpush.bf16.msra.mxu0 %v4091
    %7530 = vmatpush.bf16.msra.mxu0 %v4088
    %7531 = vmatpush.bf16.msra.mxu0 %v4085
    %7532 = vmatmul.bf16.gmra.mxu0 %v6385
    %v7533 = vpop.f32.mrf.mxu0
    %v7534 = vadd.f32 %v7521, %v7533
    %v7535 = vpop.f32.mrf.mxu0
    %7536 = vdwg.mxu0
    %7537 = vmatpush.bf16.msra.mxu0 %v4130
    %7538 = vmatpush.bf16.msra.mxu0 %v4127
    %7539 = vmatpush.bf16.msra.mxu0 %v4124
    %7540 = vmatpush.bf16.msra.mxu0 %v4121
    %7541 = vmatpush.bf16.msra.mxu0 %v4118
    %7542 = vmatpush.bf16.msra.mxu0 %v4115
    %7543 = vmatpush.bf16.msra.mxu0 %v4112
    %7544 = vmatpush.bf16.msra.mxu0 %v4109
    %7545 = vmatmul.bf16.gmra.mxu0 %v6386
    %v7546 = vpop.f32.mrf.mxu0
    %v7547 = vadd.f32 %v7534, %v7546
    %v7548 = vpop.f32.mrf.mxu0
    %7549 = vdwg.mxu0
    %7550 = vmatpush.bf16.msra.mxu0 %v4154
    %7551 = vmatpush.bf16.msra.mxu0 %v4151
    %7552 = vmatpush.bf16.msra.mxu0 %v4148
    %7553 = vmatpush.bf16.msra.mxu0 %v4145
    %7554 = vmatpush.bf16.msra.mxu0 %v4142
    %7555 = vmatpush.bf16.msra.mxu0 %v4139
    %7556 = vmatpush.bf16.msra.mxu0 %v4136
    %7557 = vmatpush.bf16.msra.mxu0 %v4133
    %7558 = vmatmul.bf16.gmra.mxu0 %v6387
    %v7559 = vpop.f32.mrf.mxu0
    %v7560 = vadd.f32 %v7547, %v7559
    %v7561 = vpop.f32.mrf.mxu0
    %7562 = vdwg.mxu0
    %7563 = vmatpush.bf16.msra.mxu0 %v4178
    %7564 = vmatpush.bf16.msra.mxu0 %v4175
    %7565 = vmatpush.bf16.msra.mxu0 %v4172
    %7566 = vmatpush.bf16.msra.mxu0 %v4169
    %7567 = vmatpush.bf16.msra.mxu0 %v4166
    %7568 = vmatpush.bf16.msra.mxu0 %v4163
    %7569 = vmatpush.bf16.msra.mxu0 %v4160
    %7570 = vmatpush.bf16.msra.mxu0 %v4157
    %7571 = vmatmul.bf16.gmra.mxu0 %v6388
    %v7572 = vpop.f32.mrf.mxu0
    %v7573 = vadd.f32 %v7560, %v7572
    %v7574 = vpop.f32.mrf.mxu0
    %7575 = vdwg.mxu0
    %7576 = vmatpush.bf16.msra.mxu0 %v4202
    %7577 = vmatpush.bf16.msra.mxu0 %v4199
    %7578 = vmatpush.bf16.msra.mxu0 %v4196
    %7579 = vmatpush.bf16.msra.mxu0 %v4193
    %7580 = vmatpush.bf16.msra.mxu0 %v4190
    %7581 = vmatpush.bf16.msra.mxu0 %v4187
    %7582 = vmatpush.bf16.msra.mxu0 %v4184
    %7583 = vmatpush.bf16.msra.mxu0 %v4181
    %7584 = vmatmul.bf16.gmra.mxu0 %v6391
    %v7585 = vpop.f32.mrf.mxu0
    %v7586 = vadd.f32 %v7573, %v7585
    %v7587 = vpop.f32.mrf.mxu0
    %7588 = vdwg.mxu0
    %7589 = vmatpush.bf16.msra.mxu0 %v4226
    %7590 = vmatpush.bf16.msra.mxu0 %v4223
    %7591 = vmatpush.bf16.msra.mxu0 %v4220
    %7592 = vmatpush.bf16.msra.mxu0 %v4217
    %7593 = vmatpush.bf16.msra.mxu0 %v4214
    %7594 = vmatpush.bf16.msra.mxu0 %v4211
    %7595 = vmatpush.bf16.msra.mxu0 %v4208
    %7596 = vmatpush.bf16.msra.mxu0 %v4205
    %7597 = vmatmul.bf16.gmra.mxu0 %v6392
    %v7598 = vpop.f32.mrf.mxu0
    %v7599 = vadd.f32 %v7586, %v7598
    %v7600 = vpop.f32.mrf.mxu0
    %7601 = vdwg.mxu0
    %7602 = vmatpush.bf16.msra.mxu0 %v4250
    %7603 = vmatpush.bf16.msra.mxu0 %v4247
    %7604 = vmatpush.bf16.msra.mxu0 %v4244
    %7605 = vmatpush.bf16.msra.mxu0 %v4241
    %7606 = vmatpush.bf16.msra.mxu0 %v4238
    %7607 = vmatpush.bf16.msra.mxu0 %v4235
    %7608 = vmatpush.bf16.msra.mxu0 %v4232
    %7609 = vmatpush.bf16.msra.mxu0 %v4229
    %7610 = vmatmul.bf16.gmra.mxu0 %v6393
    %v7611 = vpop.f32.mrf.mxu0
    %v7612 = vadd.f32 %v7599, %v7611
    %v7613 = vpop.f32.mrf.mxu0
    %7614 = vdwg.mxu0
    %7615 = vmatpush.bf16.msra.mxu0 %v4274
    %7616 = vmatpush.bf16.msra.mxu0 %v4271
    %7617 = vmatpush.bf16.msra.mxu0 %v4268
    %7618 = vmatpush.bf16.msra.mxu0 %v4265
    %7619 = vmatpush.bf16.msra.mxu0 %v4262
    %7620 = vmatpush.bf16.msra.mxu0 %v4259
    %7621 = vmatpush.bf16.msra.mxu0 %v4256
    %7622 = vmatpush.bf16.msra.mxu0 %v4253
    %7623 = vmatmul.bf16.gmra.mxu0 %v6394
    %v7624 = vpop.f32.mrf.mxu0
    %v7625 = vadd.f32 %v7612, %v7624
    %v7626 = vpop.f32.mrf.mxu0
    %7627 = vdwg.mxu0
    %7628 = vmatpush.bf16.msra.mxu0 %v4298
    %7629 = vmatpush.bf16.msra.mxu0 %v4295
    %7630 = vmatpush.bf16.msra.mxu0 %v4292
    %7631 = vmatpush.bf16.msra.mxu0 %v4289
    %7632 = vmatpush.bf16.msra.mxu0 %v4286
    %7633 = vmatpush.bf16.msra.mxu0 %v4283
    %7634 = vmatpush.bf16.msra.mxu0 %v4280
    %7635 = vmatpush.bf16.msra.mxu0 %v4277
    %7636 = vmatmul.bf16.gmra.mxu0 %v6395
    %v7637 = vpop.f32.mrf.mxu0
    %v7638 = vadd.f32 %v7625, %v7637
    %v7639 = vpop.f32.mrf.mxu0
    %7640 = vdwg.mxu0
    %7641 = vmatpush.bf16.msra.mxu0 %v4322
    %7642 = vmatpush.bf16.msra.mxu0 %v4319
    %7643 = vmatpush.bf16.msra.mxu0 %v4316
    %7644 = vmatpush.bf16.msra.mxu0 %v4313
    %7645 = vmatpush.bf16.msra.mxu0 %v4310
    %7646 = vmatpush.bf16.msra.mxu0 %v4307
    %7647 = vmatpush.bf16.msra.mxu0 %v4304
    %7648 = vmatpush.bf16.msra.mxu0 %v4301
    %7649 = vmatmul.bf16.gmra.mxu0 %v6396
    %v7650 = vpop.f32.mrf.mxu0
    %v7651 = vadd.f32 %v7638, %v7650
    %v7652 = vpop.f32.mrf.mxu0
    %7653 = vdwg.mxu0
    %7654 = vmatpush.bf16.msra.mxu0 %v4346
    %7655 = vmatpush.bf16.msra.mxu0 %v4343
    %7656 = vmatpush.bf16.msra.mxu0 %v4340
    %7657 = vmatpush.bf16.msra.mxu0 %v4337
    %7658 = vmatpush.bf16.msra.mxu0 %v4334
    %7659 = vmatpush.bf16.msra.mxu0 %v4331
    %7660 = vmatpush.bf16.msra.mxu0 %v4328
    %7661 = vmatpush.bf16.msra.mxu0 %v4325
    %7662 = vmatmul.bf16.gmra.mxu0 %v6397
    %v7663 = vpop.f32.mrf.mxu0
    %v7664 = vadd.f32 %v7651, %v7663
    %v7665 = vpop.f32.mrf.mxu0
    %7666 = vdwg.mxu0
    %7667 = vmatpush.bf16.msra.mxu0 0
    %7668 = vmatpush.bf16.msra.mxu0 0
    %7669 = vmatpush.bf16.msra.mxu0 0
    %7670 = vmatpush.bf16.msra.mxu0 0
    %7671 = vmatpush.bf16.msra.mxu0 0
    %7672 = vmatpush.bf16.msra.mxu0 0
    %7673 = vmatpush.bf16.msra.mxu0 %v4352
    %7674 = vmatpush.bf16.msra.mxu0 %v4349
    %7675 = vmatmul.bf16.gmra.mxu0 %v6430
    %v7676 = vpop.f32.mrf.mxu0
    %v7677 = vadd.f32 %v7664, %v7676
    %v7678 = vpop.f32.mrf.mxu0
    %7679 = vdwg.mxu0
    %v7680 = vmax.f32 %v5519, %v6845
    %v7681 = vmax.f32 %v5935, %v7261
    %v7682 = vmax.f32 %v6351, %v7677
    %s7683 = scalar_lea.vmem %s0, 64
    %v7684 = vld [vmem:[%s7683] sm:$0xff]
    %v7685 = vld [vmem:[%s7683 + $0x8] sm:$0xff]
    %v7686 = vld [vmem:[%s7683 + $0x10] sm:$0xff]
    %v7687 = vld [vmem:[%s7683 + $0x18] sm:$0xff]
    %7689 = vst [vmem:[#allocation1] ss:$9 sm:$0xff] %v7684
    %v7690 = vld [vmem:[#allocation1] sm:$0xff]
    %v7691 = vld [vmem:[#allocation1 + $0x9] sm:$0xff]
    %v7692 = vld [vmem:[#allocation1 + $0x12] sm:$0xff]
    %v7693 = vld [vmem:[#allocation1 + $0x1b] sm:$0xff]
    %v7694 = vld [vmem:[#allocation1 + $0x24] sm:$0xff]
    %v7695 = vld [vmem:[#allocation1 + $0x2d] sm:$0xff]
    %v7696 = vld [vmem:[#allocation1 + $0x36] sm:$0xff]
    %v7697 = vld [vmem:[#allocation1 + $0x3f] sm:$0xff]
    %7699 = vst [vmem:[#allocation1] ss:$9 sm:$0xff] %v7685
    %v7700 = vld [vmem:[#allocation1] sm:$0xff]
    %v7701 = vld [vmem:[#allocation1 + $0x9] sm:$0xff]
    %v7702 = vld [vmem:[#allocation1 + $0x12] sm:$0xff]
    %v7703 = vld [vmem:[#allocation1 + $0x1b] sm:$0xff]
    %v7704 = vld [vmem:[#allocation1 + $0x24] sm:$0xff]
    %v7705 = vld [vmem:[#allocation1 + $0x2d] sm:$0xff]
    %v7706 = vld [vmem:[#allocation1 + $0x36] sm:$0xff]
    %v7707 = vld [vmem:[#allocation1 + $0x3f] sm:$0xff]
    %7709 = vst [vmem:[#allocation1] ss:$9 sm:$0xff] %v7686
    %v7710 = vld [vmem:[#allocation1] sm:$0xff]
    %v7711 = vld [vmem:[#allocation1 + $0x9] sm:$0xff]
    %v7712 = vld [vmem:[#allocation1 + $0x12] sm:$0xff]
    %v7713 = vld [vmem:[#allocation1 + $0x1b] sm:$0xff]
    %v7714 = vld [vmem:[#allocation1 + $0x24] sm:$0xff]
    %v7715 = vld [vmem:[#allocation1 + $0x2d] sm:$0xff]
    %v7716 = vld [vmem:[#allocation1 + $0x36] sm:$0xff]
    %v7717 = vld [vmem:[#allocation1 + $0x3f] sm:$0xff]
    %7719 = vst [vmem:[#allocation1] ss:$9 sm:$0xff] %v7687
    %v7720 = vld [vmem:[#allocation1] sm:$0xff]
    %v7721 = vld [vmem:[#allocation1 + $0x9] sm:$0xff]
    %v7722 = vld [vmem:[#allocation1 + $0x12] sm:$0xff]
    %v7723 = vld [vmem:[#allocation1 + $0x1b] sm:$0xff]
    %v7724 = vld [vmem:[#allocation1 + $0x24] sm:$0xff]
    %v7725 = vld [vmem:[#allocation1 + $0x2d] sm:$0xff]
    %v7726 = vld [vmem:[#allocation1 + $0x36] sm:$0xff]
    %v7727 = vld [vmem:[#allocation1 + $0x3f] sm:$0xff]
    %v7759 = vsel %vm5103, %v7727, 0
    %7761 = vmatpush.bf16.msra.mxu0 %v3624
    %7762 = vmatpush.bf16.msra.mxu0 %v3621
    %7763 = vmatpush.bf16.msra.mxu0 %v3618
    %7764 = vmatpush.bf16.msra.mxu0 %v3615
    %7765 = vmatpush.bf16.msra.mxu0 %v3612
    %7766 = vmatpush.bf16.msra.mxu0 %v3609
    %7767 = vmatpush.bf16.msra.mxu0 %v3606
    %7768 = vmatpush.bf16.msra.mxu0 %v3603
    %7769 = vmatmul.bf16.gmra.mxu0 %v7690
    %v7770 = vpop.f32.mrf.mxu0
    %v7771 = vadd.f32 0.0, %v7770
    %v7772 = vpop.f32.mrf.mxu0
    %7773 = vdwg.mxu0
    %7774 = vmatpush.bf16.msra.mxu0 %v3648
    %7775 = vmatpush.bf16.msra.mxu0 %v3645
    %7776 = vmatpush.bf16.msra.mxu0 %v3642
    %7777 = vmatpush.bf16.msra.mxu0 %v3639
    %7778 = vmatpush.bf16.msra.mxu0 %v3636
    %7779 = vmatpush.bf16.msra.mxu0 %v3633
    %7780 = vmatpush.bf16.msra.mxu0 %v3630
    %7781 = vmatpush.bf16.msra.mxu0 %v3627
    %7782 = vmatmul.bf16.gmra.mxu0 %v7691
    %v7783 = vpop.f32.mrf.mxu0
    %v7784 = vadd.f32 %v7771, %v7783
    %v7785 = vpop.f32.mrf.mxu0
    %7786 = vdwg.mxu0
    %7787 = vmatpush.bf16.msra.mxu0 %v3672
    %7788 = vmatpush.bf16.msra.mxu0 %v3669
    %7789 = vmatpush.bf16.msra.mxu0 %v3666
    %7790 = vmatpush.bf16.msra.mxu0 %v3663
    %7791 = vmatpush.bf16.msra.mxu0 %v3660
    %7792 = vmatpush.bf16.msra.mxu0 %v3657
    %7793 = vmatpush.bf16.msra.mxu0 %v3654
    %7794 = vmatpush.bf16.msra.mxu0 %v3651
    %7795 = vmatmul.bf16.gmra.mxu0 %v7692
    %v7796 = vpop.f32.mrf.mxu0
    %v7797 = vadd.f32 %v7784, %v7796
    %v7798 = vpop.f32.mrf.mxu0
    %7799 = vdwg.mxu0
    %7800 = vmatpush.bf16.msra.mxu0 %v3696
    %7801 = vmatpush.bf16.msra.mxu0 %v3693
    %7802 = vmatpush.bf16.msra.mxu0 %v3690
    %7803 = vmatpush.bf16.msra.mxu0 %v3687
    %7804 = vmatpush.bf16.msra.mxu0 %v3684
    %7805 = vmatpush.bf16.msra.mxu0 %v3681
    %7806 = vmatpush.bf16.msra.mxu0 %v3678
    %7807 = vmatpush.bf16.msra.mxu0 %v3675
    %7808 = vmatmul.bf16.gmra.mxu0 %v7693
    %v7809 = vpop.f32.mrf.mxu0
    %v7810 = vadd.f32 %v7797, %v7809
    %v7811 = vpop.f32.mrf.mxu0
    %7812 = vdwg.mxu0
    %7813 = vmatpush.bf16.msra.mxu0 %v3720
    %7814 = vmatpush.bf16.msra.mxu0 %v3717
    %7815 = vmatpush.bf16.msra.mxu0 %v3714
    %7816 = vmatpush.bf16.msra.mxu0 %v3711
    %7817 = vmatpush.bf16.msra.mxu0 %v3708
    %7818 = vmatpush.bf16.msra.mxu0 %v3705
    %7819 = vmatpush.bf16.msra.mxu0 %v3702
    %7820 = vmatpush.bf16.msra.mxu0 %v3699
    %7821 = vmatmul.bf16.gmra.mxu0 %v7694
    %v7822 = vpop.f32.mrf.mxu0
    %v7823 = vadd.f32 %v7810, %v7822
    %v7824 = vpop.f32.mrf.mxu0
    %7825 = vdwg.mxu0
    %7826 = vmatpush.bf16.msra.mxu0 %v3744
    %7827 = vmatpush.bf16.msra.mxu0 %v3741
    %7828 = vmatpush.bf16.msra.mxu0 %v3738
    %7829 = vmatpush.bf16.msra.mxu0 %v3735
    %7830 = vmatpush.bf16.msra.mxu0 %v3732
    %7831 = vmatpush.bf16.msra.mxu0 %v3729
    %7832 = vmatpush.bf16.msra.mxu0 %v3726
    %7833 = vmatpush.bf16.msra.mxu0 %v3723
    %7834 = vmatmul.bf16.gmra.mxu0 %v7695
    %v7835 = vpop.f32.mrf.mxu0
    %v7836 = vadd.f32 %v7823, %v7835
    %v7837 = vpop.f32.mrf.mxu0
    %7838 = vdwg.mxu0
    %7839 = vmatpush.bf16.msra.mxu0 %v3768
    %7840 = vmatpush.bf16.msra.mxu0 %v3765
    %7841 = vmatpush.bf16.msra.mxu0 %v3762
    %7842 = vmatpush.bf16.msra.mxu0 %v3759
    %7843 = vmatpush.bf16.msra.mxu0 %v3756
    %7844 = vmatpush.bf16.msra.mxu0 %v3753
    %7845 = vmatpush.bf16.msra.mxu0 %v3750
    %7846 = vmatpush.bf16.msra.mxu0 %v3747
    %7847 = vmatmul.bf16.gmra.mxu0 %v7696
    %v7848 = vpop.f32.mrf.mxu0
    %v7849 = vadd.f32 %v7836, %v7848
    %v7850 = vpop.f32.mrf.mxu0
    %7851 = vdwg.mxu0
    %7852 = vmatpush.bf16.msra.mxu0 %v3792
    %7853 = vmatpush.bf16.msra.mxu0 %v3789
    %7854 = vmatpush.bf16.msra.mxu0 %v3786
    %7855 = vmatpush.bf16.msra.mxu0 %v3783
    %7856 = vmatpush.bf16.msra.mxu0 %v3780
    %7857 = vmatpush.bf16.msra.mxu0 %v3777
    %7858 = vmatpush.bf16.msra.mxu0 %v3774
    %7859 = vmatpush.bf16.msra.mxu0 %v3771
    %7860 = vmatmul.bf16.gmra.mxu0 %v7697
    %v7861 = vpop.f32.mrf.mxu0
    %v7862 = vadd.f32 %v7849, %v7861
    %v7863 = vpop.f32.mrf.mxu0
    %7864 = vdwg.mxu0
    %7865 = vmatpush.bf16.msra.mxu0 %v3816
    %7866 = vmatpush.bf16.msra.mxu0 %v3813
    %7867 = vmatpush.bf16.msra.mxu0 %v3810
    %7868 = vmatpush.bf16.msra.mxu0 %v3807
    %7869 = vmatpush.bf16.msra.mxu0 %v3804
    %7870 = vmatpush.bf16.msra.mxu0 %v3801
    %7871 = vmatpush.bf16.msra.mxu0 %v3798
    %7872 = vmatpush.bf16.msra.mxu0 %v3795
    %7873 = vmatmul.bf16.gmra.mxu0 %v7700
    %v7874 = vpop.f32.mrf.mxu0
    %v7875 = vadd.f32 %v7862, %v7874
    %v7876 = vpop.f32.mrf.mxu0
    %7877 = vdwg.mxu0
    %7878 = vmatpush.bf16.msra.mxu0 %v3840
    %7879 = vmatpush.bf16.msra.mxu0 %v3837
    %7880 = vmatpush.bf16.msra.mxu0 %v3834
    %7881 = vmatpush.bf16.msra.mxu0 %v3831
    %7882 = vmatpush.bf16.msra.mxu0 %v3828
    %7883 = vmatpush.bf16.msra.mxu0 %v3825
    %7884 = vmatpush.bf16.msra.mxu0 %v3822
    %7885 = vmatpush.bf16.msra.mxu0 %v3819
    %7886 = vmatmul.bf16.gmra.mxu0 %v7701
    %v7887 = vpop.f32.mrf.mxu0
    %v7888 = vadd.f32 %v7875, %v7887
    %v7889 = vpop.f32.mrf.mxu0
    %7890 = vdwg.mxu0
    %7891 = vmatpush.bf16.msra.mxu0 %v3864
    %7892 = vmatpush.bf16.msra.mxu0 %v3861
    %7893 = vmatpush.bf16.msra.mxu0 %v3858
    %7894 = vmatpush.bf16.msra.mxu0 %v3855
    %7895 = vmatpush.bf16.msra.mxu0 %v3852
    %7896 = vmatpush.bf16.msra.mxu0 %v3849
    %7897 = vmatpush.bf16.msra.mxu0 %v3846
    %7898 = vmatpush.bf16.msra.mxu0 %v3843
    %7899 = vmatmul.bf16.gmra.mxu0 %v7702
    %v7900 = vpop.f32.mrf.mxu0
    %v7901 = vadd.f32 %v7888, %v7900
    %v7902 = vpop.f32.mrf.mxu0
    %7903 = vdwg.mxu0
    %7904 = vmatpush.bf16.msra.mxu0 %v3888
    %7905 = vmatpush.bf16.msra.mxu0 %v3885
    %7906 = vmatpush.bf16.msra.mxu0 %v3882
    %7907 = vmatpush.bf16.msra.mxu0 %v3879
    %7908 = vmatpush.bf16.msra.mxu0 %v3876
    %7909 = vmatpush.bf16.msra.mxu0 %v3873
    %7910 = vmatpush.bf16.msra.mxu0 %v3870
    %7911 = vmatpush.bf16.msra.mxu0 %v3867
    %7912 = vmatmul.bf16.gmra.mxu0 %v7703
    %v7913 = vpop.f32.mrf.mxu0
    %v7914 = vadd.f32 %v7901, %v7913
    %v7915 = vpop.f32.mrf.mxu0
    %7916 = vdwg.mxu0
    %7917 = vmatpush.bf16.msra.mxu0 %v3912
    %7918 = vmatpush.bf16.msra.mxu0 %v3909
    %7919 = vmatpush.bf16.msra.mxu0 %v3906
    %7920 = vmatpush.bf16.msra.mxu0 %v3903
    %7921 = vmatpush.bf16.msra.mxu0 %v3900
    %7922 = vmatpush.bf16.msra.mxu0 %v3897
    %7923 = vmatpush.bf16.msra.mxu0 %v3894
    %7924 = vmatpush.bf16.msra.mxu0 %v3891
    %7925 = vmatmul.bf16.gmra.mxu0 %v7704
    %v7926 = vpop.f32.mrf.mxu0
    %v7927 = vadd.f32 %v7914, %v7926
    %v7928 = vpop.f32.mrf.mxu0
    %7929 = vdwg.mxu0
    %7930 = vmatpush.bf16.msra.mxu0 %v3936
    %7931 = vmatpush.bf16.msra.mxu0 %v3933
    %7932 = vmatpush.bf16.msra.mxu0 %v3930
    %7933 = vmatpush.bf16.msra.mxu0 %v3927
    %7934 = vmatpush.bf16.msra.mxu0 %v3924
    %7935 = vmatpush.bf16.msra.mxu0 %v3921
    %7936 = vmatpush.bf16.msra.mxu0 %v3918
    %7937 = vmatpush.bf16.msra.mxu0 %v3915
    %7938 = vmatmul.bf16.gmra.mxu0 %v7705
    %v7939 = vpop.f32.mrf.mxu0
    %v7940 = vadd.f32 %v7927, %v7939
    %v7941 = vpop.f32.mrf.mxu0
    %7942 = vdwg.mxu0
    %7943 = vmatpush.bf16.msra.mxu0 %v3960
    %7944 = vmatpush.bf16.msra.mxu0 %v3957
    %7945 = vmatpush.bf16.msra.mxu0 %v3954
    %7946 = vmatpush.bf16.msra.mxu0 %v3951
    %7947 = vmatpush.bf16.msra.mxu0 %v3948
    %7948 = vmatpush.bf16.msra.mxu0 %v3945
    %7949 = vmatpush.bf16.msra.mxu0 %v3942
    %7950 = vmatpush.bf16.msra.mxu0 %v3939
    %7951 = vmatmul.bf16.gmra.mxu0 %v7706
    %v7952 = vpop.f32.mrf.mxu0
    %v7953 = vadd.f32 %v7940, %v7952
    %v7954 = vpop.f32.mrf.mxu0
    %7955 = vdwg.mxu0
    %7956 = vmatpush.bf16.msra.mxu0 %v3984
    %7957 = vmatpush.bf16.msra.mxu0 %v3981
    %7958 = vmatpush.bf16.msra.mxu0 %v3978
    %7959 = vmatpush.bf16.msra.mxu0 %v3975
    %7960 = vmatpush.bf16.msra.mxu0 %v3972
    %7961 = vmatpush.bf16.msra.mxu0 %v3969
    %7962 = vmatpush.bf16.msra.mxu0 %v3966
    %7963 = vmatpush.bf16.msra.mxu0 %v3963
    %7964 = vmatmul.bf16.gmra.mxu0 %v7707
    %v7965 = vpop.f32.mrf.mxu0
    %v7966 = vadd.f32 %v7953, %v7965
    %v7967 = vpop.f32.mrf.mxu0
    %7968 = vdwg.mxu0
    %7969 = vmatpush.bf16.msra.mxu0 %v4008
    %7970 = vmatpush.bf16.msra.mxu0 %v4005
    %7971 = vmatpush.bf16.msra.mxu0 %v4002
    %7972 = vmatpush.bf16.msra.mxu0 %v3999
    %7973 = vmatpush.bf16.msra.mxu0 %v3996
    %7974 = vmatpush.bf16.msra.mxu0 %v3993
    %7975 = vmatpush.bf16.msra.mxu0 %v3990
    %7976 = vmatpush.bf16.msra.mxu0 %v3987
    %7977 = vmatmul.bf16.gmra.mxu0 %v7710
    %v7978 = vpop.f32.mrf.mxu0
    %v7979 = vadd.f32 %v7966, %v7978
    %v7980 = vpop.f32.mrf.mxu0
    %7981 = vdwg.mxu0
    %7982 = vmatpush.bf16.msra.mxu0 %v4032
    %7983 = vmatpush.bf16.msra.mxu0 %v4029
    %7984 = vmatpush.bf16.msra.mxu0 %v4026
    %7985 = vmatpush.bf16.msra.mxu0 %v4023
    %7986 = vmatpush.bf16.msra.mxu0 %v4020
    %7987 = vmatpush.bf16.msra.mxu0 %v4017
    %7988 = vmatpush.bf16.msra.mxu0 %v4014
    %7989 = vmatpush.bf16.msra.mxu0 %v4011
    %7990 = vmatmul.bf16.gmra.mxu0 %v7711
    %v7991 = vpop.f32.mrf.mxu0
    %v7992 = vadd.f32 %v7979, %v7991
    %v7993 = vpop.f32.mrf.mxu0
    %7994 = vdwg.mxu0
    %7995 = vmatpush.bf16.msra.mxu0 %v4056
    %7996 = vmatpush.bf16.msra.mxu0 %v4053
    %7997 = vmatpush.bf16.msra.mxu0 %v4050
    %7998 = vmatpush.bf16.msra.mxu0 %v4047
    %7999 = vmatpush.bf16.msra.mxu0 %v4044
    %8000 = vmatpush.bf16.msra.mxu0 %v4041
    %8001 = vmatpush.bf16.msra.mxu0 %v4038
    %8002 = vmatpush.bf16.msra.mxu0 %v4035
    %8003 = vmatmul.bf16.gmra.mxu0 %v7712
    %v8004 = vpop.f32.mrf.mxu0
    %v8005 = vadd.f32 %v7992, %v8004
    %v8006 = vpop.f32.mrf.mxu0
    %8007 = vdwg.mxu0
    %8008 = vmatpush.bf16.msra.mxu0 %v4080
    %8009 = vmatpush.bf16.msra.mxu0 %v4077
    %8010 = vmatpush.bf16.msra.mxu0 %v4074
    %8011 = vmatpush.bf16.msra.mxu0 %v4071
    %8012 = vmatpush.bf16.msra.mxu0 %v4068
    %8013 = vmatpush.bf16.msra.mxu0 %v4065
    %8014 = vmatpush.bf16.msra.mxu0 %v4062
    %8015 = vmatpush.bf16.msra.mxu0 %v4059
    %8016 = vmatmul.bf16.gmra.mxu0 %v7713
    %v8017 = vpop.f32.mrf.mxu0
    %v8018 = vadd.f32 %v8005, %v8017
    %v8019 = vpop.f32.mrf.mxu0
    %8020 = vdwg.mxu0
    %8021 = vmatpush.bf16.msra.mxu0 %v4104
    %8022 = vmatpush.bf16.msra.mxu0 %v4101
    %8023 = vmatpush.bf16.msra.mxu0 %v4098
    %8024 = vmatpush.bf16.msra.mxu0 %v4095
    %8025 = vmatpush.bf16.msra.mxu0 %v4092
    %8026 = vmatpush.bf16.msra.mxu0 %v4089
    %8027 = vmatpush.bf16.msra.mxu0 %v4086
    %8028 = vmatpush.bf16.msra.mxu0 %v4083
    %8029 = vmatmul.bf16.gmra.mxu0 %v7714
    %v8030 = vpop.f32.mrf.mxu0
    %v8031 = vadd.f32 %v8018, %v8030
    %v8032 = vpop.f32.mrf.mxu0
    %8033 = vdwg.mxu0
    %8034 = vmatpush.bf16.msra.mxu0 %v4128
    %8035 = vmatpush.bf16.msra.mxu0 %v4125
    %8036 = vmatpush.bf16.msra.mxu0 %v4122
    %8037 = vmatpush.bf16.msra.mxu0 %v4119
    %8038 = vmatpush.bf16.msra.mxu0 %v4116
    %8039 = vmatpush.bf16.msra.mxu0 %v4113
    %8040 = vmatpush.bf16.msra.mxu0 %v4110
    %8041 = vmatpush.bf16.msra.mxu0 %v4107
    %8042 = vmatmul.bf16.gmra.mxu0 %v7715
    %v8043 = vpop.f32.mrf.mxu0
    %v8044 = vadd.f32 %v8031, %v8043
    %v8045 = vpop.f32.mrf.mxu0
    %8046 = vdwg.mxu0
    %8047 = vmatpush.bf16.msra.mxu0 %v4152
    %8048 = vmatpush.bf16.msra.mxu0 %v4149
    %8049 = vmatpush.bf16.msra.mxu0 %v4146
    %8050 = vmatpush.bf16.msra.mxu0 %v4143
    %8051 = vmatpush.bf16.msra.mxu0 %v4140
    %8052 = vmatpush.bf16.msra.mxu0 %v4137
    %8053 = vmatpush.bf16.msra.mxu0 %v4134
    %8054 = vmatpush.bf16.msra.mxu0 %v4131
    %8055 = vmatmul.bf16.gmra.mxu0 %v7716
    %v8056 = vpop.f32.mrf.mxu0
    %v8057 = vadd.f32 %v8044, %v8056
    %v8058 = vpop.f32.mrf.mxu0
    %8059 = vdwg.mxu0
    %8060 = vmatpush.bf16.msra.mxu0 %v4176
    %8061 = vmatpush.bf16.msra.mxu0 %v4173
    %8062 = vmatpush.bf16.msra.mxu0 %v4170
    %8063 = vmatpush.bf16.msra.mxu0 %v4167
    %8064 = vmatpush.bf16.msra.mxu0 %v4164
    %8065 = vmatpush.bf16.msra.mxu0 %v4161
    %8066 = vmatpush.bf16.msra.mxu0 %v4158
    %8067 = vmatpush.bf16.msra.mxu0 %v4155
    %8068 = vmatmul.bf16.gmra.mxu0 %v7717
    %v8069 = vpop.f32.mrf.mxu0
    %v8070 = vadd.f32 %v8057, %v8069
    %v8071 = vpop.f32.mrf.mxu0
    %8072 = vdwg.mxu0
    %8073 = vmatpush.bf16.msra.mxu0 %v4200
    %8074 = vmatpush.bf16.msra.mxu0 %v4197
    %8075 = vmatpush.bf16.msra.mxu0 %v4194
    %8076 = vmatpush.bf16.msra.mxu0 %v4191
    %8077 = vmatpush.bf16.msra.mxu0 %v4188
    %8078 = vmatpush.bf16.msra.mxu0 %v4185
    %8079 = vmatpush.bf16.msra.mxu0 %v4182
    %8080 = vmatpush.bf16.msra.mxu0 %v4179
    %8081 = vmatmul.bf16.gmra.mxu0 %v7720
    %v8082 = vpop.f32.mrf.mxu0
    %v8083 = vadd.f32 %v8070, %v8082
    %v8084 = vpop.f32.mrf.mxu0
    %8085 = vdwg.mxu0
    %8086 = vmatpush.bf16.msra.mxu0 %v4224
    %8087 = vmatpush.bf16.msra.mxu0 %v4221
    %8088 = vmatpush.bf16.msra.mxu0 %v4218
    %8089 = vmatpush.bf16.msra.mxu0 %v4215
    %8090 = vmatpush.bf16.msra.mxu0 %v4212
    %8091 = vmatpush.bf16.msra.mxu0 %v4209
    %8092 = vmatpush.bf16.msra.mxu0 %v4206
    %8093 = vmatpush.bf16.msra.mxu0 %v4203
    %8094 = vmatmul.bf16.gmra.mxu0 %v7721
    %v8095 = vpop.f32.mrf.mxu0
    %v8096 = vadd.f32 %v8083, %v8095
    %v8097 = vpop.f32.mrf.mxu0
    %8098 = vdwg.mxu0
    %8099 = vmatpush.bf16.msra.mxu0 %v4248
    %8100 = vmatpush.bf16.msra.mxu0 %v4245
    %8101 = vmatpush.bf16.msra.mxu0 %v4242
    %8102 = vmatpush.bf16.msra.mxu0 %v4239
    %8103 = vmatpush.bf16.msra.mxu0 %v4236
    %8104 = vmatpush.bf16.msra.mxu0 %v4233
    %8105 = vmatpush.bf16.msra.mxu0 %v4230
    %8106 = vmatpush.bf16.msra.mxu0 %v4227
    %8107 = vmatmul.bf16.gmra.mxu0 %v7722
    %v8108 = vpop.f32.mrf.mxu0
    %v8109 = vadd.f32 %v8096, %v8108
    %v8110 = vpop.f32.mrf.mxu0
    %8111 = vdwg.mxu0
    %8112 = vmatpush.bf16.msra.mxu0 %v4272
    %8113 = vmatpush.bf16.msra.mxu0 %v4269
    %8114 = vmatpush.bf16.msra.mxu0 %v4266
    %8115 = vmatpush.bf16.msra.mxu0 %v4263
    %8116 = vmatpush.bf16.msra.mxu0 %v4260
    %8117 = vmatpush.bf16.msra.mxu0 %v4257
    %8118 = vmatpush.bf16.msra.mxu0 %v4254
    %8119 = vmatpush.bf16.msra.mxu0 %v4251
    %8120 = vmatmul.bf16.gmra.mxu0 %v7723
    %v8121 = vpop.f32.mrf.mxu0
    %v8122 = vadd.f32 %v8109, %v8121
    %v8123 = vpop.f32.mrf.mxu0
    %8124 = vdwg.mxu0
    %8125 = vmatpush.bf16.msra.mxu0 %v4296
    %8126 = vmatpush.bf16.msra.mxu0 %v4293
    %8127 = vmatpush.bf16.msra.mxu0 %v4290
    %8128 = vmatpush.bf16.msra.mxu0 %v4287
    %8129 = vmatpush.bf16.msra.mxu0 %v4284
    %8130 = vmatpush.bf16.msra.mxu0 %v4281
    %8131 = vmatpush.bf16.msra.mxu0 %v4278
    %8132 = vmatpush.bf16.msra.mxu0 %v4275
    %8133 = vmatmul.bf16.gmra.mxu0 %v7724
    %v8134 = vpop.f32.mrf.mxu0
    %v8135 = vadd.f32 %v8122, %v8134
    %v8136 = vpop.f32.mrf.mxu0
    %8137 = vdwg.mxu0
    %8138 = vmatpush.bf16.msra.mxu0 %v4320
    %8139 = vmatpush.bf16.msra.mxu0 %v4317
    %8140 = vmatpush.bf16.msra.mxu0 %v4314
    %8141 = vmatpush.bf16.msra.mxu0 %v4311
    %8142 = vmatpush.bf16.msra.mxu0 %v4308
    %8143 = vmatpush.bf16.msra.mxu0 %v4305
    %8144 = vmatpush.bf16.msra.mxu0 %v4302
    %8145 = vmatpush.bf16.msra.mxu0 %v4299
    %8146 = vmatmul.bf16.gmra.mxu0 %v7725
    %v8147 = vpop.f32.mrf.mxu0
    %v8148 = vadd.f32 %v8135, %v8147
    %v8149 = vpop.f32.mrf.mxu0
    %8150 = vdwg.mxu0
    %8151 = vmatpush.bf16.msra.mxu0 %v4344
    %8152 = vmatpush.bf16.msra.mxu0 %v4341
    %8153 = vmatpush.bf16.msra.mxu0 %v4338
    %8154 = vmatpush.bf16.msra.mxu0 %v4335
    %8155 = vmatpush.bf16.msra.mxu0 %v4332
    %8156 = vmatpush.bf16.msra.mxu0 %v4329
    %8157 = vmatpush.bf16.msra.mxu0 %v4326
    %8158 = vmatpush.bf16.msra.mxu0 %v4323
    %8159 = vmatmul.bf16.gmra.mxu0 %v7726
    %v8160 = vpop.f32.mrf.mxu0
    %v8161 = vadd.f32 %v8148, %v8160
    %v8162 = vpop.f32.mrf.mxu0
    %8163 = vdwg.mxu0
    %8164 = vmatpush.bf16.msra.mxu0 0
    %8165 = vmatpush.bf16.msra.mxu0 0
    %8166 = vmatpush.bf16.msra.mxu0 0
    %8167 = vmatpush.bf16.msra.mxu0 0
    %8168 = vmatpush.bf16.msra.mxu0 0
    %8169 = vmatpush.bf16.msra.mxu0 0
    %8170 = vmatpush.bf16.msra.mxu0 %v4350
    %8171 = vmatpush.bf16.msra.mxu0 %v4347
    %8172 = vmatmul.bf16.gmra.mxu0 %v7759
    %v8173 = vpop.f32.mrf.mxu0
    %v8174 = vadd.f32 %v8161, %v8173
    %v8175 = vpop.f32.mrf.mxu0
    %8176 = vdwg.mxu0
    %8177 = vmatpush.bf16.msra.mxu0 %v3625
    %8178 = vmatpush.bf16.msra.mxu0 %v3622
    %8179 = vmatpush.bf16.msra.mxu0 %v3619
    %8180 = vmatpush.bf16.msra.mxu0 %v3616
    %8181 = vmatpush.bf16.msra.mxu0 %v3613
    %8182 = vmatpush.bf16.msra.mxu0 %v3610
    %8183 = vmatpush.bf16.msra.mxu0 %v3607
    %8184 = vmatpush.bf16.msra.mxu0 %v3604
    %8185 = vmatmul.bf16.gmra.mxu0 %v7690
    %v8186 = vpop.f32.mrf.mxu0
    %v8187 = vadd.f32 0.0, %v8186
    %v8188 = vpop.f32.mrf.mxu0
    %8189 = vdwg.mxu0
    %8190 = vmatpush.bf16.msra.mxu0 %v3649
    %8191 = vmatpush.bf16.msra.mxu0 %v3646
    %8192 = vmatpush.bf16.msra.mxu0 %v3643
    %8193 = vmatpush.bf16.msra.mxu0 %v3640
    %8194 = vmatpush.bf16.msra.mxu0 %v3637
    %8195 = vmatpush.bf16.msra.mxu0 %v3634
    %8196 = vmatpush.bf16.msra.mxu0 %v3631
    %8197 = vmatpush.bf16.msra.mxu0 %v3628
    %8198 = vmatmul.bf16.gmra.mxu0 %v7691
    %v8199 = vpop.f32.mrf.mxu0
    %v8200 = vadd.f32 %v8187, %v8199
    %v8201 = vpop.f32.mrf.mxu0
    %8202 = vdwg.mxu0
    %8203 = vmatpush.bf16.msra.mxu0 %v3673
    %8204 = vmatpush.bf16.msra.mxu0 %v3670
    %8205 = vmatpush.bf16.msra.mxu0 %v3667
    %8206 = vmatpush.bf16.msra.mxu0 %v3664
    %8207 = vmatpush.bf16.msra.mxu0 %v3661
    %8208 = vmatpush.bf16.msra.mxu0 %v3658
    %8209 = vmatpush.bf16.msra.mxu0 %v3655
    %8210 = vmatpush.bf16.msra.mxu0 %v3652
    %8211 = vmatmul.bf16.gmra.mxu0 %v7692
    %v8212 = vpop.f32.mrf.mxu0
    %v8213 = vadd.f32 %v8200, %v8212
    %v8214 = vpop.f32.mrf.mxu0
    %8215 = vdwg.mxu0
    %8216 = vmatpush.bf16.msra.mxu0 %v3697
    %8217 = vmatpush.bf16.msra.mxu0 %v3694
    %8218 = vmatpush.bf16.msra.mxu0 %v3691
    %8219 = vmatpush.bf16.msra.mxu0 %v3688
    %8220 = vmatpush.bf16.msra.mxu0 %v3685
    %8221 = vmatpush.bf16.msra.mxu0 %v3682
    %8222 = vmatpush.bf16.msra.mxu0 %v3679
    %8223 = vmatpush.bf16.msra.mxu0 %v3676
    %8224 = vmatmul.bf16.gmra.mxu0 %v7693
    %v8225 = vpop.f32.mrf.mxu0
    %v8226 = vadd.f32 %v8213, %v8225
    %v8227 = vpop.f32.mrf.mxu0
    %8228 = vdwg.mxu0
    %8229 = vmatpush.bf16.msra.mxu0 %v3721
    %8230 = vmatpush.bf16.msra.mxu0 %v3718
    %8231 = vmatpush.bf16.msra.mxu0 %v3715
    %8232 = vmatpush.bf16.msra.mxu0 %v3712
    %8233 = vmatpush.bf16.msra.mxu0 %v3709
    %8234 = vmatpush.bf16.msra.mxu0 %v3706
    %8235 = vmatpush.bf16.msra.mxu0 %v3703
    %8236 = vmatpush.bf16.msra.mxu0 %v3700
    %8237 = vmatmul.bf16.gmra.mxu0 %v7694
    %v8238 = vpop.f32.mrf.mxu0
    %v8239 = vadd.f32 %v8226, %v8238
    %v8240 = vpop.f32.mrf.mxu0
    %8241 = vdwg.mxu0
    %8242 = vmatpush.bf16.msra.mxu0 %v3745
    %8243 = vmatpush.bf16.msra.mxu0 %v3742
    %8244 = vmatpush.bf16.msra.mxu0 %v3739
    %8245 = vmatpush.bf16.msra.mxu0 %v3736
    %8246 = vmatpush.bf16.msra.mxu0 %v3733
    %8247 = vmatpush.bf16.msra.mxu0 %v3730
    %8248 = vmatpush.bf16.msra.mxu0 %v3727
    %8249 = vmatpush.bf16.msra.mxu0 %v3724
    %8250 = vmatmul.bf16.gmra.mxu0 %v7695
    %v8251 = vpop.f32.mrf.mxu0
    %v8252 = vadd.f32 %v8239, %v8251
    %v8253 = vpop.f32.mrf.mxu0
    %8254 = vdwg.mxu0
    %8255 = vmatpush.bf16.msra.mxu0 %v3769
    %8256 = vmatpush.bf16.msra.mxu0 %v3766
    %8257 = vmatpush.bf16.msra.mxu0 %v3763
    %8258 = vmatpush.bf16.msra.mxu0 %v3760
    %8259 = vmatpush.bf16.msra.mxu0 %v3757
    %8260 = vmatpush.bf16.msra.mxu0 %v3754
    %8261 = vmatpush.bf16.msra.mxu0 %v3751
    %8262 = vmatpush.bf16.msra.mxu0 %v3748
    %8263 = vmatmul.bf16.gmra.mxu0 %v7696
    %v8264 = vpop.f32.mrf.mxu0
    %v8265 = vadd.f32 %v8252, %v8264
    %v8266 = vpop.f32.mrf.mxu0
    %8267 = vdwg.mxu0
    %8268 = vmatpush.bf16.msra.mxu0 %v3793
    %8269 = vmatpush.bf16.msra.mxu0 %v3790
    %8270 = vmatpush.bf16.msra.mxu0 %v3787
    %8271 = vmatpush.bf16.msra.mxu0 %v3784
    %8272 = vmatpush.bf16.msra.mxu0 %v3781
    %8273 = vmatpush.bf16.msra.mxu0 %v3778
    %8274 = vmatpush.bf16.msra.mxu0 %v3775
    %8275 = vmatpush.bf16.msra.mxu0 %v3772
    %8276 = vmatmul.bf16.gmra.mxu0 %v7697
    %v8277 = vpop.f32.mrf.mxu0
    %v8278 = vadd.f32 %v8265, %v8277
    %v8279 = vpop.f32.mrf.mxu0
    %8280 = vdwg.mxu0
    %8281 = vmatpush.bf16.msra.mxu0 %v3817
    %8282 = vmatpush.bf16.msra.mxu0 %v3814
    %8283 = vmatpush.bf16.msra.mxu0 %v3811
    %8284 = vmatpush.bf16.msra.mxu0 %v3808
    %8285 = vmatpush.bf16.msra.mxu0 %v3805
    %8286 = vmatpush.bf16.msra.mxu0 %v3802
    %8287 = vmatpush.bf16.msra.mxu0 %v3799
    %8288 = vmatpush.bf16.msra.mxu0 %v3796
    %8289 = vmatmul.bf16.gmra.mxu0 %v7700
    %v8290 = vpop.f32.mrf.mxu0
    %v8291 = vadd.f32 %v8278, %v8290
    %v8292 = vpop.f32.mrf.mxu0
    %8293 = vdwg.mxu0
    %8294 = vmatpush.bf16.msra.mxu0 %v3841
    %8295 = vmatpush.bf16.msra.mxu0 %v3838
    %8296 = vmatpush.bf16.msra.mxu0 %v3835
    %8297 = vmatpush.bf16.msra.mxu0 %v3832
    %8298 = vmatpush.bf16.msra.mxu0 %v3829
    %8299 = vmatpush.bf16.msra.mxu0 %v3826
    %8300 = vmatpush.bf16.msra.mxu0 %v3823
    %8301 = vmatpush.bf16.msra.mxu0 %v3820
    %8302 = vmatmul.bf16.gmra.mxu0 %v7701
    %v8303 = vpop.f32.mrf.mxu0
    %v8304 = vadd.f32 %v8291, %v8303
    %v8305 = vpop.f32.mrf.mxu0
    %8306 = vdwg.mxu0
    %8307 = vmatpush.bf16.msra.mxu0 %v3865
    %8308 = vmatpush.bf16.msra.mxu0 %v3862
    %8309 = vmatpush.bf16.msra.mxu0 %v3859
    %8310 = vmatpush.bf16.msra.mxu0 %v3856
    %8311 = vmatpush.bf16.msra.mxu0 %v3853
    %8312 = vmatpush.bf16.msra.mxu0 %v3850
    %8313 = vmatpush.bf16.msra.mxu0 %v3847
    %8314 = vmatpush.bf16.msra.mxu0 %v3844
    %8315 = vmatmul.bf16.gmra.mxu0 %v7702
    %v8316 = vpop.f32.mrf.mxu0
    %v8317 = vadd.f32 %v8304, %v8316
    %v8318 = vpop.f32.mrf.mxu0
    %8319 = vdwg.mxu0
    %8320 = vmatpush.bf16.msra.mxu0 %v3889
    %8321 = vmatpush.bf16.msra.mxu0 %v3886
    %8322 = vmatpush.bf16.msra.mxu0 %v3883
    %8323 = vmatpush.bf16.msra.mxu0 %v3880
    %8324 = vmatpush.bf16.msra.mxu0 %v3877
    %8325 = vmatpush.bf16.msra.mxu0 %v3874
    %8326 = vmatpush.bf16.msra.mxu0 %v3871
    %8327 = vmatpush.bf16.msra.mxu0 %v3868
    %8328 = vmatmul.bf16.gmra.mxu0 %v7703
    %v8329 = vpop.f32.mrf.mxu0
    %v8330 = vadd.f32 %v8317, %v8329
    %v8331 = vpop.f32.mrf.mxu0
    %8332 = vdwg.mxu0
    %8333 = vmatpush.bf16.msra.mxu0 %v3913
    %8334 = vmatpush.bf16.msra.mxu0 %v3910
    %8335 = vmatpush.bf16.msra.mxu0 %v3907
    %8336 = vmatpush.bf16.msra.mxu0 %v3904
    %8337 = vmatpush.bf16.msra.mxu0 %v3901
    %8338 = vmatpush.bf16.msra.mxu0 %v3898
    %8339 = vmatpush.bf16.msra.mxu0 %v3895
    %8340 = vmatpush.bf16.msra.mxu0 %v3892
    %8341 = vmatmul.bf16.gmra.mxu0 %v7704
    %v8342 = vpop.f32.mrf.mxu0
    %v8343 = vadd.f32 %v8330, %v8342
    %v8344 = vpop.f32.mrf.mxu0
    %8345 = vdwg.mxu0
    %8346 = vmatpush.bf16.msra.mxu0 %v3937
    %8347 = vmatpush.bf16.msra.mxu0 %v3934
    %8348 = vmatpush.bf16.msra.mxu0 %v3931
    %8349 = vmatpush.bf16.msra.mxu0 %v3928
    %8350 = vmatpush.bf16.msra.mxu0 %v3925
    %8351 = vmatpush.bf16.msra.mxu0 %v3922
    %8352 = vmatpush.bf16.msra.mxu0 %v3919
    %8353 = vmatpush.bf16.msra.mxu0 %v3916
    %8354 = vmatmul.bf16.gmra.mxu0 %v7705
    %v8355 = vpop.f32.mrf.mxu0
    %v8356 = vadd.f32 %v8343, %v8355
    %v8357 = vpop.f32.mrf.mxu0
    %8358 = vdwg.mxu0
    %8359 = vmatpush.bf16.msra.mxu0 %v3961
    %8360 = vmatpush.bf16.msra.mxu0 %v3958
    %8361 = vmatpush.bf16.msra.mxu0 %v3955
    %8362 = vmatpush.bf16.msra.mxu0 %v3952
    %8363 = vmatpush.bf16.msra.mxu0 %v3949
    %8364 = vmatpush.bf16.msra.mxu0 %v3946
    %8365 = vmatpush.bf16.msra.mxu0 %v3943
    %8366 = vmatpush.bf16.msra.mxu0 %v3940
    %8367 = vmatmul.bf16.gmra.mxu0 %v7706
    %v8368 = vpop.f32.mrf.mxu0
    %v8369 = vadd.f32 %v8356, %v8368
    %v8370 = vpop.f32.mrf.mxu0
    %8371 = vdwg.mxu0
    %8372 = vmatpush.bf16.msra.mxu0 %v3985
    %8373 = vmatpush.bf16.msra.mxu0 %v3982
    %8374 = vmatpush.bf16.msra.mxu0 %v3979
    %8375 = vmatpush.bf16.msra.mxu0 %v3976
    %8376 = vmatpush.bf16.msra.mxu0 %v3973
    %8377 = vmatpush.bf16.msra.mxu0 %v3970
    %8378 = vmatpush.bf16.msra.mxu0 %v3967
    %8379 = vmatpush.bf16.msra.mxu0 %v3964
    %8380 = vmatmul.bf16.gmra.mxu0 %v7707
    %v8381 = vpop.f32.mrf.mxu0
    %v8382 = vadd.f32 %v8369, %v8381
    %v8383 = vpop.f32.mrf.mxu0
    %8384 = vdwg.mxu0
    %8385 = vmatpush.bf16.msra.mxu0 %v4009
    %8386 = vmatpush.bf16.msra.mxu0 %v4006
    %8387 = vmatpush.bf16.msra.mxu0 %v4003
    %8388 = vmatpush.bf16.msra.mxu0 %v4000
    %8389 = vmatpush.bf16.msra.mxu0 %v3997
    %8390 = vmatpush.bf16.msra.mxu0 %v3994
    %8391 = vmatpush.bf16.msra.mxu0 %v3991
    %8392 = vmatpush.bf16.msra.mxu0 %v3988
    %8393 = vmatmul.bf16.gmra.mxu0 %v7710
    %v8394 = vpop.f32.mrf.mxu0
    %v8395 = vadd.f32 %v8382, %v8394
    %v8396 = vpop.f32.mrf.mxu0
    %8397 = vdwg.mxu0
    %8398 = vmatpush.bf16.msra.mxu0 %v4033
    %8399 = vmatpush.bf16.msra.mxu0 %v4030
    %8400 = vmatpush.bf16.msra.mxu0 %v4027
    %8401 = vmatpush.bf16.msra.mxu0 %v4024
    %8402 = vmatpush.bf16.msra.mxu0 %v4021
    %8403 = vmatpush.bf16.msra.mxu0 %v4018
    %8404 = vmatpush.bf16.msra.mxu0 %v4015
    %8405 = vmatpush.bf16.msra.mxu0 %v4012
    %8406 = vmatmul.bf16.gmra.mxu0 %v7711
    %v8407 = vpop.f32.mrf.mxu0
    %v8408 = vadd.f32 %v8395, %v8407
    %v8409 = vpop.f32.mrf.mxu0
    %8410 = vdwg.mxu0
    %8411 = vmatpush.bf16.msra.mxu0 %v4057
    %8412 = vmatpush.bf16.msra.mxu0 %v4054
    %8413 = vmatpush.bf16.msra.mxu0 %v4051
    %8414 = vmatpush.bf16.msra.mxu0 %v4048
    %8415 = vmatpush.bf16.msra.mxu0 %v4045
    %8416 = vmatpush.bf16.msra.mxu0 %v4042
    %8417 = vmatpush.bf16.msra.mxu0 %v4039
    %8418 = vmatpush.bf16.msra.mxu0 %v4036
    %8419 = vmatmul.bf16.gmra.mxu0 %v7712
    %v8420 = vpop.f32.mrf.mxu0
    %v8421 = vadd.f32 %v8408, %v8420
    %v8422 = vpop.f32.mrf.mxu0
    %8423 = vdwg.mxu0
    %8424 = vmatpush.bf16.msra.mxu0 %v4081
    %8425 = vmatpush.bf16.msra.mxu0 %v4078
    %8426 = vmatpush.bf16.msra.mxu0 %v4075
    %8427 = vmatpush.bf16.msra.mxu0 %v4072
    %8428 = vmatpush.bf16.msra.mxu0 %v4069
    %8429 = vmatpush.bf16.msra.mxu0 %v4066
    %8430 = vmatpush.bf16.msra.mxu0 %v4063
    %8431 = vmatpush.bf16.msra.mxu0 %v4060
    %8432 = vmatmul.bf16.gmra.mxu0 %v7713
    %v8433 = vpop.f32.mrf.mxu0
    %v8434 = vadd.f32 %v8421, %v8433
    %v8435 = vpop.f32.mrf.mxu0
    %8436 = vdwg.mxu0
    %8437 = vmatpush.bf16.msra.mxu0 %v4105
    %8438 = vmatpush.bf16.msra.mxu0 %v4102
    %8439 = vmatpush.bf16.msra.mxu0 %v4099
    %8440 = vmatpush.bf16.msra.mxu0 %v4096
    %8441 = vmatpush.bf16.msra.mxu0 %v4093
    %8442 = vmatpush.bf16.msra.mxu0 %v4090
    %8443 = vmatpush.bf16.msra.mxu0 %v4087
    %8444 = vmatpush.bf16.msra.mxu0 %v4084
    %8445 = vmatmul.bf16.gmra.mxu0 %v7714
    %v8446 = vpop.f32.mrf.mxu0
    %v8447 = vadd.f32 %v8434, %v8446
    %v8448 = vpop.f32.mrf.mxu0
    %8449 = vdwg.mxu0
    %8450 = vmatpush.bf16.msra.mxu0 %v4129
    %8451 = vmatpush.bf16.msra.mxu0 %v4126
    %8452 = vmatpush.bf16.msra.mxu0 %v4123
    %8453 = vmatpush.bf16.msra.mxu0 %v4120
    %8454 = vmatpush.bf16.msra.mxu0 %v4117
    %8455 = vmatpush.bf16.msra.mxu0 %v4114
    %8456 = vmatpush.bf16.msra.mxu0 %v4111
    %8457 = vmatpush.bf16.msra.mxu0 %v4108
    %8458 = vmatmul.bf16.gmra.mxu0 %v7715
    %v8459 = vpop.f32.mrf.mxu0
    %v8460 = vadd.f32 %v8447, %v8459
    %v8461 = vpop.f32.mrf.mxu0
    %8462 = vdwg.mxu0
    %8463 = vmatpush.bf16.msra.mxu0 %v4153
    %8464 = vmatpush.bf16.msra.mxu0 %v4150
    %8465 = vmatpush.bf16.msra.mxu0 %v4147
    %8466 = vmatpush.bf16.msra.mxu0 %v4144
    %8467 = vmatpush.bf16.msra.mxu0 %v4141
    %8468 = vmatpush.bf16.msra.mxu0 %v4138
    %8469 = vmatpush.bf16.msra.mxu0 %v4135
    %8470 = vmatpush.bf16.msra.mxu0 %v4132
    %8471 = vmatmul.bf16.gmra.mxu0 %v7716
    %v8472 = vpop.f32.mrf.mxu0
    %v8473 = vadd.f32 %v8460, %v8472
    %v8474 = vpop.f32.mrf.mxu0
    %8475 = vdwg.mxu0
    %8476 = vmatpush.bf16.msra.mxu0 %v4177
    %8477 = vmatpush.bf16.msra.mxu0 %v4174
    %8478 = vmatpush.bf16.msra.mxu0 %v4171
    %8479 = vmatpush.bf16.msra.mxu0 %v4168
    %8480 = vmatpush.bf16.msra.mxu0 %v4165
    %8481 = vmatpush.bf16.msra.mxu0 %v4162
    %8482 = vmatpush.bf16.msra.mxu0 %v4159
    %8483 = vmatpush.bf16.msra.mxu0 %v4156
    %8484 = vmatmul.bf16.gmra.mxu0 %v7717
    %v8485 = vpop.f32.mrf.mxu0
    %v8486 = vadd.f32 %v8473, %v8485
    %v8487 = vpop.f32.mrf.mxu0
    %8488 = vdwg.mxu0
    %8489 = vmatpush.bf16.msra.mxu0 %v4201
    %8490 = vmatpush.bf16.msra.mxu0 %v4198
    %8491 = vmatpush.bf16.msra.mxu0 %v4195
    %8492 = vmatpush.bf16.msra.mxu0 %v4192
    %8493 = vmatpush.bf16.msra.mxu0 %v4189
    %8494 = vmatpush.bf16.msra.mxu0 %v4186
    %8495 = vmatpush.bf16.msra.mxu0 %v4183
    %8496 = vmatpush.bf16.msra.mxu0 %v4180
    %8497 = vmatmul.bf16.gmra.mxu0 %v7720
    %v8498 = vpop.f32.mrf.mxu0
    %v8499 = vadd.f32 %v8486, %v8498
    %v8500 = vpop.f32.mrf.mxu0
    %8501 = vdwg.mxu0
    %8502 = vmatpush.bf16.msra.mxu0 %v4225
    %8503 = vmatpush.bf16.msra.mxu0 %v4222
    %8504 = vmatpush.bf16.msra.mxu0 %v4219
    %8505 = vmatpush.bf16.msra.mxu0 %v4216
    %8506 = vmatpush.bf16.msra.mxu0 %v4213
    %8507 = vmatpush.bf16.msra.mxu0 %v4210
    %8508 = vmatpush.bf16.msra.mxu0 %v4207
    %8509 = vmatpush.bf16.msra.mxu0 %v4204
    %8510 = vmatmul.bf16.gmra.mxu0 %v7721
    %v8511 = vpop.f32.mrf.mxu0
    %v8512 = vadd.f32 %v8499, %v8511
    %v8513 = vpop.f32.mrf.mxu0
    %8514 = vdwg.mxu0
    %8515 = vmatpush.bf16.msra.mxu0 %v4249
    %8516 = vmatpush.bf16.msra.mxu0 %v4246
    %8517 = vmatpush.bf16.msra.mxu0 %v4243
    %8518 = vmatpush.bf16.msra.mxu0 %v4240
    %8519 = vmatpush.bf16.msra.mxu0 %v4237
    %8520 = vmatpush.bf16.msra.mxu0 %v4234
    %8521 = vmatpush.bf16.msra.mxu0 %v4231
    %8522 = vmatpush.bf16.msra.mxu0 %v4228
    %8523 = vmatmul.bf16.gmra.mxu0 %v7722
    %v8524 = vpop.f32.mrf.mxu0
    %v8525 = vadd.f32 %v8512, %v8524
    %v8526 = vpop.f32.mrf.mxu0
    %8527 = vdwg.mxu0
    %8528 = vmatpush.bf16.msra.mxu0 %v4273
    %8529 = vmatpush.bf16.msra.mxu0 %v4270
    %8530 = vmatpush.bf16.msra.mxu0 %v4267
    %8531 = vmatpush.bf16.msra.mxu0 %v4264
    %8532 = vmatpush.bf16.msra.mxu0 %v4261
    %8533 = vmatpush.bf16.msra.mxu0 %v4258
    %8534 = vmatpush.bf16.msra.mxu0 %v4255
    %8535 = vmatpush.bf16.msra.mxu0 %v4252
    %8536 = vmatmul.bf16.gmra.mxu0 %v7723
    %v8537 = vpop.f32.mrf.mxu0
    %v8538 = vadd.f32 %v8525, %v8537
    %v8539 = vpop.f32.mrf.mxu0
    %8540 = vdwg.mxu0
    %8541 = vmatpush.bf16.msra.mxu0 %v4297
    %8542 = vmatpush.bf16.msra.mxu0 %v4294
    %8543 = vmatpush.bf16.msra.mxu0 %v4291
    %8544 = vmatpush.bf16.msra.mxu0 %v4288
    %8545 = vmatpush.bf16.msra.mxu0 %v4285
    %8546 = vmatpush.bf16.msra.mxu0 %v4282
    %8547 = vmatpush.bf16.msra.mxu0 %v4279
    %8548 = vmatpush.bf16.msra.mxu0 %v4276
    %8549 = vmatmul.bf16.gmra.mxu0 %v7724
    %v8550 = vpop.f32.mrf.mxu0
    %v8551 = vadd.f32 %v8538, %v8550
    %v8552 = vpop.f32.mrf.mxu0
    %8553 = vdwg.mxu0
    %8554 = vmatpush.bf16.msra.mxu0 %v4321
    %8555 = vmatpush.bf16.msra.mxu0 %v4318
    %8556 = vmatpush.bf16.msra.mxu0 %v4315
    %8557 = vmatpush.bf16.msra.mxu0 %v4312
    %8558 = vmatpush.bf16.msra.mxu0 %v4309
    %8559 = vmatpush.bf16.msra.mxu0 %v4306
    %8560 = vmatpush.bf16.msra.mxu0 %v4303
    %8561 = vmatpush.bf16.msra.mxu0 %v4300
    %8562 = vmatmul.bf16.gmra.mxu0 %v7725
    %v8563 = vpop.f32.mrf.mxu0
    %v8564 = vadd.f32 %v8551, %v8563
    %v8565 = vpop.f32.mrf.mxu0
    %8566 = vdwg.mxu0
    %8567 = vmatpush.bf16.msra.mxu0 %v4345
    %8568 = vmatpush.bf16.msra.mxu0 %v4342
    %8569 = vmatpush.bf16.msra.mxu0 %v4339
    %8570 = vmatpush.bf16.msra.mxu0 %v4336
    %8571 = vmatpush.bf16.msra.mxu0 %v4333
    %8572 = vmatpush.bf16.msra.mxu0 %v4330
    %8573 = vmatpush.bf16.msra.mxu0 %v4327
    %8574 = vmatpush.bf16.msra.mxu0 %v4324
    %8575 = vmatmul.bf16.gmra.mxu0 %v7726
    %v8576 = vpop.f32.mrf.mxu0
    %v8577 = vadd.f32 %v8564, %v8576
    %v8578 = vpop.f32.mrf.mxu0
    %8579 = vdwg.mxu0
    %8580 = vmatpush.bf16.msra.mxu0 0
    %8581 = vmatpush.bf16.msra.mxu0 0
    %8582 = vmatpush.bf16.msra.mxu0 0
    %8583 = vmatpush.bf16.msra.mxu0 0
    %8584 = vmatpush.bf16.msra.mxu0 0
    %8585 = vmatpush.bf16.msra.mxu0 0
    %8586 = vmatpush.bf16.msra.mxu0 %v4351
    %8587 = vmatpush.bf16.msra.mxu0 %v4348
    %8588 = vmatmul.bf16.gmra.mxu0 %v7759
    %v8589 = vpop.f32.mrf.mxu0
    %v8590 = vadd.f32 %v8577, %v8589
    %v8591 = vpop.f32.mrf.mxu0
    %8592 = vdwg.mxu0
    %8593 = vmatpush.bf16.msra.mxu0 %v3626
    %8594 = vmatpush.bf16.msra.mxu0 %v3623
    %8595 = vmatpush.bf16.msra.mxu0 %v3620
    %8596 = vmatpush.bf16.msra.mxu0 %v3617
    %8597 = vmatpush.bf16.msra.mxu0 %v3614
    %8598 = vmatpush.bf16.msra.mxu0 %v3611
    %8599 = vmatpush.bf16.msra.mxu0 %v3608
    %8600 = vmatpush.bf16.msra.mxu0 %v3605
    %8601 = vmatmul.bf16.gmra.mxu0 %v7690
    %v8602 = vpop.f32.mrf.mxu0
    %v8603 = vadd.f32 0.0, %v8602
    %v8604 = vpop.f32.mrf.mxu0
    %8605 = vdwg.mxu0
    %8606 = vmatpush.bf16.msra.mxu0 %v3650
    %8607 = vmatpush.bf16.msra.mxu0 %v3647
    %8608 = vmatpush.bf16.msra.mxu0 %v3644
    %8609 = vmatpush.bf16.msra.mxu0 %v3641
    %8610 = vmatpush.bf16.msra.mxu0 %v3638
    %8611 = vmatpush.bf16.msra.mxu0 %v3635
    %8612 = vmatpush.bf16.msra.mxu0 %v3632
    %8613 = vmatpush.bf16.msra.mxu0 %v3629
    %8614 = vmatmul.bf16.gmra.mxu0 %v7691
    %v8615 = vpop.f32.mrf.mxu0
    %v8616 = vadd.f32 %v8603, %v8615
    %v8617 = vpop.f32.mrf.mxu0
    %8618 = vdwg.mxu0
    %8619 = vmatpush.bf16.msra.mxu0 %v3674
    %8620 = vmatpush.bf16.msra.mxu0 %v3671
    %8621 = vmatpush.bf16.msra.mxu0 %v3668
    %8622 = vmatpush.bf16.msra.mxu0 %v3665
    %8623 = vmatpush.bf16.msra.mxu0 %v3662
    %8624 = vmatpush.bf16.msra.mxu0 %v3659
    %8625 = vmatpush.bf16.msra.mxu0 %v3656
    %8626 = vmatpush.bf16.msra.mxu0 %v3653
    %8627 = vmatmul.bf16.gmra.mxu0 %v7692
    %v8628 = vpop.f32.mrf.mxu0
    %v8629 = vadd.f32 %v8616, %v8628
    %v8630 = vpop.f32.mrf.mxu0
    %8631 = vdwg.mxu0
    %8632 = vmatpush.bf16.msra.mxu0 %v3698
    %8633 = vmatpush.bf16.msra.mxu0 %v3695
    %8634 = vmatpush.bf16.msra.mxu0 %v3692
    %8635 = vmatpush.bf16.msra.mxu0 %v3689
    %8636 = vmatpush.bf16.msra.mxu0 %v3686
    %8637 = vmatpush.bf16.msra.mxu0 %v3683
    %8638 = vmatpush.bf16.msra.mxu0 %v3680
    %8639 = vmatpush.bf16.msra.mxu0 %v3677
    %8640 = vmatmul.bf16.gmra.mxu0 %v7693
    %v8641 = vpop.f32.mrf.mxu0
    %v8642 = vadd.f32 %v8629, %v8641
    %v8643 = vpop.f32.mrf.mxu0
    %8644 = vdwg.mxu0
    %8645 = vmatpush.bf16.msra.mxu0 %v3722
    %8646 = vmatpush.bf16.msra.mxu0 %v3719
    %8647 = vmatpush.bf16.msra.mxu0 %v3716
    %8648 = vmatpush.bf16.msra.mxu0 %v3713
    %8649 = vmatpush.bf16.msra.mxu0 %v3710
    %8650 = vmatpush.bf16.msra.mxu0 %v3707
    %8651 = vmatpush.bf16.msra.mxu0 %v3704
    %8652 = vmatpush.bf16.msra.mxu0 %v3701
    %8653 = vmatmul.bf16.gmra.mxu0 %v7694
    %v8654 = vpop.f32.mrf.mxu0
    %v8655 = vadd.f32 %v8642, %v8654
    %v8656 = vpop.f32.mrf.mxu0
    %8657 = vdwg.mxu0
    %8658 = vmatpush.bf16.msra.mxu0 %v3746
    %8659 = vmatpush.bf16.msra.mxu0 %v3743
    %8660 = vmatpush.bf16.msra.mxu0 %v3740
    %8661 = vmatpush.bf16.msra.mxu0 %v3737
    %8662 = vmatpush.bf16.msra.mxu0 %v3734
    %8663 = vmatpush.bf16.msra.mxu0 %v3731
    %8664 = vmatpush.bf16.msra.mxu0 %v3728
    %8665 = vmatpush.bf16.msra.mxu0 %v3725
    %8666 = vmatmul.bf16.gmra.mxu0 %v7695
    %v8667 = vpop.f32.mrf.mxu0
    %v8668 = vadd.f32 %v8655, %v8667
    %v8669 = vpop.f32.mrf.mxu0
    %8670 = vdwg.mxu0
    %8671 = vmatpush.bf16.msra.mxu0 %v3770
    %8672 = vmatpush.bf16.msra.mxu0 %v3767
    %8673 = vmatpush.bf16.msra.mxu0 %v3764
    %8674 = vmatpush.bf16.msra.mxu0 %v3761
    %8675 = vmatpush.bf16.msra.mxu0 %v3758
    %8676 = vmatpush.bf16.msra.mxu0 %v3755
    %8677 = vmatpush.bf16.msra.mxu0 %v3752
    %8678 = vmatpush.bf16.msra.mxu0 %v3749
    %8679 = vmatmul.bf16.gmra.mxu0 %v7696
    %v8680 = vpop.f32.mrf.mxu0
    %v8681 = vadd.f32 %v8668, %v8680
    %v8682 = vpop.f32.mrf.mxu0
    %8683 = vdwg.mxu0
    %8684 = vmatpush.bf16.msra.mxu0 %v3794
    %8685 = vmatpush.bf16.msra.mxu0 %v3791
    %8686 = vmatpush.bf16.msra.mxu0 %v3788
    %8687 = vmatpush.bf16.msra.mxu0 %v3785
    %8688 = vmatpush.bf16.msra.mxu0 %v3782
    %8689 = vmatpush.bf16.msra.mxu0 %v3779
    %8690 = vmatpush.bf16.msra.mxu0 %v3776
    %8691 = vmatpush.bf16.msra.mxu0 %v3773
    %8692 = vmatmul.bf16.gmra.mxu0 %v7697
    %v8693 = vpop.f32.mrf.mxu0
    %v8694 = vadd.f32 %v8681, %v8693
    %v8695 = vpop.f32.mrf.mxu0
    %8696 = vdwg.mxu0
    %8697 = vmatpush.bf16.msra.mxu0 %v3818
    %8698 = vmatpush.bf16.msra.mxu0 %v3815
    %8699 = vmatpush.bf16.msra.mxu0 %v3812
    %8700 = vmatpush.bf16.msra.mxu0 %v3809
    %8701 = vmatpush.bf16.msra.mxu0 %v3806
    %8702 = vmatpush.bf16.msra.mxu0 %v3803
    %8703 = vmatpush.bf16.msra.mxu0 %v3800
    %8704 = vmatpush.bf16.msra.mxu0 %v3797
    %8705 = vmatmul.bf16.gmra.mxu0 %v7700
    %v8706 = vpop.f32.mrf.mxu0
    %v8707 = vadd.f32 %v8694, %v8706
    %v8708 = vpop.f32.mrf.mxu0
    %8709 = vdwg.mxu0
    %8710 = vmatpush.bf16.msra.mxu0 %v3842
    %8711 = vmatpush.bf16.msra.mxu0 %v3839
    %8712 = vmatpush.bf16.msra.mxu0 %v3836
    %8713 = vmatpush.bf16.msra.mxu0 %v3833
    %8714 = vmatpush.bf16.msra.mxu0 %v3830
    %8715 = vmatpush.bf16.msra.mxu0 %v3827
    %8716 = vmatpush.bf16.msra.mxu0 %v3824
    %8717 = vmatpush.bf16.msra.mxu0 %v3821
    %8718 = vmatmul.bf16.gmra.mxu0 %v7701
    %v8719 = vpop.f32.mrf.mxu0
    %v8720 = vadd.f32 %v8707, %v8719
    %v8721 = vpop.f32.mrf.mxu0
    %8722 = vdwg.mxu0
    %8723 = vmatpush.bf16.msra.mxu0 %v3866
    %8724 = vmatpush.bf16.msra.mxu0 %v3863
    %8725 = vmatpush.bf16.msra.mxu0 %v3860
    %8726 = vmatpush.bf16.msra.mxu0 %v3857
    %8727 = vmatpush.bf16.msra.mxu0 %v3854
    %8728 = vmatpush.bf16.msra.mxu0 %v3851
    %8729 = vmatpush.bf16.msra.mxu0 %v3848
    %8730 = vmatpush.bf16.msra.mxu0 %v3845
    %8731 = vmatmul.bf16.gmra.mxu0 %v7702
    %v8732 = vpop.f32.mrf.mxu0
    %v8733 = vadd.f32 %v8720, %v8732
    %v8734 = vpop.f32.mrf.mxu0
    %8735 = vdwg.mxu0
    %8736 = vmatpush.bf16.msra.mxu0 %v3890
    %8737 = vmatpush.bf16.msra.mxu0 %v3887
    %8738 = vmatpush.bf16.msra.mxu0 %v3884
    %8739 = vmatpush.bf16.msra.mxu0 %v3881
    %8740 = vmatpush.bf16.msra.mxu0 %v3878
    %8741 = vmatpush.bf16.msra.mxu0 %v3875
    %8742 = vmatpush.bf16.msra.mxu0 %v3872
    %8743 = vmatpush.bf16.msra.mxu0 %v3869
    %8744 = vmatmul.bf16.gmra.mxu0 %v7703
    %v8745 = vpop.f32.mrf.mxu0
    %v8746 = vadd.f32 %v8733, %v8745
    %v8747 = vpop.f32.mrf.mxu0
    %8748 = vdwg.mxu0
    %8749 = vmatpush.bf16.msra.mxu0 %v3914
    %8750 = vmatpush.bf16.msra.mxu0 %v3911
    %8751 = vmatpush.bf16.msra.mxu0 %v3908
    %8752 = vmatpush.bf16.msra.mxu0 %v3905
    %8753 = vmatpush.bf16.msra.mxu0 %v3902
    %8754 = vmatpush.bf16.msra.mxu0 %v3899
    %8755 = vmatpush.bf16.msra.mxu0 %v3896
    %8756 = vmatpush.bf16.msra.mxu0 %v3893
    %8757 = vmatmul.bf16.gmra.mxu0 %v7704
    %v8758 = vpop.f32.mrf.mxu0
    %v8759 = vadd.f32 %v8746, %v8758
    %v8760 = vpop.f32.mrf.mxu0
    %8761 = vdwg.mxu0
    %8762 = vmatpush.bf16.msra.mxu0 %v3938
    %8763 = vmatpush.bf16.msra.mxu0 %v3935
    %8764 = vmatpush.bf16.msra.mxu0 %v3932
    %8765 = vmatpush.bf16.msra.mxu0 %v3929
    %8766 = vmatpush.bf16.msra.mxu0 %v3926
    %8767 = vmatpush.bf16.msra.mxu0 %v3923
    %8768 = vmatpush.bf16.msra.mxu0 %v3920
    %8769 = vmatpush.bf16.msra.mxu0 %v3917
    %8770 = vmatmul.bf16.gmra.mxu0 %v7705
    %v8771 = vpop.f32.mrf.mxu0
    %v8772 = vadd.f32 %v8759, %v8771
    %v8773 = vpop.f32.mrf.mxu0
    %8774 = vdwg.mxu0
    %8775 = vmatpush.bf16.msra.mxu0 %v3962
    %8776 = vmatpush.bf16.msra.mxu0 %v3959
    %8777 = vmatpush.bf16.msra.mxu0 %v3956
    %8778 = vmatpush.bf16.msra.mxu0 %v3953
    %8779 = vmatpush.bf16.msra.mxu0 %v3950
    %8780 = vmatpush.bf16.msra.mxu0 %v3947
    %8781 = vmatpush.bf16.msra.mxu0 %v3944
    %8782 = vmatpush.bf16.msra.mxu0 %v3941
    %8783 = vmatmul.bf16.gmra.mxu0 %v7706
    %v8784 = vpop.f32.mrf.mxu0
    %v8785 = vadd.f32 %v8772, %v8784
    %v8786 = vpop.f32.mrf.mxu0
    %8787 = vdwg.mxu0
    %8788 = vmatpush.bf16.msra.mxu0 %v3986
    %8789 = vmatpush.bf16.msra.mxu0 %v3983
    %8790 = vmatpush.bf16.msra.mxu0 %v3980
    %8791 = vmatpush.bf16.msra.mxu0 %v3977
    %8792 = vmatpush.bf16.msra.mxu0 %v3974
    %8793 = vmatpush.bf16.msra.mxu0 %v3971
    %8794 = vmatpush.bf16.msra.mxu0 %v3968
    %8795 = vmatpush.bf16.msra.mxu0 %v3965
    %8796 = vmatmul.bf16.gmra.mxu0 %v7707
    %v8797 = vpop.f32.mrf.mxu0
    %v8798 = vadd.f32 %v8785, %v8797
    %v8799 = vpop.f32.mrf.mxu0
    %8800 = vdwg.mxu0
    %8801 = vmatpush.bf16.msra.mxu0 %v4010
    %8802 = vmatpush.bf16.msra.mxu0 %v4007
    %8803 = vmatpush.bf16.msra.mxu0 %v4004
    %8804 = vmatpush.bf16.msra.mxu0 %v4001
    %8805 = vmatpush.bf16.msra.mxu0 %v3998
    %8806 = vmatpush.bf16.msra.mxu0 %v3995
    %8807 = vmatpush.bf16.msra.mxu0 %v3992
    %8808 = vmatpush.bf16.msra.mxu0 %v3989
    %8809 = vmatmul.bf16.gmra.mxu0 %v7710
    %v8810 = vpop.f32.mrf.mxu0
    %v8811 = vadd.f32 %v8798, %v8810
    %v8812 = vpop.f32.mrf.mxu0
    %8813 = vdwg.mxu0
    %8814 = vmatpush.bf16.msra.mxu0 %v4034
    %8815 = vmatpush.bf16.msra.mxu0 %v4031
    %8816 = vmatpush.bf16.msra.mxu0 %v4028
    %8817 = vmatpush.bf16.msra.mxu0 %v4025
    %8818 = vmatpush.bf16.msra.mxu0 %v4022
    %8819 = vmatpush.bf16.msra.mxu0 %v4019
    %8820 = vmatpush.bf16.msra.mxu0 %v4016
    %8821 = vmatpush.bf16.msra.mxu0 %v4013
    %8822 = vmatmul.bf16.gmra.mxu0 %v7711
    %v8823 = vpop.f32.mrf.mxu0
    %v8824 = vadd.f32 %v8811, %v8823
    %v8825 = vpop.f32.mrf.mxu0
    %8826 = vdwg.mxu0
    %8827 = vmatpush.bf16.msra.mxu0 %v4058
    %8828 = vmatpush.bf16.msra.mxu0 %v4055
    %8829 = vmatpush.bf16.msra.mxu0 %v4052
    %8830 = vmatpush.bf16.msra.mxu0 %v4049
    %8831 = vmatpush.bf16.msra.mxu0 %v4046
    %8832 = vmatpush.bf16.msra.mxu0 %v4043
    %8833 = vmatpush.bf16.msra.mxu0 %v4040
    %8834 = vmatpush.bf16.msra.mxu0 %v4037
    %8835 = vmatmul.bf16.gmra.mxu0 %v7712
    %v8836 = vpop.f32.mrf.mxu0
    %v8837 = vadd.f32 %v8824, %v8836
    %v8838 = vpop.f32.mrf.mxu0
    %8839 = vdwg.mxu0
    %8840 = vmatpush.bf16.msra.mxu0 %v4082
    %8841 = vmatpush.bf16.msra.mxu0 %v4079
    %8842 = vmatpush.bf16.msra.mxu0 %v4076
    %8843 = vmatpush.bf16.msra.mxu0 %v4073
    %8844 = vmatpush.bf16.msra.mxu0 %v4070
    %8845 = vmatpush.bf16.msra.mxu0 %v4067
    %8846 = vmatpush.bf16.msra.mxu0 %v4064
    %8847 = vmatpush.bf16.msra.mxu0 %v4061
    %8848 = vmatmul.bf16.gmra.mxu0 %v7713
    %v8849 = vpop.f32.mrf.mxu0
    %v8850 = vadd.f32 %v8837, %v8849
    %v8851 = vpop.f32.mrf.mxu0
    %8852 = vdwg.mxu0
    %8853 = vmatpush.bf16.msra.mxu0 %v4106
    %8854 = vmatpush.bf16.msra.mxu0 %v4103
    %8855 = vmatpush.bf16.msra.mxu0 %v4100
    %8856 = vmatpush.bf16.msra.mxu0 %v4097
    %8857 = vmatpush.bf16.msra.mxu0 %v4094
    %8858 = vmatpush.bf16.msra.mxu0 %v4091
    %8859 = vmatpush.bf16.msra.mxu0 %v4088
    %8860 = vmatpush.bf16.msra.mxu0 %v4085
    %8861 = vmatmul.bf16.gmra.mxu0 %v7714
    %v8862 = vpop.f32.mrf.mxu0
    %v8863 = vadd.f32 %v8850, %v8862
    %v8864 = vpop.f32.mrf.mxu0
    %8865 = vdwg.mxu0
    %8866 = vmatpush.bf16.msra.mxu0 %v4130
    %8867 = vmatpush.bf16.msra.mxu0 %v4127
    %8868 = vmatpush.bf16.msra.mxu0 %v4124
    %8869 = vmatpush.bf16.msra.mxu0 %v4121
    %8870 = vmatpush.bf16.msra.mxu0 %v4118
    %8871 = vmatpush.bf16.msra.mxu0 %v4115
    %8872 = vmatpush.bf16.msra.mxu0 %v4112
    %8873 = vmatpush.bf16.msra.mxu0 %v4109
    %8874 = vmatmul.bf16.gmra.mxu0 %v7715
    %v8875 = vpop.f32.mrf.mxu0
    %v8876 = vadd.f32 %v8863, %v8875
    %v8877 = vpop.f32.mrf.mxu0
    %8878 = vdwg.mxu0
    %8879 = vmatpush.bf16.msra.mxu0 %v4154
    %8880 = vmatpush.bf16.msra.mxu0 %v4151
    %8881 = vmatpush.bf16.msra.mxu0 %v4148
    %8882 = vmatpush.bf16.msra.mxu0 %v4145
    %8883 = vmatpush.bf16.msra.mxu0 %v4142
    %8884 = vmatpush.bf16.msra.mxu0 %v4139
    %8885 = vmatpush.bf16.msra.mxu0 %v4136
    %8886 = vmatpush.bf16.msra.mxu0 %v4133
    %8887 = vmatmul.bf16.gmra.mxu0 %v7716
    %v8888 = vpop.f32.mrf.mxu0
    %v8889 = vadd.f32 %v8876, %v8888
    %v8890 = vpop.f32.mrf.mxu0
    %8891 = vdwg.mxu0
    %8892 = vmatpush.bf16.msra.mxu0 %v4178
    %8893 = vmatpush.bf16.msra.mxu0 %v4175
    %8894 = vmatpush.bf16.msra.mxu0 %v4172
    %8895 = vmatpush.bf16.msra.mxu0 %v4169
    %8896 = vmatpush.bf16.msra.mxu0 %v4166
    %8897 = vmatpush.bf16.msra.mxu0 %v4163
    %8898 = vmatpush.bf16.msra.mxu0 %v4160
    %8899 = vmatpush.bf16.msra.mxu0 %v4157
    %8900 = vmatmul.bf16.gmra.mxu0 %v7717
    %v8901 = vpop.f32.mrf.mxu0
    %v8902 = vadd.f32 %v8889, %v8901
    %v8903 = vpop.f32.mrf.mxu0
    %8904 = vdwg.mxu0
    %8905 = vmatpush.bf16.msra.mxu0 %v4202
    %8906 = vmatpush.bf16.msra.mxu0 %v4199
    %8907 = vmatpush.bf16.msra.mxu0 %v4196
    %8908 = vmatpush.bf16.msra.mxu0 %v4193
    %8909 = vmatpush.bf16.msra.mxu0 %v4190
    %8910 = vmatpush.bf16.msra.mxu0 %v4187
    %8911 = vmatpush.bf16.msra.mxu0 %v4184
    %8912 = vmatpush.bf16.msra.mxu0 %v4181
    %8913 = vmatmul.bf16.gmra.mxu0 %v7720
    %v8914 = vpop.f32.mrf.mxu0
    %v8915 = vadd.f32 %v8902, %v8914
    %v8916 = vpop.f32.mrf.mxu0
    %8917 = vdwg.mxu0
    %8918 = vmatpush.bf16.msra.mxu0 %v4226
    %8919 = vmatpush.bf16.msra.mxu0 %v4223
    %8920 = vmatpush.bf16.msra.mxu0 %v4220
    %8921 = vmatpush.bf16.msra.mxu0 %v4217
    %8922 = vmatpush.bf16.msra.mxu0 %v4214
    %8923 = vmatpush.bf16.msra.mxu0 %v4211
    %8924 = vmatpush.bf16.msra.mxu0 %v4208
    %8925 = vmatpush.bf16.msra.mxu0 %v4205
    %8926 = vmatmul.bf16.gmra.mxu0 %v7721
    %v8927 = vpop.f32.mrf.mxu0
    %v8928 = vadd.f32 %v8915, %v8927
    %v8929 = vpop.f32.mrf.mxu0
    %8930 = vdwg.mxu0
    %8931 = vmatpush.bf16.msra.mxu0 %v4250
    %8932 = vmatpush.bf16.msra.mxu0 %v4247
    %8933 = vmatpush.bf16.msra.mxu0 %v4244
    %8934 = vmatpush.bf16.msra.mxu0 %v4241
    %8935 = vmatpush.bf16.msra.mxu0 %v4238
    %8936 = vmatpush.bf16.msra.mxu0 %v4235
    %8937 = vmatpush.bf16.msra.mxu0 %v4232
    %8938 = vmatpush.bf16.msra.mxu0 %v4229
    %8939 = vmatmul.bf16.gmra.mxu0 %v7722
    %v8940 = vpop.f32.mrf.mxu0
    %v8941 = vadd.f32 %v8928, %v8940
    %v8942 = vpop.f32.mrf.mxu0
    %8943 = vdwg.mxu0
    %8944 = vmatpush.bf16.msra.mxu0 %v4274
    %8945 = vmatpush.bf16.msra.mxu0 %v4271
    %8946 = vmatpush.bf16.msra.mxu0 %v4268
    %8947 = vmatpush.bf16.msra.mxu0 %v4265
    %8948 = vmatpush.bf16.msra.mxu0 %v4262
    %8949 = vmatpush.bf16.msra.mxu0 %v4259
    %8950 = vmatpush.bf16.msra.mxu0 %v4256
    %8951 = vmatpush.bf16.msra.mxu0 %v4253
    %8952 = vmatmul.bf16.gmra.mxu0 %v7723
    %v8953 = vpop.f32.mrf.mxu0
    %v8954 = vadd.f32 %v8941, %v8953
    %v8955 = vpop.f32.mrf.mxu0
    %8956 = vdwg.mxu0
    %8957 = vmatpush.bf16.msra.mxu0 %v4298
    %8958 = vmatpush.bf16.msra.mxu0 %v4295
    %8959 = vmatpush.bf16.msra.mxu0 %v4292
    %8960 = vmatpush.bf16.msra.mxu0 %v4289
    %8961 = vmatpush.bf16.msra.mxu0 %v4286
    %8962 = vmatpush.bf16.msra.mxu0 %v4283
    %8963 = vmatpush.bf16.msra.mxu0 %v4280
    %8964 = vmatpush.bf16.msra.mxu0 %v4277
    %8965 = vmatmul.bf16.gmra.mxu0 %v7724
    %v8966 = vpop.f32.mrf.mxu0
    %v8967 = vadd.f32 %v8954, %v8966
    %v8968 = vpop.f32.mrf.mxu0
    %8969 = vdwg.mxu0
    %8970 = vmatpush.bf16.msra.mxu0 %v4322
    %8971 = vmatpush.bf16.msra.mxu0 %v4319
    %8972 = vmatpush.bf16.msra.mxu0 %v4316
    %8973 = vmatpush.bf16.msra.mxu0 %v4313
    %8974 = vmatpush.bf16.msra.mxu0 %v4310
    %8975 = vmatpush.bf16.msra.mxu0 %v4307
    %8976 = vmatpush.bf16.msra.mxu0 %v4304
    %8977 = vmatpush.bf16.msra.mxu0 %v4301
    %8978 = vmatmul.bf16.gmra.mxu0 %v7725
    %v8979 = vpop.f32.mrf.mxu0
    %v8980 = vadd.f32 %v8967, %v8979
    %v8981 = vpop.f32.mrf.mxu0
    %8982 = vdwg.mxu0
    %8983 = vmatpush.bf16.msra.mxu0 %v4346
    %8984 = vmatpush.bf16.msra.mxu0 %v4343
    %8985 = vmatpush.bf16.msra.mxu0 %v4340
    %8986 = vmatpush.bf16.msra.mxu0 %v4337
    %8987 = vmatpush.bf16.msra.mxu0 %v4334
    %8988 = vmatpush.bf16.msra.mxu0 %v4331
    %8989 = vmatpush.bf16.msra.mxu0 %v4328
    %8990 = vmatpush.bf16.msra.mxu0 %v4325
    %8991 = vmatmul.bf16.gmra.mxu0 %v7726
    %v8992 = vpop.f32.mrf.mxu0
    %v8993 = vadd.f32 %v8980, %v8992
    %v8994 = vpop.f32.mrf.mxu0
    %8995 = vdwg.mxu0
    %8996 = vmatpush.bf16.msra.mxu0 0
    %8997 = vmatpush.bf16.msra.mxu0 0
    %8998 = vmatpush.bf16.msra.mxu0 0
    %8999 = vmatpush.bf16.msra.mxu0 0
    %9000 = vmatpush.bf16.msra.mxu0 0
    %9001 = vmatpush.bf16.msra.mxu0 0
    %9002 = vmatpush.bf16.msra.mxu0 %v4352
    %9003 = vmatpush.bf16.msra.mxu0 %v4349
    %9004 = vmatmul.bf16.gmra.mxu0 %v7759
    %v9005 = vpop.f32.mrf.mxu0
    %v9006 = vadd.f32 %v8993, %v9005
    %v9007 = vpop.f32.mrf.mxu0
    %9008 = vdwg.mxu0
    %s9009 = scalar_lea.vmem %s0, 96
    %v9010 = vld [vmem:[%s9009] sm:$0xff]
    %v9011 = vld [vmem:[%s9009 + $0x8] sm:$0xff]
    %v9012 = vld [vmem:[%s9009 + $0x10] sm:$0xff]
    %v9013 = vld [vmem:[%s9009 + $0x18] sm:$0xff]
    %9015 = vst [vmem:[#allocation1] ss:$9 sm:$0xff] %v9010
    %v9016 = vld [vmem:[#allocation1] sm:$0xff]
    %v9017 = vld [vmem:[#allocation1 + $0x9] sm:$0xff]
    %v9018 = vld [vmem:[#allocation1 + $0x12] sm:$0xff]
    %v9019 = vld [vmem:[#allocation1 + $0x1b] sm:$0xff]
    %v9020 = vld [vmem:[#allocation1 + $0x24] sm:$0xff]
    %v9021 = vld [vmem:[#allocation1 + $0x2d] sm:$0xff]
    %v9022 = vld [vmem:[#allocation1 + $0x36] sm:$0xff]
    %v9023 = vld [vmem:[#allocation1 + $0x3f] sm:$0xff]
    %9025 = vst [vmem:[#allocation1] ss:$9 sm:$0xff] %v9011
    %v9026 = vld [vmem:[#allocation1] sm:$0xff]
    %v9027 = vld [vmem:[#allocation1 + $0x9] sm:$0xff]
    %v9028 = vld [vmem:[#allocation1 + $0x12] sm:$0xff]
    %v9029 = vld [vmem:[#allocation1 + $0x1b] sm:$0xff]
    %v9030 = vld [vmem:[#allocation1 + $0x24] sm:$0xff]
    %v9031 = vld [vmem:[#allocation1 + $0x2d] sm:$0xff]
    %v9032 = vld [vmem:[#allocation1 + $0x36] sm:$0xff]
    %v9033 = vld [vmem:[#allocation1 + $0x3f] sm:$0xff]
    %9035 = vst [vmem:[#allocation1] ss:$9 sm:$0xff] %v9012
    %v9036 = vld [vmem:[#allocation1] sm:$0xff]
    %v9037 = vld [vmem:[#allocation1 + $0x9] sm:$0xff]
    %v9038 = vld [vmem:[#allocation1 + $0x12] sm:$0xff]
    %v9039 = vld [vmem:[#allocation1 + $0x1b] sm:$0xff]
    %v9040 = vld [vmem:[#allocation1 + $0x24] sm:$0xff]
    %v9041 = vld [vmem:[#allocation1 + $0x2d] sm:$0xff]
    %v9042 = vld [vmem:[#allocation1 + $0x36] sm:$0xff]
    %v9043 = vld [vmem:[#allocation1 + $0x3f] sm:$0xff]
    %9045 = vst [vmem:[#allocation1] ss:$9 sm:$0xff] %v9013
    %v9046 = vld [vmem:[#allocation1] sm:$0xff]
    %v9047 = vld [vmem:[#allocation1 + $0x9] sm:$0xff]
    %v9048 = vld [vmem:[#allocation1 + $0x12] sm:$0xff]
    %v9049 = vld [vmem:[#allocation1 + $0x1b] sm:$0xff]
    %v9050 = vld [vmem:[#allocation1 + $0x24] sm:$0xff]
    %v9051 = vld [vmem:[#allocation1 + $0x2d] sm:$0xff]
    %v9052 = vld [vmem:[#allocation1 + $0x36] sm:$0xff]
    %v9053 = vld [vmem:[#allocation1 + $0x3f] sm:$0xff]
    %v9085 = vsel %vm5103, %v9053, 0
    %9087 = vmatpush.bf16.msra.mxu0 %v3624
    %9088 = vmatpush.bf16.msra.mxu0 %v3621
    %9089 = vmatpush.bf16.msra.mxu0 %v3618
    %9090 = vmatpush.bf16.msra.mxu0 %v3615
    %9091 = vmatpush.bf16.msra.mxu0 %v3612
    %9092 = vmatpush.bf16.msra.mxu0 %v3609
    %9093 = vmatpush.bf16.msra.mxu0 %v3606
    %9094 = vmatpush.bf16.msra.mxu0 %v3603
    %9095 = vmatmul.bf16.gmra.mxu0 %v9016
    %v9096 = vpop.f32.mrf.mxu0
    %v9097 = vadd.f32 0.0, %v9096
    %v9098 = vpop.f32.mrf.mxu0
    %9099 = vdwg.mxu0
    %9100 = vmatpush.bf16.msra.mxu0 %v3648
    %9101 = vmatpush.bf16.msra.mxu0 %v3645
    %9102 = vmatpush.bf16.msra.mxu0 %v3642
    %9103 = vmatpush.bf16.msra.mxu0 %v3639
    %9104 = vmatpush.bf16.msra.mxu0 %v3636
    %9105 = vmatpush.bf16.msra.mxu0 %v3633
    %9106 = vmatpush.bf16.msra.mxu0 %v3630
    %9107 = vmatpush.bf16.msra.mxu0 %v3627
    %9108 = vmatmul.bf16.gmra.mxu0 %v9017
    %v9109 = vpop.f32.mrf.mxu0
    %v9110 = vadd.f32 %v9097, %v9109
    %v9111 = vpop.f32.mrf.mxu0
    %9112 = vdwg.mxu0
    %9113 = vmatpush.bf16.msra.mxu0 %v3672
    %9114 = vmatpush.bf16.msra.mxu0 %v3669
    %9115 = vmatpush.bf16.msra.mxu0 %v3666
    %9116 = vmatpush.bf16.msra.mxu0 %v3663
    %9117 = vmatpush.bf16.msra.mxu0 %v3660
    %9118 = vmatpush.bf16.msra.mxu0 %v3657
    %9119 = vmatpush.bf16.msra.mxu0 %v3654
    %9120 = vmatpush.bf16.msra.mxu0 %v3651
    %9121 = vmatmul.bf16.gmra.mxu0 %v9018
    %v9122 = vpop.f32.mrf.mxu0
    %v9123 = vadd.f32 %v9110, %v9122
    %v9124 = vpop.f32.mrf.mxu0
    %9125 = vdwg.mxu0
    %9126 = vmatpush.bf16.msra.mxu0 %v3696
    %9127 = vmatpush.bf16.msra.mxu0 %v3693
    %9128 = vmatpush.bf16.msra.mxu0 %v3690
    %9129 = vmatpush.bf16.msra.mxu0 %v3687
    %9130 = vmatpush.bf16.msra.mxu0 %v3684
    %9131 = vmatpush.bf16.msra.mxu0 %v3681
    %9132 = vmatpush.bf16.msra.mxu0 %v3678
    %9133 = vmatpush.bf16.msra.mxu0 %v3675
    %9134 = vmatmul.bf16.gmra.mxu0 %v9019
    %v9135 = vpop.f32.mrf.mxu0
    %v9136 = vadd.f32 %v9123, %v9135
    %v9137 = vpop.f32.mrf.mxu0
    %9138 = vdwg.mxu0
    %9139 = vmatpush.bf16.msra.mxu0 %v3720
    %9140 = vmatpush.bf16.msra.mxu0 %v3717
    %9141 = vmatpush.bf16.msra.mxu0 %v3714
    %9142 = vmatpush.bf16.msra.mxu0 %v3711
    %9143 = vmatpush.bf16.msra.mxu0 %v3708
    %9144 = vmatpush.bf16.msra.mxu0 %v3705
    %9145 = vmatpush.bf16.msra.mxu0 %v3702
    %9146 = vmatpush.bf16.msra.mxu0 %v3699
    %9147 = vmatmul.bf16.gmra.mxu0 %v9020
    %v9148 = vpop.f32.mrf.mxu0
    %v9149 = vadd.f32 %v9136, %v9148
    %v9150 = vpop.f32.mrf.mxu0
    %9151 = vdwg.mxu0
    %9152 = vmatpush.bf16.msra.mxu0 %v3744
    %9153 = vmatpush.bf16.msra.mxu0 %v3741
    %9154 = vmatpush.bf16.msra.mxu0 %v3738
    %9155 = vmatpush.bf16.msra.mxu0 %v3735
    %9156 = vmatpush.bf16.msra.mxu0 %v3732
    %9157 = vmatpush.bf16.msra.mxu0 %v3729
    %9158 = vmatpush.bf16.msra.mxu0 %v3726
    %9159 = vmatpush.bf16.msra.mxu0 %v3723
    %9160 = vmatmul.bf16.gmra.mxu0 %v9021
    %v9161 = vpop.f32.mrf.mxu0
    %v9162 = vadd.f32 %v9149, %v9161
    %v9163 = vpop.f32.mrf.mxu0
    %9164 = vdwg.mxu0
    %9165 = vmatpush.bf16.msra.mxu0 %v3768
    %9166 = vmatpush.bf16.msra.mxu0 %v3765
    %9167 = vmatpush.bf16.msra.mxu0 %v3762
    %9168 = vmatpush.bf16.msra.mxu0 %v3759
    %9169 = vmatpush.bf16.msra.mxu0 %v3756
    %9170 = vmatpush.bf16.msra.mxu0 %v3753
    %9171 = vmatpush.bf16.msra.mxu0 %v3750
    %9172 = vmatpush.bf16.msra.mxu0 %v3747
    %9173 = vmatmul.bf16.gmra.mxu0 %v9022
    %v9174 = vpop.f32.mrf.mxu0
    %v9175 = vadd.f32 %v9162, %v9174
    %v9176 = vpop.f32.mrf.mxu0
    %9177 = vdwg.mxu0
    %9178 = vmatpush.bf16.msra.mxu0 %v3792
    %9179 = vmatpush.bf16.msra.mxu0 %v3789
    %9180 = vmatpush.bf16.msra.mxu0 %v3786
    %9181 = vmatpush.bf16.msra.mxu0 %v3783
    %9182 = vmatpush.bf16.msra.mxu0 %v3780
    %9183 = vmatpush.bf16.msra.mxu0 %v3777
    %9184 = vmatpush.bf16.msra.mxu0 %v3774
    %9185 = vmatpush.bf16.msra.mxu0 %v3771
    %9186 = vmatmul.bf16.gmra.mxu0 %v9023
    %v9187 = vpop.f32.mrf.mxu0
    %v9188 = vadd.f32 %v9175, %v9187
    %v9189 = vpop.f32.mrf.mxu0
    %9190 = vdwg.mxu0
    %9191 = vmatpush.bf16.msra.mxu0 %v3816
    %9192 = vmatpush.bf16.msra.mxu0 %v3813
    %9193 = vmatpush.bf16.msra.mxu0 %v3810
    %9194 = vmatpush.bf16.msra.mxu0 %v3807
    %9195 = vmatpush.bf16.msra.mxu0 %v3804
    %9196 = vmatpush.bf16.msra.mxu0 %v3801
    %9197 = vmatpush.bf16.msra.mxu0 %v3798
    %9198 = vmatpush.bf16.msra.mxu0 %v3795
    %9199 = vmatmul.bf16.gmra.mxu0 %v9026
    %v9200 = vpop.f32.mrf.mxu0
    %v9201 = vadd.f32 %v9188, %v9200
    %v9202 = vpop.f32.mrf.mxu0
    %9203 = vdwg.mxu0
    %9204 = vmatpush.bf16.msra.mxu0 %v3840
    %9205 = vmatpush.bf16.msra.mxu0 %v3837
    %9206 = vmatpush.bf16.msra.mxu0 %v3834
    %9207 = vmatpush.bf16.msra.mxu0 %v3831
    %9208 = vmatpush.bf16.msra.mxu0 %v3828
    %9209 = vmatpush.bf16.msra.mxu0 %v3825
    %9210 = vmatpush.bf16.msra.mxu0 %v3822
    %9211 = vmatpush.bf16.msra.mxu0 %v3819
    %9212 = vmatmul.bf16.gmra.mxu0 %v9027
    %v9213 = vpop.f32.mrf.mxu0
    %v9214 = vadd.f32 %v9201, %v9213
    %v9215 = vpop.f32.mrf.mxu0
    %9216 = vdwg.mxu0
    %9217 = vmatpush.bf16.msra.mxu0 %v3864
    %9218 = vmatpush.bf16.msra.mxu0 %v3861
    %9219 = vmatpush.bf16.msra.mxu0 %v3858
    %9220 = vmatpush.bf16.msra.mxu0 %v3855
    %9221 = vmatpush.bf16.msra.mxu0 %v3852
    %9222 = vmatpush.bf16.msra.mxu0 %v3849
    %9223 = vmatpush.bf16.msra.mxu0 %v3846
    %9224 = vmatpush.bf16.msra.mxu0 %v3843
    %9225 = vmatmul.bf16.gmra.mxu0 %v9028
    %v9226 = vpop.f32.mrf.mxu0
    %v9227 = vadd.f32 %v9214, %v9226
    %v9228 = vpop.f32.mrf.mxu0
    %9229 = vdwg.mxu0
    %9230 = vmatpush.bf16.msra.mxu0 %v3888
    %9231 = vmatpush.bf16.msra.mxu0 %v3885
    %9232 = vmatpush.bf16.msra.mxu0 %v3882
    %9233 = vmatpush.bf16.msra.mxu0 %v3879
    %9234 = vmatpush.bf16.msra.mxu0 %v3876
    %9235 = vmatpush.bf16.msra.mxu0 %v3873
    %9236 = vmatpush.bf16.msra.mxu0 %v3870
    %9237 = vmatpush.bf16.msra.mxu0 %v3867
    %9238 = vmatmul.bf16.gmra.mxu0 %v9029
    %v9239 = vpop.f32.mrf.mxu0
    %v9240 = vadd.f32 %v9227, %v9239
    %v9241 = vpop.f32.mrf.mxu0
    %9242 = vdwg.mxu0
    %9243 = vmatpush.bf16.msra.mxu0 %v3912
    %9244 = vmatpush.bf16.msra.mxu0 %v3909
    %9245 = vmatpush.bf16.msra.mxu0 %v3906
    %9246 = vmatpush.bf16.msra.mxu0 %v3903
    %9247 = vmatpush.bf16.msra.mxu0 %v3900
    %9248 = vmatpush.bf16.msra.mxu0 %v3897
    %9249 = vmatpush.bf16.msra.mxu0 %v3894
    %9250 = vmatpush.bf16.msra.mxu0 %v3891
    %9251 = vmatmul.bf16.gmra.mxu0 %v9030
    %v9252 = vpop.f32.mrf.mxu0
    %v9253 = vadd.f32 %v9240, %v9252
    %v9254 = vpop.f32.mrf.mxu0
    %9255 = vdwg.mxu0
    %9256 = vmatpush.bf16.msra.mxu0 %v3936
    %9257 = vmatpush.bf16.msra.mxu0 %v3933
    %9258 = vmatpush.bf16.msra.mxu0 %v3930
    %9259 = vmatpush.bf16.msra.mxu0 %v3927
    %9260 = vmatpush.bf16.msra.mxu0 %v3924
    %9261 = vmatpush.bf16.msra.mxu0 %v3921
    %9262 = vmatpush.bf16.msra.mxu0 %v3918
    %9263 = vmatpush.bf16.msra.mxu0 %v3915
    %9264 = vmatmul.bf16.gmra.mxu0 %v9031
    %v9265 = vpop.f32.mrf.mxu0
    %v9266 = vadd.f32 %v9253, %v9265
    %v9267 = vpop.f32.mrf.mxu0
    %9268 = vdwg.mxu0
    %9269 = vmatpush.bf16.msra.mxu0 %v3960
    %9270 = vmatpush.bf16.msra.mxu0 %v3957
    %9271 = vmatpush.bf16.msra.mxu0 %v3954
    %9272 = vmatpush.bf16.msra.mxu0 %v3951
    %9273 = vmatpush.bf16.msra.mxu0 %v3948
    %9274 = vmatpush.bf16.msra.mxu0 %v3945
    %9275 = vmatpush.bf16.msra.mxu0 %v3942
    %9276 = vmatpush.bf16.msra.mxu0 %v3939
    %9277 = vmatmul.bf16.gmra.mxu0 %v9032
    %v9278 = vpop.f32.mrf.mxu0
    %v9279 = vadd.f32 %v9266, %v9278
    %v9280 = vpop.f32.mrf.mxu0
    %9281 = vdwg.mxu0
    %9282 = vmatpush.bf16.msra.mxu0 %v3984
    %9283 = vmatpush.bf16.msra.mxu0 %v3981
    %9284 = vmatpush.bf16.msra.mxu0 %v3978
    %9285 = vmatpush.bf16.msra.mxu0 %v3975
    %9286 = vmatpush.bf16.msra.mxu0 %v3972
    %9287 = vmatpush.bf16.msra.mxu0 %v3969
    %9288 = vmatpush.bf16.msra.mxu0 %v3966
    %9289 = vmatpush.bf16.msra.mxu0 %v3963
    %9290 = vmatmul.bf16.gmra.mxu0 %v9033
    %v9291 = vpop.f32.mrf.mxu0
    %v9292 = vadd.f32 %v9279, %v9291
    %v9293 = vpop.f32.mrf.mxu0
    %9294 = vdwg.mxu0
    %9295 = vmatpush.bf16.msra.mxu0 %v4008
    %9296 = vmatpush.bf16.msra.mxu0 %v4005
    %9297 = vmatpush.bf16.msra.mxu0 %v4002
    %9298 = vmatpush.bf16.msra.mxu0 %v3999
    %9299 = vmatpush.bf16.msra.mxu0 %v3996
    %9300 = vmatpush.bf16.msra.mxu0 %v3993
    %9301 = vmatpush.bf16.msra.mxu0 %v3990
    %9302 = vmatpush.bf16.msra.mxu0 %v3987
    %9303 = vmatmul.bf16.gmra.mxu0 %v9036
    %v9304 = vpop.f32.mrf.mxu0
    %v9305 = vadd.f32 %v9292, %v9304
    %v9306 = vpop.f32.mrf.mxu0
    %9307 = vdwg.mxu0
    %9308 = vmatpush.bf16.msra.mxu0 %v4032
    %9309 = vmatpush.bf16.msra.mxu0 %v4029
    %9310 = vmatpush.bf16.msra.mxu0 %v4026
    %9311 = vmatpush.bf16.msra.mxu0 %v4023
    %9312 = vmatpush.bf16.msra.mxu0 %v4020
    %9313 = vmatpush.bf16.msra.mxu0 %v4017
    %9314 = vmatpush.bf16.msra.mxu0 %v4014
    %9315 = vmatpush.bf16.msra.mxu0 %v4011
    %9316 = vmatmul.bf16.gmra.mxu0 %v9037
    %v9317 = vpop.f32.mrf.mxu0
    %v9318 = vadd.f32 %v9305, %v9317
    %v9319 = vpop.f32.mrf.mxu0
    %9320 = vdwg.mxu0
    %9321 = vmatpush.bf16.msra.mxu0 %v4056
    %9322 = vmatpush.bf16.msra.mxu0 %v4053
    %9323 = vmatpush.bf16.msra.mxu0 %v4050
    %9324 = vmatpush.bf16.msra.mxu0 %v4047
    %9325 = vmatpush.bf16.msra.mxu0 %v4044
    %9326 = vmatpush.bf16.msra.mxu0 %v4041
    %9327 = vmatpush.bf16.msra.mxu0 %v4038
    %9328 = vmatpush.bf16.msra.mxu0 %v4035
    %9329 = vmatmul.bf16.gmra.mxu0 %v9038
    %v9330 = vpop.f32.mrf.mxu0
    %v9331 = vadd.f32 %v9318, %v9330
    %v9332 = vpop.f32.mrf.mxu0
    %9333 = vdwg.mxu0
    %9334 = vmatpush.bf16.msra.mxu0 %v4080
    %9335 = vmatpush.bf16.msra.mxu0 %v4077
    %9336 = vmatpush.bf16.msra.mxu0 %v4074
    %9337 = vmatpush.bf16.msra.mxu0 %v4071
    %9338 = vmatpush.bf16.msra.mxu0 %v4068
    %9339 = vmatpush.bf16.msra.mxu0 %v4065
    %9340 = vmatpush.bf16.msra.mxu0 %v4062
    %9341 = vmatpush.bf16.msra.mxu0 %v4059
    %9342 = vmatmul.bf16.gmra.mxu0 %v9039
    %v9343 = vpop.f32.mrf.mxu0
    %v9344 = vadd.f32 %v9331, %v9343
    %v9345 = vpop.f32.mrf.mxu0
    %9346 = vdwg.mxu0
    %9347 = vmatpush.bf16.msra.mxu0 %v4104
    %9348 = vmatpush.bf16.msra.mxu0 %v4101
    %9349 = vmatpush.bf16.msra.mxu0 %v4098
    %9350 = vmatpush.bf16.msra.mxu0 %v4095
    %9351 = vmatpush.bf16.msra.mxu0 %v4092
    %9352 = vmatpush.bf16.msra.mxu0 %v4089
    %9353 = vmatpush.bf16.msra.mxu0 %v4086
    %9354 = vmatpush.bf16.msra.mxu0 %v4083
    %9355 = vmatmul.bf16.gmra.mxu0 %v9040
    %v9356 = vpop.f32.mrf.mxu0
    %v9357 = vadd.f32 %v9344, %v9356
    %v9358 = vpop.f32.mrf.mxu0
    %9359 = vdwg.mxu0
    %9360 = vmatpush.bf16.msra.mxu0 %v4128
    %9361 = vmatpush.bf16.msra.mxu0 %v4125
    %9362 = vmatpush.bf16.msra.mxu0 %v4122
    %9363 = vmatpush.bf16.msra.mxu0 %v4119
    %9364 = vmatpush.bf16.msra.mxu0 %v4116
    %9365 = vmatpush.bf16.msra.mxu0 %v4113
    %9366 = vmatpush.bf16.msra.mxu0 %v4110
    %9367 = vmatpush.bf16.msra.mxu0 %v4107
    %9368 = vmatmul.bf16.gmra.mxu0 %v9041
    %v9369 = vpop.f32.mrf.mxu0
    %v9370 = vadd.f32 %v9357, %v9369
    %v9371 = vpop.f32.mrf.mxu0
    %9372 = vdwg.mxu0
    %9373 = vmatpush.bf16.msra.mxu0 %v4152
    %9374 = vmatpush.bf16.msra.mxu0 %v4149
    %9375 = vmatpush.bf16.msra.mxu0 %v4146
    %9376 = vmatpush.bf16.msra.mxu0 %v4143
    %9377 = vmatpush.bf16.msra.mxu0 %v4140
    %9378 = vmatpush.bf16.msra.mxu0 %v4137
    %9379 = vmatpush.bf16.msra.mxu0 %v4134
    %9380 = vmatpush.bf16.msra.mxu0 %v4131
    %9381 = vmatmul.bf16.gmra.mxu0 %v9042
    %v9382 = vpop.f32.mrf.mxu0
    %v9383 = vadd.f32 %v9370, %v9382
    %v9384 = vpop.f32.mrf.mxu0
    %9385 = vdwg.mxu0
    %9386 = vmatpush.bf16.msra.mxu0 %v4176
    %9387 = vmatpush.bf16.msra.mxu0 %v4173
    %9388 = vmatpush.bf16.msra.mxu0 %v4170
    %9389 = vmatpush.bf16.msra.mxu0 %v4167
    %9390 = vmatpush.bf16.msra.mxu0 %v4164
    %9391 = vmatpush.bf16.msra.mxu0 %v4161
    %9392 = vmatpush.bf16.msra.mxu0 %v4158
    %9393 = vmatpush.bf16.msra.mxu0 %v4155
    %9394 = vmatmul.bf16.gmra.mxu0 %v9043
    %v9395 = vpop.f32.mrf.mxu0
    %v9396 = vadd.f32 %v9383, %v9395
    %v9397 = vpop.f32.mrf.mxu0
    %9398 = vdwg.mxu0
    %9399 = vmatpush.bf16.msra.mxu0 %v4200
    %9400 = vmatpush.bf16.msra.mxu0 %v4197
    %9401 = vmatpush.bf16.msra.mxu0 %v4194
    %9402 = vmatpush.bf16.msra.mxu0 %v4191
    %9403 = vmatpush.bf16.msra.mxu0 %v4188
    %9404 = vmatpush.bf16.msra.mxu0 %v4185
    %9405 = vmatpush.bf16.msra.mxu0 %v4182
    %9406 = vmatpush.bf16.msra.mxu0 %v4179
    %9407 = vmatmul.bf16.gmra.mxu0 %v9046
    %v9408 = vpop.f32.mrf.mxu0
    %v9409 = vadd.f32 %v9396, %v9408
    %v9410 = vpop.f32.mrf.mxu0
    %9411 = vdwg.mxu0
    %9412 = vmatpush.bf16.msra.mxu0 %v4224
    %9413 = vmatpush.bf16.msra.mxu0 %v4221
    %9414 = vmatpush.bf16.msra.mxu0 %v4218
    %9415 = vmatpush.bf16.msra.mxu0 %v4215
    %9416 = vmatpush.bf16.msra.mxu0 %v4212
    %9417 = vmatpush.bf16.msra.mxu0 %v4209
    %9418 = vmatpush.bf16.msra.mxu0 %v4206
    %9419 = vmatpush.bf16.msra.mxu0 %v4203
    %9420 = vmatmul.bf16.gmra.mxu0 %v9047
    %v9421 = vpop.f32.mrf.mxu0
    %v9422 = vadd.f32 %v9409, %v9421
    %v9423 = vpop.f32.mrf.mxu0
    %9424 = vdwg.mxu0
    %9425 = vmatpush.bf16.msra.mxu0 %v4248
    %9426 = vmatpush.bf16.msra.mxu0 %v4245
    %9427 = vmatpush.bf16.msra.mxu0 %v4242
    %9428 = vmatpush.bf16.msra.mxu0 %v4239
    %9429 = vmatpush.bf16.msra.mxu0 %v4236
    %9430 = vmatpush.bf16.msra.mxu0 %v4233
    %9431 = vmatpush.bf16.msra.mxu0 %v4230
    %9432 = vmatpush.bf16.msra.mxu0 %v4227
    %9433 = vmatmul.bf16.gmra.mxu0 %v9048
    %v9434 = vpop.f32.mrf.mxu0
    %v9435 = vadd.f32 %v9422, %v9434
    %v9436 = vpop.f32.mrf.mxu0
    %9437 = vdwg.mxu0
    %9438 = vmatpush.bf16.msra.mxu0 %v4272
    %9439 = vmatpush.bf16.msra.mxu0 %v4269
    %9440 = vmatpush.bf16.msra.mxu0 %v4266
    %9441 = vmatpush.bf16.msra.mxu0 %v4263
    %9442 = vmatpush.bf16.msra.mxu0 %v4260
    %9443 = vmatpush.bf16.msra.mxu0 %v4257
    %9444 = vmatpush.bf16.msra.mxu0 %v4254
    %9445 = vmatpush.bf16.msra.mxu0 %v4251
    %9446 = vmatmul.bf16.gmra.mxu0 %v9049
    %v9447 = vpop.f32.mrf.mxu0
    %v9448 = vadd.f32 %v9435, %v9447
    %v9449 = vpop.f32.mrf.mxu0
    %9450 = vdwg.mxu0
    %9451 = vmatpush.bf16.msra.mxu0 %v4296
    %9452 = vmatpush.bf16.msra.mxu0 %v4293
    %9453 = vmatpush.bf16.msra.mxu0 %v4290
    %9454 = vmatpush.bf16.msra.mxu0 %v4287
    %9455 = vmatpush.bf16.msra.mxu0 %v4284
    %9456 = vmatpush.bf16.msra.mxu0 %v4281
    %9457 = vmatpush.bf16.msra.mxu0 %v4278
    %9458 = vmatpush.bf16.msra.mxu0 %v4275
    %9459 = vmatmul.bf16.gmra.mxu0 %v9050
    %v9460 = vpop.f32.mrf.mxu0
    %v9461 = vadd.f32 %v9448, %v9460
    %v9462 = vpop.f32.mrf.mxu0
    %9463 = vdwg.mxu0
    %9464 = vmatpush.bf16.msra.mxu0 %v4320
    %9465 = vmatpush.bf16.msra.mxu0 %v4317
    %9466 = vmatpush.bf16.msra.mxu0 %v4314
    %9467 = vmatpush.bf16.msra.mxu0 %v4311
    %9468 = vmatpush.bf16.msra.mxu0 %v4308
    %9469 = vmatpush.bf16.msra.mxu0 %v4305
    %9470 = vmatpush.bf16.msra.mxu0 %v4302
    %9471 = vmatpush.bf16.msra.mxu0 %v4299
    %9472 = vmatmul.bf16.gmra.mxu0 %v9051
    %v9473 = vpop.f32.mrf.mxu0
    %v9474 = vadd.f32 %v9461, %v9473
    %v9475 = vpop.f32.mrf.mxu0
    %9476 = vdwg.mxu0
    %9477 = vmatpush.bf16.msra.mxu0 %v4344
    %9478 = vmatpush.bf16.msra.mxu0 %v4341
    %9479 = vmatpush.bf16.msra.mxu0 %v4338
    %9480 = vmatpush.bf16.msra.mxu0 %v4335
    %9481 = vmatpush.bf16.msra.mxu0 %v4332
    %9482 = vmatpush.bf16.msra.mxu0 %v4329
    %9483 = vmatpush.bf16.msra.mxu0 %v4326
    %9484 = vmatpush.bf16.msra.mxu0 %v4323
    %9485 = vmatmul.bf16.gmra.mxu0 %v9052
    %v9486 = vpop.f32.mrf.mxu0
    %v9487 = vadd.f32 %v9474, %v9486
    %v9488 = vpop.f32.mrf.mxu0
    %9489 = vdwg.mxu0
    %9490 = vmatpush.bf16.msra.mxu0 0
    %9491 = vmatpush.bf16.msra.mxu0 0
    %9492 = vmatpush.bf16.msra.mxu0 0
    %9493 = vmatpush.bf16.msra.mxu0 0
    %9494 = vmatpush.bf16.msra.mxu0 0
    %9495 = vmatpush.bf16.msra.mxu0 0
    %9496 = vmatpush.bf16.msra.mxu0 %v4350
    %9497 = vmatpush.bf16.msra.mxu0 %v4347
    %9498 = vmatmul.bf16.gmra.mxu0 %v9085
    %v9499 = vpop.f32.mrf.mxu0
    %v9500 = vadd.f32 %v9487, %v9499
    %v9501 = vpop.f32.mrf.mxu0
    %9502 = vdwg.mxu0
    %9503 = vmatpush.bf16.msra.mxu0 %v3625
    %9504 = vmatpush.bf16.msra.mxu0 %v3622
    %9505 = vmatpush.bf16.msra.mxu0 %v3619
    %9506 = vmatpush.bf16.msra.mxu0 %v3616
    %9507 = vmatpush.bf16.msra.mxu0 %v3613
    %9508 = vmatpush.bf16.msra.mxu0 %v3610
    %9509 = vmatpush.bf16.msra.mxu0 %v3607
    %9510 = vmatpush.bf16.msra.mxu0 %v3604
    %9511 = vmatmul.bf16.gmra.mxu0 %v9016
    %v9512 = vpop.f32.mrf.mxu0
    %v9513 = vadd.f32 0.0, %v9512
    %v9514 = vpop.f32.mrf.mxu0
    %9515 = vdwg.mxu0
    %9516 = vmatpush.bf16.msra.mxu0 %v3649
    %9517 = vmatpush.bf16.msra.mxu0 %v3646
    %9518 = vmatpush.bf16.msra.mxu0 %v3643
    %9519 = vmatpush.bf16.msra.mxu0 %v3640
    %9520 = vmatpush.bf16.msra.mxu0 %v3637
    %9521 = vmatpush.bf16.msra.mxu0 %v3634
    %9522 = vmatpush.bf16.msra.mxu0 %v3631
    %9523 = vmatpush.bf16.msra.mxu0 %v3628
    %9524 = vmatmul.bf16.gmra.mxu0 %v9017
    %v9525 = vpop.f32.mrf.mxu0
    %v9526 = vadd.f32 %v9513, %v9525
    %v9527 = vpop.f32.mrf.mxu0
    %9528 = vdwg.mxu0
    %9529 = vmatpush.bf16.msra.mxu0 %v3673
    %9530 = vmatpush.bf16.msra.mxu0 %v3670
    %9531 = vmatpush.bf16.msra.mxu0 %v3667
    %9532 = vmatpush.bf16.msra.mxu0 %v3664
    %9533 = vmatpush.bf16.msra.mxu0 %v3661
    %9534 = vmatpush.bf16.msra.mxu0 %v3658
    %9535 = vmatpush.bf16.msra.mxu0 %v3655
    %9536 = vmatpush.bf16.msra.mxu0 %v3652
    %9537 = vmatmul.bf16.gmra.mxu0 %v9018
    %v9538 = vpop.f32.mrf.mxu0
    %v9539 = vadd.f32 %v9526, %v9538
    %v9540 = vpop.f32.mrf.mxu0
    %9541 = vdwg.mxu0
    %9542 = vmatpush.bf16.msra.mxu0 %v3697
    %9543 = vmatpush.bf16.msra.mxu0 %v3694
    %9544 = vmatpush.bf16.msra.mxu0 %v3691
    %9545 = vmatpush.bf16.msra.mxu0 %v3688
    %9546 = vmatpush.bf16.msra.mxu0 %v3685
    %9547 = vmatpush.bf16.msra.mxu0 %v3682
    %9548 = vmatpush.bf16.msra.mxu0 %v3679
    %9549 = vmatpush.bf16.msra.mxu0 %v3676
    %9550 = vmatmul.bf16.gmra.mxu0 %v9019
    %v9551 = vpop.f32.mrf.mxu0
    %v9552 = vadd.f32 %v9539, %v9551
    %v9553 = vpop.f32.mrf.mxu0
    %9554 = vdwg.mxu0
    %9555 = vmatpush.bf16.msra.mxu0 %v3721
    %9556 = vmatpush.bf16.msra.mxu0 %v3718
    %9557 = vmatpush.bf16.msra.mxu0 %v3715
    %9558 = vmatpush.bf16.msra.mxu0 %v3712
    %9559 = vmatpush.bf16.msra.mxu0 %v3709
    %9560 = vmatpush.bf16.msra.mxu0 %v3706
    %9561 = vmatpush.bf16.msra.mxu0 %v3703
    %9562 = vmatpush.bf16.msra.mxu0 %v3700
    %9563 = vmatmul.bf16.gmra.mxu0 %v9020
    %v9564 = vpop.f32.mrf.mxu0
    %v9565 = vadd.f32 %v9552, %v9564
    %v9566 = vpop.f32.mrf.mxu0
    %9567 = vdwg.mxu0
    %9568 = vmatpush.bf16.msra.mxu0 %v3745
    %9569 = vmatpush.bf16.msra.mxu0 %v3742
    %9570 = vmatpush.bf16.msra.mxu0 %v3739
    %9571 = vmatpush.bf16.msra.mxu0 %v3736
    %9572 = vmatpush.bf16.msra.mxu0 %v3733
    %9573 = vmatpush.bf16.msra.mxu0 %v3730
    %9574 = vmatpush.bf16.msra.mxu0 %v3727
    %9575 = vmatpush.bf16.msra.mxu0 %v3724
    %9576 = vmatmul.bf16.gmra.mxu0 %v9021
    %v9577 = vpop.f32.mrf.mxu0
    %v9578 = vadd.f32 %v9565, %v9577
    %v9579 = vpop.f32.mrf.mxu0
    %9580 = vdwg.mxu0
    %9581 = vmatpush.bf16.msra.mxu0 %v3769
    %9582 = vmatpush.bf16.msra.mxu0 %v3766
    %9583 = vmatpush.bf16.msra.mxu0 %v3763
    %9584 = vmatpush.bf16.msra.mxu0 %v3760
    %9585 = vmatpush.bf16.msra.mxu0 %v3757
    %9586 = vmatpush.bf16.msra.mxu0 %v3754
    %9587 = vmatpush.bf16.msra.mxu0 %v3751
    %9588 = vmatpush.bf16.msra.mxu0 %v3748
    %9589 = vmatmul.bf16.gmra.mxu0 %v9022
    %v9590 = vpop.f32.mrf.mxu0
    %v9591 = vadd.f32 %v9578, %v9590
    %v9592 = vpop.f32.mrf.mxu0
    %9593 = vdwg.mxu0
    %9594 = vmatpush.bf16.msra.mxu0 %v3793
    %9595 = vmatpush.bf16.msra.mxu0 %v3790
    %9596 = vmatpush.bf16.msra.mxu0 %v3787
    %9597 = vmatpush.bf16.msra.mxu0 %v3784
    %9598 = vmatpush.bf16.msra.mxu0 %v3781
    %9599 = vmatpush.bf16.msra.mxu0 %v3778
    %9600 = vmatpush.bf16.msra.mxu0 %v3775
    %9601 = vmatpush.bf16.msra.mxu0 %v3772
    %9602 = vmatmul.bf16.gmra.mxu0 %v9023
    %v9603 = vpop.f32.mrf.mxu0
    %v9604 = vadd.f32 %v9591, %v9603
    %v9605 = vpop.f32.mrf.mxu0
    %9606 = vdwg.mxu0
    %9607 = vmatpush.bf16.msra.mxu0 %v3817
    %9608 = vmatpush.bf16.msra.mxu0 %v3814
    %9609 = vmatpush.bf16.msra.mxu0 %v3811
    %9610 = vmatpush.bf16.msra.mxu0 %v3808
    %9611 = vmatpush.bf16.msra.mxu0 %v3805
    %9612 = vmatpush.bf16.msra.mxu0 %v3802
    %9613 = vmatpush.bf16.msra.mxu0 %v3799
    %9614 = vmatpush.bf16.msra.mxu0 %v3796
    %9615 = vmatmul.bf16.gmra.mxu0 %v9026
    %v9616 = vpop.f32.mrf.mxu0
    %v9617 = vadd.f32 %v9604, %v9616
    %v9618 = vpop.f32.mrf.mxu0
    %9619 = vdwg.mxu0
    %9620 = vmatpush.bf16.msra.mxu0 %v3841
    %9621 = vmatpush.bf16.msra.mxu0 %v3838
    %9622 = vmatpush.bf16.msra.mxu0 %v3835
    %9623 = vmatpush.bf16.msra.mxu0 %v3832
    %9624 = vmatpush.bf16.msra.mxu0 %v3829
    %9625 = vmatpush.bf16.msra.mxu0 %v3826
    %9626 = vmatpush.bf16.msra.mxu0 %v3823
    %9627 = vmatpush.bf16.msra.mxu0 %v3820
    %9628 = vmatmul.bf16.gmra.mxu0 %v9027
    %v9629 = vpop.f32.mrf.mxu0
    %v9630 = vadd.f32 %v9617, %v9629
    %v9631 = vpop.f32.mrf.mxu0
    %9632 = vdwg.mxu0
    %9633 = vmatpush.bf16.msra.mxu0 %v3865
    %9634 = vmatpush.bf16.msra.mxu0 %v3862
    %9635 = vmatpush.bf16.msra.mxu0 %v3859
    %9636 = vmatpush.bf16.msra.mxu0 %v3856
    %9637 = vmatpush.bf16.msra.mxu0 %v3853
    %9638 = vmatpush.bf16.msra.mxu0 %v3850
    %9639 = vmatpush.bf16.msra.mxu0 %v3847
    %9640 = vmatpush.bf16.msra.mxu0 %v3844
    %9641 = vmatmul.bf16.gmra.mxu0 %v9028
    %v9642 = vpop.f32.mrf.mxu0
    %v9643 = vadd.f32 %v9630, %v9642
    %v9644 = vpop.f32.mrf.mxu0
    %9645 = vdwg.mxu0
    %9646 = vmatpush.bf16.msra.mxu0 %v3889
    %9647 = vmatpush.bf16.msra.mxu0 %v3886
    %9648 = vmatpush.bf16.msra.mxu0 %v3883
    %9649 = vmatpush.bf16.msra.mxu0 %v3880
    %9650 = vmatpush.bf16.msra.mxu0 %v3877
    %9651 = vmatpush.bf16.msra.mxu0 %v3874
    %9652 = vmatpush.bf16.msra.mxu0 %v3871
    %9653 = vmatpush.bf16.msra.mxu0 %v3868
    %9654 = vmatmul.bf16.gmra.mxu0 %v9029
    %v9655 = vpop.f32.mrf.mxu0
    %v9656 = vadd.f32 %v9643, %v9655
    %v9657 = vpop.f32.mrf.mxu0
    %9658 = vdwg.mxu0
    %9659 = vmatpush.bf16.msra.mxu0 %v3913
    %9660 = vmatpush.bf16.msra.mxu0 %v3910
    %9661 = vmatpush.bf16.msra.mxu0 %v3907
    %9662 = vmatpush.bf16.msra.mxu0 %v3904
    %9663 = vmatpush.bf16.msra.mxu0 %v3901
    %9664 = vmatpush.bf16.msra.mxu0 %v3898
    %9665 = vmatpush.bf16.msra.mxu0 %v3895
    %9666 = vmatpush.bf16.msra.mxu0 %v3892
    %9667 = vmatmul.bf16.gmra.mxu0 %v9030
    %v9668 = vpop.f32.mrf.mxu0
    %v9669 = vadd.f32 %v9656, %v9668
    %v9670 = vpop.f32.mrf.mxu0
    %9671 = vdwg.mxu0
    %9672 = vmatpush.bf16.msra.mxu0 %v3937
    %9673 = vmatpush.bf16.msra.mxu0 %v3934
    %9674 = vmatpush.bf16.msra.mxu0 %v3931
    %9675 = vmatpush.bf16.msra.mxu0 %v3928
    %9676 = vmatpush.bf16.msra.mxu0 %v3925
    %9677 = vmatpush.bf16.msra.mxu0 %v3922
    %9678 = vmatpush.bf16.msra.mxu0 %v3919
    %9679 = vmatpush.bf16.msra.mxu0 %v3916
    %9680 = vmatmul.bf16.gmra.mxu0 %v9031
    %v9681 = vpop.f32.mrf.mxu0
    %v9682 = vadd.f32 %v9669, %v9681
    %v9683 = vpop.f32.mrf.mxu0
    %9684 = vdwg.mxu0
    %9685 = vmatpush.bf16.msra.mxu0 %v3961
    %9686 = vmatpush.bf16.msra.mxu0 %v3958
    %9687 = vmatpush.bf16.msra.mxu0 %v3955
    %9688 = vmatpush.bf16.msra.mxu0 %v3952
    %9689 = vmatpush.bf16.msra.mxu0 %v3949
    %9690 = vmatpush.bf16.msra.mxu0 %v3946
    %9691 = vmatpush.bf16.msra.mxu0 %v3943
    %9692 = vmatpush.bf16.msra.mxu0 %v3940
    %9693 = vmatmul.bf16.gmra.mxu0 %v9032
    %v9694 = vpop.f32.mrf.mxu0
    %v9695 = vadd.f32 %v9682, %v9694
    %v9696 = vpop.f32.mrf.mxu0
    %9697 = vdwg.mxu0
    %9698 = vmatpush.bf16.msra.mxu0 %v3985
    %9699 = vmatpush.bf16.msra.mxu0 %v3982
    %9700 = vmatpush.bf16.msra.mxu0 %v3979
    %9701 = vmatpush.bf16.msra.mxu0 %v3976
    %9702 = vmatpush.bf16.msra.mxu0 %v3973
    %9703 = vmatpush.bf16.msra.mxu0 %v3970
    %9704 = vmatpush.bf16.msra.mxu0 %v3967
    %9705 = vmatpush.bf16.msra.mxu0 %v3964
    %9706 = vmatmul.bf16.gmra.mxu0 %v9033
    %v9707 = vpop.f32.mrf.mxu0
    %v9708 = vadd.f32 %v9695, %v9707
    %v9709 = vpop.f32.mrf.mxu0
    %9710 = vdwg.mxu0
    %9711 = vmatpush.bf16.msra.mxu0 %v4009
    %9712 = vmatpush.bf16.msra.mxu0 %v4006
    %9713 = vmatpush.bf16.msra.mxu0 %v4003
    %9714 = vmatpush.bf16.msra.mxu0 %v4000
    %9715 = vmatpush.bf16.msra.mxu0 %v3997
    %9716 = vmatpush.bf16.msra.mxu0 %v3994
    %9717 = vmatpush.bf16.msra.mxu0 %v3991
    %9718 = vmatpush.bf16.msra.mxu0 %v3988
    %9719 = vmatmul.bf16.gmra.mxu0 %v9036
    %v9720 = vpop.f32.mrf.mxu0
    %v9721 = vadd.f32 %v9708, %v9720
    %v9722 = vpop.f32.mrf.mxu0
    %9723 = vdwg.mxu0
    %9724 = vmatpush.bf16.msra.mxu0 %v4033
    %9725 = vmatpush.bf16.msra.mxu0 %v4030
    %9726 = vmatpush.bf16.msra.mxu0 %v4027
    %9727 = vmatpush.bf16.msra.mxu0 %v4024
    %9728 = vmatpush.bf16.msra.mxu0 %v4021
    %9729 = vmatpush.bf16.msra.mxu0 %v4018
    %9730 = vmatpush.bf16.msra.mxu0 %v4015
    %9731 = vmatpush.bf16.msra.mxu0 %v4012
    %9732 = vmatmul.bf16.gmra.mxu0 %v9037
    %v9733 = vpop.f32.mrf.mxu0
    %v9734 = vadd.f32 %v9721, %v9733
    %v9735 = vpop.f32.mrf.mxu0
    %9736 = vdwg.mxu0
    %9737 = vmatpush.bf16.msra.mxu0 %v4057
    %9738 = vmatpush.bf16.msra.mxu0 %v4054
    %9739 = vmatpush.bf16.msra.mxu0 %v4051
    %9740 = vmatpush.bf16.msra.mxu0 %v4048
    %9741 = vmatpush.bf16.msra.mxu0 %v4045
    %9742 = vmatpush.bf16.msra.mxu0 %v4042
    %9743 = vmatpush.bf16.msra.mxu0 %v4039
    %9744 = vmatpush.bf16.msra.mxu0 %v4036
    %9745 = vmatmul.bf16.gmra.mxu0 %v9038
    %v9746 = vpop.f32.mrf.mxu0
    %v9747 = vadd.f32 %v9734, %v9746
    %v9748 = vpop.f32.mrf.mxu0
    %9749 = vdwg.mxu0
    %9750 = vmatpush.bf16.msra.mxu0 %v4081
    %9751 = vmatpush.bf16.msra.mxu0 %v4078
    %9752 = vmatpush.bf16.msra.mxu0 %v4075
    %9753 = vmatpush.bf16.msra.mxu0 %v4072
    %9754 = vmatpush.bf16.msra.mxu0 %v4069
    %9755 = vmatpush.bf16.msra.mxu0 %v4066
    %9756 = vmatpush.bf16.msra.mxu0 %v4063
    %9757 = vmatpush.bf16.msra.mxu0 %v4060
    %9758 = vmatmul.bf16.gmra.mxu0 %v9039
    %v9759 = vpop.f32.mrf.mxu0
    %v9760 = vadd.f32 %v9747, %v9759
    %v9761 = vpop.f32.mrf.mxu0
    %9762 = vdwg.mxu0
    %9763 = vmatpush.bf16.msra.mxu0 %v4105
    %9764 = vmatpush.bf16.msra.mxu0 %v4102
    %9765 = vmatpush.bf16.msra.mxu0 %v4099
    %9766 = vmatpush.bf16.msra.mxu0 %v4096
    %9767 = vmatpush.bf16.msra.mxu0 %v4093
    %9768 = vmatpush.bf16.msra.mxu0 %v4090
    %9769 = vmatpush.bf16.msra.mxu0 %v4087
    %9770 = vmatpush.bf16.msra.mxu0 %v4084
    %9771 = vmatmul.bf16.gmra.mxu0 %v9040
    %v9772 = vpop.f32.mrf.mxu0
    %v9773 = vadd.f32 %v9760, %v9772
    %v9774 = vpop.f32.mrf.mxu0
    %9775 = vdwg.mxu0
    %9776 = vmatpush.bf16.msra.mxu0 %v4129
    %9777 = vmatpush.bf16.msra.mxu0 %v4126
    %9778 = vmatpush.bf16.msra.mxu0 %v4123
    %9779 = vmatpush.bf16.msra.mxu0 %v4120
    %9780 = vmatpush.bf16.msra.mxu0 %v4117
    %9781 = vmatpush.bf16.msra.mxu0 %v4114
    %9782 = vmatpush.bf16.msra.mxu0 %v4111
    %9783 = vmatpush.bf16.msra.mxu0 %v4108
    %9784 = vmatmul.bf16.gmra.mxu0 %v9041
    %v9785 = vpop.f32.mrf.mxu0
    %v9786 = vadd.f32 %v9773, %v9785
    %v9787 = vpop.f32.mrf.mxu0
    %9788 = vdwg.mxu0
    %9789 = vmatpush.bf16.msra.mxu0 %v4153
    %9790 = vmatpush.bf16.msra.mxu0 %v4150
    %9791 = vmatpush.bf16.msra.mxu0 %v4147
    %9792 = vmatpush.bf16.msra.mxu0 %v4144
    %9793 = vmatpush.bf16.msra.mxu0 %v4141
    %9794 = vmatpush.bf16.msra.mxu0 %v4138
    %9795 = vmatpush.bf16.msra.mxu0 %v4135
    %9796 = vmatpush.bf16.msra.mxu0 %v4132
    %9797 = vmatmul.bf16.gmra.mxu0 %v9042
    %v9798 = vpop.f32.mrf.mxu0
    %v9799 = vadd.f32 %v9786, %v9798
    %v9800 = vpop.f32.mrf.mxu0
    %9801 = vdwg.mxu0
    %9802 = vmatpush.bf16.msra.mxu0 %v4177
    %9803 = vmatpush.bf16.msra.mxu0 %v4174
    %9804 = vmatpush.bf16.msra.mxu0 %v4171
    %9805 = vmatpush.bf16.msra.mxu0 %v4168
    %9806 = vmatpush.bf16.msra.mxu0 %v4165
    %9807 = vmatpush.bf16.msra.mxu0 %v4162
    %9808 = vmatpush.bf16.msra.mxu0 %v4159
    %9809 = vmatpush.bf16.msra.mxu0 %v4156
    %9810 = vmatmul.bf16.gmra.mxu0 %v9043
    %v9811 = vpop.f32.mrf.mxu0
    %v9812 = vadd.f32 %v9799, %v9811
    %v9813 = vpop.f32.mrf.mxu0
    %9814 = vdwg.mxu0
    %9815 = vmatpush.bf16.msra.mxu0 %v4201
    %9816 = vmatpush.bf16.msra.mxu0 %v4198
    %9817 = vmatpush.bf16.msra.mxu0 %v4195
    %9818 = vmatpush.bf16.msra.mxu0 %v4192
    %9819 = vmatpush.bf16.msra.mxu0 %v4189
    %9820 = vmatpush.bf16.msra.mxu0 %v4186
    %9821 = vmatpush.bf16.msra.mxu0 %v4183
    %9822 = vmatpush.bf16.msra.mxu0 %v4180
    %9823 = vmatmul.bf16.gmra.mxu0 %v9046
    %v9824 = vpop.f32.mrf.mxu0
    %v9825 = vadd.f32 %v9812, %v9824
    %v9826 = vpop.f32.mrf.mxu0
    %9827 = vdwg.mxu0
    %9828 = vmatpush.bf16.msra.mxu0 %v4225
    %9829 = vmatpush.bf16.msra.mxu0 %v4222
    %9830 = vmatpush.bf16.msra.mxu0 %v4219
    %9831 = vmatpush.bf16.msra.mxu0 %v4216
    %9832 = vmatpush.bf16.msra.mxu0 %v4213
    %9833 = vmatpush.bf16.msra.mxu0 %v4210
    %9834 = vmatpush.bf16.msra.mxu0 %v4207
    %9835 = vmatpush.bf16.msra.mxu0 %v4204
    %9836 = vmatmul.bf16.gmra.mxu0 %v9047
    %v9837 = vpop.f32.mrf.mxu0
    %v9838 = vadd.f32 %v9825, %v9837
    %v9839 = vpop.f32.mrf.mxu0
    %9840 = vdwg.mxu0
    %9841 = vmatpush.bf16.msra.mxu0 %v4249
    %9842 = vmatpush.bf16.msra.mxu0 %v4246
    %9843 = vmatpush.bf16.msra.mxu0 %v4243
    %9844 = vmatpush.bf16.msra.mxu0 %v4240
    %9845 = vmatpush.bf16.msra.mxu0 %v4237
    %9846 = vmatpush.bf16.msra.mxu0 %v4234
    %9847 = vmatpush.bf16.msra.mxu0 %v4231
    %9848 = vmatpush.bf16.msra.mxu0 %v4228
    %9849 = vmatmul.bf16.gmra.mxu0 %v9048
    %v9850 = vpop.f32.mrf.mxu0
    %v9851 = vadd.f32 %v9838, %v9850
    %v9852 = vpop.f32.mrf.mxu0
    %9853 = vdwg.mxu0
    %9854 = vmatpush.bf16.msra.mxu0 %v4273
    %9855 = vmatpush.bf16.msra.mxu0 %v4270
    %9856 = vmatpush.bf16.msra.mxu0 %v4267
    %9857 = vmatpush.bf16.msra.mxu0 %v4264
    %9858 = vmatpush.bf16.msra.mxu0 %v4261
    %9859 = vmatpush.bf16.msra.mxu0 %v4258
    %9860 = vmatpush.bf16.msra.mxu0 %v4255
    %9861 = vmatpush.bf16.msra.mxu0 %v4252
    %9862 = vmatmul.bf16.gmra.mxu0 %v9049
    %v9863 = vpop.f32.mrf.mxu0
    %v9864 = vadd.f32 %v9851, %v9863
    %v9865 = vpop.f32.mrf.mxu0
    %9866 = vdwg.mxu0
    %9867 = vmatpush.bf16.msra.mxu0 %v4297
    %9868 = vmatpush.bf16.msra.mxu0 %v4294
    %9869 = vmatpush.bf16.msra.mxu0 %v4291
    %9870 = vmatpush.bf16.msra.mxu0 %v4288
    %9871 = vmatpush.bf16.msra.mxu0 %v4285
    %9872 = vmatpush.bf16.msra.mxu0 %v4282
    %9873 = vmatpush.bf16.msra.mxu0 %v4279
    %9874 = vmatpush.bf16.msra.mxu0 %v4276
    %9875 = vmatmul.bf16.gmra.mxu0 %v9050
    %v9876 = vpop.f32.mrf.mxu0
    %v9877 = vadd.f32 %v9864, %v9876
    %v9878 = vpop.f32.mrf.mxu0
    %9879 = vdwg.mxu0
    %9880 = vmatpush.bf16.msra.mxu0 %v4321
    %9881 = vmatpush.bf16.msra.mxu0 %v4318
    %9882 = vmatpush.bf16.msra.mxu0 %v4315
    %9883 = vmatpush.bf16.msra.mxu0 %v4312
    %9884 = vmatpush.bf16.msra.mxu0 %v4309
    %9885 = vmatpush.bf16.msra.mxu0 %v4306
    %9886 = vmatpush.bf16.msra.mxu0 %v4303
    %9887 = vmatpush.bf16.msra.mxu0 %v4300
    %9888 = vmatmul.bf16.gmra.mxu0 %v9051
    %v9889 = vpop.f32.mrf.mxu0
    %v9890 = vadd.f32 %v9877, %v9889
    %v9891 = vpop.f32.mrf.mxu0
    %9892 = vdwg.mxu0
    %9893 = vmatpush.bf16.msra.mxu0 %v4345
    %9894 = vmatpush.bf16.msra.mxu0 %v4342
    %9895 = vmatpush.bf16.msra.mxu0 %v4339
    %9896 = vmatpush.bf16.msra.mxu0 %v4336
    %9897 = vmatpush.bf16.msra.mxu0 %v4333
    %9898 = vmatpush.bf16.msra.mxu0 %v4330
    %9899 = vmatpush.bf16.msra.mxu0 %v4327
    %9900 = vmatpush.bf16.msra.mxu0 %v4324
    %9901 = vmatmul.bf16.gmra.mxu0 %v9052
    %v9902 = vpop.f32.mrf.mxu0
    %v9903 = vadd.f32 %v9890, %v9902
    %v9904 = vpop.f32.mrf.mxu0
    %9905 = vdwg.mxu0
    %9906 = vmatpush.bf16.msra.mxu0 0
    %9907 = vmatpush.bf16.msra.mxu0 0
    %9908 = vmatpush.bf16.msra.mxu0 0
    %9909 = vmatpush.bf16.msra.mxu0 0
    %9910 = vmatpush.bf16.msra.mxu0 0
    %9911 = vmatpush.bf16.msra.mxu0 0
    %9912 = vmatpush.bf16.msra.mxu0 %v4351
    %9913 = vmatpush.bf16.msra.mxu0 %v4348
    %9914 = vmatmul.bf16.gmra.mxu0 %v9085
    %v9915 = vpop.f32.mrf.mxu0
    %v9916 = vadd.f32 %v9903, %v9915
    %v9917 = vpop.f32.mrf.mxu0
    %9918 = vdwg.mxu0
    %9919 = vmatpush.bf16.msra.mxu0 %v3626
    %9920 = vmatpush.bf16.msra.mxu0 %v3623
    %9921 = vmatpush.bf16.msra.mxu0 %v3620
    %9922 = vmatpush.bf16.msra.mxu0 %v3617
    %9923 = vmatpush.bf16.msra.mxu0 %v3614
    %9924 = vmatpush.bf16.msra.mxu0 %v3611
    %9925 = vmatpush.bf16.msra.mxu0 %v3608
    %9926 = vmatpush.bf16.msra.mxu0 %v3605
    %9927 = vmatmul.bf16.gmra.mxu0 %v9016
    %v9928 = vpop.f32.mrf.mxu0
    %v9929 = vadd.f32 0.0, %v9928
    %v9930 = vpop.f32.mrf.mxu0
    %9931 = vdwg.mxu0
    %9932 = vmatpush.bf16.msra.mxu0 %v3650
    %9933 = vmatpush.bf16.msra.mxu0 %v3647
    %9934 = vmatpush.bf16.msra.mxu0 %v3644
    %9935 = vmatpush.bf16.msra.mxu0 %v3641
    %9936 = vmatpush.bf16.msra.mxu0 %v3638
    %9937 = vmatpush.bf16.msra.mxu0 %v3635
    %9938 = vmatpush.bf16.msra.mxu0 %v3632
    %9939 = vmatpush.bf16.msra.mxu0 %v3629
    %9940 = vmatmul.bf16.gmra.mxu0 %v9017
    %v9941 = vpop.f32.mrf.mxu0
    %v9942 = vadd.f32 %v9929, %v9941
    %v9943 = vpop.f32.mrf.mxu0
    %9944 = vdwg.mxu0
    %9945 = vmatpush.bf16.msra.mxu0 %v3674
    %9946 = vmatpush.bf16.msra.mxu0 %v3671
    %9947 = vmatpush.bf16.msra.mxu0 %v3668
    %9948 = vmatpush.bf16.msra.mxu0 %v3665
    %9949 = vmatpush.bf16.msra.mxu0 %v3662
    %9950 = vmatpush.bf16.msra.mxu0 %v3659
    %9951 = vmatpush.bf16.msra.mxu0 %v3656
    %9952 = vmatpush.bf16.msra.mxu0 %v3653
    %9953 = vmatmul.bf16.gmra.mxu0 %v9018
    %v9954 = vpop.f32.mrf.mxu0
    %v9955 = vadd.f32 %v9942, %v9954
    %v9956 = vpop.f32.mrf.mxu0
    %9957 = vdwg.mxu0
    %9958 = vmatpush.bf16.msra.mxu0 %v3698
    %9959 = vmatpush.bf16.msra.mxu0 %v3695
    %9960 = vmatpush.bf16.msra.mxu0 %v3692
    %9961 = vmatpush.bf16.msra.mxu0 %v3689
    %9962 = vmatpush.bf16.msra.mxu0 %v3686
    %9963 = vmatpush.bf16.msra.mxu0 %v3683
    %9964 = vmatpush.bf16.msra.mxu0 %v3680
    %9965 = vmatpush.bf16.msra.mxu0 %v3677
    %9966 = vmatmul.bf16.gmra.mxu0 %v9019
    %v9967 = vpop.f32.mrf.mxu0
    %v9968 = vadd.f32 %v9955, %v9967
    %v9969 = vpop.f32.mrf.mxu0
    %9970 = vdwg.mxu0
    %9971 = vmatpush.bf16.msra.mxu0 %v3722
    %9972 = vmatpush.bf16.msra.mxu0 %v3719
    %9973 = vmatpush.bf16.msra.mxu0 %v3716
    %9974 = vmatpush.bf16.msra.mxu0 %v3713
    %9975 = vmatpush.bf16.msra.mxu0 %v3710
    %9976 = vmatpush.bf16.msra.mxu0 %v3707
    %9977 = vmatpush.bf16.msra.mxu0 %v3704
    %9978 = vmatpush.bf16.msra.mxu0 %v3701
    %9979 = vmatmul.bf16.gmra.mxu0 %v9020
    %v9980 = vpop.f32.mrf.mxu0
    %v9981 = vadd.f32 %v9968, %v9980
    %v9982 = vpop.f32.mrf.mxu0
    %9983 = vdwg.mxu0
    %9984 = vmatpush.bf16.msra.mxu0 %v3746
    %9985 = vmatpush.bf16.msra.mxu0 %v3743
    %9986 = vmatpush.bf16.msra.mxu0 %v3740
    %9987 = vmatpush.bf16.msra.mxu0 %v3737
    %9988 = vmatpush.bf16.msra.mxu0 %v3734
    %9989 = vmatpush.bf16.msra.mxu0 %v3731
    %9990 = vmatpush.bf16.msra.mxu0 %v3728
    %9991 = vmatpush.bf16.msra.mxu0 %v3725
    %9992 = vmatmul.bf16.gmra.mxu0 %v9021
    %v9993 = vpop.f32.mrf.mxu0
    %v9994 = vadd.f32 %v9981, %v9993
    %v9995 = vpop.f32.mrf.mxu0
    %9996 = vdwg.mxu0
    %9997 = vmatpush.bf16.msra.mxu0 %v3770
    %9998 = vmatpush.bf16.msra.mxu0 %v3767
    %9999 = vmatpush.bf16.msra.mxu0 %v3764
    %10000 = vmatpush.bf16.msra.mxu0 %v3761
    %10001 = vmatpush.bf16.msra.mxu0 %v3758
    %10002 = vmatpush.bf16.msra.mxu0 %v3755
    %10003 = vmatpush.bf16.msra.mxu0 %v3752
    %10004 = vmatpush.bf16.msra.mxu0 %v3749
    %10005 = vmatmul.bf16.gmra.mxu0 %v9022
    %v10006 = vpop.f32.mrf.mxu0
    %v10007 = vadd.f32 %v9994, %v10006
    %v10008 = vpop.f32.mrf.mxu0
    %10009 = vdwg.mxu0
    %10010 = vmatpush.bf16.msra.mxu0 %v3794
    %10011 = vmatpush.bf16.msra.mxu0 %v3791
    %10012 = vmatpush.bf16.msra.mxu0 %v3788
    %10013 = vmatpush.bf16.msra.mxu0 %v3785
    %10014 = vmatpush.bf16.msra.mxu0 %v3782
    %10015 = vmatpush.bf16.msra.mxu0 %v3779
    %10016 = vmatpush.bf16.msra.mxu0 %v3776
    %10017 = vmatpush.bf16.msra.mxu0 %v3773
    %10018 = vmatmul.bf16.gmra.mxu0 %v9023
    %v10019 = vpop.f32.mrf.mxu0
    %v10020 = vadd.f32 %v10007, %v10019
    %v10021 = vpop.f32.mrf.mxu0
    %10022 = vdwg.mxu0
    %10023 = vmatpush.bf16.msra.mxu0 %v3818
    %10024 = vmatpush.bf16.msra.mxu0 %v3815
    %10025 = vmatpush.bf16.msra.mxu0 %v3812
    %10026 = vmatpush.bf16.msra.mxu0 %v3809
    %10027 = vmatpush.bf16.msra.mxu0 %v3806
    %10028 = vmatpush.bf16.msra.mxu0 %v3803
    %10029 = vmatpush.bf16.msra.mxu0 %v3800
    %10030 = vmatpush.bf16.msra.mxu0 %v3797
    %10031 = vmatmul.bf16.gmra.mxu0 %v9026
    %v10032 = vpop.f32.mrf.mxu0
    %v10033 = vadd.f32 %v10020, %v10032
    %v10034 = vpop.f32.mrf.mxu0
    %10035 = vdwg.mxu0
    %10036 = vmatpush.bf16.msra.mxu0 %v3842
    %10037 = vmatpush.bf16.msra.mxu0 %v3839
    %10038 = vmatpush.bf16.msra.mxu0 %v3836
    %10039 = vmatpush.bf16.msra.mxu0 %v3833
    %10040 = vmatpush.bf16.msra.mxu0 %v3830
    %10041 = vmatpush.bf16.msra.mxu0 %v3827
    %10042 = vmatpush.bf16.msra.mxu0 %v3824
    %10043 = vmatpush.bf16.msra.mxu0 %v3821
    %10044 = vmatmul.bf16.gmra.mxu0 %v9027
    %v10045 = vpop.f32.mrf.mxu0
    %v10046 = vadd.f32 %v10033, %v10045
    %v10047 = vpop.f32.mrf.mxu0
    %10048 = vdwg.mxu0
    %10049 = vmatpush.bf16.msra.mxu0 %v3866
    %10050 = vmatpush.bf16.msra.mxu0 %v3863
    %10051 = vmatpush.bf16.msra.mxu0 %v3860
    %10052 = vmatpush.bf16.msra.mxu0 %v3857
    %10053 = vmatpush.bf16.msra.mxu0 %v3854
    %10054 = vmatpush.bf16.msra.mxu0 %v3851
    %10055 = vmatpush.bf16.msra.mxu0 %v3848
    %10056 = vmatpush.bf16.msra.mxu0 %v3845
    %10057 = vmatmul.bf16.gmra.mxu0 %v9028
    %v10058 = vpop.f32.mrf.mxu0
    %v10059 = vadd.f32 %v10046, %v10058
    %v10060 = vpop.f32.mrf.mxu0
    %10061 = vdwg.mxu0
    %10062 = vmatpush.bf16.msra.mxu0 %v3890
    %10063 = vmatpush.bf16.msra.mxu0 %v3887
    %10064 = vmatpush.bf16.msra.mxu0 %v3884
    %10065 = vmatpush.bf16.msra.mxu0 %v3881
    %10066 = vmatpush.bf16.msra.mxu0 %v3878
    %10067 = vmatpush.bf16.msra.mxu0 %v3875
    %10068 = vmatpush.bf16.msra.mxu0 %v3872
    %10069 = vmatpush.bf16.msra.mxu0 %v3869
    %10070 = vmatmul.bf16.gmra.mxu0 %v9029
    %v10071 = vpop.f32.mrf.mxu0
    %v10072 = vadd.f32 %v10059, %v10071
    %v10073 = vpop.f32.mrf.mxu0
    %10074 = vdwg.mxu0
    %10075 = vmatpush.bf16.msra.mxu0 %v3914
    %10076 = vmatpush.bf16.msra.mxu0 %v3911
    %10077 = vmatpush.bf16.msra.mxu0 %v3908
    %10078 = vmatpush.bf16.msra.mxu0 %v3905
    %10079 = vmatpush.bf16.msra.mxu0 %v3902
    %10080 = vmatpush.bf16.msra.mxu0 %v3899
    %10081 = vmatpush.bf16.msra.mxu0 %v3896
    %10082 = vmatpush.bf16.msra.mxu0 %v3893
    %10083 = vmatmul.bf16.gmra.mxu0 %v9030
    %v10084 = vpop.f32.mrf.mxu0
    %v10085 = vadd.f32 %v10072, %v10084
    %v10086 = vpop.f32.mrf.mxu0
    %10087 = vdwg.mxu0
    %10088 = vmatpush.bf16.msra.mxu0 %v3938
    %10089 = vmatpush.bf16.msra.mxu0 %v3935
    %10090 = vmatpush.bf16.msra.mxu0 %v3932
    %10091 = vmatpush.bf16.msra.mxu0 %v3929
    %10092 = vmatpush.bf16.msra.mxu0 %v3926
    %10093 = vmatpush.bf16.msra.mxu0 %v3923
    %10094 = vmatpush.bf16.msra.mxu0 %v3920
    %10095 = vmatpush.bf16.msra.mxu0 %v3917
    %10096 = vmatmul.bf16.gmra.mxu0 %v9031
    %v10097 = vpop.f32.mrf.mxu0
    %v10098 = vadd.f32 %v10085, %v10097
    %v10099 = vpop.f32.mrf.mxu0
    %10100 = vdwg.mxu0
    %10101 = vmatpush.bf16.msra.mxu0 %v3962
    %10102 = vmatpush.bf16.msra.mxu0 %v3959
    %10103 = vmatpush.bf16.msra.mxu0 %v3956
    %10104 = vmatpush.bf16.msra.mxu0 %v3953
    %10105 = vmatpush.bf16.msra.mxu0 %v3950
    %10106 = vmatpush.bf16.msra.mxu0 %v3947
    %10107 = vmatpush.bf16.msra.mxu0 %v3944
    %10108 = vmatpush.bf16.msra.mxu0 %v3941
    %10109 = vmatmul.bf16.gmra.mxu0 %v9032
    %v10110 = vpop.f32.mrf.mxu0
    %v10111 = vadd.f32 %v10098, %v10110
    %v10112 = vpop.f32.mrf.mxu0
    %10113 = vdwg.mxu0
    %10114 = vmatpush.bf16.msra.mxu0 %v3986
    %10115 = vmatpush.bf16.msra.mxu0 %v3983
    %10116 = vmatpush.bf16.msra.mxu0 %v3980
    %10117 = vmatpush.bf16.msra.mxu0 %v3977
    %10118 = vmatpush.bf16.msra.mxu0 %v3974
    %10119 = vmatpush.bf16.msra.mxu0 %v3971
    %10120 = vmatpush.bf16.msra.mxu0 %v3968
    %10121 = vmatpush.bf16.msra.mxu0 %v3965
    %10122 = vmatmul.bf16.gmra.mxu0 %v9033
    %v10123 = vpop.f32.mrf.mxu0
    %v10124 = vadd.f32 %v10111, %v10123
    %v10125 = vpop.f32.mrf.mxu0
    %10126 = vdwg.mxu0
    %10127 = vmatpush.bf16.msra.mxu0 %v4010
    %10128 = vmatpush.bf16.msra.mxu0 %v4007
    %10129 = vmatpush.bf16.msra.mxu0 %v4004
    %10130 = vmatpush.bf16.msra.mxu0 %v4001
    %10131 = vmatpush.bf16.msra.mxu0 %v3998
    %10132 = vmatpush.bf16.msra.mxu0 %v3995
    %10133 = vmatpush.bf16.msra.mxu0 %v3992
    %10134 = vmatpush.bf16.msra.mxu0 %v3989
    %10135 = vmatmul.bf16.gmra.mxu0 %v9036
    %v10136 = vpop.f32.mrf.mxu0
    %v10137 = vadd.f32 %v10124, %v10136
    %v10138 = vpop.f32.mrf.mxu0
    %10139 = vdwg.mxu0
    %10140 = vmatpush.bf16.msra.mxu0 %v4034
    %10141 = vmatpush.bf16.msra.mxu0 %v4031
    %10142 = vmatpush.bf16.msra.mxu0 %v4028
    %10143 = vmatpush.bf16.msra.mxu0 %v4025
    %10144 = vmatpush.bf16.msra.mxu0 %v4022
    %10145 = vmatpush.bf16.msra.mxu0 %v4019
    %10146 = vmatpush.bf16.msra.mxu0 %v4016
    %10147 = vmatpush.bf16.msra.mxu0 %v4013
    %10148 = vmatmul.bf16.gmra.mxu0 %v9037
    %v10149 = vpop.f32.mrf.mxu0
    %v10150 = vadd.f32 %v10137, %v10149
    %v10151 = vpop.f32.mrf.mxu0
    %10152 = vdwg.mxu0
    %10153 = vmatpush.bf16.msra.mxu0 %v4058
    %10154 = vmatpush.bf16.msra.mxu0 %v4055
    %10155 = vmatpush.bf16.msra.mxu0 %v4052
    %10156 = vmatpush.bf16.msra.mxu0 %v4049
    %10157 = vmatpush.bf16.msra.mxu0 %v4046
    %10158 = vmatpush.bf16.msra.mxu0 %v4043
    %10159 = vmatpush.bf16.msra.mxu0 %v4040
    %10160 = vmatpush.bf16.msra.mxu0 %v4037
    %10161 = vmatmul.bf16.gmra.mxu0 %v9038
    %v10162 = vpop.f32.mrf.mxu0
    %v10163 = vadd.f32 %v10150, %v10162
    %v10164 = vpop.f32.mrf.mxu0
    %10165 = vdwg.mxu0
    %10166 = vmatpush.bf16.msra.mxu0 %v4082
    %10167 = vmatpush.bf16.msra.mxu0 %v4079
    %10168 = vmatpush.bf16.msra.mxu0 %v4076
    %10169 = vmatpush.bf16.msra.mxu0 %v4073
    %10170 = vmatpush.bf16.msra.mxu0 %v4070
    %10171 = vmatpush.bf16.msra.mxu0 %v4067
    %10172 = vmatpush.bf16.msra.mxu0 %v4064
    %10173 = vmatpush.bf16.msra.mxu0 %v4061
    %10174 = vmatmul.bf16.gmra.mxu0 %v9039
    %v10175 = vpop.f32.mrf.mxu0
    %v10176 = vadd.f32 %v10163, %v10175
    %v10177 = vpop.f32.mrf.mxu0
    %10178 = vdwg.mxu0
    %10179 = vmatpush.bf16.msra.mxu0 %v4106
    %10180 = vmatpush.bf16.msra.mxu0 %v4103
    %10181 = vmatpush.bf16.msra.mxu0 %v4100
    %10182 = vmatpush.bf16.msra.mxu0 %v4097
    %10183 = vmatpush.bf16.msra.mxu0 %v4094
    %10184 = vmatpush.bf16.msra.mxu0 %v4091
    %10185 = vmatpush.bf16.msra.mxu0 %v4088
    %10186 = vmatpush.bf16.msra.mxu0 %v4085
    %10187 = vmatmul.bf16.gmra.mxu0 %v9040
    %v10188 = vpop.f32.mrf.mxu0
    %v10189 = vadd.f32 %v10176, %v10188
    %v10190 = vpop.f32.mrf.mxu0
    %10191 = vdwg.mxu0
    %10192 = vmatpush.bf16.msra.mxu0 %v4130
    %10193 = vmatpush.bf16.msra.mxu0 %v4127
    %10194 = vmatpush.bf16.msra.mxu0 %v4124
    %10195 = vmatpush.bf16.msra.mxu0 %v4121
    %10196 = vmatpush.bf16.msra.mxu0 %v4118
    %10197 = vmatpush.bf16.msra.mxu0 %v4115
    %10198 = vmatpush.bf16.msra.mxu0 %v4112
    %10199 = vmatpush.bf16.msra.mxu0 %v4109
    %10200 = vmatmul.bf16.gmra.mxu0 %v9041
    %v10201 = vpop.f32.mrf.mxu0
    %v10202 = vadd.f32 %v10189, %v10201
    %v10203 = vpop.f32.mrf.mxu0
    %10204 = vdwg.mxu0
    %10205 = vmatpush.bf16.msra.mxu0 %v4154
    %10206 = vmatpush.bf16.msra.mxu0 %v4151
    %10207 = vmatpush.bf16.msra.mxu0 %v4148
    %10208 = vmatpush.bf16.msra.mxu0 %v4145
    %10209 = vmatpush.bf16.msra.mxu0 %v4142
    %10210 = vmatpush.bf16.msra.mxu0 %v4139
    %10211 = vmatpush.bf16.msra.mxu0 %v4136
    %10212 = vmatpush.bf16.msra.mxu0 %v4133
    %10213 = vmatmul.bf16.gmra.mxu0 %v9042
    %v10214 = vpop.f32.mrf.mxu0
    %v10215 = vadd.f32 %v10202, %v10214
    %v10216 = vpop.f32.mrf.mxu0
    %10217 = vdwg.mxu0
    %10218 = vmatpush.bf16.msra.mxu0 %v4178
    %10219 = vmatpush.bf16.msra.mxu0 %v4175
    %10220 = vmatpush.bf16.msra.mxu0 %v4172
    %10221 = vmatpush.bf16.msra.mxu0 %v4169
    %10222 = vmatpush.bf16.msra.mxu0 %v4166
    %10223 = vmatpush.bf16.msra.mxu0 %v4163
    %10224 = vmatpush.bf16.msra.mxu0 %v4160
    %10225 = vmatpush.bf16.msra.mxu0 %v4157
    %10226 = vmatmul.bf16.gmra.mxu0 %v9043
    %v10227 = vpop.f32.mrf.mxu0
    %v10228 = vadd.f32 %v10215, %v10227
    %v10229 = vpop.f32.mrf.mxu0
    %10230 = vdwg.mxu0
    %10231 = vmatpush.bf16.msra.mxu0 %v4202
    %10232 = vmatpush.bf16.msra.mxu0 %v4199
    %10233 = vmatpush.bf16.msra.mxu0 %v4196
    %10234 = vmatpush.bf16.msra.mxu0 %v4193
    %10235 = vmatpush.bf16.msra.mxu0 %v4190
    %10236 = vmatpush.bf16.msra.mxu0 %v4187
    %10237 = vmatpush.bf16.msra.mxu0 %v4184
    %10238 = vmatpush.bf16.msra.mxu0 %v4181
    %10239 = vmatmul.bf16.gmra.mxu0 %v9046
    %v10240 = vpop.f32.mrf.mxu0
    %v10241 = vadd.f32 %v10228, %v10240
    %v10242 = vpop.f32.mrf.mxu0
    %10243 = vdwg.mxu0
    %10244 = vmatpush.bf16.msra.mxu0 %v4226
    %10245 = vmatpush.bf16.msra.mxu0 %v4223
    %10246 = vmatpush.bf16.msra.mxu0 %v4220
    %10247 = vmatpush.bf16.msra.mxu0 %v4217
    %10248 = vmatpush.bf16.msra.mxu0 %v4214
    %10249 = vmatpush.bf16.msra.mxu0 %v4211
    %10250 = vmatpush.bf16.msra.mxu0 %v4208
    %10251 = vmatpush.bf16.msra.mxu0 %v4205
    %10252 = vmatmul.bf16.gmra.mxu0 %v9047
    %v10253 = vpop.f32.mrf.mxu0
    %v10254 = vadd.f32 %v10241, %v10253
    %v10255 = vpop.f32.mrf.mxu0
    %10256 = vdwg.mxu0
    %10257 = vmatpush.bf16.msra.mxu0 %v4250
    %10258 = vmatpush.bf16.msra.mxu0 %v4247
    %10259 = vmatpush.bf16.msra.mxu0 %v4244
    %10260 = vmatpush.bf16.msra.mxu0 %v4241
    %10261 = vmatpush.bf16.msra.mxu0 %v4238
    %10262 = vmatpush.bf16.msra.mxu0 %v4235
    %10263 = vmatpush.bf16.msra.mxu0 %v4232
    %10264 = vmatpush.bf16.msra.mxu0 %v4229
    %10265 = vmatmul.bf16.gmra.mxu0 %v9048
    %v10266 = vpop.f32.mrf.mxu0
    %v10267 = vadd.f32 %v10254, %v10266
    %v10268 = vpop.f32.mrf.mxu0
    %10269 = vdwg.mxu0
    %10270 = vmatpush.bf16.msra.mxu0 %v4274
    %10271 = vmatpush.bf16.msra.mxu0 %v4271
    %10272 = vmatpush.bf16.msra.mxu0 %v4268
    %10273 = vmatpush.bf16.msra.mxu0 %v4265
    %10274 = vmatpush.bf16.msra.mxu0 %v4262
    %10275 = vmatpush.bf16.msra.mxu0 %v4259
    %10276 = vmatpush.bf16.msra.mxu0 %v4256
    %10277 = vmatpush.bf16.msra.mxu0 %v4253
    %10278 = vmatmul.bf16.gmra.mxu0 %v9049
    %v10279 = vpop.f32.mrf.mxu0
    %v10280 = vadd.f32 %v10267, %v10279
    %v10281 = vpop.f32.mrf.mxu0
    %10282 = vdwg.mxu0
    %10283 = vmatpush.bf16.msra.mxu0 %v4298
    %10284 = vmatpush.bf16.msra.mxu0 %v4295
    %10285 = vmatpush.bf16.msra.mxu0 %v4292
    %10286 = vmatpush.bf16.msra.mxu0 %v4289
    %10287 = vmatpush.bf16.msra.mxu0 %v4286
    %10288 = vmatpush.bf16.msra.mxu0 %v4283
    %10289 = vmatpush.bf16.msra.mxu0 %v4280
    %10290 = vmatpush.bf16.msra.mxu0 %v4277
    %10291 = vmatmul.bf16.gmra.mxu0 %v9050
    %v10292 = vpop.f32.mrf.mxu0
    %v10293 = vadd.f32 %v10280, %v10292
    %v10294 = vpop.f32.mrf.mxu0
    %10295 = vdwg.mxu0
    %10296 = vmatpush.bf16.msra.mxu0 %v4322
    %10297 = vmatpush.bf16.msra.mxu0 %v4319
    %10298 = vmatpush.bf16.msra.mxu0 %v4316
    %10299 = vmatpush.bf16.msra.mxu0 %v4313
    %10300 = vmatpush.bf16.msra.mxu0 %v4310
    %10301 = vmatpush.bf16.msra.mxu0 %v4307
    %10302 = vmatpush.bf16.msra.mxu0 %v4304
    %10303 = vmatpush.bf16.msra.mxu0 %v4301
    %10304 = vmatmul.bf16.gmra.mxu0 %v9051
    %v10305 = vpop.f32.mrf.mxu0
    %v10306 = vadd.f32 %v10293, %v10305
    %v10307 = vpop.f32.mrf.mxu0
    %10308 = vdwg.mxu0
    %10309 = vmatpush.bf16.msra.mxu0 %v4346
    %10310 = vmatpush.bf16.msra.mxu0 %v4343
    %10311 = vmatpush.bf16.msra.mxu0 %v4340
    %10312 = vmatpush.bf16.msra.mxu0 %v4337
    %10313 = vmatpush.bf16.msra.mxu0 %v4334
    %10314 = vmatpush.bf16.msra.mxu0 %v4331
    %10315 = vmatpush.bf16.msra.mxu0 %v4328
    %10316 = vmatpush.bf16.msra.mxu0 %v4325
    %10317 = vmatmul.bf16.gmra.mxu0 %v9052
    %v10318 = vpop.f32.mrf.mxu0
    %v10319 = vadd.f32 %v10306, %v10318
    %v10320 = vpop.f32.mrf.mxu0
    %10321 = vdwg.mxu0
    %10322 = vmatpush.bf16.msra.mxu0 0
    %10323 = vmatpush.bf16.msra.mxu0 0
    %10324 = vmatpush.bf16.msra.mxu0 0
    %10325 = vmatpush.bf16.msra.mxu0 0
    %10326 = vmatpush.bf16.msra.mxu0 0
    %10327 = vmatpush.bf16.msra.mxu0 0
    %10328 = vmatpush.bf16.msra.mxu0 %v4352
    %10329 = vmatpush.bf16.msra.mxu0 %v4349
    %10330 = vmatmul.bf16.gmra.mxu0 %v9085
    %v10331 = vpop.f32.mrf.mxu0
    %v10332 = vadd.f32 %v10319, %v10331
    %v10333 = vpop.f32.mrf.mxu0
    %10334 = vdwg.mxu0
    %v10335 = vmax.f32 %v8174, %v9500
    %v10336 = vmax.f32 %v8590, %v9916
    %v10337 = vmax.f32 %v9006, %v10332
    %v10338 = vmax.f32 %v7680, %v10335
    %v10339 = vmax.f32 %v7681, %v10336
    %v10340 = vmax.f32 %v7682, %v10337
    %v10341 = vld [vmem:[%s2] sm:$0x7]
    %v10343 = vperm.slane %v10341, 0
    %v10344 = vperm.slane %v10341, 1
    %v10345 = vperm.slane %v10341, 2
    %v10349 = vadd.f32 %v10338, %v10343
    %v10350 = vadd.f32 %v10339, %v10344
    %v10351 = vadd.f32 %v10340, %v10345
    %v10352 = vmax.f32 %v10349, 0.0
    %v10353 = vmax.f32 %v10350, 0.0
    %v10354 = vmax.f32 %v10351, 0.0
    %v10355 = vpack.c.bf16 %v10352, %v10352
    %v10356 = vpack.c.bf16 %v10353, %v10353
    %v10357 = vpack.c.bf16 %v10354, %v10354
    %v10358 = vld [vmem:[%s3] sm:$0xf]
    %v10359 = vld [vmem:[%s3 + $0x4] sm:$0xf]
    %v10360 = vld [vmem:[%s3 + $0x8] sm:$0xf]
    %v10361 = vld [vmem:[%s3 + $0xc] sm:$0xf]
    %v10362 = vld [vmem:[%s3 + $0x10] sm:$0xf]
    %v10363 = vld [vmem:[%s3 + $0x14] sm:$0xf]
    %v10364 = vld [vmem:[%s3 + $0x18] sm:$0xf]
    %v10365 = vld [vmem:[%s3 + $0x1c] sm:$0xf]
    %v10366 = vld [vmem:[%s3 + $0x20] sm:$0xf]
    %v10367 = vld [vmem:[%s3 + $0x24] sm:$0xf]
    %v10368 = vld [vmem:[%s3 + $0x28] sm:$0xf]
    %v10369 = vld [vmem:[%s3 + $0x2c] sm:$0xf]
    %v10370 = vld [vmem:[%s3 + $0x30] sm:$0xf]
    %v10371 = vld [vmem:[%s3 + $0x34] sm:$0xf]
    %v10372 = vld [vmem:[%s3 + $0x38] sm:$0xf]
    %v10373 = vld [vmem:[%s3 + $0x3c] sm:$0xf]
    %v10374 = vld [vmem:[%s3 + $0x40] sm:$0xf]
    %v10375 = vld [vmem:[%s3 + $0x44] sm:$0xf]
    %v10376 = vld [vmem:[%s3 + $0x48] sm:$0xf]
    %v10377 = vld [vmem:[%s3 + $0x4c] sm:$0xf]
    %v10378 = vld [vmem:[%s3 + $0x50] sm:$0xf]
    %v10379 = vld [vmem:[%s3 + $0x54] sm:$0xf]
    %v10380 = vld [vmem:[%s3 + $0x58] sm:$0xf]
    %v10381 = vld [vmem:[%s3 + $0x5c] sm:$0xf]
    %v10382 = vld [vmem:[%s3 + $0x60] sm:$0xf]
    %v10383 = vld [vmem:[%s3 + $0x64] sm:$0xf]
    %v10384 = vld [vmem:[%s3 + $0x68] sm:$0xf]
    %v10385 = vld [vmem:[%s3 + $0x6c] sm:$0xf]
    %v10386 = vld [vmem:[%s3 + $0x70] sm:$0xf]
    %v10387 = vld [vmem:[%s3 + $0x74] sm:$0xf]
    %v10388 = vld [vmem:[%s3 + $0x78] sm:$0xf]
    %v10389 = vld [vmem:[%s3 + $0x7c] sm:$0xf]
    %v10390 = vld [vmem:[%s3 + $0x80] sm:$0xf]
    %v10391 = vld [vmem:[%s3 + $0x84] sm:$0xf]
    %v10392 = vld [vmem:[%s3 + $0x88] sm:$0xf]
    %v10393 = vld [vmem:[%s3 + $0x8c] sm:$0xf]
    %v10394 = vld [vmem:[%s3 + $0x90] sm:$0xf]
    %v10395 = vld [vmem:[%s3 + $0x94] sm:$0xf]
    %v10396 = vld [vmem:[%s3 + $0x98] sm:$0xf]
    %v10397 = vld [vmem:[%s3 + $0x9c] sm:$0xf]
    %v10398 = vld [vmem:[%s4] sm:$0x1]
    %v10400 = vperm.slane %v10398, 0
    %v10442 = vunpack.c.l.b16 %v10358
    %v10443 = vunpack.c.l.b16 %v10359
    %v10444 = vunpack.c.l.b16 %v10360
    %v10445 = vunpack.c.l.b16 %v10361
    %v10446 = vunpack.c.l.b16 %v10362
    %v10447 = vunpack.c.l.b16 %v10363
    %v10448 = vunpack.c.l.b16 %v10364
    %v10449 = vunpack.c.l.b16 %v10365
    %v10450 = vunpack.c.l.b16 %v10366
    %v10451 = vunpack.c.l.b16 %v10367
    %v10452 = vunpack.c.l.b16 %v10368
    %v10453 = vunpack.c.l.b16 %v10369
    %v10454 = vunpack.c.l.b16 %v10370
    %v10455 = vunpack.c.l.b16 %v10371
    %v10456 = vunpack.c.l.b16 %v10372
    %v10457 = vunpack.c.l.b16 %v10373
    %v10458 = vunpack.c.l.b16 %v10374
    %v10459 = vunpack.c.l.b16 %v10375
    %v10460 = vunpack.c.l.b16 %v10376
    %v10461 = vunpack.c.l.b16 %v10377
    %v10462 = vunpack.c.l.b16 %v10378
    %v10463 = vunpack.c.l.b16 %v10379
    %v10464 = vunpack.c.l.b16 %v10380
    %v10465 = vunpack.c.l.b16 %v10381
    %v10466 = vunpack.c.l.b16 %v10382
    %v10467 = vunpack.c.l.b16 %v10383
    %v10468 = vunpack.c.l.b16 %v10384
    %v10469 = vunpack.c.l.b16 %v10385
    %v10470 = vunpack.c.l.b16 %v10386
    %v10471 = vunpack.c.l.b16 %v10387
    %v10472 = vunpack.c.l.b16 %v10388
    %v10473 = vunpack.c.l.b16 %v10389
    %v10474 = vunpack.c.l.b16 %v10390
    %v10475 = vunpack.c.l.b16 %v10391
    %v10476 = vunpack.c.l.b16 %v10392
    %v10477 = vunpack.c.l.b16 %v10393
    %v10478 = vunpack.c.l.b16 %v10394
    %v10479 = vunpack.c.l.b16 %v10395
    %v10480 = vunpack.c.l.b16 %v10396
    %v10481 = vunpack.c.l.b16 %v10397
    %v10482 = vpack.c.b16 %v10443, %v10442
    %v10483 = vpack.c.b16 %v10445, %v10444
    %v10484 = vpack.c.b16 %v10447, %v10446
    %v10485 = vpack.c.b16 %v10449, %v10448
    %v10486 = vpack.c.b16 %v10451, %v10450
    %v10487 = vpack.c.b16 %v10453, %v10452
    %v10488 = vpack.c.b16 %v10455, %v10454
    %v10489 = vpack.c.b16 %v10457, %v10456
    %v10490 = vpack.c.b16 %v10459, %v10458
    %v10491 = vpack.c.b16 %v10461, %v10460
    %v10492 = vpack.c.b16 %v10463, %v10462
    %v10493 = vpack.c.b16 %v10465, %v10464
    %v10494 = vpack.c.b16 %v10467, %v10466
    %v10495 = vpack.c.b16 %v10469, %v10468
    %v10496 = vpack.c.b16 %v10471, %v10470
    %v10497 = vpack.c.b16 %v10473, %v10472
    %v10498 = vpack.c.b16 %v10475, %v10474
    %v10499 = vpack.c.b16 %v10477, %v10476
    %v10500 = vpack.c.b16 %v10479, %v10478
    %v10501 = vpack.c.b16 %v10481, %v10480
    %vm10522 = vcmask 523264
    %v10524 = vsel %vm10522, %v10357, 0
    %10526 = vmatpush.bf16.msra.mxu0 %v10489
    %10527 = vmatpush.bf16.msra.mxu0 %v10488
    %10528 = vmatpush.bf16.msra.mxu0 %v10487
    %10529 = vmatpush.bf16.msra.mxu0 %v10486
    %10530 = vmatpush.bf16.msra.mxu0 %v10485
    %10531 = vmatpush.bf16.msra.mxu0 %v10484
    %10532 = vmatpush.bf16.msra.mxu0 %v10483
    %10533 = vmatpush.bf16.msra.mxu0 %v10482
    %10534 = vmatmul.bf16.gmra.mxu0 %v10355
    %v10535 = vpop.f32.mrf.mxu0
    %v10536 = vadd.f32 %v10400, %v10535
    %v10537 = vpop.f32.mrf.mxu0
    %10538 = vdwg.mxu0
    %10539 = vmatpush.bf16.msra.mxu0 %v10497
    %10540 = vmatpush.bf16.msra.mxu0 %v10496
    %10541 = vmatpush.bf16.msra.mxu0 %v10495
    %10542 = vmatpush.bf16.msra.mxu0 %v10494
    %10543 = vmatpush.bf16.msra.mxu0 %v10493
    %10544 = vmatpush.bf16.msra.mxu0 %v10492
    %10545 = vmatpush.bf16.msra.mxu0 %v10491
    %10546 = vmatpush.bf16.msra.mxu0 %v10490
    %10547 = vmatmul.bf16.gmra.mxu0 %v10356
    %v10548 = vpop.f32.mrf.mxu0
    %v10549 = vadd.f32 %v10536, %v10548
    %v10550 = vpop.f32.mrf.mxu0
    %10551 = vdwg.mxu0
    %10552 = vmatpush.bf16.msra.mxu0 0
    %10553 = vmatpush.bf16.msra.mxu0 0
    %10554 = vmatpush.bf16.msra.mxu0 0
    %10555 = vmatpush.bf16.msra.mxu0 0
    %10556 = vmatpush.bf16.msra.mxu0 %v10501
    %10557 = vmatpush.bf16.msra.mxu0 %v10500
    %10558 = vmatpush.bf16.msra.mxu0 %v10499
    %10559 = vmatpush.bf16.msra.mxu0 %v10498
    %10560 = vmatmul.bf16.gmra.mxu0 %v10524
    %v10561 = vpop.f32.mrf.mxu0
    %v10562 = vadd.f32 %v10549, %v10561
    %v10563 = vpop.f32.mrf.mxu0
    %10564 = vdwg.mxu0
    %v10565 = vmax.f32 %v10562, 0.0
    %v10566 = vpack.c.bf16 %v10565, %v10565
    %v10567 = vld [vmem:[%s5] sm:$0xf]
    %v10568 = vld [vmem:[%s5 + $0x4] sm:$0xf]
    %v10569 = vld [vmem:[%s5 + $0x8] sm:$0xf]
    %v10570 = vld [vmem:[%s5 + $0xc] sm:$0xf]
    %v10571 = vld [vmem:[%s5 + $0x10] sm:$0xf]
    %v10572 = vld [vmem:[%s5 + $0x14] sm:$0xf]
    %v10573 = vld [vmem:[%s5 + $0x18] sm:$0x1]
    %v10574 = vld [vmem:[%s6] sm:$0x1]
    %v10576 = vperm.slane %v10574, 0
    %v10585 = vunpack.c.l.b16 %v10567
    %v10586 = vunpack.c.l.b16 %v10568
    %v10587 = vunpack.c.l.b16 %v10569
    %v10588 = vunpack.c.l.b16 %v10570
    %v10589 = vunpack.c.l.b16 %v10571
    %v10590 = vunpack.c.l.b16 %v10572
    %v10591 = vunpack.c.l.b16 %v10573
    %v10592 = vpack.c.b16 %v10586, %v10585
    %v10593 = vpack.c.b16 %v10588, %v10587
    %v10594 = vpack.c.b16 %v10590, %v10589
    %v10595 = vpack.c.b16 %v10591, %v10591
    %vm10599 = vcmask 408576
    %v10601 = vsel %vm10599, %v10566, 0
    %vm10603 = vcmask 1040384
    %v10605 = vsel %vm10603, %v10595, 0
    %10607 = vmatpush.bf16.msra.mxu0 0
    %10608 = vmatpush.bf16.msra.mxu0 0
    %10609 = vmatpush.bf16.msra.mxu0 0
    %10610 = vmatpush.bf16.msra.mxu0 0
    %10611 = vmatpush.bf16.msra.mxu0 %v10605
    %10612 = vmatpush.bf16.msra.mxu0 %v10594
    %10613 = vmatpush.bf16.msra.mxu0 %v10593
    %10614 = vmatpush.bf16.msra.mxu0 %v10592
    %10615 = vmatmul.bf16.gmra.mxu0 %v10601
    %v10616 = vpop.f32.mrf.mxu0
    %v10617 = vadd.f32 %v10576, %v10616
    %v10618 = vpop.f32.mrf.mxu0
    %10619 = vdwg.mxu0
    %vm10620 = vcmask 74752
    %v10621 = vsel %vm10620, %v10617, -inf
    %10622 = vmax.xlane.f32.xlu0 %v10621
    %v10623 = vpop.xlane.xlu0 %10622
    %v10624 = vsub.f32 %v10617, %v10623
    %v10625 = vmul.f32 %v10624, 1.442695
    %v10626 = vpow.pop %v10625
    %v10627 = vsel %vm10620, %v10626, 0.0
    %10628 = vadd.xlane.f32.xlu0 %v10627
    %v10629 = vpop.xlane.xlu0 %10628
    %v10630 = vlog2.pop %v10629
    %v10631 = vmul.f32 %v10630, 0.6931472
    %v10632 = vsub.f32 %v10624, %v10631
    %10633 = vst.msk [vmem:[#allocation2] sm:$0x3] %vm10620, %v10632
    // Predicated region
    $region30: #{net_forward.3} parent=1 // pred_check
      _
    $region31: #{net_forward.3} parent=1 // pred_check_branch
      %10635 = sbr.rel (0) target = $region33
    $region32: #{net_forward.3} parent=1 // pred_region
      %10637 = vsyncadd [#allocation3], 0
      %s10639 = sshll.u32 [#allocation2], 4
      %s10640 = int_to_ptr.vmem [resolvable:$true] %s10639
      %s10641 = sshll.u32 %s7, 4
      %s10642 = int_to_ptr.hbm [resolvable:$true] %s10641
      %10644 = dma.vmem_to_hbm [thread:$0]  %s10640, 32, %s10642, [#allocation3]
    $region33: #{net_forward.3} parent=1 // pred_fallthru
      _
    // Predicated region
    $region34: #{net_forward.3} parent=1 // pred_check
      _
    $region35: #{net_forward.3} parent=1 // pred_check_branch
      %10646 = sbr.rel (0) target = $region37
    $region36: #{net_forward.3} parent=1 // pred_region
      %10648 = dma.done [#allocation3], 32
    $region37: #{net_forward.3} parent=1 // pred_fallthru
      _
    %10649 = vsyncpa [#allocation3], 1

</llo_original>
